<compile_context>
chip_gen: v6e
topology: v6e:2x2x1
jax: 0.10.0
libtpu: 0.0.40
codegen_flags: <defaults>
</compile_context>

<pallas_src>
import jax
import jax.numpy as jnp
from jax.experimental import pallas as pl
from jax.experimental.pallas import tpu as pltpu

LANE = 128                      # TPU lane width
MXU_DTYPE = jnp.bfloat16        # matmul operand / inter-stage activation dtype
BN_EPS = 1e-5
_MAX_MATMUL_M = 4096            # diminishing returns past a few thousand M rows


def _vmem_limit_bytes():
    """Per-generation VMEM budget (~85% of physical; 64 MiB v7x, 128 MiB v5e/v6e)."""
    try:
        cap = int(pltpu.get_tpu_info().vmem_capacity_bytes)
    except Exception:
        cap = 64 * 1024 * 1024  # conservative fallback (v7x-safe)
    return max(32 * 1024 * 1024, min(int(cap * 0.85), 112 * 1024 * 1024))


VMEM_LIMIT_BYTES = _vmem_limit_bytes()


# ----------------------------------------------------------------------------
# small helpers
# ----------------------------------------------------------------------------
def _round_up(x, m):
    return (x + m - 1) // m * m


def _pad_last(a, target):
    pad = target - a.shape[-1]
    if pad == 0:
        return a
    return jnp.pad(a, [(0, 0)] * (a.ndim - 1) + [(0, pad)])


def _pick_row_tile(h, w, cin_p, cout_p):
    """Largest divisor of H whose per-step working set fits the VMEM budget,
    with matmul M = th*W capped at _MAX_MATMUL_M (prefers M >= 512 when H allows)."""
    resident = (2 * h * w * cin_p * 2              # double-buffered input image (bf16)
                + (h + 2) * (w + 2) * cin_p * 2    # padded VMEM scratch (bf16)
                + 2 * 9 * cin_p * cout_p * 2)      # double-buffered weights (bf16)
    budget = VMEM_LIMIT_BYTES - resident - (8 << 20)   # margin for temporaries
    best = 1
    for th in range(1, h + 1):
        if h % th:
            continue
        m = th * w
        step = (2 * m * cout_p * 2                 # double-buffered bf16 output tile
                + m * cout_p * 4                   # f32 accumulator
                + 4 * m * cin_p * 2)               # dy slabs / shifted patch temps
        if m <= _MAX_MATMUL_M and step <= max(budget, 0):
            best = th
    # TODO(synk): for images whose resident set (input + padded scratch) exceeds
    # VMEM, switch the input path to manual row-slab DMA (memory_space=pl.ANY +
    # pltpu.make_async_copy of rows [j*th-1, j*th+th+1)) instead of keeping the
    # whole image resident per batch element.
    return best


def _weight_k9(w_oihw, cin_p, cout_p):
    """PyTorch conv weight (C_out, C_in, 3, 3) -> (9, Cin_p, Cout_p), k = 3*dy + dx."""
    co, ci, kh, kw = w_oihw.shape
    wk = jnp.transpose(w_oihw, (2, 3, 1, 0)).reshape(kh * kw, ci, co)
    wk = jnp.pad(wk, ((0, 0), (0, cin_p - ci), (0, cout_p - co)))
    return wk.astype(MXU_DTYPE)


# ----------------------------------------------------------------------------
# Pallas kernel 1: fused (optional BN+ReLU on input) + halo pad + 3x3 conv
#                  + Welford-style per-tile BN partial statistics
# ----------------------------------------------------------------------------
def _conv3x3_bn_stats(x, w_k9, scale, shift, *, fuse_input_bn_relu):
    """x: (N, H, W, Cin_p) bf16, lane-padded channels, NO spatial padding.
       w_k9: (9, Cin_p, Cout_p) bf16.  scale/shift: (1, Cin_p) f32.
       If fuse_input_bn_relu, max(x*scale + shift, 0) (previous stage's BN+ReLU)
       is applied to the input inside the kernel before padding/convolving.
       Returns:
         conv  (N, H, W, Cout_p) bf16    pre-BN conv output
         stats (N, n_h, 2, Cout_p) f32   per-tile [channel sum, sum of squared
                                         deviations from the tile mean]"""
    n, hd, wd, cin_p = x.shape
    cout_p = w_k9.shape[-1]
    wp2 = wd + 2
    th = _pick_row_tile(hd, wd, cin_p, cout_p)
    n_h = hd // th
    m_tile = th * wd

    def kernel(x_ref, w_ref, s_ref, b_ref, out_ref, st_ref, xpad_ref):
        j = pl.program_id(1)

        # Once per batch element: build the zero-padded (and, for stage 2,
        # BN1+ReLU-activated) image in VMEM.  Activation and halo padding never
        # round-trip through HBM.
        @pl.when(j == 0)
        def _():
            if fuse_input_bn_relu:
                xin = x_ref[...].astype(jnp.float32)
                s = s_ref[...].reshape(1, 1, 1, cin_p)
                b = b_ref[...].reshape(1, 1, 1, cin_p)
                y = jnp.maximum(xin * s + b, 0.0).astype(MXU_DTYPE)
            else:
                y = x_ref[...]
            xpad_ref[...] = jnp.zeros((1, hd + 2, wp2, cin_p), MXU_DTYPE)
            xpad_ref[0, pl.ds(1, hd), pl.ds(1, wd), :] = y[0]

        # Fused im2col: one aligned row-slab load per dy, static in-register
        # shifts for dx, nine (M, Cin_p) @ (Cin_p, Cout_p) MXU matmuls with f32
        # accumulation.
        row0 = pl.multiple_of(j * th, th)
        acc = jnp.zeros((m_tile, cout_p), jnp.float32)
        for dy in range(3):
            slab = xpad_ref[0, pl.ds(row0 + dy, th), :, :]      # (th, W+2, Cin_p)
            for dx in range(3):
                patch = slab[:, dx:dx + wd, :]                  # static shift
                acc = acc + jnp.dot(patch.reshape(m_tile, cin_p),
                                    w_ref[3 * dy + dx],
                                    preferred_element_type=jnp.float32)

        # bf16 conv output (halves inter-stage HBM traffic); BN statistics come
        # from the exact f32 accumulator.
        out_ref[...] = acc.reshape(1, th, wd, cout_p).astype(out_ref.dtype)
        psum = jnp.sum(acc, axis=0, keepdims=True)              # (1, Cout_p)
        tmean = psum / m_tile
        dev = acc - tmean
        m2 = jnp.sum(dev * dev, axis=0, keepdims=True)          # Welford-style partial
        st_ref[0, 0, 0:1, :] = psum
        st_ref[0, 0, 1:2, :] = m2

    cost = pl.CostEstimate(
        flops=2 * n * hd * wd * 9 * cin_p * cout_p,
        transcendentals=0,
        bytes_accessed=int(2 * x.size * x.dtype.itemsize
                           + w_k9.size * w_k9.dtype.itemsize
                           + n * hd * wd * cout_p * 2),
    )

    return pl.pallas_call(
        kernel,
        grid=(n, n_h),
        in_specs=[
            # Whole image resident across the row-tile axis (fetched once per i).
            pl.BlockSpec((1, hd, wd, cin_p), lambda i, j: (i, 0, 0, 0)),
            pl.BlockSpec((9, cin_p, cout_p), lambda i, j: (0, 0, 0)),
            pl.BlockSpec((1, cin_p), lambda i, j: (0, 0)),
            pl.BlockSpec((1, cin_p), lambda i, j: (0, 0)),
        ],
        out_specs=[
            pl.BlockSpec((1, th, wd, cout_p), lambda i, j: (i, j, 0, 0)),
            pl.BlockSpec((1, 1, 2, cout_p), lambda i, j: (i, j, 0, 0)),
        ],
        out_shape=[
            jax.ShapeDtypeStruct((n, hd, wd, cout_p), MXU_DTYPE),
            jax.ShapeDtypeStruct((n, n_h, 2, cout_p), jnp.float32),
        ],
        scratch_shapes=[pltpu.VMEM((1, hd + 2, wp2, cin_p), MXU_DTYPE)],
        compiler_params=pltpu.CompilerParams(
            # Row-tile axis must stay sequential per batch element (the padded
            # image is built in scratch at j == 0); batch axis shards across cores.
            dimension_semantics=("parallel", "arbitrary"),
            vmem_limit_bytes=VMEM_LIMIT_BYTES),
        cost_estimate=cost,
    )(x, w_k9, scale, shift)


# ----------------------------------------------------------------------------
# per-channel BN affine from the per-tile partials (parallel-variance combine)
# ----------------------------------------------------------------------------
def _bn_affine_from_stats(stats, gamma_p, beta_p, m_total):
    psum = stats[:, :, 0, :]                                   # (N, n_h, C) tile sums
    m2 = stats[:, :, 1, :]                                     # (N, n_h, C) tile M2
    n_tile = m_total // (stats.shape[0] * stats.shape[1])
    mean = jnp.sum(psum, axis=(0, 1)) / m_total
    tmean = psum / n_tile
    var = (jnp.sum(m2, axis=(0, 1))
           + n_tile * jnp.sum((tmean - mean) ** 2, axis=(0, 1))) / m_total
    var = jnp.maximum(var, 0.0)                                # biased batch variance
    inv = jax.lax.rsqrt(var + BN_EPS)
    scale = gamma_p * inv
    shift = beta_p - mean * scale
    return scale.reshape(1, -1), shift.reshape(1, -1)


# ----------------------------------------------------------------------------
# Pallas kernel 2: lane-dense BN(scale/shift) + ReLU apply (final stage only)
# ----------------------------------------------------------------------------
def _row_block(m, cp):
    budget = max(VMEM_LIMIT_BYTES // 4, 1 << 20)
    for tm in (8192, 4096, 2048, 1024, 512, 256, 128, 64, 32, 16, 8):
        if m % tm == 0 and tm * cp * 12 <= budget:
            return tm
    return m  # full extent is always a legal block


def _bn_relu_apply(x2d, scale, shift, out_dtype):
    """x2d: (M, Cp) bf16; scale/shift: (1, Cp) f32; out = max(x*scale + shift, 0)."""
    m, cp = x2d.shape
    tm = _row_block(m, cp)

    def kernel(x_ref, s_ref, b_ref, o_ref):
        y = x_ref[...].astype(jnp.float32) * s_ref[...] + b_ref[...]
        o_ref[...] = jnp.maximum(y, 0.0).astype(o_ref.dtype)

    return pl.pallas_call(
        kernel,
        grid=(m // tm,),
        in_specs=[
            pl.BlockSpec((tm, cp), lambda i: (i, 0)),
            pl.BlockSpec((1, cp), lambda i: (0, 0)),
            pl.BlockSpec((1, cp), lambda i: (0, 0)),
        ],
        out_specs=pl.BlockSpec((tm, cp), lambda i: (i, 0)),
        out_shape=jax.ShapeDtypeStruct((m, cp), out_dtype),
        compiler_params=pltpu.CompilerParams(
            dimension_semantics=("parallel",),
            vmem_limit_bytes=VMEM_LIMIT_BYTES),
    )(x2d, scale, shift)


# ----------------------------------------------------------------------------
# DoubleConv forward (NCHW in, NCHW out -- same semantics as the PyTorch module)
# ----------------------------------------------------------------------------
@jax.jit
def double_conv_forward(x_nchw, params):
    n, c_in, h, w = x_nchw.shape
    c_mid = params["w1"].shape[0]
    c_out = params["w2"].shape[0]
    cin_p = _round_up(c_in, LANE)
    cmid_p = _round_up(c_mid, LANE)
    cout_p = _round_up(c_out, LANE)
    m_total = n * h * w

    # NCHW -> NHWC, lane-pad channels, cast MXU operands.  Spatial halo padding
    # and the stage-1 BN+ReLU happen INSIDE the conv kernels (no HBM round trip).
    # TODO(synk): the NCHW<->NHWC transposes are still standalone XLA passes.
    x = jnp.transpose(x_nchw, (0, 2, 3, 1))
    x = _pad_last(x, cin_p).astype(MXU_DTYPE)

    w1 = _weight_k9(params["w1"], cin_p, cmid_p)
    w2 = _weight_k9(params["w2"], cmid_p, cout_p)
    g1, be1 = _pad_last(params["g1"], cmid_p), _pad_last(params["be1"], cmid_p)
    g2, be2 = _pad_last(params["g2"], cout_p), _pad_last(params["be2"], cout_p)
    # Conv biases b1/b2 are intentionally unused in the kernel path: a bias
    # added right before BatchNorm is cancelled exactly by the mean subtraction.

    one = jnp.ones((1, cin_p), jnp.float32)
    zero = jnp.zeros((1, cin_p), jnp.float32)

    # conv1 (+ per-tile BN1 stats)
    c1, st1 = _conv3x3_bn_stats(x, w1, one, zero, fuse_input_bn_relu=False)
    sc1, sh1 = _bn_affine_from_stats(st1, g1, be1, m_total)

    # conv2 with BN1+ReLU fused into its input path (+ per-tile BN2 stats)
    c2, st2 = _conv3x3_bn_stats(c1, w2, sc1, sh1, fuse_input_bn_relu=True)
    sc2, sh2 = _bn_affine_from_stats(st2, g2, be2, m_total)

    # BN2 + ReLU, lane-dense apply -> f32 module output
    z = _bn_relu_apply(c2.reshape(m_total, cout_p), sc2, sh2, jnp.float32)
    z = z.reshape(n, h, w, cout_p)[..., :c_out]
    return jnp.transpose(z, (0, 3, 1, 2))


# ----------------------------------------------------------------------------
# Pure-JAX reference (same math, mirroring the kernel's bf16 rounding points)
# ----------------------------------------------------------------------------
def _ref_forward(x_nchw, params):
    def conv(x, wgt, b):
        out = jax.lax.conv_general_dilated(
            x.astype(MXU_DTYPE), wgt.astype(MXU_DTYPE),
            window_strides=(1, 1), padding=((1, 1), (1, 1)),
            dimension_numbers=("NCHW", "OIHW", "NCHW"),
            preferred_element_type=jnp.float32)
        return out + b[None, :, None, None]

    def bn_affine(c, g, be):
        mean = jnp.mean(c, axis=(0, 2, 3))
        var = jnp.mean((c - mean[None, :, None, None]) ** 2, axis=(0, 2, 3))
        scale = g * jax.lax.rsqrt(var + BN_EPS)
        shift = be - mean * scale
        return scale[None, :, None, None], shift[None, :, None, None]

    c1 = conv(x_nchw, params["w1"], params["b1"])
    s1, h1 = bn_affine(c1, params["g1"], params["be1"])
    # the kernel stores conv outputs in bf16 before the BN affine is applied
    y1 = jnp.maximum(c1.astype(MXU_DTYPE).astype(jnp.float32) * s1 + h1, 0.0)
    c2 = conv(y1.astype(MXU_DTYPE), params["w2"], params["b2"])
    s2, h2 = bn_affine(c2, params["g2"], params["be2"])
    return jnp.maximum(c2.astype(MXU_DTYPE).astype(jnp.float32) * s2 + h2, 0.0)


# ----------------------------------------------------------------------------
# Main
# ----------------------------------------------------------------------------
if __name__ == "__main__":
    # Shapes consistent with the module: N=2, in_channels=4, out_channels=8
    # (mid_channels defaults to out_channels), H=W=16.
    N, C_IN, C_MID, C_OUT, H, W = 2, 4, 8, 8, 16, 16

    key = jax.random.PRNGKey(0)
    k = jax.random.split(key, 7)

    x = jax.random.normal(k[0], (N, C_IN, H, W), dtype=jnp.float32)

    params = {
        "w1": 0.2 * jax.random.normal(k[1], (C_MID, C_IN, 3, 3), jnp.float32),
        "b1": 0.1 * jax.random.normal(k[2], (C_MID,), jnp.float32),
        "g1": jnp.ones((C_MID,), jnp.float32) + 0.1 * jax.random.normal(k[3], (C_MID,), jnp.float32),
        "be1": jnp.zeros((C_MID,), jnp.float32),
        "w2": 0.2 * jax.random.normal(k[4], (C_OUT, C_MID, 3, 3), jnp.float32),
        "b2": 0.1 * jax.random.normal(k[5], (C_OUT,), jnp.float32),
        "g2": jnp.ones((C_OUT,), jnp.float32) + 0.1 * jax.random.normal(k[6], (C_OUT,), jnp.float32),
        "be2": jnp.zeros((C_OUT,), jnp.float32),
    }

    out = jax.block_until_ready(double_conv_forward(x, params))
    assert out.shape == (N, C_OUT, H, W), out.shape

    # Correctness check vs. a reference that mirrors the kernel's bf16 rounding
    # points; any wiring error (conv taps, fused BN/halo, stats, padding) would
    # produce O(1) errors, far above this bound.
    ref = jax.block_until_ready(_ref_forward(x, params))
    max_err = float(jnp.max(jnp.abs(out - ref)))
    assert max_err < 5e-2, f"mismatch vs reference: max abs err = {max_err}"

    print("KERNEL_OK")
</pallas_src>

<mosaic_0001>
module attributes {stable_mosaic.version = 11 : i64} {
  func.func @kernel(%arg0: i32, %arg1: i32, %arg2: memref<1x16x16x128xbf16, #tpu.memory_space<vmem>>, %arg3: memref<9x128x128xbf16, #tpu.memory_space<vmem>>, %arg4: memref<1x128xf32, #tpu.memory_space<vmem>>, %arg5: memref<1x128xf32, #tpu.memory_space<vmem>>, %arg6: memref<1x16x16x128xbf16, #tpu.memory_space<vmem>>, %arg7: memref<1x1x2x128xf32, #tpu.memory_space<vmem>>, %arg8: memref<1x18x18x128xbf16, #tpu.memory_space<vmem>>) attributes {dimension_semantics = [#tpu.dimension_semantics<parallel>, #tpu.dimension_semantics<arbitrary>], iteration_bounds = array<i64: 2, 1>, scalar_prefetch = 0 : i64, scratch_operands = 1 : i64, tpu.core_type = #tpu.core_type<tc>, window_params = [{transform_indices = @transform_0, window_bounds = array<i64: 1, 16, 16, 128>}, {pipeline_mode = #tpu.pipeline_mode<synchronous>, transform_indices = @transform_1, window_bounds = array<i64: 9, 128, 128>}, {pipeline_mode = #tpu.pipeline_mode<synchronous>, transform_indices = @transform_2, window_bounds = array<i64: 1, 128>}, {pipeline_mode = #tpu.pipeline_mode<synchronous>, transform_indices = @transform_3, window_bounds = array<i64: 1, 128>}, {transform_indices = @transform_4, window_bounds = array<i64: 1, 16, 16, 128>}, {transform_indices = @transform_5, window_bounds = array<i64: 1, 1, 2, 128>}]} {
    %c0_i32 = arith.constant 0 : i32
    %0 = arith.cmpi eq, %arg1, %c0_i32 : i32
    %1 = arith.extui %0 : i1 to i32
    %c0_i32_0 = arith.constant 0 : i32
    %2 = arith.cmpi ne, %1, %c0_i32_0 : i32
    scf.if %2 {
      %c0_53 = arith.constant 0 : index
      %c0_54 = arith.constant 0 : index
      %c0_55 = arith.constant 0 : index
      %c0_56 = arith.constant 0 : index
      %90 = vector.load %arg2[%c0_53, %c0_54, %c0_55, %c0_56] : memref<1x16x16x128xbf16, #tpu.memory_space<vmem>>, vector<1x16x16x128xbf16>
      %cst_57 = arith.constant 0.000000e+00 : bf16
      %91 = vector.broadcast %cst_57 : bf16 to vector<1x18x18x128xbf16>
      %c0_58 = arith.constant 0 : index
      %c0_59 = arith.constant 0 : index
      %c0_60 = arith.constant 0 : index
      %c0_61 = arith.constant 0 : index
      %92 = vector.load %arg8[%c0_58, %c0_59, %c0_60, %c0_61] : memref<1x18x18x128xbf16, #tpu.memory_space<vmem>>, vector<1x18x18x128xbf16>
      tpu.vector_store %arg8[%c0_58, %c0_59, %c0_60, %c0_61], %91 {strides = array<i32>} : memref<1x18x18x128xbf16, #tpu.memory_space<vmem>>, vector<1x18x18x128xbf16>,
      %93 = vector.shape_cast %90 : vector<1x16x16x128xbf16> to vector<16x16x128xbf16>
      %c0_62 = arith.constant 0 : index
      %c1_63 = arith.constant 1 : index
      %c1_64 = arith.constant 1 : index
      %c0_65 = arith.constant 0 : index
      %94 = vector.load %arg8[%c0_62, %c1_63, %c1_64, %c0_65] : memref<1x18x18x128xbf16, #tpu.memory_space<vmem>>, vector<1x16x16x128xbf16>
      %95 = vector.shape_cast %94 : vector<1x16x16x128xbf16> to vector<16x16x128xbf16>
      %96 = vector.shape_cast %93 : vector<16x16x128xbf16> to vector<1x16x16x128xbf16>
      tpu.vector_store %arg8[%c0_62, %c1_63, %c1_64, %c0_65], %96 {strides = array<i32>} : memref<1x18x18x128xbf16, #tpu.memory_space<vmem>>, vector<1x16x16x128xbf16>,
    } else {
    }
    %c16_i32 = arith.constant 16 : i32
    %3 = arith.muli %arg1, %c16_i32 : i32
    %4 = tpu.assume_multiple %3, 16 : i32
    %cst = arith.constant 0.000000e+00 : f32
    %5 = vector.broadcast %cst : f32 to vector<256x128xf32>
    %c0_i32_1 = arith.constant 0 : i32
    %6 = arith.addi %4, %c0_i32_1 : i32
    %c0 = arith.constant 0 : index
    %7 = arith.index_cast %6 : i32 to index
    %c0_2 = arith.constant 0 : index
    %c0_3 = arith.constant 0 : index
    %8 = vector.load %arg8[%c0, %7, %c0_2, %c0_3] : memref<1x18x18x128xbf16, #tpu.memory_space<vmem>>, vector<1x16x18x128xbf16>
    %9 = vector.shape_cast %8 : vector<1x16x18x128xbf16> to vector<16x18x128xbf16>
    %10 = vector.extract_strided_slice %9 {offsets = [0, 0, 0], sizes = [16, 16, 128], strides = [1, 1, 1]} : vector<16x18x128xbf16> to vector<16x16x128xbf16>
    %11 = vector.shape_cast %10 : vector<16x16x128xbf16> to vector<256x128xbf16>
    %c0_4 = arith.constant 0 : index
    %c0_5 = arith.constant 0 : index
    %c0_6 = arith.constant 0 : index
    %12 = vector.load %arg3[%c0_4, %c0_5, %c0_6] : memref<9x128x128xbf16, #tpu.memory_space<vmem>>, vector<1x128x128xbf16>
    %13 = vector.shape_cast %12 : vector<1x128x128xbf16> to vector<128x128xbf16>
    %cst_7 = arith.constant dense<0.000000e+00> : vector<256x128xf32>
    %14 = tpu.matmul %11, %13, %cst_7 {dimension_numbers = #tpu.dot_dimension_numbers<[1], [0], [0], [1], [0, 0, 1, 1], [], []>} : vector<256x128xbf16>, vector<128x128xbf16>, vector<256x128xf32> -> vector<256x128xf32>
    %15 = arith.addf %5, %14 : vector<256x128xf32>
    %16 = vector.extract_strided_slice %9 {offsets = [0, 1, 0], sizes = [16, 16, 128], strides = [1, 1, 1]} : vector<16x18x128xbf16> to vector<16x16x128xbf16>
    %17 = vector.shape_cast %16 : vector<16x16x128xbf16> to vector<256x128xbf16>
    %c1 = arith.constant 1 : index
    %c0_8 = arith.constant 0 : index
    %c0_9 = arith.constant 0 : index
    %18 = vector.load %arg3[%c1, %c0_8, %c0_9] : memref<9x128x128xbf16, #tpu.memory_space<vmem>>, vector<1x128x128xbf16>
    %19 = vector.shape_cast %18 : vector<1x128x128xbf16> to vector<128x128xbf16>
    %cst_10 = arith.constant dense<0.000000e+00> : vector<256x128xf32>
    %20 = tpu.matmul %17, %19, %cst_10 {dimension_numbers = #tpu.dot_dimension_numbers<[1], [0], [0], [1], [0, 0, 1, 1], [], []>} : vector<256x128xbf16>, vector<128x128xbf16>, vector<256x128xf32> -> vector<256x128xf32>
    %21 = arith.addf %15, %20 : vector<256x128xf32>
    %22 = vector.extract_strided_slice %9 {offsets = [0, 2, 0], sizes = [16, 16, 128], strides = [1, 1, 1]} : vector<16x18x128xbf16> to vector<16x16x128xbf16>
    %23 = vector.shape_cast %22 : vector<16x16x128xbf16> to vector<256x128xbf16>
    %c2 = arith.constant 2 : index
    %c0_11 = arith.constant 0 : index
    %c0_12 = arith.constant 0 : index
    %24 = vector.load %arg3[%c2, %c0_11, %c0_12] : memref<9x128x128xbf16, #tpu.memory_space<vmem>>, vector<1x128x128xbf16>
    %25 = vector.shape_cast %24 : vector<1x128x128xbf16> to vector<128x128xbf16>
    %cst_13 = arith.constant dense<0.000000e+00> : vector<256x128xf32>
    %26 = tpu.matmul %23, %25, %cst_13 {dimension_numbers = #tpu.dot_dimension_numbers<[1], [0], [0], [1], [0, 0, 1, 1], [], []>} : vector<256x128xbf16>, vector<128x128xbf16>, vector<256x128xf32> -> vector<256x128xf32>
    %27 = arith.addf %21, %26 : vector<256x128xf32>
    %c1_i32 = arith.constant 1 : i32
    %28 = arith.addi %4, %c1_i32 : i32
    %c0_14 = arith.constant 0 : index
    %29 = arith.index_cast %28 : i32 to index
    %c0_15 = arith.constant 0 : index
    %c0_16 = arith.constant 0 : index
    %30 = vector.load %arg8[%c0_14, %29, %c0_15, %c0_16] : memref<1x18x18x128xbf16, #tpu.memory_space<vmem>>, vector<1x16x18x128xbf16>
    %31 = vector.shape_cast %30 : vector<1x16x18x128xbf16> to vector<16x18x128xbf16>
    %32 = vector.extract_strided_slice %31 {offsets = [0, 0, 0], sizes = [16, 16, 128], strides = [1, 1, 1]} : vector<16x18x128xbf16> to vector<16x16x128xbf16>
    %33 = vector.shape_cast %32 : vector<16x16x128xbf16> to vector<256x128xbf16>
    %c3 = arith.constant 3 : index
    %c0_17 = arith.constant 0 : index
    %c0_18 = arith.constant 0 : index
    %34 = vector.load %arg3[%c3, %c0_17, %c0_18] : memref<9x128x128xbf16, #tpu.memory_space<vmem>>, vector<1x128x128xbf16>
    %35 = vector.shape_cast %34 : vector<1x128x128xbf16> to vector<128x128xbf16>
    %cst_19 = arith.constant dense<0.000000e+00> : vector<256x128xf32>
    %36 = tpu.matmul %33, %35, %cst_19 {dimension_numbers = #tpu.dot_dimension_numbers<[1], [0], [0], [1], [0, 0, 1, 1], [], []>} : vector<256x128xbf16>, vector<128x128xbf16>, vector<256x128xf32> -> vector<256x128xf32>
    %37 = arith.addf %27, %36 : vector<256x128xf32>
    %38 = vector.extract_strided_slice %31 {offsets = [0, 1, 0], sizes = [16, 16, 128], strides = [1, 1, 1]} : vector<16x18x128xbf16> to vector<16x16x128xbf16>
    %39 = vector.shape_cast %38 : vector<16x16x128xbf16> to vector<256x128xbf16>
    %c4 = arith.constant 4 : index
    %c0_20 = arith.constant 0 : index
    %c0_21 = arith.constant 0 : index
    %40 = vector.load %arg3[%c4, %c0_20, %c0_21] : memref<9x128x128xbf16, #tpu.memory_space<vmem>>, vector<1x128x128xbf16>
    %41 = vector.shape_cast %40 : vector<1x128x128xbf16> to vector<128x128xbf16>
    %cst_22 = arith.constant dense<0.000000e+00> : vector<256x128xf32>
    %42 = tpu.matmul %39, %41, %cst_22 {dimension_numbers = #tpu.dot_dimension_numbers<[1], [0], [0], [1], [0, 0, 1, 1], [], []>} : vector<256x128xbf16>, vector<128x128xbf16>, vector<256x128xf32> -> vector<256x128xf32>
    %43 = arith.addf %37, %42 : vector<256x128xf32>
    %44 = vector.extract_strided_slice %31 {offsets = [0, 2, 0], sizes = [16, 16, 128], strides = [1, 1, 1]} : vector<16x18x128xbf16> to vector<16x16x128xbf16>
    %45 = vector.shape_cast %44 : vector<16x16x128xbf16> to vector<256x128xbf16>
    %c5 = arith.constant 5 : index
    %c0_23 = arith.constant 0 : index
    %c0_24 = arith.constant 0 : index
    %46 = vector.load %arg3[%c5, %c0_23, %c0_24] : memref<9x128x128xbf16, #tpu.memory_space<vmem>>, vector<1x128x128xbf16>
    %47 = vector.shape_cast %46 : vector<1x128x128xbf16> to vector<128x128xbf16>
    %cst_25 = arith.constant dense<0.000000e+00> : vector<256x128xf32>
    %48 = tpu.matmul %45, %47, %cst_25 {dimension_numbers = #tpu.dot_dimension_numbers<[1], [0], [0], [1], [0, 0, 1, 1], [], []>} : vector<256x128xbf16>, vector<128x128xbf16>, vector<256x128xf32> -> vector<256x128xf32>
    %49 = arith.addf %43, %48 : vector<256x128xf32>
    %c2_i32 = arith.constant 2 : i32
    %50 = arith.addi %4, %c2_i32 : i32
    %c0_26 = arith.constant 0 : index
    %51 = arith.index_cast %50 : i32 to index
    %c0_27 = arith.constant 0 : index
    %c0_28 = arith.constant 0 : index
    %52 = vector.load %arg8[%c0_26, %51, %c0_27, %c0_28] : memref<1x18x18x128xbf16, #tpu.memory_space<vmem>>, vector<1x16x18x128xbf16>
    %53 = vector.shape_cast %52 : vector<1x16x18x128xbf16> to vector<16x18x128xbf16>
    %54 = vector.extract_strided_slice %53 {offsets = [0, 0, 0], sizes = [16, 16, 128], strides = [1, 1, 1]} : vector<16x18x128xbf16> to vector<16x16x128xbf16>
    %55 = vector.shape_cast %54 : vector<16x16x128xbf16> to vector<256x128xbf16>
    %c6 = arith.constant 6 : index
    %c0_29 = arith.constant 0 : index
    %c0_30 = arith.constant 0 : index
    %56 = vector.load %arg3[%c6, %c0_29, %c0_30] : memref<9x128x128xbf16, #tpu.memory_space<vmem>>, vector<1x128x128xbf16>
    %57 = vector.shape_cast %56 : vector<1x128x128xbf16> to vector<128x128xbf16>
    %cst_31 = arith.constant dense<0.000000e+00> : vector<256x128xf32>
    %58 = tpu.matmul %55, %57, %cst_31 {dimension_numbers = #tpu.dot_dimension_numbers<[1], [0], [0], [1], [0, 0, 1, 1], [], []>} : vector<256x128xbf16>, vector<128x128xbf16>, vector<256x128xf32> -> vector<256x128xf32>
    %59 = arith.addf %49, %58 : vector<256x128xf32>
    %60 = vector.extract_strided_slice %53 {offsets = [0, 1, 0], sizes = [16, 16, 128], strides = [1, 1, 1]} : vector<16x18x128xbf16> to vector<16x16x128xbf16>
    %61 = vector.shape_cast %60 : vector<16x16x128xbf16> to vector<256x128xbf16>
    %c7 = arith.constant 7 : index
    %c0_32 = arith.constant 0 : index
    %c0_33 = arith.constant 0 : index
    %62 = vector.load %arg3[%c7, %c0_32, %c0_33] : memref<9x128x128xbf16, #tpu.memory_space<vmem>>, vector<1x128x128xbf16>
    %63 = vector.shape_cast %62 : vector<1x128x128xbf16> to vector<128x128xbf16>
    %cst_34 = arith.constant dense<0.000000e+00> : vector<256x128xf32>
    %64 = tpu.matmul %61, %63, %cst_34 {dimension_numbers = #tpu.dot_dimension_numbers<[1], [0], [0], [1], [0, 0, 1, 1], [], []>} : vector<256x128xbf16>, vector<128x128xbf16>, vector<256x128xf32> -> vector<256x128xf32>
    %65 = arith.addf %59, %64 : vector<256x128xf32>
    %66 = vector.extract_strided_slice %53 {offsets = [0, 2, 0], sizes = [16, 16, 128], strides = [1, 1, 1]} : vector<16x18x128xbf16> to vector<16x16x128xbf16>
    %67 = vector.shape_cast %66 : vector<16x16x128xbf16> to vector<256x128xbf16>
    %c8 = arith.constant 8 : index
    %c0_35 = arith.constant 0 : index
    %c0_36 = arith.constant 0 : index
    %68 = vector.load %arg3[%c8, %c0_35, %c0_36] : memref<9x128x128xbf16, #tpu.memory_space<vmem>>, vector<1x128x128xbf16>
    %69 = vector.shape_cast %68 : vector<1x128x128xbf16> to vector<128x128xbf16>
    %cst_37 = arith.constant dense<0.000000e+00> : vector<256x128xf32>
    %70 = tpu.matmul %67, %69, %cst_37 {dimension_numbers = #tpu.dot_dimension_numbers<[1], [0], [0], [1], [0, 0, 1, 1], [], []>} : vector<256x128xbf16>, vector<128x128xbf16>, vector<256x128xf32> -> vector<256x128xf32>
    %71 = arith.addf %65, %70 : vector<256x128xf32>
    %72 = vector.shape_cast %71 : vector<256x128xf32> to vector<1x16x16x128xf32>
    %73 = arith.truncf %72 : vector<1x16x16x128xf32> to vector<1x16x16x128xbf16>
    %c0_38 = arith.constant 0 : index
    %c0_39 = arith.constant 0 : index
    %c0_40 = arith.constant 0 : index
    %c0_41 = arith.constant 0 : index
    %74 = vector.load %arg6[%c0_38, %c0_39, %c0_40, %c0_41] : memref<1x16x16x128xbf16, #tpu.memory_space<vmem>>, vector<1x16x16x128xbf16>
    tpu.vector_store %arg6[%c0_38, %c0_39, %c0_40, %c0_41], %73 {strides = array<i32>} : memref<1x16x16x128xbf16, #tpu.memory_space<vmem>>, vector<1x16x16x128xbf16>,
    %cst_42 = arith.constant dense<0.000000e+00> : vector<128xf32>
    %75 = vector.multi_reduction <add>, %71, %cst_42 [0] : vector<256x128xf32> to vector<128xf32>
    %76 = vector.shape_cast %75 : vector<128xf32> to vector<1x128xf32>
    %cst_43 = arith.constant 2.560000e+02 : f32
    %77 = vector.broadcast %cst_43 : f32 to vector<1x128xf32>
    %78 = arith.divf %76, %77 : vector<1x128xf32>
    %79 = vector.broadcast %78 : vector<1x128xf32> to vector<256x128xf32>
    %80 = arith.subf %71, %79 : vector<256x128xf32>
    %81 = arith.mulf %80, %80 : vector<256x128xf32>
    %cst_44 = arith.constant dense<0.000000e+00> : vector<128xf32>
    %82 = vector.multi_reduction <add>, %81, %cst_44 [0] : vector<256x128xf32> to vector<128xf32>
    %83 = vector.shape_cast %82 : vector<128xf32> to vector<1x128xf32>
    %c0_45 = arith.constant 0 : index
    %c0_46 = arith.constant 0 : index
    %c0_47 = arith.constant 0 : index
    %c0_48 = arith.constant 0 : index
    %84 = vector.load %arg7[%c0_45, %c0_46, %c0_47, %c0_48] : memref<1x1x2x128xf32, #tpu.memory_space<vmem>>, vector<1x1x1x128xf32>
    %85 = vector.shape_cast %84 : vector<1x1x1x128xf32> to vector<1x128xf32>
    %86 = vector.shape_cast %76 : vector<1x128xf32> to vector<1x1x1x128xf32>
    tpu.vector_store %arg7[%c0_45, %c0_46, %c0_47, %c0_48], %86 {strides = array<i32>} : memref<1x1x2x128xf32, #tpu.memory_space<vmem>>, vector<1x1x1x128xf32>,
    %c0_49 = arith.constant 0 : index
    %c0_50 = arith.constant 0 : index
    %c1_51 = arith.constant 1 : index
    %c0_52 = arith.constant 0 : index
    %87 = vector.load %arg7[%c0_49, %c0_50, %c1_51, %c0_52] : memref<1x1x2x128xf32, #tpu.memory_space<vmem>>, vector<1x1x1x128xf32>
    %88 = vector.shape_cast %87 : vector<1x1x1x128xf32> to vector<1x128xf32>
    %89 = vector.shape_cast %83 : vector<1x128xf32> to vector<1x1x1x128xf32>
    tpu.vector_store %arg7[%c0_49, %c0_50, %c1_51, %c0_52], %89 {strides = array<i32>} : memref<1x1x2x128xf32, #tpu.memory_space<vmem>>, vector<1x1x1x128xf32>,
    return
  }
  func.func @transform_0(%arg0: i32, %arg1: i32) -> (i32, i32, i32, i32) {
    %c0_i32 = arith.constant 0 : i32
    %c0_i32_0 = arith.constant 0 : i32
    %c0_i32_1 = arith.constant 0 : i32
    %c0_i32_2 = arith.constant 0 : i32
    return %arg0, %c0_i32, %c0_i32_0, %c0_i32_1 : i32, i32, i32, i32
  }
  func.func @transform_1(%arg0: i32, %arg1: i32) -> (i32, i32, i32) {
    %c0_i32 = arith.constant 0 : i32
    %c0_i32_0 = arith.constant 0 : i32
    %c0_i32_1 = arith.constant 0 : i32
    %c0_i32_2 = arith.constant 0 : i32
    return %c0_i32, %c0_i32_0, %c0_i32_1 : i32, i32, i32
  }
  func.func @transform_2(%arg0: i32, %arg1: i32) -> (i32, i32) {
    %c0_i32 = arith.constant 0 : i32
    %c0_i32_0 = arith.constant 0 : i32
    %c0_i32_1 = arith.constant 0 : i32
    return %c0_i32, %c0_i32_0 : i32, i32
  }
  func.func @transform_3(%arg0: i32, %arg1: i32) -> (i32, i32) {
    %c0_i32 = arith.constant 0 : i32
    %c0_i32_0 = arith.constant 0 : i32
    %c0_i32_1 = arith.constant 0 : i32
    return %c0_i32, %c0_i32_0 : i32, i32
  }
  func.func @transform_4(%arg0: i32, %arg1: i32) -> (i32, i32, i32, i32) {
    %c0_i32 = arith.constant 0 : i32
    %c0_i32_0 = arith.constant 0 : i32
    %c0_i32_1 = arith.constant 0 : i32
    return %arg0, %arg1, %c0_i32, %c0_i32_0 : i32, i32, i32, i32
  }
  func.func @transform_5(%arg0: i32, %arg1: i32) -> (i32, i32, i32, i32) {
    %c0_i32 = arith.constant 0 : i32
    %c0_i32_0 = arith.constant 0 : i32
    %c0_i32_1 = arith.constant 0 : i32
    return %arg0, %arg1, %c0_i32, %c0_i32_0 : i32, i32, i32, i32
  }
}

module attributes {stable_mosaic.version = 11 : i64} {
  func.func @kernel(%arg0: i32, %arg1: memref<512x128xbf16, #tpu.memory_space<vmem>>, %arg2: memref<1x128xf32, #tpu.memory_space<vmem>>, %arg3: memref<1x128xf32, #tpu.memory_space<vmem>>, %arg4: memref<512x128xf32, #tpu.memory_space<vmem>>) attributes {dimension_semantics = [#tpu.dimension_semantics<parallel>], iteration_bounds = array<i64: 1>, scalar_prefetch = 0 : i64, scratch_operands = 0 : i64, tpu.core_type = #tpu.core_type<tc>, window_params = [{transform_indices = @transform_0, window_bounds = array<i64: 512, 128>}, {pipeline_mode = #tpu.pipeline_mode<synchronous>, transform_indices = @transform_1, window_bounds = array<i64: 1, 128>}, {pipeline_mode = #tpu.pipeline_mode<synchronous>, transform_indices = @transform_2, window_bounds = array<i64: 1, 128>}, {transform_indices = @transform_3, window_bounds = array<i64: 512, 128>}]} {
    %c0 = arith.constant 0 : index
    %c0_0 = arith.constant 0 : index
    %0 = vector.load %arg1[%c0, %c0_0] : memref<512x128xbf16, #tpu.memory_space<vmem>>, vector<512x128xbf16>
    %1 = arith.extf %0 : vector<512x128xbf16> to vector<512x128xf32>
    %c0_1 = arith.constant 0 : index
    %c0_2 = arith.constant 0 : index
    %2 = vector.load %arg2[%c0_1, %c0_2] : memref<1x128xf32, #tpu.memory_space<vmem>>, vector<1x128xf32>
    %3 = vector.broadcast %2 : vector<1x128xf32> to vector<512x128xf32>
    %4 = arith.mulf %1, %3 : vector<512x128xf32>
    %c0_3 = arith.constant 0 : index
    %c0_4 = arith.constant 0 : index
    %5 = vector.load %arg3[%c0_3, %c0_4] : memref<1x128xf32, #tpu.memory_space<vmem>>, vector<1x128xf32>
    %6 = vector.broadcast %5 : vector<1x128xf32> to vector<512x128xf32>
    %7 = arith.addf %4, %6 : vector<512x128xf32>
    %cst = arith.constant 0.000000e+00 : f32
    %8 = vector.broadcast %cst : f32 to vector<512x128xf32>
    %9 = arith.maximumf %7, %8 : vector<512x128xf32>
    %c0_5 = arith.constant 0 : index
    %c0_6 = arith.constant 0 : index
    %10 = vector.load %arg4[%c0_5, %c0_6] : memref<512x128xf32, #tpu.memory_space<vmem>>, vector<512x128xf32>
    tpu.vector_store %arg4[%c0_5, %c0_6], %9 {strides = array<i32>} : memref<512x128xf32, #tpu.memory_space<vmem>>, vector<512x128xf32>,
    return
  }
  func.func @transform_0(%arg0: i32) -> (i32, i32) {
    %c0_i32 = arith.constant 0 : i32
    %c0_i32_0 = arith.constant 0 : i32
    return %arg0, %c0_i32 : i32, i32
  }
  func.func @transform_1(%arg0: i32) -> (i32, i32) {
    %c0_i32 = arith.constant 0 : i32
    %c0_i32_0 = arith.constant 0 : i32
    %c0_i32_1 = arith.constant 0 : i32
    return %c0_i32, %c0_i32_0 : i32, i32
  }
  func.func @transform_2(%arg0: i32) -> (i32, i32) {
    %c0_i32 = arith.constant 0 : i32
    %c0_i32_0 = arith.constant 0 : i32
    %c0_i32_1 = arith.constant 0 : i32
    return %c0_i32, %c0_i32_0 : i32, i32
  }
  func.func @transform_3(%arg0: i32) -> (i32, i32) {
    %c0_i32 = arith.constant 0 : i32
    %c0_i32_0 = arith.constant 0 : i32
    return %arg0, %c0_i32 : i32, i32
  }
}

module attributes {stable_mosaic.version = 11 : i64} {
  func.func @kernel(%arg0: i32, %arg1: i32, %arg2: memref<1x16x16x128xbf16, #tpu.memory_space<vmem>>, %arg3: memref<9x128x128xbf16, #tpu.memory_space<vmem>>, %arg4: memref<1x128xf32, #tpu.memory_space<vmem>>, %arg5: memref<1x128xf32, #tpu.memory_space<vmem>>, %arg6: memref<1x16x16x128xbf16, #tpu.memory_space<vmem>>, %arg7: memref<1x1x2x128xf32, #tpu.memory_space<vmem>>, %arg8: memref<1x18x18x128xbf16, #tpu.memory_space<vmem>>) attributes {dimension_semantics = [#tpu.dimension_semantics<parallel>, #tpu.dimension_semantics<arbitrary>], iteration_bounds = array<i64: 2, 1>, scalar_prefetch = 0 : i64, scratch_operands = 1 : i64, tpu.core_type = #tpu.core_type<tc>, window_params = [{transform_indices = @transform_0, window_bounds = array<i64: 1, 16, 16, 128>}, {pipeline_mode = #tpu.pipeline_mode<synchronous>, transform_indices = @transform_1, window_bounds = array<i64: 9, 128, 128>}, {pipeline_mode = #tpu.pipeline_mode<synchronous>, transform_indices = @transform_2, window_bounds = array<i64: 1, 128>}, {pipeline_mode = #tpu.pipeline_mode<synchronous>, transform_indices = @transform_3, window_bounds = array<i64: 1, 128>}, {transform_indices = @transform_4, window_bounds = array<i64: 1, 16, 16, 128>}, {transform_indices = @transform_5, window_bounds = array<i64: 1, 1, 2, 128>}]} {
    %c0_i32 = arith.constant 0 : i32
    %0 = arith.cmpi eq, %arg1, %c0_i32 : i32
    %1 = arith.extui %0 : i1 to i32
    %c0_i32_0 = arith.constant 0 : i32
    %2 = arith.cmpi ne, %1, %c0_i32_0 : i32
    scf.if %2 {
      %c0_53 = arith.constant 0 : index
      %c0_54 = arith.constant 0 : index
      %c0_55 = arith.constant 0 : index
      %c0_56 = arith.constant 0 : index
      %90 = vector.load %arg2[%c0_53, %c0_54, %c0_55, %c0_56] : memref<1x16x16x128xbf16, #tpu.memory_space<vmem>>, vector<1x16x16x128xbf16>
      %91 = arith.extf %90 : vector<1x16x16x128xbf16> to vector<1x16x16x128xf32>
      %c0_57 = arith.constant 0 : index
      %c0_58 = arith.constant 0 : index
      %92 = vector.load %arg4[%c0_57, %c0_58] : memref<1x128xf32, #tpu.memory_space<vmem>>, vector<1x128xf32>
      %93 = vector.shape_cast %92 : vector<1x128xf32> to vector<1x1x1x128xf32>
      %c0_59 = arith.constant 0 : index
      %c0_60 = arith.constant 0 : index
      %94 = vector.load %arg5[%c0_59, %c0_60] : memref<1x128xf32, #tpu.memory_space<vmem>>, vector<1x128xf32>
      %95 = vector.shape_cast %94 : vector<1x128xf32> to vector<1x1x1x128xf32>
      %96 = vector.broadcast %93 : vector<1x1x1x128xf32> to vector<1x16x16x128xf32>
      %97 = arith.mulf %91, %96 : vector<1x16x16x128xf32>
      %98 = vector.broadcast %95 : vector<1x1x1x128xf32> to vector<1x16x16x128xf32>
      %99 = arith.addf %97, %98 : vector<1x16x16x128xf32>
      %cst_61 = arith.constant 0.000000e+00 : f32
      %100 = vector.broadcast %cst_61 : f32 to vector<1x16x16x128xf32>
      %101 = arith.maximumf %99, %100 : vector<1x16x16x128xf32>
      %102 = arith.truncf %101 : vector<1x16x16x128xf32> to vector<1x16x16x128xbf16>
      %cst_62 = arith.constant 0.000000e+00 : bf16
      %103 = vector.broadcast %cst_62 : bf16 to vector<1x18x18x128xbf16>
      %c0_63 = arith.constant 0 : index
      %c0_64 = arith.constant 0 : index
      %c0_65 = arith.constant 0 : index
      %c0_66 = arith.constant 0 : index
      %104 = vector.load %arg8[%c0_63, %c0_64, %c0_65, %c0_66] : memref<1x18x18x128xbf16, #tpu.memory_space<vmem>>, vector<1x18x18x128xbf16>
      tpu.vector_store %arg8[%c0_63, %c0_64, %c0_65, %c0_66], %103 {strides = array<i32>} : memref<1x18x18x128xbf16, #tpu.memory_space<vmem>>, vector<1x18x18x128xbf16>,
      %105 = vector.shape_cast %102 : vector<1x16x16x128xbf16> to vector<16x16x128xbf16>
      %c0_67 = arith.constant 0 : index
      %c1_68 = arith.constant 1 : index
      %c1_69 = arith.constant 1 : index
      %c0_70 = arith.constant 0 : index
      %106 = vector.load %arg8[%c0_67, %c1_68, %c1_69, %c0_70] : memref<1x18x18x128xbf16, #tpu.memory_space<vmem>>, vector<1x16x16x128xbf16>
      %107 = vector.shape_cast %106 : vector<1x16x16x128xbf16> to vector<16x16x128xbf16>
      %108 = vector.shape_cast %105 : vector<16x16x128xbf16> to vector<1x16x16x128xbf16>
      tpu.vector_store %arg8[%c0_67, %c1_68, %c1_69, %c0_70], %108 {strides = array<i32>} : memref<1x18x18x128xbf16, #tpu.memory_space<vmem>>, vector<1x16x16x128xbf16>,
    } else {
    }
    %c16_i32 = arith.constant 16 : i32
    %3 = arith.muli %arg1, %c16_i32 : i32
    %4 = tpu.assume_multiple %3, 16 : i32
    %cst = arith.constant 0.000000e+00 : f32
    %5 = vector.broadcast %cst : f32 to vector<256x128xf32>
    %c0_i32_1 = arith.constant 0 : i32
    %6 = arith.addi %4, %c0_i32_1 : i32
    %c0 = arith.constant 0 : index
    %7 = arith.index_cast %6 : i32 to index
    %c0_2 = arith.constant 0 : index
    %c0_3 = arith.constant 0 : index
    %8 = vector.load %arg8[%c0, %7, %c0_2, %c0_3] : memref<1x18x18x128xbf16, #tpu.memory_space<vmem>>, vector<1x16x18x128xbf16>
    %9 = vector.shape_cast %8 : vector<1x16x18x128xbf16> to vector<16x18x128xbf16>
    %10 = vector.extract_strided_slice %9 {offsets = [0, 0, 0], sizes = [16, 16, 128], strides = [1, 1, 1]} : vector<16x18x128xbf16> to vector<16x16x128xbf16>
    %11 = vector.shape_cast %10 : vector<16x16x128xbf16> to vector<256x128xbf16>
    %c0_4 = arith.constant 0 : index
    %c0_5 = arith.constant 0 : index
    %c0_6 = arith.constant 0 : index
    %12 = vector.load %arg3[%c0_4, %c0_5, %c0_6] : memref<9x128x128xbf16, #tpu.memory_space<vmem>>, vector<1x128x128xbf16>
    %13 = vector.shape_cast %12 : vector<1x128x128xbf16> to vector<128x128xbf16>
    %cst_7 = arith.constant dense<0.000000e+00> : vector<256x128xf32>
    %14 = tpu.matmul %11, %13, %cst_7 {dimension_numbers = #tpu.dot_dimension_numbers<[1], [0], [0], [1], [0, 0, 1, 1], [], []>} : vector<256x128xbf16>, vector<128x128xbf16>, vector<256x128xf32> -> vector<256x128xf32>
    %15 = arith.addf %5, %14 : vector<256x128xf32>
    %16 = vector.extract_strided_slice %9 {offsets = [0, 1, 0], sizes = [16, 16, 128], strides = [1, 1, 1]} : vector<16x18x128xbf16> to vector<16x16x128xbf16>
    %17 = vector.shape_cast %16 : vector<16x16x128xbf16> to vector<256x128xbf16>
    %c1 = arith.constant 1 : index
    %c0_8 = arith.constant 0 : index
    %c0_9 = arith.constant 0 : index
    %18 = vector.load %arg3[%c1, %c0_8, %c0_9] : memref<9x128x128xbf16, #tpu.memory_space<vmem>>, vector<1x128x128xbf16>
    %19 = vector.shape_cast %18 : vector<1x128x128xbf16> to vector<128x128xbf16>
    %cst_10 = arith.constant dense<0.000000e+00> : vector<256x128xf32>
    %20 = tpu.matmul %17, %19, %cst_10 {dimension_numbers = #tpu.dot_dimension_numbers<[1], [0], [0], [1], [0, 0, 1, 1], [], []>} : vector<256x128xbf16>, vector<128x128xbf16>, vector<256x128xf32> -> vector<256x128xf32>
    %21 = arith.addf %15, %20 : vector<256x128xf32>
    %22 = vector.extract_strided_slice %9 {offsets = [0, 2, 0], sizes = [16, 16, 128], strides = [1, 1, 1]} : vector<16x18x128xbf16> to vector<16x16x128xbf16>
    %23 = vector.shape_cast %22 : vector<16x16x128xbf16> to vector<256x128xbf16>
    %c2 = arith.constant 2 : index
    %c0_11 = arith.constant 0 : index
    %c0_12 = arith.constant 0 : index
    %24 = vector.load %arg3[%c2, %c0_11, %c0_12] : memref<9x128x128xbf16, #tpu.memory_space<vmem>>, vector<1x128x128xbf16>
    %25 = vector.shape_cast %24 : vector<1x128x128xbf16> to vector<128x128xbf16>
    %cst_13 = arith.constant dense<0.000000e+00> : vector<256x128xf32>
    %26 = tpu.matmul %23, %25, %cst_13 {dimension_numbers = #tpu.dot_dimension_numbers<[1], [0], [0], [1], [0, 0, 1, 1], [], []>} : vector<256x128xbf16>, vector<128x128xbf16>, vector<256x128xf32> -> vector<256x128xf32>
    %27 = arith.addf %21, %26 : vector<256x128xf32>
    %c1_i32 = arith.constant 1 : i32
    %28 = arith.addi %4, %c1_i32 : i32
    %c0_14 = arith.constant 0 : index
    %29 = arith.index_cast %28 : i32 to index
    %c0_15 = arith.constant 0 : index
    %c0_16 = arith.constant 0 : index
    %30 = vector.load %arg8[%c0_14, %29, %c0_15, %c0_16] : memref<1x18x18x128xbf16, #tpu.memory_space<vmem>>, vector<1x16x18x128xbf16>
    %31 = vector.shape_cast %30 : vector<1x16x18x128xbf16> to vector<16x18x128xbf16>
    %32 = vector.extract_strided_slice %31 {offsets = [0, 0, 0], sizes = [16, 16, 128], strides = [1, 1, 1]} : vector<16x18x128xbf16> to vector<16x16x128xbf16>
    %33 = vector.shape_cast %32 : vector<16x16x128xbf16> to vector<256x128xbf16>
    %c3 = arith.constant 3 : index
    %c0_17 = arith.constant 0 : index
    %c0_18 = arith.constant 0 : index
    %34 = vector.load %arg3[%c3, %c0_17, %c0_18] : memref<9x128x128xbf16, #tpu.memory_space<vmem>>, vector<1x128x128xbf16>
    %35 = vector.shape_cast %34 : vector<1x128x128xbf16> to vector<128x128xbf16>
    %cst_19 = arith.constant dense<0.000000e+00> : vector<256x128xf32>
    %36 = tpu.matmul %33, %35, %cst_19 {dimension_numbers = #tpu.dot_dimension_numbers<[1], [0], [0], [1], [0, 0, 1, 1], [], []>} : vector<256x128xbf16>, vector<128x128xbf16>, vector<256x128xf32> -> vector<256x128xf32>
    %37 = arith.addf %27, %36 : vector<256x128xf32>
    %38 = vector.extract_strided_slice %31 {offsets = [0, 1, 0], sizes = [16, 16, 128], strides = [1, 1, 1]} : vector<16x18x128xbf16> to vector<16x16x128xbf16>
    %39 = vector.shape_cast %38 : vector<16x16x128xbf16> to vector<256x128xbf16>
    %c4 = arith.constant 4 : index
    %c0_20 = arith.constant 0 : index
    %c0_21 = arith.constant 0 : index
    %40 = vector.load %arg3[%c4, %c0_20, %c0_21] : memref<9x128x128xbf16, #tpu.memory_space<vmem>>, vector<1x128x128xbf16>
    %41 = vector.shape_cast %40 : vector<1x128x128xbf16> to vector<128x128xbf16>
    %cst_22 = arith.constant dense<0.000000e+00> : vector<256x128xf32>
    %42 = tpu.matmul %39, %41, %cst_22 {dimension_numbers = #tpu.dot_dimension_numbers<[1], [0], [0], [1], [0, 0, 1, 1], [], []>} : vector<256x128xbf16>, vector<128x128xbf16>, vector<256x128xf32> -> vector<256x128xf32>
    %43 = arith.addf %37, %42 : vector<256x128xf32>
    %44 = vector.extract_strided_slice %31 {offsets = [0, 2, 0], sizes = [16, 16, 128], strides = [1, 1, 1]} : vector<16x18x128xbf16> to vector<16x16x128xbf16>
    %45 = vector.shape_cast %44 : vector<16x16x128xbf16> to vector<256x128xbf16>
    %c5 = arith.constant 5 : index
    %c0_23 = arith.constant 0 : index
    %c0_24 = arith.constant 0 : index
    %46 = vector.load %arg3[%c5, %c0_23, %c0_24] : memref<9x128x128xbf16, #tpu.memory_space<vmem>>, vector<1x128x128xbf16>
    %47 = vector.shape_cast %46 : vector<1x128x128xbf16> to vector<128x128xbf16>
    %cst_25 = arith.constant dense<0.000000e+00> : vector<256x128xf32>
    %48 = tpu.matmul %45, %47, %cst_25 {dimension_numbers = #tpu.dot_dimension_numbers<[1], [0], [0], [1], [0, 0, 1, 1], [], []>} : vector<256x128xbf16>, vector<128x128xbf16>, vector<256x128xf32> -> vector<256x128xf32>
    %49 = arith.addf %43, %48 : vector<256x128xf32>
    %c2_i32 = arith.constant 2 : i32
    %50 = arith.addi %4, %c2_i32 : i32
    %c0_26 = arith.constant 0 : index
    %51 = arith.index_cast %50 : i32 to index
    %c0_27 = arith.constant 0 : index
    %c0_28 = arith.constant 0 : index
    %52 = vector.load %arg8[%c0_26, %51, %c0_27, %c0_28] : memref<1x18x18x128xbf16, #tpu.memory_space<vmem>>, vector<1x16x18x128xbf16>
    %53 = vector.shape_cast %52 : vector<1x16x18x128xbf16> to vector<16x18x128xbf16>
    %54 = vector.extract_strided_slice %53 {offsets = [0, 0, 0], sizes = [16, 16, 128], strides = [1, 1, 1]} : vector<16x18x128xbf16> to vector<16x16x128xbf16>
    %55 = vector.shape_cast %54 : vector<16x16x128xbf16> to vector<256x128xbf16>
    %c6 = arith.constant 6 : index
    %c0_29 = arith.constant 0 : index
    %c0_30 = arith.constant 0 : index
    %56 = vector.load %arg3[%c6, %c0_29, %c0_30] : memref<9x128x128xbf16, #tpu.memory_space<vmem>>, vector<1x128x128xbf16>
    %57 = vector.shape_cast %56 : vector<1x128x128xbf16> to vector<128x128xbf16>
    %cst_31 = arith.constant dense<0.000000e+00> : vector<256x128xf32>
    %58 = tpu.matmul %55, %57, %cst_31 {dimension_numbers = #tpu.dot_dimension_numbers<[1], [0], [0], [1], [0, 0, 1, 1], [], []>} : vector<256x128xbf16>, vector<128x128xbf16>, vector<256x128xf32> -> vector<256x128xf32>
    %59 = arith.addf %49, %58 : vector<256x128xf32>
    %60 = vector.extract_strided_slice %53 {offsets = [0, 1, 0], sizes = [16, 16, 128], strides = [1, 1, 1]} : vector<16x18x128xbf16> to vector<16x16x128xbf16>
    %61 = vector.shape_cast %60 : vector<16x16x128xbf16> to vector<256x128xbf16>
    %c7 = arith.constant 7 : index
    %c0_32 = arith.constant 0 : index
    %c0_33 = arith.constant 0 : index
    %62 = vector.load %arg3[%c7, %c0_32, %c0_33] : memref<9x128x128xbf16, #tpu.memory_space<vmem>>, vector<1x128x128xbf16>
    %63 = vector.shape_cast %62 : vector<1x128x128xbf16> to vector<128x128xbf16>
    %cst_34 = arith.constant dense<0.000000e+00> : vector<256x128xf32>
    %64 = tpu.matmul %61, %63, %cst_34 {dimension_numbers = #tpu.dot_dimension_numbers<[1], [0], [0], [1], [0, 0, 1, 1], [], []>} : vector<256x128xbf16>, vector<128x128xbf16>, vector<256x128xf32> -> vector<256x128xf32>
    %65 = arith.addf %59, %64 : vector<256x128xf32>
    %66 = vector.extract_strided_slice %53 {offsets = [0, 2, 0], sizes = [16, 16, 128], strides = [1, 1, 1]} : vector<16x18x128xbf16> to vector<16x16x128xbf16>
    %67 = vector.shape_cast %66 : vector<16x16x128xbf16> to vector<256x128xbf16>
    %c8 = arith.constant 8 : index
    %c0_35 = arith.constant 0 : index
    %c0_36 = arith.constant 0 : index
    %68 = vector.load %arg3[%c8, %c0_35, %c0_36] : memref<9x128x128xbf16, #tpu.memory_space<vmem>>, vector<1x128x128xbf16>
    %69 = vector.shape_cast %68 : vector<1x128x128xbf16> to vector<128x128xbf16>
    %cst_37 = arith.constant dense<0.000000e+00> : vector<256x128xf32>
    %70 = tpu.matmul %67, %69, %cst_37 {dimension_numbers = #tpu.dot_dimension_numbers<[1], [0], [0], [1], [0, 0, 1, 1], [], []>} : vector<256x128xbf16>, vector<128x128xbf16>, vector<256x128xf32> -> vector<256x128xf32>
    %71 = arith.addf %65, %70 : vector<256x128xf32>
    %72 = vector.shape_cast %71 : vector<256x128xf32> to vector<1x16x16x128xf32>
    %73 = arith.truncf %72 : vector<1x16x16x128xf32> to vector<1x16x16x128xbf16>
    %c0_38 = arith.constant 0 : index
    %c0_39 = arith.constant 0 : index
    %c0_40 = arith.constant 0 : index
    %c0_41 = arith.constant 0 : index
    %74 = vector.load %arg6[%c0_38, %c0_39, %c0_40, %c0_41] : memref<1x16x16x128xbf16, #tpu.memory_space<vmem>>, vector<1x16x16x128xbf16>
    tpu.vector_store %arg6[%c0_38, %c0_39, %c0_40, %c0_41], %73 {strides = array<i32>} : memref<1x16x16x128xbf16, #tpu.memory_space<vmem>>, vector<1x16x16x128xbf16>,
    %cst_42 = arith.constant dense<0.000000e+00> : vector<128xf32>
    %75 = vector.multi_reduction <add>, %71, %cst_42 [0] : vector<256x128xf32> to vector<128xf32>
    %76 = vector.shape_cast %75 : vector<128xf32> to vector<1x128xf32>
    %cst_43 = arith.constant 2.560000e+02 : f32
    %77 = vector.broadcast %cst_43 : f32 to vector<1x128xf32>
    %78 = arith.divf %76, %77 : vector<1x128xf32>
    %79 = vector.broadcast %78 : vector<1x128xf32> to vector<256x128xf32>
    %80 = arith.subf %71, %79 : vector<256x128xf32>
    %81 = arith.mulf %80, %80 : vector<256x128xf32>
    %cst_44 = arith.constant dense<0.000000e+00> : vector<128xf32>
    %82 = vector.multi_reduction <add>, %81, %cst_44 [0] : vector<256x128xf32> to vector<128xf32>
    %83 = vector.shape_cast %82 : vector<128xf32> to vector<1x128xf32>
    %c0_45 = arith.constant 0 : index
    %c0_46 = arith.constant 0 : index
    %c0_47 = arith.constant 0 : index
    %c0_48 = arith.constant 0 : index
    %84 = vector.load %arg7[%c0_45, %c0_46, %c0_47, %c0_48] : memref<1x1x2x128xf32, #tpu.memory_space<vmem>>, vector<1x1x1x128xf32>
    %85 = vector.shape_cast %84 : vector<1x1x1x128xf32> to vector<1x128xf32>
    %86 = vector.shape_cast %76 : vector<1x128xf32> to vector<1x1x1x128xf32>
    tpu.vector_store %arg7[%c0_45, %c0_46, %c0_47, %c0_48], %86 {strides = array<i32>} : memref<1x1x2x128xf32, #tpu.memory_space<vmem>>, vector<1x1x1x128xf32>,
    %c0_49 = arith.constant 0 : index
    %c0_50 = arith.constant 0 : index
    %c1_51 = arith.constant 1 : index
    %c0_52 = arith.constant 0 : index
    %87 = vector.load %arg7[%c0_49, %c0_50, %c1_51, %c0_52] : memref<1x1x2x128xf32, #tpu.memory_space<vmem>>, vector<1x1x1x128xf32>
    %88 = vector.shape_cast %87 : vector<1x1x1x128xf32> to vector<1x128xf32>
    %89 = vector.shape_cast %83 : vector<1x128xf32> to vector<1x1x1x128xf32>
    tpu.vector_store %arg7[%c0_49, %c0_50, %c1_51, %c0_52], %89 {strides = array<i32>} : memref<1x1x2x128xf32, #tpu.memory_space<vmem>>, vector<1x1x1x128xf32>,
    return
  }
  func.func @transform_0(%arg0: i32, %arg1: i32) -> (i32, i32, i32, i32) {
    %c0_i32 = arith.constant 0 : i32
    %c0_i32_0 = arith.constant 0 : i32
    %c0_i32_1 = arith.constant 0 : i32
    %c0_i32_2 = arith.constant 0 : i32
    return %arg0, %c0_i32, %c0_i32_0, %c0_i32_1 : i32, i32, i32, i32
  }
  func.func @transform_1(%arg0: i32, %arg1: i32) -> (i32, i32, i32) {
    %c0_i32 = arith.constant 0 : i32
    %c0_i32_0 = arith.constant 0 : i32
    %c0_i32_1 = arith.constant 0 : i32
    %c0_i32_2 = arith.constant 0 : i32
    return %c0_i32, %c0_i32_0, %c0_i32_1 : i32, i32, i32
  }
  func.func @transform_2(%arg0: i32, %arg1: i32) -> (i32, i32) {
    %c0_i32 = arith.constant 0 : i32
    %c0_i32_0 = arith.constant 0 : i32
    %c0_i32_1 = arith.constant 0 : i32
    return %c0_i32, %c0_i32_0 : i32, i32
  }
  func.func @transform_3(%arg0: i32, %arg1: i32) -> (i32, i32) {
    %c0_i32 = arith.constant 0 : i32
    %c0_i32_0 = arith.constant 0 : i32
    %c0_i32_1 = arith.constant 0 : i32
    return %c0_i32, %c0_i32_0 : i32, i32
  }
  func.func @transform_4(%arg0: i32, %arg1: i32) -> (i32, i32, i32, i32) {
    %c0_i32 = arith.constant 0 : i32
    %c0_i32_0 = arith.constant 0 : i32
    %c0_i32_1 = arith.constant 0 : i32
    return %arg0, %arg1, %c0_i32, %c0_i32_0 : i32, i32, i32, i32
  }
  func.func @transform_5(%arg0: i32, %arg1: i32) -> (i32, i32, i32, i32) {
    %c0_i32 = arith.constant 0 : i32
    %c0_i32_0 = arith.constant 0 : i32
    %c0_i32_1 = arith.constant 0 : i32
    return %arg0, %arg1, %c0_i32, %c0_i32_0 : i32, i32, i32, i32
  }
}

</mosaic_0001>

<llo_original>
// kernel: double_conv_forward.5
$region0: #{double_conv_forward.5}
  #allocation0 [shape = 'u32[]', space=smem, size = 0x4, offset = 0x4, fixed_abs, tag = 'smem constant byte address 0x4 - core index']
  #allocation1 [shape = 'u32[144,128]{1,0:T(1,128)}', space=vmem, size = 0x12000, scoped, tag = 'internal scratch']
  %s0 = inlined_call_operand.vmem [shape: bf16[512,128], index: 0, kind: input, shape index: {}]
  %s1 = inlined_call_operand.vmem [shape: f32[1,128], index: 1, kind: input, shape index: {}]
  %s2 = inlined_call_operand.vmem [shape: f32[1,128], index: 2, kind: input, shape index: {}]
  %s3 = inlined_call_operand.vmem [shape: f32[512,128], index: 3, kind: output, shape index: {}]
  %s4 = sld [smem:[#allocation0]]
  $region22: #{double_conv_forward.5} parent=0
    _
  %s6 = ssub.s32 1, %s4
  %s7 = scalar_select 0, %s6, %s4
  // Predicated region
  $region2: #{double_conv_forward.5} parent=0 // pred_check
    _
  $region3: #{double_conv_forward.5} parent=0 // pred_check_branch
    %9 = sbr.rel (0) target = $region5
  $region4: #{double_conv_forward.5} parent=0 // pred_region
    _
  $region5: #{double_conv_forward.5} parent=0 // pred_fallthru
    _
  // Predicated region
  $region6: #{double_conv_forward.5} parent=0 // pred_check
    _
  $region7: #{double_conv_forward.5} parent=0 // pred_check_branch
    %11 = sbr.rel (0) target = $region9
  $region8: #{double_conv_forward.5} parent=0 // pred_region
    _
  $region9: #{double_conv_forward.5} parent=0 // pred_fallthru
    _
  // Predicated region
  $region10: #{double_conv_forward.5} parent=0 // pred_check
    _
  $region11: #{double_conv_forward.5} parent=0 // pred_check_branch
    %13 = sbr.rel (0) target = $region13
  $region12: #{double_conv_forward.5} parent=0 // pred_region
    _
  $region13: #{double_conv_forward.5} parent=0 // pred_fallthru
    _
  %v14 = vld [vmem:[%s0] sm:$0xf]
  %v15 = vld [vmem:[%s0 + $0x4] sm:$0xf]
  %v16 = vld [vmem:[%s0 + $0x8] sm:$0xf]
  %v17 = vld [vmem:[%s0 + $0xc] sm:$0xf]
  %v18 = vld [vmem:[%s0 + $0x10] sm:$0xf]
  %v19 = vld [vmem:[%s0 + $0x14] sm:$0xf]
  %v20 = vld [vmem:[%s0 + $0x18] sm:$0xf]
  %v21 = vld [vmem:[%s0 + $0x1c] sm:$0xf]
  %v22 = vld [vmem:[%s0 + $0x20] sm:$0xf]
  %v23 = vld [vmem:[%s0 + $0x24] sm:$0xf]
  %v24 = vld [vmem:[%s0 + $0x28] sm:$0xf]
  %v25 = vld [vmem:[%s0 + $0x2c] sm:$0xf]
  %v26 = vld [vmem:[%s0 + $0x30] sm:$0xf]
  %v27 = vld [vmem:[%s0 + $0x34] sm:$0xf]
  %v28 = vld [vmem:[%s0 + $0x38] sm:$0xf]
  %v29 = vld [vmem:[%s0 + $0x3c] sm:$0xf]
  %v30 = vld [vmem:[%s0 + $0x40] sm:$0xf]
  %v31 = vld [vmem:[%s0 + $0x44] sm:$0xf]
  %v32 = vld [vmem:[%s0 + $0x48] sm:$0xf]
  %v33 = vld [vmem:[%s0 + $0x4c] sm:$0xf]
  %v34 = vld [vmem:[%s0 + $0x50] sm:$0xf]
  %v35 = vld [vmem:[%s0 + $0x54] sm:$0xf]
  %v36 = vld [vmem:[%s0 + $0x58] sm:$0xf]
  %v37 = vld [vmem:[%s0 + $0x5c] sm:$0xf]
  %v38 = vld [vmem:[%s0 + $0x60] sm:$0xf]
  %v39 = vld [vmem:[%s0 + $0x64] sm:$0xf]
  %v40 = vld [vmem:[%s0 + $0x68] sm:$0xf]
  %v41 = vld [vmem:[%s0 + $0x6c] sm:$0xf]
  %v42 = vld [vmem:[%s0 + $0x70] sm:$0xf]
  %v43 = vld [vmem:[%s0 + $0x74] sm:$0xf]
  %v44 = vld [vmem:[%s0 + $0x78] sm:$0xf]
  %v45 = vld [vmem:[%s0 + $0x7c] sm:$0xf]
  %v46 = vld [vmem:[%s0 + $0x80] sm:$0xf]
  %v47 = vld [vmem:[%s0 + $0x84] sm:$0xf]
  %v48 = vld [vmem:[%s0 + $0x88] sm:$0xf]
  %v49 = vld [vmem:[%s0 + $0x8c] sm:$0xf]
  %v50 = vld [vmem:[%s0 + $0x90] sm:$0xf]
  %v51 = vld [vmem:[%s0 + $0x94] sm:$0xf]
  %v52 = vld [vmem:[%s0 + $0x98] sm:$0xf]
  %v53 = vld [vmem:[%s0 + $0x9c] sm:$0xf]
  %v54 = vld [vmem:[%s0 + $0xa0] sm:$0xf]
  %v55 = vld [vmem:[%s0 + $0xa4] sm:$0xf]
  %v56 = vld [vmem:[%s0 + $0xa8] sm:$0xf]
  %v57 = vld [vmem:[%s0 + $0xac] sm:$0xf]
  %v58 = vld [vmem:[%s0 + $0xb0] sm:$0xf]
  %v59 = vld [vmem:[%s0 + $0xb4] sm:$0xf]
  %v60 = vld [vmem:[%s0 + $0xb8] sm:$0xf]
  %v61 = vld [vmem:[%s0 + $0xbc] sm:$0xf]
  %v62 = vld [vmem:[%s0 + $0xc0] sm:$0xf]
  %v63 = vld [vmem:[%s0 + $0xc4] sm:$0xf]
  %v64 = vld [vmem:[%s0 + $0xc8] sm:$0xf]
  %v65 = vld [vmem:[%s0 + $0xcc] sm:$0xf]
  %v66 = vld [vmem:[%s0 + $0xd0] sm:$0xf]
  %v67 = vld [vmem:[%s0 + $0xd4] sm:$0xf]
  %v68 = vld [vmem:[%s0 + $0xd8] sm:$0xf]
  %v69 = vld [vmem:[%s0 + $0xdc] sm:$0xf]
  %v70 = vld [vmem:[%s0 + $0xe0] sm:$0xf]
  %v71 = vld [vmem:[%s0 + $0xe4] sm:$0xf]
  %v72 = vld [vmem:[%s0 + $0xe8] sm:$0xf]
  %v73 = vld [vmem:[%s0 + $0xec] sm:$0xf]
  %v74 = vld [vmem:[%s0 + $0xf0] sm:$0xf]
  %v75 = vld [vmem:[%s0 + $0xf4] sm:$0xf]
  %v76 = vld [vmem:[%s0 + $0xf8] sm:$0xf]
  %v77 = vld [vmem:[%s0 + $0xfc] sm:$0xf]
  %v78 = vunpack.c.l.bf16 %v14
  %v79 = vunpack.c.l.bf16 %v15
  %v80 = vunpack.c.l.bf16 %v16
  %v81 = vunpack.c.l.bf16 %v17
  %v82 = vunpack.c.l.bf16 %v18
  %v83 = vunpack.c.l.bf16 %v19
  %v84 = vunpack.c.l.bf16 %v20
  %v85 = vunpack.c.l.bf16 %v21
  %v86 = vunpack.c.l.bf16 %v22
  %v87 = vunpack.c.l.bf16 %v23
  %v88 = vunpack.c.l.bf16 %v24
  %v89 = vunpack.c.l.bf16 %v25
  %v90 = vunpack.c.l.bf16 %v26
  %v91 = vunpack.c.l.bf16 %v27
  %v92 = vunpack.c.l.bf16 %v28
  %v93 = vunpack.c.l.bf16 %v29
  %v94 = vunpack.c.l.bf16 %v30
  %v95 = vunpack.c.l.bf16 %v31
  %v96 = vunpack.c.l.bf16 %v32
  %v97 = vunpack.c.l.bf16 %v33
  %v98 = vunpack.c.l.bf16 %v34
  %v99 = vunpack.c.l.bf16 %v35
  %v100 = vunpack.c.l.bf16 %v36
  %v101 = vunpack.c.l.bf16 %v37
  %v102 = vunpack.c.l.bf16 %v38
  %v103 = vunpack.c.l.bf16 %v39
  %v104 = vunpack.c.l.bf16 %v40
  %v105 = vunpack.c.l.bf16 %v41
  %v106 = vunpack.c.l.bf16 %v42
  %v107 = vunpack.c.l.bf16 %v43
  %v108 = vunpack.c.l.bf16 %v44
  %v109 = vunpack.c.l.bf16 %v45
  %v110 = vunpack.c.l.bf16 %v46
  %v111 = vunpack.c.l.bf16 %v47
  %v112 = vunpack.c.l.bf16 %v48
  %v113 = vunpack.c.l.bf16 %v49
  %v114 = vunpack.c.l.bf16 %v50
  %v115 = vunpack.c.l.bf16 %v51
  %v116 = vunpack.c.l.bf16 %v52
  %v117 = vunpack.c.l.bf16 %v53
  %v118 = vunpack.c.l.bf16 %v54
  %v119 = vunpack.c.l.bf16 %v55
  %v120 = vunpack.c.l.bf16 %v56
  %v121 = vunpack.c.l.bf16 %v57
  %v122 = vunpack.c.l.bf16 %v58
  %v123 = vunpack.c.l.bf16 %v59
  %v124 = vunpack.c.l.bf16 %v60
  %v125 = vunpack.c.l.bf16 %v61
  %v126 = vunpack.c.l.bf16 %v62
  %v127 = vunpack.c.l.bf16 %v63
  %v128 = vunpack.c.l.bf16 %v64
  %v129 = vunpack.c.l.bf16 %v65
  %v130 = vunpack.c.l.bf16 %v66
  %v131 = vunpack.c.l.bf16 %v67
  %v132 = vunpack.c.l.bf16 %v68
  %v133 = vunpack.c.l.bf16 %v69
  %v134 = vunpack.c.l.bf16 %v70
  %v135 = vunpack.c.l.bf16 %v71
  %v136 = vunpack.c.l.bf16 %v72
  %v137 = vunpack.c.l.bf16 %v73
  %v138 = vunpack.c.l.bf16 %v74
  %v139 = vunpack.c.l.bf16 %v75
  %v140 = vunpack.c.l.bf16 %v76
  %v141 = vunpack.c.l.bf16 %v77
  %v142 = vld [vmem:[%s1] sm:$0x1]
  %v144 = vlaneseq
  %v145 = vshrl.u32 %v144, 7
  %v146 = vsub.s32 0, %v145
  %v147 = vrot.slane %v142, %v146
  %v149 = vmul.f32 %v78, %v147
  %v150 = vmul.f32 %v79, %v147
  %v151 = vmul.f32 %v80, %v147
  %v152 = vmul.f32 %v81, %v147
  %v153 = vmul.f32 %v82, %v147
  %v154 = vmul.f32 %v83, %v147
  %v155 = vmul.f32 %v84, %v147
  %v156 = vmul.f32 %v85, %v147
  %v157 = vmul.f32 %v86, %v147
  %v158 = vmul.f32 %v87, %v147
  %v159 = vmul.f32 %v88, %v147
  %v160 = vmul.f32 %v89, %v147
  %v161 = vmul.f32 %v90, %v147
  %v162 = vmul.f32 %v91, %v147
  %v163 = vmul.f32 %v92, %v147
  %v164 = vmul.f32 %v93, %v147
  %v165 = vmul.f32 %v94, %v147
  %v166 = vmul.f32 %v95, %v147
  %v167 = vmul.f32 %v96, %v147
  %v168 = vmul.f32 %v97, %v147
  %v169 = vmul.f32 %v98, %v147
  %v170 = vmul.f32 %v99, %v147
  %v171 = vmul.f32 %v100, %v147
  %v172 = vmul.f32 %v101, %v147
  %v173 = vmul.f32 %v102, %v147
  %v174 = vmul.f32 %v103, %v147
  %v175 = vmul.f32 %v104, %v147
  %v176 = vmul.f32 %v105, %v147
  %v177 = vmul.f32 %v106, %v147
  %v178 = vmul.f32 %v107, %v147
  %v179 = vmul.f32 %v108, %v147
  %v180 = vmul.f32 %v109, %v147
  %v181 = vmul.f32 %v110, %v147
  %v182 = vmul.f32 %v111, %v147
  %v183 = vmul.f32 %v112, %v147
  %v184 = vmul.f32 %v113, %v147
  %v185 = vmul.f32 %v114, %v147
  %v186 = vmul.f32 %v115, %v147
  %v187 = vmul.f32 %v116, %v147
  %v188 = vmul.f32 %v117, %v147
  %v189 = vmul.f32 %v118, %v147
  %v190 = vmul.f32 %v119, %v147
  %v191 = vmul.f32 %v120, %v147
  %v192 = vmul.f32 %v121, %v147
  %v193 = vmul.f32 %v122, %v147
  %v194 = vmul.f32 %v123, %v147
  %v195 = vmul.f32 %v124, %v147
  %v196 = vmul.f32 %v125, %v147
  %v197 = vmul.f32 %v126, %v147
  %v198 = vmul.f32 %v127, %v147
  %v199 = vmul.f32 %v128, %v147
  %v200 = vmul.f32 %v129, %v147
  %v201 = vmul.f32 %v130, %v147
  %v202 = vmul.f32 %v131, %v147
  %v203 = vmul.f32 %v132, %v147
  %v204 = vmul.f32 %v133, %v147
  %v205 = vmul.f32 %v134, %v147
  %v206 = vmul.f32 %v135, %v147
  %v207 = vmul.f32 %v136, %v147
  %v208 = vmul.f32 %v137, %v147
  %v209 = vmul.f32 %v138, %v147
  %v210 = vmul.f32 %v139, %v147
  %v211 = vmul.f32 %v140, %v147
  %v212 = vmul.f32 %v141, %v147
  %v213 = vld [vmem:[%s2] sm:$0x1]
  %v215 = vlaneseq
  %v216 = vshrl.u32 %v215, 7
  %v217 = vsub.s32 0, %v216
  %v218 = vrot.slane %v213, %v217
  %v220 = vadd.f32 %v149, %v218
  %v221 = vadd.f32 %v150, %v218
  %v222 = vadd.f32 %v151, %v218
  %v223 = vadd.f32 %v152, %v218
  %v224 = vadd.f32 %v153, %v218
  %v225 = vadd.f32 %v154, %v218
  %v226 = vadd.f32 %v155, %v218
  %v227 = vadd.f32 %v156, %v218
  %v228 = vadd.f32 %v157, %v218
  %v229 = vadd.f32 %v158, %v218
  %v230 = vadd.f32 %v159, %v218
  %v231 = vadd.f32 %v160, %v218
  %v232 = vadd.f32 %v161, %v218
  %v233 = vadd.f32 %v162, %v218
  %v234 = vadd.f32 %v163, %v218
  %v235 = vadd.f32 %v164, %v218
  %v236 = vadd.f32 %v165, %v218
  %v237 = vadd.f32 %v166, %v218
  %v238 = vadd.f32 %v167, %v218
  %v239 = vadd.f32 %v168, %v218
  %v240 = vadd.f32 %v169, %v218
  %v241 = vadd.f32 %v170, %v218
  %v242 = vadd.f32 %v171, %v218
  %v243 = vadd.f32 %v172, %v218
  %v244 = vadd.f32 %v173, %v218
  %v245 = vadd.f32 %v174, %v218
  %v246 = vadd.f32 %v175, %v218
  %v247 = vadd.f32 %v176, %v218
  %v248 = vadd.f32 %v177, %v218
  %v249 = vadd.f32 %v178, %v218
  %v250 = vadd.f32 %v179, %v218
  %v251 = vadd.f32 %v180, %v218
  %v252 = vadd.f32 %v181, %v218
  %v253 = vadd.f32 %v182, %v218
  %v254 = vadd.f32 %v183, %v218
  %v255 = vadd.f32 %v184, %v218
  %v256 = vadd.f32 %v185, %v218
  %v257 = vadd.f32 %v186, %v218
  %v258 = vadd.f32 %v187, %v218
  %v259 = vadd.f32 %v188, %v218
  %v260 = vadd.f32 %v189, %v218
  %v261 = vadd.f32 %v190, %v218
  %v262 = vadd.f32 %v191, %v218
  %v263 = vadd.f32 %v192, %v218
  %v264 = vadd.f32 %v193, %v218
  %v265 = vadd.f32 %v194, %v218
  %v266 = vadd.f32 %v195, %v218
  %v267 = vadd.f32 %v196, %v218
  %v268 = vadd.f32 %v197, %v218
  %v269 = vadd.f32 %v198, %v218
  %v270 = vadd.f32 %v199, %v218
  %v271 = vadd.f32 %v200, %v218
  %v272 = vadd.f32 %v201, %v218
  %v273 = vadd.f32 %v202, %v218
  %v274 = vadd.f32 %v203, %v218
  %v275 = vadd.f32 %v204, %v218
  %v276 = vadd.f32 %v205, %v218
  %v277 = vadd.f32 %v206, %v218
  %v278 = vadd.f32 %v207, %v218
  %v279 = vadd.f32 %v208, %v218
  %v280 = vadd.f32 %v209, %v218
  %v281 = vadd.f32 %v210, %v218
  %v282 = vadd.f32 %v211, %v218
  %v283 = vadd.f32 %v212, %v218
  %v284 = vmax.f32 %v220, 0.0
  %v285 = vmax.f32 %v221, 0.0
  %v286 = vmax.f32 %v222, 0.0
  %v287 = vmax.f32 %v223, 0.0
  %v288 = vmax.f32 %v224, 0.0
  %v289 = vmax.f32 %v225, 0.0
  %v290 = vmax.f32 %v226, 0.0
  %v291 = vmax.f32 %v227, 0.0
  %v292 = vmax.f32 %v228, 0.0
  %v293 = vmax.f32 %v229, 0.0
  %v294 = vmax.f32 %v230, 0.0
  %v295 = vmax.f32 %v231, 0.0
  %v296 = vmax.f32 %v232, 0.0
  %v297 = vmax.f32 %v233, 0.0
  %v298 = vmax.f32 %v234, 0.0
  %v299 = vmax.f32 %v235, 0.0
  %v300 = vmax.f32 %v236, 0.0
  %v301 = vmax.f32 %v237, 0.0
  %v302 = vmax.f32 %v238, 0.0
  %v303 = vmax.f32 %v239, 0.0
  %v304 = vmax.f32 %v240, 0.0
  %v305 = vmax.f32 %v241, 0.0
  %v306 = vmax.f32 %v242, 0.0
  %v307 = vmax.f32 %v243, 0.0
  %v308 = vmax.f32 %v244, 0.0
  %v309 = vmax.f32 %v245, 0.0
  %v310 = vmax.f32 %v246, 0.0
  %v311 = vmax.f32 %v247, 0.0
  %v312 = vmax.f32 %v248, 0.0
  %v313 = vmax.f32 %v249, 0.0
  %v314 = vmax.f32 %v250, 0.0
  %v315 = vmax.f32 %v251, 0.0
  %v316 = vmax.f32 %v252, 0.0
  %v317 = vmax.f32 %v253, 0.0
  %v318 = vmax.f32 %v254, 0.0
  %v319 = vmax.f32 %v255, 0.0
  %v320 = vmax.f32 %v256, 0.0
  %v321 = vmax.f32 %v257, 0.0
  %v322 = vmax.f32 %v258, 0.0
  %v323 = vmax.f32 %v259, 0.0
  %v324 = vmax.f32 %v260, 0.0
  %v325 = vmax.f32 %v261, 0.0
  %v326 = vmax.f32 %v262, 0.0
  %v327 = vmax.f32 %v263, 0.0
  %v328 = vmax.f32 %v264, 0.0
  %v329 = vmax.f32 %v265, 0.0
  %v330 = vmax.f32 %v266, 0.0
  %v331 = vmax.f32 %v267, 0.0
  %v332 = vmax.f32 %v268, 0.0
  %v333 = vmax.f32 %v269, 0.0
  %v334 = vmax.f32 %v270, 0.0
  %v335 = vmax.f32 %v271, 0.0
  %v336 = vmax.f32 %v272, 0.0
  %v337 = vmax.f32 %v273, 0.0
  %v338 = vmax.f32 %v274, 0.0
  %v339 = vmax.f32 %v275, 0.0
  %v340 = vmax.f32 %v276, 0.0
  %v341 = vmax.f32 %v277, 0.0
  %v342 = vmax.f32 %v278, 0.0
  %v343 = vmax.f32 %v279, 0.0
  %v344 = vmax.f32 %v280, 0.0
  %v345 = vmax.f32 %v281, 0.0
  %v346 = vmax.f32 %v282, 0.0
  %v347 = vmax.f32 %v283, 0.0
  %348 = vst [vmem:[%s3] sm:$0xff] %v284
  %349 = vst [vmem:[%s3 + $0x8] sm:$0xff] %v285
  %350 = vst [vmem:[%s3 + $0x10] sm:$0xff] %v286
  %351 = vst [vmem:[%s3 + $0x18] sm:$0xff] %v287
  %352 = vst [vmem:[%s3 + $0x20] sm:$0xff] %v288
  %353 = vst [vmem:[%s3 + $0x28] sm:$0xff] %v289
  %354 = vst [vmem:[%s3 + $0x30] sm:$0xff] %v290
  %355 = vst [vmem:[%s3 + $0x38] sm:$0xff] %v291
  %356 = vst [vmem:[%s3 + $0x40] sm:$0xff] %v292
  %357 = vst [vmem:[%s3 + $0x48] sm:$0xff] %v293
  %358 = vst [vmem:[%s3 + $0x50] sm:$0xff] %v294
  %359 = vst [vmem:[%s3 + $0x58] sm:$0xff] %v295
  %360 = vst [vmem:[%s3 + $0x60] sm:$0xff] %v296
  %361 = vst [vmem:[%s3 + $0x68] sm:$0xff] %v297
  %362 = vst [vmem:[%s3 + $0x70] sm:$0xff] %v298
  %363 = vst [vmem:[%s3 + $0x78] sm:$0xff] %v299
  %364 = vst [vmem:[%s3 + $0x80] sm:$0xff] %v300
  %365 = vst [vmem:[%s3 + $0x88] sm:$0xff] %v301
  %366 = vst [vmem:[%s3 + $0x90] sm:$0xff] %v302
  %367 = vst [vmem:[%s3 + $0x98] sm:$0xff] %v303
  %368 = vst [vmem:[%s3 + $0xa0] sm:$0xff] %v304
  %369 = vst [vmem:[%s3 + $0xa8] sm:$0xff] %v305
  %370 = vst [vmem:[%s3 + $0xb0] sm:$0xff] %v306
  %371 = vst [vmem:[%s3 + $0xb8] sm:$0xff] %v307
  %372 = vst [vmem:[%s3 + $0xc0] sm:$0xff] %v308
  %373 = vst [vmem:[%s3 + $0xc8] sm:$0xff] %v309
  %374 = vst [vmem:[%s3 + $0xd0] sm:$0xff] %v310
  %375 = vst [vmem:[%s3 + $0xd8] sm:$0xff] %v311
  %376 = vst [vmem:[%s3 + $0xe0] sm:$0xff] %v312
  %377 = vst [vmem:[%s3 + $0xe8] sm:$0xff] %v313
  %378 = vst [vmem:[%s3 + $0xf0] sm:$0xff] %v314
  %379 = vst [vmem:[%s3 + $0xf8] sm:$0xff] %v315
  %380 = vst [vmem:[%s3 + $0x100] sm:$0xff] %v316
  %381 = vst [vmem:[%s3 + $0x108] sm:$0xff] %v317
  %382 = vst [vmem:[%s3 + $0x110] sm:$0xff] %v318
  %383 = vst [vmem:[%s3 + $0x118] sm:$0xff] %v319
  %384 = vst [vmem:[%s3 + $0x120] sm:$0xff] %v320
  %385 = vst [vmem:[%s3 + $0x128] sm:$0xff] %v321
  %386 = vst [vmem:[%s3 + $0x130] sm:$0xff] %v322
  %387 = vst [vmem:[%s3 + $0x138] sm:$0xff] %v323
  %388 = vst [vmem:[%s3 + $0x140] sm:$0xff] %v324
  %389 = vst [vmem:[%s3 + $0x148] sm:$0xff] %v325
  %390 = vst [vmem:[%s3 + $0x150] sm:$0xff] %v326
  %391 = vst [vmem:[%s3 + $0x158] sm:$0xff] %v327
  %392 = vst [vmem:[%s3 + $0x160] sm:$0xff] %v328
  %393 = vst [vmem:[%s3 + $0x168] sm:$0xff] %v329
  %394 = vst [vmem:[%s3 + $0x170] sm:$0xff] %v330
  %395 = vst [vmem:[%s3 + $0x178] sm:$0xff] %v331
  %396 = vst [vmem:[%s3 + $0x180] sm:$0xff] %v332
  %397 = vst [vmem:[%s3 + $0x188] sm:$0xff] %v333
  %398 = vst [vmem:[%s3 + $0x190] sm:$0xff] %v334
  %399 = vst [vmem:[%s3 + $0x198] sm:$0xff] %v335
  %400 = vst [vmem:[%s3 + $0x1a0] sm:$0xff] %v336
  %401 = vst [vmem:[%s3 + $0x1a8] sm:$0xff] %v337
  %402 = vst [vmem:[%s3 + $0x1b0] sm:$0xff] %v338
  %403 = vst [vmem:[%s3 + $0x1b8] sm:$0xff] %v339
  %404 = vst [vmem:[%s3 + $0x1c0] sm:$0xff] %v340
  %405 = vst [vmem:[%s3 + $0x1c8] sm:$0xff] %v341
  %406 = vst [vmem:[%s3 + $0x1d0] sm:$0xff] %v342
  %407 = vst [vmem:[%s3 + $0x1d8] sm:$0xff] %v343
  %408 = vst [vmem:[%s3 + $0x1e0] sm:$0xff] %v344
  %409 = vst [vmem:[%s3 + $0x1e8] sm:$0xff] %v345
  %410 = vst [vmem:[%s3 + $0x1f0] sm:$0xff] %v346
  %411 = vst [vmem:[%s3 + $0x1f8] sm:$0xff] %v347
  // Predicated region
  $region14: #{double_conv_forward.5} parent=0 // pred_check
    _
  $region15: #{double_conv_forward.5} parent=0 // pred_check_branch
    %413 = sbr.rel (0) target = $region17
  $region16: #{double_conv_forward.5} parent=0 // pred_region
    _
  $region17: #{double_conv_forward.5} parent=0 // pred_fallthru
    _
  // Predicated region
  $region18: #{double_conv_forward.5} parent=0 // pred_check
    _
  $region19: #{double_conv_forward.5} parent=0 // pred_check_branch
    %415 = sbr.rel (0) target = $region21
  $region20: #{double_conv_forward.5} parent=0 // pred_region
    _
  $region21: #{double_conv_forward.5} parent=0 // pred_fallthru
    _

// kernel: double_conv_forward.3
$region0: #{double_conv_forward.3}
  #allocation0 [shape = 'u32[]', space=smem, size = 0x4, offset = 0x4, fixed_abs, tag = 'smem constant byte address 0x4 - core index']
  #allocation1 [shape = 'u32[144,128]{1,0:T(1,128)}', space=vmem, size = 0x12000, scoped, tag = 'internal scratch']
  #allocation2 [shape = 'bf16[1,18,18,128]{3,2,1,0:T(8,128)(2,1)}', space=vmem, size = 0x1b000, scoped, tag = 'scratch operand']
  %s0 = inlined_call_operand.vmem [shape: bf16[2,16,16,128], index: 0, kind: input, shape index: {}]
  %s1 = inlined_call_operand.vmem [shape: bf16[9,128,128], index: 1, kind: input, shape index: {}]
  %s2 = inlined_call_operand.vmem [shape: f32[1,128], index: 2, kind: input, shape index: {}]
  %s3 = inlined_call_operand.vmem [shape: f32[1,128], index: 3, kind: input, shape index: {}]
  %s4 = inlined_call_operand.vmem [shape: bf16[2,16,16,128], index: 4, kind: output, shape index: {0}]
  %s5 = inlined_call_operand.vmem [shape: f32[2,1,2,128], index: 5, kind: output, shape index: {1}]
  %6 = xla_tuple %s4, %s5
  %s7 = sld [smem:[#allocation0]]
  $region61: #{double_conv_forward.3} parent=0
    _
  %s9 = ssub.s32 1, %s7
  %s10 = scalar_select 0, %s9, %s7
  loop: start=0, step=1, limit=4
  $region2: #{double_conv_forward.3} parent=0 // loop_pre_header
    _
  $region3: #{double_conv_forward.3} parent=0 // loop_header
    %s12 = sphi 0, %s16
    %p13 = scmp.ge.s32.totalorder %s12, 4
    %s19 = sphi 0, %s31
    %s20 = sphi 0, %s27
    %s21 = sphi 0, %s19
    %s22 = sphi 0, %s20
    %s23 = sphi 0, %s21
    %s24 = sphi 0, %s22
    %s34 = sphi 0, %s36
    %s37 = sphi 0, %s34
    %s38 = sphi 0, %s37
    %s54 = sphi 0, %s38
    %s58 = sphi 0, %s58
    %s60 = sphi 0, %s58
    %s61 = sphi 0, %s60
    %s75 = sphi 0, %s61
    %s79 = sphi 0, %s79
    %s81 = sphi 0, %s79
    %s82 = sphi 0, %s81
    %s96 = sphi 0, %s82
    %s100 = sphi 0, %s100
    %s102 = sphi 0, %s100
    %s103 = sphi 0, %s102
    %s117 = sphi 0, %s103
    %s125 = sphi 0, %s127
    %s128 = sphi 0, %s125
    %s129 = sphi 0, %s128
    %s145 = sphi 0, %s129
    %s153 = sphi 0, %s155
    %s156 = sphi 0, %s153
    %s157 = sphi 0, %s156
    %s173 = sphi 0, %s157
  $region4: #{double_conv_forward.3} parent=0 // loop_header_branch
    %15 = sbr.rel (%p13) target = $region8
  $region5: #{double_conv_forward.3} parent=0 // loop_body
    %s17 = ssub.s32 %s12, 1
    %s18 = ssub.s32 %s12, 2
    %s25 = sadd.s32 1, %s20
    %p26 = scmp.ge.s32.totalorder %s25, 1
    %s27 = scalar_select %p26, 0, %s25
    %s28 = sadd.s32 1, %s19
    %s29 = scalar_select %p26, %s28, %s19
    %p30 = scmp.ge.s32.totalorder %s29, 2
    %s31 = scalar_select %p30, 0, %s29
    %s32 = ssub.s32 %s19, %s31
    %p33 = scmp.eq.s32.totalorder %s32, 0
    %s35 = sadd.s32 %s34, 1
    %s36 = scalar_select %p33, %s34, %s35
    %p39 = pneg %p33
    %p40 = scmp.eq.s32.totalorder %s12, 1
    %p41 = por %p39, %p40
    %p42 = scmp.ne.s32.totalorder %s34, %s37
    %p43 = scmp.eq.s32.totalorder %s12, 0
    %p44 = por %p42, %p43
    %p45 = scmp.ne.s32.totalorder %s34, %s37
    %p46 = scmp.eq.s32.totalorder %s17, 1
    %p47 = por %p45, %p46
    %p48 = scmp.ne.s32.totalorder %s37, %s38
    %p49 = scmp.eq.s32.totalorder %s17, 0
    %p50 = por %p48, %p49
    %p51 = scmp.ne.s32.totalorder %s37, %s38
    %p52 = scmp.eq.s32.totalorder %s18, 1
    %p53 = por %p51, %p52
    %p55 = scmp.ne.s32.totalorder %s38, %s54
    %p56 = scmp.eq.s32.totalorder %s18, 0
    %p57 = por %p55, %p56
    %s59 = sadd.s32 %s58, 1
    %p62 = scmp.eq.s32.totalorder %s12, 1
    %p63 = scmp.ne.s32.totalorder %s58, %s60
    %p64 = scmp.eq.s32.totalorder %s12, 0
    %p65 = por %p63, %p64
    %p66 = scmp.ne.s32.totalorder %s58, %s60
    %p67 = scmp.eq.s32.totalorder %s17, 1
    %p68 = por %p66, %p67
    %p69 = scmp.ne.s32.totalorder %s60, %s61
    %p70 = scmp.eq.s32.totalorder %s17, 0
    %p71 = por %p69, %p70
    %p72 = scmp.ne.s32.totalorder %s60, %s61
    %p73 = scmp.eq.s32.totalorder %s18, 1
    %p74 = por %p72, %p73
    %p76 = scmp.ne.s32.totalorder %s61, %s75
    %p77 = scmp.eq.s32.totalorder %s18, 0
    %p78 = por %p76, %p77
    %s80 = sadd.s32 %s79, 1
    %p83 = scmp.eq.s32.totalorder %s12, 1
    %p84 = scmp.ne.s32.totalorder %s79, %s81
    %p85 = scmp.eq.s32.totalorder %s12, 0
    %p86 = por %p84, %p85
    %p87 = scmp.ne.s32.totalorder %s79, %s81
    %p88 = scmp.eq.s32.totalorder %s17, 1
    %p89 = por %p87, %p88
    %p90 = scmp.ne.s32.totalorder %s81, %s82
    %p91 = scmp.eq.s32.totalorder %s17, 0
    %p92 = por %p90, %p91
    %p93 = scmp.ne.s32.totalorder %s81, %s82
    %p94 = scmp.eq.s32.totalorder %s18, 1
    %p95 = por %p93, %p94
    %p97 = scmp.ne.s32.totalorder %s82, %s96
    %p98 = scmp.eq.s32.totalorder %s18, 0
    %p99 = por %p97, %p98
    %s101 = sadd.s32 %s100, 1
    %p104 = scmp.eq.s32.totalorder %s12, 1
    %p105 = scmp.ne.s32.totalorder %s100, %s102
    %p106 = scmp.eq.s32.totalorder %s12, 0
    %p107 = por %p105, %p106
    %p108 = scmp.ne.s32.totalorder %s100, %s102
    %p109 = scmp.eq.s32.totalorder %s17, 1
    %p110 = por %p108, %p109
    %p111 = scmp.ne.s32.totalorder %s102, %s103
    %p112 = scmp.eq.s32.totalorder %s17, 0
    %p113 = por %p111, %p112
    %p114 = scmp.ne.s32.totalorder %s102, %s103
    %p115 = scmp.eq.s32.totalorder %s18, 1
    %p116 = por %p114, %p115
    %p118 = scmp.ne.s32.totalorder %s103, %s117
    %p119 = scmp.eq.s32.totalorder %s18, 0
    %p120 = por %p118, %p119
    %s121 = ssub.s32 %s19, %s31
    %s122 = ssub.s32 %s20, %s27
    %s123 = sor.u32 %s121, %s122
    %p124 = scmp.eq.s32.totalorder %s123, 0
    %s126 = sadd.s32 %s125, 1
    %s127 = scalar_select %p124, %s125, %s126
    %p130 = pneg %p124
    %p131 = scmp.eq.s32.totalorder %s12, 1
    %p132 = por %p130, %p131
    %p133 = scmp.ne.s32.totalorder %s125, %s128
    %p134 = scmp.eq.s32.totalorder %s12, 0
    %p135 = por %p133, %p134
    %p136 = scmp.ne.s32.totalorder %s125, %s128
    %p137 = scmp.eq.s32.totalorder %s17, 1
    %p138 = por %p136, %p137
    %p139 = scmp.ne.s32.totalorder %s128, %s129
    %p140 = scmp.eq.s32.totalorder %s17, 0
    %p141 = por %p139, %p140
    %p142 = scmp.ne.s32.totalorder %s128, %s129
    %p143 = scmp.eq.s32.totalorder %s18, 1
    %p144 = por %p142, %p143
    %p146 = scmp.ne.s32.totalorder %s129, %s145
    %p147 = scmp.eq.s32.totalorder %s18, 0
    %p148 = por %p146, %p147
    %s149 = ssub.s32 %s19, %s31
    %s150 = ssub.s32 %s20, %s27
    %s151 = sor.u32 %s149, %s150
    %p152 = scmp.eq.s32.totalorder %s151, 0
    %s154 = sadd.s32 %s153, 1
    %s155 = scalar_select %p152, %s153, %s154
    %p158 = pneg %p152
    %p159 = scmp.eq.s32.totalorder %s12, 1
    %p160 = por %p158, %p159
    %p161 = scmp.ne.s32.totalorder %s153, %s156
    %p162 = scmp.eq.s32.totalorder %s12, 0
    %p163 = por %p161, %p162
    %p164 = scmp.ne.s32.totalorder %s153, %s156
    %p165 = scmp.eq.s32.totalorder %s17, 1
    %p166 = por %p164, %p165
    %p167 = scmp.ne.s32.totalorder %s156, %s157
    %p168 = scmp.eq.s32.totalorder %s17, 0
    %p169 = por %p167, %p168
    %p170 = scmp.ne.s32.totalorder %s156, %s157
    %p171 = scmp.eq.s32.totalorder %s18, 1
    %p172 = por %p170, %p171
    %p174 = scmp.ne.s32.totalorder %s157, %s173
    %p175 = scmp.eq.s32.totalorder %s18, 0
    %p176 = por %p174, %p175
    %p177 = scmp.le.s32.totalorder 1, %s12
    %p178 = scmp.lt.s32.totalorder %s12, 3
    %p179 = pnand %p177, %p178
    %p180 = pneg %p179
    // Predicated region
    $region9: #{double_conv_forward.3} parent=5 // pred_check
      _
    $region10: #{double_conv_forward.3} parent=5 // pred_check_branch
      %182 = sbr.rel (%p179) target = $region12
    $region11: #{double_conv_forward.3} parent=5 // pred_region
      %s183 = ssub.s32 %s12, 1
      // Predicated region
      $region13: #{double_conv_forward.3} parent=11 // pred_check
        %p184 = pneg %p71
      $region14: #{double_conv_forward.3} parent=11 // pred_check_branch
        %186 = sbr.rel (%p184) target = $region16
      $region15: #{double_conv_forward.3} parent=11 // pred_region
        _
      $region16: #{double_conv_forward.3} parent=11 // pred_fallthru
        _
      // Predicated region
      $region17: #{double_conv_forward.3} parent=11 // pred_check
        %p187 = pneg %p92
      $region18: #{double_conv_forward.3} parent=11 // pred_check_branch
        %189 = sbr.rel (%p187) target = $region20
      $region19: #{double_conv_forward.3} parent=11 // pred_region
        _
      $region20: #{double_conv_forward.3} parent=11 // pred_fallthru
        _
      // Predicated region
      $region21: #{double_conv_forward.3} parent=11 // pred_check
        %p190 = pneg %p113
      $region22: #{double_conv_forward.3} parent=11 // pred_check_branch
        %192 = sbr.rel (%p190) target = $region24
      $region23: #{double_conv_forward.3} parent=11 // pred_region
        _
      $region24: #{double_conv_forward.3} parent=11 // pred_fallthru
        _
    $region12: #{double_conv_forward.3} parent=5 // pred_fallthru
      _
    %p193 = scmp.lt.s32.totalorder %s12, 2
    // Predicated region
    $region25: #{double_conv_forward.3} parent=5 // pred_check
      %p194 = pneg %p193
    $region26: #{double_conv_forward.3} parent=5 // pred_check_branch
      %196 = sbr.rel (%p194) target = $region28
    $region27: #{double_conv_forward.3} parent=5 // pred_region
      // Predicated region
      $region29: #{double_conv_forward.3} parent=27 // pred_check
        %p197 = pneg %p44
      $region30: #{double_conv_forward.3} parent=27 // pred_check_branch
        %199 = sbr.rel (%p197) target = $region32
      $region31: #{double_conv_forward.3} parent=27 // pred_region
        %p200 = scmp.lt.s32.totalorder %s19, 1
        %s201 = scalar_select %p200, %s19, 1
        %s202 = smul.addr %s201, 32
        %s203 = smul.addr %s202, 4
        %s204 = scalar_lea.vmem %s0, %s203
      $region32: #{double_conv_forward.3} parent=27 // pred_fallthru
        _
    $region28: #{double_conv_forward.3} parent=5 // pred_fallthru
      _
    %p205 = scmp.le.s32.totalorder 1, %s12
    %p206 = scmp.lt.s32.totalorder %s12, 3
    %p207 = pnand %p205, %p206
    %p208 = pneg %p207
    // Predicated region
    $region33: #{double_conv_forward.3} parent=5 // pred_check
      _
    $region34: #{double_conv_forward.3} parent=5 // pred_check_branch
      %210 = sbr.rel (%p207) target = $region36
    $region35: #{double_conv_forward.3} parent=5 // pred_region
      %s211 = ssub.s32 %s12, 1
      %p212 = scmp.lt.s32.totalorder %s21, 1
      %s213 = scalar_select %p212, %s21, 1
      %s214 = smul.addr %s213, 32
      %s215 = smul.addr %s214, 4
      %s216 = scalar_lea.vmem %s0, %s215
      %p217 = pneg %p50
      %p218 = pneg %p47
      %p219 = pneg %p71
      %p220 = pneg %p68
      %p221 = pneg %p92
      %p222 = pneg %p89
      %p223 = pneg %p113
      %p224 = pneg %p110
      %p225 = pneg %p141
      %p226 = pneg %p138
      %s227 = smul.u32 16, %s22
      %p228 = scmp.lt.s32.totalorder %s21, 1
      %s229 = scalar_select %p228, %s21, 1
      %p230 = scmp.lt.s32.totalorder %s227, 15
      %s231 = scalar_select %p230, %s227, 15
      %s232 = smul.addr %s231, 2
      %s233 = smul.addr %s229, 32
      %s234 = sadd.s32 %s232, %s233
      %s235 = smul.addr %s234, 4
      %s236 = scalar_lea.vmem %s4, %s235
      %p237 = pneg %p169
      %p238 = pneg %p166
      %p239 = scmp.lt.s32.totalorder %s21, 1
      %s240 = scalar_select %p239, %s21, 1
      %p241 = scmp.lt.s32.totalorder %s22, 0
      %s242 = scalar_select %p241, %s22, 0
      %s243 = sadd.s32 %s242, %s240
      %s244 = smul.addr %s243, 2
      %s245 = scalar_lea.vmem %s5, %s244
      %p246 = scmp.lt.s32.totalorder %s21, 1
      %s247 = scalar_select %p246, %s21, 1
      %s248 = smul.addr %s247, 32
      %s249 = smul.addr %s248, 4
      %s250 = scalar_lea.vmem %s0, %s249
      %s251 = smul.u32 16, %s22
      %p252 = scmp.lt.s32.totalorder %s21, 1
      %s253 = scalar_select %p252, %s21, 1
      %p254 = scmp.lt.s32.totalorder %s251, 15
      %s255 = scalar_select %p254, %s251, 15
      %s256 = smul.addr %s255, 2
      %s257 = smul.addr %s253, 32
      %s258 = sadd.s32 %s256, %s257
      %s259 = smul.addr %s258, 4
      %s260 = scalar_lea.vmem %s4, %s259
      %s261 = smul.u32 16, %s22
      %p262 = scmp.lt.s32.totalorder %s21, 1
      %s263 = scalar_select %p262, %s21, 1
      %p264 = scmp.lt.s32.totalorder %s22, 0
      %s265 = scalar_select %p264, %s22, 0
      %s266 = sadd.s32 %s265, %s263
      %s267 = smul.addr %s266, 2
      %s268 = scalar_lea.vmem %s5, %s267
      %p270 = scmp.eq.s32.totalorder %s22, 0
      // Predicated region
      $region37: #{double_conv_forward.3} parent=35 // pred_check
        %p271 = pneg %p270
      $region38: #{double_conv_forward.3} parent=35 // pred_check_branch
        %273 = sbr.rel (%p271) target = $region40
      $region39: #{double_conv_forward.3} parent=35 // pred_region
        %v274 = vld [vmem:[%s250] sm:$0xf]
        %v275 = vld [vmem:[%s250 + $0x4] sm:$0xf]
        %v276 = vld [vmem:[%s250 + $0x8] sm:$0xf]
        %v277 = vld [vmem:[%s250 + $0xc] sm:$0xf]
        %v278 = vld [vmem:[%s250 + $0x10] sm:$0xf]
        %v279 = vld [vmem:[%s250 + $0x14] sm:$0xf]
        %v280 = vld [vmem:[%s250 + $0x18] sm:$0xf]
        %v281 = vld [vmem:[%s250 + $0x1c] sm:$0xf]
        %v282 = vld [vmem:[%s250 + $0x20] sm:$0xf]
        %v283 = vld [vmem:[%s250 + $0x24] sm:$0xf]
        %v284 = vld [vmem:[%s250 + $0x28] sm:$0xf]
        %v285 = vld [vmem:[%s250 + $0x2c] sm:$0xf]
        %v286 = vld [vmem:[%s250 + $0x30] sm:$0xf]
        %v287 = vld [vmem:[%s250 + $0x34] sm:$0xf]
        %v288 = vld [vmem:[%s250 + $0x38] sm:$0xf]
        %v289 = vld [vmem:[%s250 + $0x3c] sm:$0xf]
        %v290 = vld [vmem:[%s250 + $0x40] sm:$0xf]
        %v291 = vld [vmem:[%s250 + $0x44] sm:$0xf]
        %v292 = vld [vmem:[%s250 + $0x48] sm:$0xf]
        %v293 = vld [vmem:[%s250 + $0x4c] sm:$0xf]
        %v294 = vld [vmem:[%s250 + $0x50] sm:$0xf]
        %v295 = vld [vmem:[%s250 + $0x54] sm:$0xf]
        %v296 = vld [vmem:[%s250 + $0x58] sm:$0xf]
        %v297 = vld [vmem:[%s250 + $0x5c] sm:$0xf]
        %v298 = vld [vmem:[%s250 + $0x60] sm:$0xf]
        %v299 = vld [vmem:[%s250 + $0x64] sm:$0xf]
        %v300 = vld [vmem:[%s250 + $0x68] sm:$0xf]
        %v301 = vld [vmem:[%s250 + $0x6c] sm:$0xf]
        %v302 = vld [vmem:[%s250 + $0x70] sm:$0xf]
        %v303 = vld [vmem:[%s250 + $0x74] sm:$0xf]
        %v304 = vld [vmem:[%s250 + $0x78] sm:$0xf]
        %v305 = vld [vmem:[%s250 + $0x7c] sm:$0xf]
        %306 = vst [vmem:[#allocation2] sm:$0xf] 0
        %307 = vst [vmem:[#allocation2 + $0x4] sm:$0xf] 0
        %308 = vst [vmem:[#allocation2 + $0x8] sm:$0x1] 0
        %309 = vst [vmem:[#allocation2 + $0xc] sm:$0xf] 0
        %310 = vst [vmem:[#allocation2 + $0x10] sm:$0xf] 0
        %311 = vst [vmem:[#allocation2 + $0x14] sm:$0x1] 0
        %312 = vst [vmem:[#allocation2 + $0x18] sm:$0xf] 0
        %313 = vst [vmem:[#allocation2 + $0x1c] sm:$0xf] 0
        %314 = vst [vmem:[#allocation2 + $0x20] sm:$0x1] 0
        %315 = vst [vmem:[#allocation2 + $0x24] sm:$0xf] 0
        %316 = vst [vmem:[#allocation2 + $0x28] sm:$0xf] 0
        %317 = vst [vmem:[#allocation2 + $0x2c] sm:$0x1] 0
        %318 = vst [vmem:[#allocation2 + $0x30] sm:$0xf] 0
        %319 = vst [vmem:[#allocation2 + $0x34] sm:$0xf] 0
        %320 = vst [vmem:[#allocation2 + $0x38] sm:$0x1] 0
        %321 = vst [vmem:[#allocation2 + $0x3c] sm:$0xf] 0
        %322 = vst [vmem:[#allocation2 + $0x40] sm:$0xf] 0
        %323 = vst [vmem:[#allocation2 + $0x44] sm:$0x1] 0
        %324 = vst [vmem:[#allocation2 + $0x48] sm:$0xf] 0
        %325 = vst [vmem:[#allocation2 + $0x4c] sm:$0xf] 0
        %326 = vst [vmem:[#allocation2 + $0x50] sm:$0x1] 0
        %327 = vst [vmem:[#allocation2 + $0x54] sm:$0xf] 0
        %328 = vst [vmem:[#allocation2 + $0x58] sm:$0xf] 0
        %329 = vst [vmem:[#allocation2 + $0x5c] sm:$0x1] 0
        %330 = vst [vmem:[#allocation2 + $0x60] sm:$0xf] 0
        %331 = vst [vmem:[#allocation2 + $0x64] sm:$0xf] 0
        %332 = vst [vmem:[#allocation2 + $0x68] sm:$0x1] 0
        %333 = vst [vmem:[#allocation2 + $0x6c] sm:$0xf] 0
        %334 = vst [vmem:[#allocation2 + $0x70] sm:$0xf] 0
        %335 = vst [vmem:[#allocation2 + $0x74] sm:$0x1] 0
        %336 = vst [vmem:[#allocation2 + $0x78] sm:$0xf] 0
        %337 = vst [vmem:[#allocation2 + $0x7c] sm:$0xf] 0
        %338 = vst [vmem:[#allocation2 + $0x80] sm:$0x1] 0
        %339 = vst [vmem:[#allocation2 + $0x84] sm:$0xf] 0
        %340 = vst [vmem:[#allocation2 + $0x88] sm:$0xf] 0
        %341 = vst [vmem:[#allocation2 + $0x8c] sm:$0x1] 0
        %342 = vst [vmem:[#allocation2 + $0x90] sm:$0xf] 0
        %343 = vst [vmem:[#allocation2 + $0x94] sm:$0xf] 0
        %344 = vst [vmem:[#allocation2 + $0x98] sm:$0x1] 0
        %345 = vst [vmem:[#allocation2 + $0x9c] sm:$0xf] 0
        %346 = vst [vmem:[#allocation2 + $0xa0] sm:$0xf] 0
        %347 = vst [vmem:[#allocation2 + $0xa4] sm:$0x1] 0
        %348 = vst [vmem:[#allocation2 + $0xa8] sm:$0xf] 0
        %349 = vst [vmem:[#allocation2 + $0xac] sm:$0xf] 0
        %350 = vst [vmem:[#allocation2 + $0xb0] sm:$0x1] 0
        %351 = vst [vmem:[#allocation2 + $0xb4] sm:$0xf] 0
        %352 = vst [vmem:[#allocation2 + $0xb8] sm:$0xf] 0
        %353 = vst [vmem:[#allocation2 + $0xbc] sm:$0x1] 0
        %354 = vst [vmem:[#allocation2 + $0xc0] sm:$0xf] 0
        %355 = vst [vmem:[#allocation2 + $0xc4] sm:$0xf] 0
        %356 = vst [vmem:[#allocation2 + $0xc8] sm:$0x1] 0
        %357 = vst [vmem:[#allocation2 + $0xcc] sm:$0xf] 0
        %358 = vst [vmem:[#allocation2 + $0xd0] sm:$0xf] 0
        %359 = vst [vmem:[#allocation2 + $0xd4] sm:$0x1] 0
        %vm360 = vsmask.f32 256
        %vm361 = vsmask.f32 4368
        %vm362 = vmor %vm360, %vm361
        %v364 = vshrl.u32 %v274, 16
        %v366 = vrot.slane %v364, 7
        %v367 = vshll.u32 %v274, 16
        %v369 = vor.u32 %v366, %v367
        %v370 = vrot.slane %v366, 4
        %v372 = vshrl.u32 %v275, 16
        %v374 = vrot.slane %v372, 7
        %v375 = vshll.u32 %v275, 16
        %v377 = vor.u32 %v374, %v375
        %v378 = vsel %vm362, %v370, %v377
        %v379 = vrot.slane %v374, 4
        %v381 = vshrl.u32 %v276, 16
        %v383 = vrot.slane %v381, 7
        %v384 = vshll.u32 %v276, 16
        %v386 = vor.u32 %v383, %v384
        %v387 = vrot.slane %v383, 4
        %v389 = vshrl.u32 %v277, 16
        %v391 = vrot.slane %v389, 7
        %v392 = vshll.u32 %v277, 16
        %v394 = vor.u32 %v391, %v392
        %v395 = vsel %vm362, %v387, %v394
        %v396 = vrot.slane %v391, 4
        %v398 = vshrl.u32 %v278, 16
        %v400 = vrot.slane %v398, 7
        %v401 = vshll.u32 %v278, 16
        %v403 = vor.u32 %v400, %v401
        %v404 = vrot.slane %v400, 4
        %v406 = vshrl.u32 %v279, 16
        %v408 = vrot.slane %v406, 7
        %v409 = vshll.u32 %v279, 16
        %v411 = vor.u32 %v408, %v409
        %v412 = vsel %vm362, %v404, %v411
        %v413 = vrot.slane %v408, 4
        %v415 = vshrl.u32 %v280, 16
        %v417 = vrot.slane %v415, 7
        %v418 = vshll.u32 %v280, 16
        %v420 = vor.u32 %v417, %v418
        %v421 = vrot.slane %v417, 4
        %v423 = vshrl.u32 %v281, 16
        %v425 = vrot.slane %v423, 7
        %v426 = vshll.u32 %v281, 16
        %v428 = vor.u32 %v425, %v426
        %v429 = vsel %vm362, %v421, %v428
        %v430 = vrot.slane %v425, 4
        %v432 = vshrl.u32 %v282, 16
        %v434 = vrot.slane %v432, 7
        %v435 = vshll.u32 %v282, 16
        %v437 = vor.u32 %v434, %v435
        %v438 = vrot.slane %v434, 4
        %v440 = vshrl.u32 %v283, 16
        %v442 = vrot.slane %v440, 7
        %v443 = vshll.u32 %v283, 16
        %v445 = vor.u32 %v442, %v443
        %v446 = vsel %vm362, %v438, %v445
        %v447 = vrot.slane %v442, 4
        %v449 = vshrl.u32 %v284, 16
        %v451 = vrot.slane %v449, 7
        %v452 = vshll.u32 %v284, 16
        %v454 = vor.u32 %v451, %v452
        %v455 = vrot.slane %v451, 4
        %v457 = vshrl.u32 %v285, 16
        %v459 = vrot.slane %v457, 7
        %v460 = vshll.u32 %v285, 16
        %v462 = vor.u32 %v459, %v460
        %v463 = vsel %vm362, %v455, %v462
        %v464 = vrot.slane %v459, 4
        %v466 = vshrl.u32 %v286, 16
        %v468 = vrot.slane %v466, 7
        %v469 = vshll.u32 %v286, 16
        %v471 = vor.u32 %v468, %v469
        %v472 = vrot.slane %v468, 4
        %v474 = vshrl.u32 %v287, 16
        %v476 = vrot.slane %v474, 7
        %v477 = vshll.u32 %v287, 16
        %v479 = vor.u32 %v476, %v477
        %v480 = vsel %vm362, %v472, %v479
        %v481 = vrot.slane %v476, 4
        %v483 = vshrl.u32 %v288, 16
        %v485 = vrot.slane %v483, 7
        %v486 = vshll.u32 %v288, 16
        %v488 = vor.u32 %v485, %v486
        %v489 = vrot.slane %v485, 4
        %v491 = vshrl.u32 %v289, 16
        %v493 = vrot.slane %v491, 7
        %v494 = vshll.u32 %v289, 16
        %v496 = vor.u32 %v493, %v494
        %v497 = vsel %vm362, %v489, %v496
        %v498 = vrot.slane %v493, 4
        %v500 = vshrl.u32 %v290, 16
        %v502 = vrot.slane %v500, 7
        %v503 = vshll.u32 %v290, 16
        %v505 = vor.u32 %v502, %v503
        %v506 = vrot.slane %v502, 4
        %v508 = vshrl.u32 %v291, 16
        %v510 = vrot.slane %v508, 7
        %v511 = vshll.u32 %v291, 16
        %v513 = vor.u32 %v510, %v511
        %v514 = vsel %vm362, %v506, %v513
        %v515 = vrot.slane %v510, 4
        %v517 = vshrl.u32 %v292, 16
        %v519 = vrot.slane %v517, 7
        %v520 = vshll.u32 %v292, 16
        %v522 = vor.u32 %v519, %v520
        %v523 = vrot.slane %v519, 4
        %v525 = vshrl.u32 %v293, 16
        %v527 = vrot.slane %v525, 7
        %v528 = vshll.u32 %v293, 16
        %v530 = vor.u32 %v527, %v528
        %v531 = vsel %vm362, %v523, %v530
        %v532 = vrot.slane %v527, 4
        %v534 = vshrl.u32 %v294, 16
        %v536 = vrot.slane %v534, 7
        %v537 = vshll.u32 %v294, 16
        %v539 = vor.u32 %v536, %v537
        %v540 = vrot.slane %v536, 4
        %v542 = vshrl.u32 %v295, 16
        %v544 = vrot.slane %v542, 7
        %v545 = vshll.u32 %v295, 16
        %v547 = vor.u32 %v544, %v545
        %v548 = vsel %vm362, %v540, %v547
        %v549 = vrot.slane %v544, 4
        %v551 = vshrl.u32 %v296, 16
        %v553 = vrot.slane %v551, 7
        %v554 = vshll.u32 %v296, 16
        %v556 = vor.u32 %v553, %v554
        %v557 = vrot.slane %v553, 4
        %v559 = vshrl.u32 %v297, 16
        %v561 = vrot.slane %v559, 7
        %v562 = vshll.u32 %v297, 16
        %v564 = vor.u32 %v561, %v562
        %v565 = vsel %vm362, %v557, %v564
        %v566 = vrot.slane %v561, 4
        %v568 = vshrl.u32 %v298, 16
        %v570 = vrot.slane %v568, 7
        %v571 = vshll.u32 %v298, 16
        %v573 = vor.u32 %v570, %v571
        %v574 = vrot.slane %v570, 4
        %v576 = vshrl.u32 %v299, 16
        %v578 = vrot.slane %v576, 7
        %v579 = vshll.u32 %v299, 16
        %v581 = vor.u32 %v578, %v579
        %v582 = vsel %vm362, %v574, %v581
        %v583 = vrot.slane %v578, 4
        %v585 = vshrl.u32 %v300, 16
        %v587 = vrot.slane %v585, 7
        %v588 = vshll.u32 %v300, 16
        %v590 = vor.u32 %v587, %v588
        %v591 = vrot.slane %v587, 4
        %v593 = vshrl.u32 %v301, 16
        %v595 = vrot.slane %v593, 7
        %v596 = vshll.u32 %v301, 16
        %v598 = vor.u32 %v595, %v596
        %v599 = vsel %vm362, %v591, %v598
        %v600 = vrot.slane %v595, 4
        %v602 = vshrl.u32 %v302, 16
        %v604 = vrot.slane %v602, 7
        %v605 = vshll.u32 %v302, 16
        %v607 = vor.u32 %v604, %v605
        %v608 = vrot.slane %v604, 4
        %v610 = vshrl.u32 %v303, 16
        %v612 = vrot.slane %v610, 7
        %v613 = vshll.u32 %v303, 16
        %v615 = vor.u32 %v612, %v613
        %v616 = vsel %vm362, %v608, %v615
        %v617 = vrot.slane %v612, 4
        %v619 = vshrl.u32 %v304, 16
        %v621 = vrot.slane %v619, 7
        %v622 = vshll.u32 %v304, 16
        %v624 = vor.u32 %v621, %v622
        %v625 = vrot.slane %v621, 4
        %v627 = vshrl.u32 %v305, 16
        %v629 = vrot.slane %v627, 7
        %v630 = vshll.u32 %v305, 16
        %v632 = vor.u32 %v629, %v630
        %v633 = vsel %vm362, %v625, %v632
        %v634 = vrot.slane %v629, 4
        %s683 = scalar_lea.vmem [#allocation2], 12
        %vm684 = vcmask 1043456
        %vm685 = vsmask.f32 7938
        %vm686 = vmand %vm684, %vm685
        %v687 = vld [vmem:[%s683] sm:$0xf]
        %v688 = vsel %vm686, %v369, %v687
        %689 = vst [vmem:[%s683] sm:$0xf] %v688
        %690 = vst [vmem:[%s683 + $0x4] sm:$0xf] %v378
        %vm691 = vcmask 1040384
        %vm692 = vmand %vm691, %vm360
        %v693 = vld [vmem:[%s683 + $0x8] sm:$0x1]
        %v694 = vsel %vm692, %v379, %v693
        %695 = vst [vmem:[%s683 + $0x8] sm:$0x1] %v694
        %v696 = vld [vmem:[%s683 + $0xc] sm:$0xf]
        %v697 = vsel %vm686, %v386, %v696
        %698 = vst [vmem:[%s683 + $0xc] sm:$0xf] %v697
        %699 = vst [vmem:[%s683 + $0x10] sm:$0xf] %v395
        %v700 = vld [vmem:[%s683 + $0x14] sm:$0x1]
        %v701 = vsel %vm692, %v396, %v700
        %702 = vst [vmem:[%s683 + $0x14] sm:$0x1] %v701
        %v703 = vld [vmem:[%s683 + $0x18] sm:$0xf]
        %v704 = vsel %vm686, %v403, %v703
        %705 = vst [vmem:[%s683 + $0x18] sm:$0xf] %v704
        %706 = vst [vmem:[%s683 + $0x1c] sm:$0xf] %v412
        %v707 = vld [vmem:[%s683 + $0x20] sm:$0x1]
        %v708 = vsel %vm692, %v413, %v707
        %709 = vst [vmem:[%s683 + $0x20] sm:$0x1] %v708
        %v710 = vld [vmem:[%s683 + $0x24] sm:$0xf]
        %v711 = vsel %vm686, %v420, %v710
        %712 = vst [vmem:[%s683 + $0x24] sm:$0xf] %v711
        %713 = vst [vmem:[%s683 + $0x28] sm:$0xf] %v429
        %v714 = vld [vmem:[%s683 + $0x2c] sm:$0x1]
        %v715 = vsel %vm692, %v430, %v714
        %716 = vst [vmem:[%s683 + $0x2c] sm:$0x1] %v715
        %v717 = vld [vmem:[%s683 + $0x30] sm:$0xf]
        %v718 = vsel %vm686, %v437, %v717
        %719 = vst [vmem:[%s683 + $0x30] sm:$0xf] %v718
        %720 = vst [vmem:[%s683 + $0x34] sm:$0xf] %v446
        %v721 = vld [vmem:[%s683 + $0x38] sm:$0x1]
        %v722 = vsel %vm692, %v447, %v721
        %723 = vst [vmem:[%s683 + $0x38] sm:$0x1] %v722
        %v724 = vld [vmem:[%s683 + $0x3c] sm:$0xf]
        %v725 = vsel %vm686, %v454, %v724
        %726 = vst [vmem:[%s683 + $0x3c] sm:$0xf] %v725
        %727 = vst [vmem:[%s683 + $0x40] sm:$0xf] %v463
        %v728 = vld [vmem:[%s683 + $0x44] sm:$0x1]
        %v729 = vsel %vm692, %v464, %v728
        %730 = vst [vmem:[%s683 + $0x44] sm:$0x1] %v729
        %v731 = vld [vmem:[%s683 + $0x48] sm:$0xf]
        %v732 = vsel %vm686, %v471, %v731
        %733 = vst [vmem:[%s683 + $0x48] sm:$0xf] %v732
        %734 = vst [vmem:[%s683 + $0x4c] sm:$0xf] %v480
        %v735 = vld [vmem:[%s683 + $0x50] sm:$0x1]
        %v736 = vsel %vm692, %v481, %v735
        %737 = vst [vmem:[%s683 + $0x50] sm:$0x1] %v736
        %v738 = vld [vmem:[%s683 + $0x54] sm:$0xf]
        %v739 = vsel %vm686, %v488, %v738
        %740 = vst [vmem:[%s683 + $0x54] sm:$0xf] %v739
        %741 = vst [vmem:[%s683 + $0x58] sm:$0xf] %v497
        %v742 = vld [vmem:[%s683 + $0x5c] sm:$0x1]
        %v743 = vsel %vm692, %v498, %v742
        %744 = vst [vmem:[%s683 + $0x5c] sm:$0x1] %v743
        %v745 = vld [vmem:[%s683 + $0x60] sm:$0xf]
        %v746 = vsel %vm686, %v505, %v745
        %747 = vst [vmem:[%s683 + $0x60] sm:$0xf] %v746
        %748 = vst [vmem:[%s683 + $0x64] sm:$0xf] %v514
        %v749 = vld [vmem:[%s683 + $0x68] sm:$0x1]
        %v750 = vsel %vm692, %v515, %v749
        %751 = vst [vmem:[%s683 + $0x68] sm:$0x1] %v750
        %v752 = vld [vmem:[%s683 + $0x6c] sm:$0xf]
        %v753 = vsel %vm686, %v522, %v752
        %754 = vst [vmem:[%s683 + $0x6c] sm:$0xf] %v753
        %755 = vst [vmem:[%s683 + $0x70] sm:$0xf] %v531
        %v756 = vld [vmem:[%s683 + $0x74] sm:$0x1]
        %v757 = vsel %vm692, %v532, %v756
        %758 = vst [vmem:[%s683 + $0x74] sm:$0x1] %v757
        %v759 = vld [vmem:[%s683 + $0x78] sm:$0xf]
        %v760 = vsel %vm686, %v539, %v759
        %761 = vst [vmem:[%s683 + $0x78] sm:$0xf] %v760
        %762 = vst [vmem:[%s683 + $0x7c] sm:$0xf] %v548
        %v763 = vld [vmem:[%s683 + $0x80] sm:$0x1]
        %v764 = vsel %vm692, %v549, %v763
        %765 = vst [vmem:[%s683 + $0x80] sm:$0x1] %v764
        %v766 = vld [vmem:[%s683 + $0x84] sm:$0xf]
        %v767 = vsel %vm686, %v556, %v766
        %768 = vst [vmem:[%s683 + $0x84] sm:$0xf] %v767
        %769 = vst [vmem:[%s683 + $0x88] sm:$0xf] %v565
        %v770 = vld [vmem:[%s683 + $0x8c] sm:$0x1]
        %v771 = vsel %vm692, %v566, %v770
        %772 = vst [vmem:[%s683 + $0x8c] sm:$0x1] %v771
        %v773 = vld [vmem:[%s683 + $0x90] sm:$0xf]
        %v774 = vsel %vm686, %v573, %v773
        %775 = vst [vmem:[%s683 + $0x90] sm:$0xf] %v774
        %776 = vst [vmem:[%s683 + $0x94] sm:$0xf] %v582
        %v777 = vld [vmem:[%s683 + $0x98] sm:$0x1]
        %v778 = vsel %vm692, %v583, %v777
        %779 = vst [vmem:[%s683 + $0x98] sm:$0x1] %v778
        %v780 = vld [vmem:[%s683 + $0x9c] sm:$0xf]
        %v781 = vsel %vm686, %v590, %v780
        %782 = vst [vmem:[%s683 + $0x9c] sm:$0xf] %v781
        %783 = vst [vmem:[%s683 + $0xa0] sm:$0xf] %v599
        %v784 = vld [vmem:[%s683 + $0xa4] sm:$0x1]
        %v785 = vsel %vm692, %v600, %v784
        %786 = vst [vmem:[%s683 + $0xa4] sm:$0x1] %v785
        %v787 = vld [vmem:[%s683 + $0xa8] sm:$0xf]
        %v788 = vsel %vm686, %v607, %v787
        %789 = vst [vmem:[%s683 + $0xa8] sm:$0xf] %v788
        %790 = vst [vmem:[%s683 + $0xac] sm:$0xf] %v616
        %v791 = vld [vmem:[%s683 + $0xb0] sm:$0x1]
        %v792 = vsel %vm692, %v617, %v791
        %793 = vst [vmem:[%s683 + $0xb0] sm:$0x1] %v792
        %v794 = vld [vmem:[%s683 + $0xb4] sm:$0xf]
        %v795 = vsel %vm686, %v624, %v794
        %796 = vst [vmem:[%s683 + $0xb4] sm:$0xf] %v795
        %797 = vst [vmem:[%s683 + $0xb8] sm:$0xf] %v633
        %v798 = vld [vmem:[%s683 + $0xbc] sm:$0x1]
        %v799 = vsel %vm692, %v634, %v798
        %800 = vst [vmem:[%s683 + $0xbc] sm:$0x1] %v799
      $region40: #{double_conv_forward.3} parent=35 // pred_fallthru
        _
      %s801 = smul.u32 %s22, 16
      %s802 = smul.u32 %s801, 3
      %s803 = smul.addr %s802, 4
      %s804 = scalar_lea.vmem [#allocation2], %s803
      %v805 = vld [vmem:[%s804] sm:$0xf]
      %v806 = vld [vmem:[%s804 + $0x4] sm:$0xf]
      %v807 = vld [vmem:[%s804 + $0x8] sm:$0x1]
      %v808 = vld [vmem:[%s804 + $0xc] sm:$0xf]
      %v809 = vld [vmem:[%s804 + $0x10] sm:$0xf]
      %v810 = vld [vmem:[%s804 + $0x14] sm:$0x1]
      %v811 = vld [vmem:[%s804 + $0x18] sm:$0xf]
      %v812 = vld [vmem:[%s804 + $0x1c] sm:$0xf]
      %v813 = vld [vmem:[%s804 + $0x20] sm:$0x1]
      %v814 = vld [vmem:[%s804 + $0x24] sm:$0xf]
      %v815 = vld [vmem:[%s804 + $0x28] sm:$0xf]
      %v816 = vld [vmem:[%s804 + $0x2c] sm:$0x1]
      %v817 = vld [vmem:[%s804 + $0x30] sm:$0xf]
      %v818 = vld [vmem:[%s804 + $0x34] sm:$0xf]
      %v819 = vld [vmem:[%s804 + $0x38] sm:$0x1]
      %v820 = vld [vmem:[%s804 + $0x3c] sm:$0xf]
      %v821 = vld [vmem:[%s804 + $0x40] sm:$0xf]
      %v822 = vld [vmem:[%s804 + $0x44] sm:$0x1]
      %v823 = vld [vmem:[%s804 + $0x48] sm:$0xf]
      %v824 = vld [vmem:[%s804 + $0x4c] sm:$0xf]
      %v825 = vld [vmem:[%s804 + $0x50] sm:$0x1]
      %v826 = vld [vmem:[%s804 + $0x54] sm:$0xf]
      %v827 = vld [vmem:[%s804 + $0x58] sm:$0xf]
      %v828 = vld [vmem:[%s804 + $0x5c] sm:$0x1]
      %v829 = vld [vmem:[%s804 + $0x60] sm:$0xf]
      %v830 = vld [vmem:[%s804 + $0x64] sm:$0xf]
      %v831 = vld [vmem:[%s804 + $0x68] sm:$0x1]
      %v832 = vld [vmem:[%s804 + $0x6c] sm:$0xf]
      %v833 = vld [vmem:[%s804 + $0x70] sm:$0xf]
      %v834 = vld [vmem:[%s804 + $0x74] sm:$0x1]
      %v835 = vld [vmem:[%s804 + $0x78] sm:$0xf]
      %v836 = vld [vmem:[%s804 + $0x7c] sm:$0xf]
      %v837 = vld [vmem:[%s804 + $0x80] sm:$0x1]
      %v838 = vld [vmem:[%s804 + $0x84] sm:$0xf]
      %v839 = vld [vmem:[%s804 + $0x88] sm:$0xf]
      %v840 = vld [vmem:[%s804 + $0x8c] sm:$0x1]
      %v841 = vld [vmem:[%s804 + $0x90] sm:$0xf]
      %v842 = vld [vmem:[%s804 + $0x94] sm:$0xf]
      %v843 = vld [vmem:[%s804 + $0x98] sm:$0x1]
      %v844 = vld [vmem:[%s804 + $0x9c] sm:$0xf]
      %v845 = vld [vmem:[%s804 + $0xa0] sm:$0xf]
      %v846 = vld [vmem:[%s804 + $0xa4] sm:$0x1]
      %v847 = vld [vmem:[%s804 + $0xa8] sm:$0xf]
      %v848 = vld [vmem:[%s804 + $0xac] sm:$0xf]
      %v849 = vld [vmem:[%s804 + $0xb0] sm:$0x1]
      %v850 = vld [vmem:[%s804 + $0xb4] sm:$0xf]
      %v851 = vld [vmem:[%s804 + $0xb8] sm:$0xf]
      %v852 = vld [vmem:[%s804 + $0xbc] sm:$0x1]
      %v853 = vld [vmem:[%s1] sm:$0xf]
      %v854 = vld [vmem:[%s1 + $0x4] sm:$0xf]
      %v855 = vld [vmem:[%s1 + $0x8] sm:$0xf]
      %v856 = vld [vmem:[%s1 + $0xc] sm:$0xf]
      %v857 = vld [vmem:[%s1 + $0x10] sm:$0xf]
      %v858 = vld [vmem:[%s1 + $0x14] sm:$0xf]
      %v859 = vld [vmem:[%s1 + $0x18] sm:$0xf]
      %v860 = vld [vmem:[%s1 + $0x1c] sm:$0xf]
      %v861 = vld [vmem:[%s1 + $0x20] sm:$0xf]
      %v862 = vld [vmem:[%s1 + $0x24] sm:$0xf]
      %v863 = vld [vmem:[%s1 + $0x28] sm:$0xf]
      %v864 = vld [vmem:[%s1 + $0x2c] sm:$0xf]
      %v865 = vld [vmem:[%s1 + $0x30] sm:$0xf]
      %v866 = vld [vmem:[%s1 + $0x34] sm:$0xf]
      %v867 = vld [vmem:[%s1 + $0x38] sm:$0xf]
      %v868 = vld [vmem:[%s1 + $0x3c] sm:$0xf]
      %vm869 = vsmask.f32 3328
      %vm870 = vsmask.f32 7440
      %vm871 = vmor %vm869, %vm870
      %v873 = vshrl.u32 %v805, 16
      %v875 = vrot.slane %v873, 4
      %v876 = vshll.u32 %v805, 16
      %v878 = vrot.slane %v876, 5
      %v879 = vor.u32 %v875, %v878
      %v880 = vrot.slane %v879, 4
      %v882 = vshll.u32 %v806, 16
      %v884 = vrot.slane %v882, 5
      %v885 = vsel %vm871, %v880, %v884
      %v886 = vshrl.u32 %v806, 16
      %v888 = vrot.slane %v886, 4
      %v889 = vor.u32 %v888, %v884
      %v890 = vrot.slane %v889, 4
      %v892 = vshll.u32 %v807, 16
      %v894 = vrot.slane %v892, 5
      %v895 = vsel %vm871, %v890, %v894
      %v897 = vshrl.u32 %v808, 16
      %v899 = vrot.slane %v897, 4
      %v900 = vshll.u32 %v808, 16
      %v902 = vrot.slane %v900, 5
      %v903 = vor.u32 %v899, %v902
      %v904 = vrot.slane %v903, 4
      %v906 = vshll.u32 %v809, 16
      %v908 = vrot.slane %v906, 5
      %v909 = vsel %vm871, %v904, %v908
      %v910 = vshrl.u32 %v809, 16
      %v912 = vrot.slane %v910, 4
      %v913 = vor.u32 %v912, %v908
      %v914 = vrot.slane %v913, 4
      %v916 = vshll.u32 %v810, 16
      %v918 = vrot.slane %v916, 5
      %v919 = vsel %vm871, %v914, %v918
      %v921 = vshrl.u32 %v811, 16
      %v923 = vrot.slane %v921, 4
      %v924 = vshll.u32 %v811, 16
      %v926 = vrot.slane %v924, 5
      %v927 = vor.u32 %v923, %v926
      %v928 = vrot.slane %v927, 4
      %v930 = vshll.u32 %v812, 16
      %v932 = vrot.slane %v930, 5
      %v933 = vsel %vm871, %v928, %v932
      %v934 = vshrl.u32 %v812, 16
      %v936 = vrot.slane %v934, 4
      %v937 = vor.u32 %v936, %v932
      %v938 = vrot.slane %v937, 4
      %v940 = vshll.u32 %v813, 16
      %v942 = vrot.slane %v940, 5
      %v943 = vsel %vm871, %v938, %v942
      %v945 = vshrl.u32 %v814, 16
      %v947 = vrot.slane %v945, 4
      %v948 = vshll.u32 %v814, 16
      %v950 = vrot.slane %v948, 5
      %v951 = vor.u32 %v947, %v950
      %v952 = vrot.slane %v951, 4
      %v954 = vshll.u32 %v815, 16
      %v956 = vrot.slane %v954, 5
      %v957 = vsel %vm871, %v952, %v956
      %v958 = vshrl.u32 %v815, 16
      %v960 = vrot.slane %v958, 4
      %v961 = vor.u32 %v960, %v956
      %v962 = vrot.slane %v961, 4
      %v964 = vshll.u32 %v816, 16
      %v966 = vrot.slane %v964, 5
      %v967 = vsel %vm871, %v962, %v966
      %v969 = vshrl.u32 %v817, 16
      %v971 = vrot.slane %v969, 4
      %v972 = vshll.u32 %v817, 16
      %v974 = vrot.slane %v972, 5
      %v975 = vor.u32 %v971, %v974
      %v976 = vrot.slane %v975, 4
      %v978 = vshll.u32 %v818, 16
      %v980 = vrot.slane %v978, 5
      %v981 = vsel %vm871, %v976, %v980
      %v982 = vshrl.u32 %v818, 16
      %v984 = vrot.slane %v982, 4
      %v985 = vor.u32 %v984, %v980
      %v986 = vrot.slane %v985, 4
      %v988 = vshll.u32 %v819, 16
      %v990 = vrot.slane %v988, 5
      %v991 = vsel %vm871, %v986, %v990
      %v993 = vshrl.u32 %v820, 16
      %v995 = vrot.slane %v993, 4
      %v996 = vshll.u32 %v820, 16
      %v998 = vrot.slane %v996, 5
      %v999 = vor.u32 %v995, %v998
      %v1000 = vrot.slane %v999, 4
      %v1002 = vshll.u32 %v821, 16
      %v1004 = vrot.slane %v1002, 5
      %v1005 = vsel %vm871, %v1000, %v1004
      %v1006 = vshrl.u32 %v821, 16
      %v1008 = vrot.slane %v1006, 4
      %v1009 = vor.u32 %v1008, %v1004
      %v1010 = vrot.slane %v1009, 4
      %v1012 = vshll.u32 %v822, 16
      %v1014 = vrot.slane %v1012, 5
      %v1015 = vsel %vm871, %v1010, %v1014
      %v1017 = vshrl.u32 %v823, 16
      %v1019 = vrot.slane %v1017, 4
      %v1020 = vshll.u32 %v823, 16
      %v1022 = vrot.slane %v1020, 5
      %v1023 = vor.u32 %v1019, %v1022
      %v1024 = vrot.slane %v1023, 4
      %v1026 = vshll.u32 %v824, 16
      %v1028 = vrot.slane %v1026, 5
      %v1029 = vsel %vm871, %v1024, %v1028
      %v1030 = vshrl.u32 %v824, 16
      %v1032 = vrot.slane %v1030, 4
      %v1033 = vor.u32 %v1032, %v1028
      %v1034 = vrot.slane %v1033, 4
      %v1036 = vshll.u32 %v825, 16
      %v1038 = vrot.slane %v1036, 5
      %v1039 = vsel %vm871, %v1034, %v1038
      %v1041 = vshrl.u32 %v826, 16
      %v1043 = vrot.slane %v1041, 4
      %v1044 = vshll.u32 %v826, 16
      %v1046 = vrot.slane %v1044, 5
      %v1047 = vor.u32 %v1043, %v1046
      %v1048 = vrot.slane %v1047, 4
      %v1050 = vshll.u32 %v827, 16
      %v1052 = vrot.slane %v1050, 5
      %v1053 = vsel %vm871, %v1048, %v1052
      %v1054 = vshrl.u32 %v827, 16
      %v1056 = vrot.slane %v1054, 4
      %v1057 = vor.u32 %v1056, %v1052
      %v1058 = vrot.slane %v1057, 4
      %v1060 = vshll.u32 %v828, 16
      %v1062 = vrot.slane %v1060, 5
      %v1063 = vsel %vm871, %v1058, %v1062
      %v1065 = vshrl.u32 %v829, 16
      %v1067 = vrot.slane %v1065, 4
      %v1068 = vshll.u32 %v829, 16
      %v1070 = vrot.slane %v1068, 5
      %v1071 = vor.u32 %v1067, %v1070
      %v1072 = vrot.slane %v1071, 4
      %v1074 = vshll.u32 %v830, 16
      %v1076 = vrot.slane %v1074, 5
      %v1077 = vsel %vm871, %v1072, %v1076
      %v1078 = vshrl.u32 %v830, 16
      %v1080 = vrot.slane %v1078, 4
      %v1081 = vor.u32 %v1080, %v1076
      %v1082 = vrot.slane %v1081, 4
      %v1084 = vshll.u32 %v831, 16
      %v1086 = vrot.slane %v1084, 5
      %v1087 = vsel %vm871, %v1082, %v1086
      %v1089 = vshrl.u32 %v832, 16
      %v1091 = vrot.slane %v1089, 4
      %v1092 = vshll.u32 %v832, 16
      %v1094 = vrot.slane %v1092, 5
      %v1095 = vor.u32 %v1091, %v1094
      %v1096 = vrot.slane %v1095, 4
      %v1098 = vshll.u32 %v833, 16
      %v1100 = vrot.slane %v1098, 5
      %v1101 = vsel %vm871, %v1096, %v1100
      %v1102 = vshrl.u32 %v833, 16
      %v1104 = vrot.slane %v1102, 4
      %v1105 = vor.u32 %v1104, %v1100
      %v1106 = vrot.slane %v1105, 4
      %v1108 = vshll.u32 %v834, 16
      %v1110 = vrot.slane %v1108, 5
      %v1111 = vsel %vm871, %v1106, %v1110
      %v1113 = vshrl.u32 %v835, 16
      %v1115 = vrot.slane %v1113, 4
      %v1116 = vshll.u32 %v835, 16
      %v1118 = vrot.slane %v1116, 5
      %v1119 = vor.u32 %v1115, %v1118
      %v1120 = vrot.slane %v1119, 4
      %v1122 = vshll.u32 %v836, 16
      %v1124 = vrot.slane %v1122, 5
      %v1125 = vsel %vm871, %v1120, %v1124
      %v1126 = vshrl.u32 %v836, 16
      %v1128 = vrot.slane %v1126, 4
      %v1129 = vor.u32 %v1128, %v1124
      %v1130 = vrot.slane %v1129, 4
      %v1132 = vshll.u32 %v837, 16
      %v1134 = vrot.slane %v1132, 5
      %v1135 = vsel %vm871, %v1130, %v1134
      %v1137 = vshrl.u32 %v838, 16
      %v1139 = vrot.slane %v1137, 4
      %v1140 = vshll.u32 %v838, 16
      %v1142 = vrot.slane %v1140, 5
      %v1143 = vor.u32 %v1139, %v1142
      %v1144 = vrot.slane %v1143, 4
      %v1146 = vshll.u32 %v839, 16
      %v1148 = vrot.slane %v1146, 5
      %v1149 = vsel %vm871, %v1144, %v1148
      %v1150 = vshrl.u32 %v839, 16
      %v1152 = vrot.slane %v1150, 4
      %v1153 = vor.u32 %v1152, %v1148
      %v1154 = vrot.slane %v1153, 4
      %v1156 = vshll.u32 %v840, 16
      %v1158 = vrot.slane %v1156, 5
      %v1159 = vsel %vm871, %v1154, %v1158
      %v1161 = vshrl.u32 %v841, 16
      %v1163 = vrot.slane %v1161, 4
      %v1164 = vshll.u32 %v841, 16
      %v1166 = vrot.slane %v1164, 5
      %v1167 = vor.u32 %v1163, %v1166
      %v1168 = vrot.slane %v1167, 4
      %v1170 = vshll.u32 %v842, 16
      %v1172 = vrot.slane %v1170, 5
      %v1173 = vsel %vm871, %v1168, %v1172
      %v1174 = vshrl.u32 %v842, 16
      %v1176 = vrot.slane %v1174, 4
      %v1177 = vor.u32 %v1176, %v1172
      %v1178 = vrot.slane %v1177, 4
      %v1180 = vshll.u32 %v843, 16
      %v1182 = vrot.slane %v1180, 5
      %v1183 = vsel %vm871, %v1178, %v1182
      %v1185 = vshrl.u32 %v844, 16
      %v1187 = vrot.slane %v1185, 4
      %v1188 = vshll.u32 %v844, 16
      %v1190 = vrot.slane %v1188, 5
      %v1191 = vor.u32 %v1187, %v1190
      %v1192 = vrot.slane %v1191, 4
      %v1194 = vshll.u32 %v845, 16
      %v1196 = vrot.slane %v1194, 5
      %v1197 = vsel %vm871, %v1192, %v1196
      %v1198 = vshrl.u32 %v845, 16
      %v1200 = vrot.slane %v1198, 4
      %v1201 = vor.u32 %v1200, %v1196
      %v1202 = vrot.slane %v1201, 4
      %v1204 = vshll.u32 %v846, 16
      %v1206 = vrot.slane %v1204, 5
      %v1207 = vsel %vm871, %v1202, %v1206
      %v1209 = vshrl.u32 %v847, 16
      %v1211 = vrot.slane %v1209, 4
      %v1212 = vshll.u32 %v847, 16
      %v1214 = vrot.slane %v1212, 5
      %v1215 = vor.u32 %v1211, %v1214
      %v1216 = vrot.slane %v1215, 4
      %v1218 = vshll.u32 %v848, 16
      %v1220 = vrot.slane %v1218, 5
      %v1221 = vsel %vm871, %v1216, %v1220
      %v1222 = vshrl.u32 %v848, 16
      %v1224 = vrot.slane %v1222, 4
      %v1225 = vor.u32 %v1224, %v1220
      %v1226 = vrot.slane %v1225, 4
      %v1228 = vshll.u32 %v849, 16
      %v1230 = vrot.slane %v1228, 5
      %v1231 = vsel %vm871, %v1226, %v1230
      %v1233 = vshrl.u32 %v850, 16
      %v1235 = vrot.slane %v1233, 4
      %v1236 = vshll.u32 %v850, 16
      %v1238 = vrot.slane %v1236, 5
      %v1239 = vor.u32 %v1235, %v1238
      %v1240 = vrot.slane %v1239, 4
      %v1242 = vshll.u32 %v851, 16
      %v1244 = vrot.slane %v1242, 5
      %v1245 = vsel %vm871, %v1240, %v1244
      %v1246 = vshrl.u32 %v851, 16
      %v1248 = vrot.slane %v1246, 4
      %v1249 = vor.u32 %v1248, %v1244
      %v1250 = vrot.slane %v1249, 4
      %v1252 = vshll.u32 %v852, 16
      %v1254 = vrot.slane %v1252, 5
      %v1255 = vsel %vm871, %v1250, %v1254
      %s1256 = scalar_lea.vmem %s1, 64
      %v1257 = vld [vmem:[%s1256] sm:$0xf]
      %v1258 = vld [vmem:[%s1256 + $0x4] sm:$0xf]
      %v1259 = vld [vmem:[%s1256 + $0x8] sm:$0xf]
      %v1260 = vld [vmem:[%s1256 + $0xc] sm:$0xf]
      %v1261 = vld [vmem:[%s1256 + $0x10] sm:$0xf]
      %v1262 = vld [vmem:[%s1256 + $0x14] sm:$0xf]
      %v1263 = vld [vmem:[%s1256 + $0x18] sm:$0xf]
      %v1264 = vld [vmem:[%s1256 + $0x1c] sm:$0xf]
      %v1265 = vld [vmem:[%s1256 + $0x20] sm:$0xf]
      %v1266 = vld [vmem:[%s1256 + $0x24] sm:$0xf]
      %v1267 = vld [vmem:[%s1256 + $0x28] sm:$0xf]
      %v1268 = vld [vmem:[%s1256 + $0x2c] sm:$0xf]
      %v1269 = vld [vmem:[%s1256 + $0x30] sm:$0xf]
      %v1270 = vld [vmem:[%s1256 + $0x34] sm:$0xf]
      %v1271 = vld [vmem:[%s1256 + $0x38] sm:$0xf]
      %v1272 = vld [vmem:[%s1256 + $0x3c] sm:$0xf]
      %v1273 = vunpack.c.l.b16 %v885
      %v1274 = vunpack.c.l.b16 %v895
      %v1275 = vunpack.c.l.b16 %v909
      %v1276 = vunpack.c.l.b16 %v919
      %v1277 = vunpack.c.l.b16 %v933
      %v1278 = vunpack.c.l.b16 %v943
      %v1279 = vunpack.c.l.b16 %v957
      %v1280 = vunpack.c.l.b16 %v967
      %v1281 = vunpack.c.l.b16 %v981
      %v1282 = vunpack.c.l.b16 %v991
      %v1283 = vunpack.c.l.b16 %v1005
      %v1284 = vunpack.c.l.b16 %v1015
      %v1285 = vunpack.c.l.b16 %v1029
      %v1286 = vunpack.c.l.b16 %v1039
      %v1287 = vunpack.c.l.b16 %v1053
      %v1288 = vunpack.c.l.b16 %v1063
      %v1289 = vunpack.c.l.b16 %v1077
      %v1290 = vunpack.c.l.b16 %v1087
      %v1291 = vunpack.c.l.b16 %v1101
      %v1292 = vunpack.c.l.b16 %v1111
      %v1293 = vunpack.c.l.b16 %v1125
      %v1294 = vunpack.c.l.b16 %v1135
      %v1295 = vunpack.c.l.b16 %v1149
      %v1296 = vunpack.c.l.b16 %v1159
      %v1297 = vunpack.c.l.b16 %v1173
      %v1298 = vunpack.c.l.b16 %v1183
      %v1299 = vunpack.c.l.b16 %v1197
      %v1300 = vunpack.c.l.b16 %v1207
      %v1301 = vunpack.c.l.b16 %v1221
      %v1302 = vunpack.c.l.b16 %v1231
      %v1303 = vunpack.c.l.b16 %v1245
      %v1304 = vunpack.c.l.b16 %v1255
      %v1305 = vpack.c.b16 %v1274, %v1273
      %v1306 = vpack.c.b16 %v1276, %v1275
      %v1307 = vpack.c.b16 %v1278, %v1277
      %v1308 = vpack.c.b16 %v1280, %v1279
      %v1309 = vpack.c.b16 %v1282, %v1281
      %v1310 = vpack.c.b16 %v1284, %v1283
      %v1311 = vpack.c.b16 %v1286, %v1285
      %v1312 = vpack.c.b16 %v1288, %v1287
      %v1313 = vpack.c.b16 %v1290, %v1289
      %v1314 = vpack.c.b16 %v1292, %v1291
      %v1315 = vpack.c.b16 %v1294, %v1293
      %v1316 = vpack.c.b16 %v1296, %v1295
      %v1317 = vpack.c.b16 %v1298, %v1297
      %v1318 = vpack.c.b16 %v1300, %v1299
      %v1319 = vpack.c.b16 %v1302, %v1301
      %v1320 = vpack.c.b16 %v1304, %v1303
      %v1353 = vunpack.c.l.b16 %v1257
      %v1354 = vunpack.c.l.b16 %v1258
      %v1355 = vunpack.c.l.b16 %v1259
      %v1356 = vunpack.c.l.b16 %v1260
      %v1357 = vunpack.c.l.b16 %v1261
      %v1358 = vunpack.c.l.b16 %v1262
      %v1359 = vunpack.c.l.b16 %v1263
      %v1360 = vunpack.c.l.b16 %v1264
      %v1361 = vunpack.c.l.b16 %v1265
      %v1362 = vunpack.c.l.b16 %v1266
      %v1363 = vunpack.c.l.b16 %v1267
      %v1364 = vunpack.c.l.b16 %v1268
      %v1365 = vunpack.c.l.b16 %v1269
      %v1366 = vunpack.c.l.b16 %v1270
      %v1367 = vunpack.c.l.b16 %v1271
      %v1368 = vunpack.c.l.b16 %v1272
      %v1369 = vpack.c.b16 %v1354, %v1353
      %v1370 = vpack.c.b16 %v1356, %v1355
      %v1371 = vpack.c.b16 %v1358, %v1357
      %v1372 = vpack.c.b16 %v1360, %v1359
      %v1373 = vpack.c.b16 %v1362, %v1361
      %v1374 = vpack.c.b16 %v1364, %v1363
      %v1375 = vpack.c.b16 %v1366, %v1365
      %v1376 = vpack.c.b16 %v1368, %v1367
      %1385 = vmatprep.subr.bf16.mxu0 0
      %1386 = vmatpush1.bf16.msra.mxu0 %v1376
      %1387 = vmatprep.subr.bf16.mxu0 0
      %1388 = vmatpush1.bf16.msra.mxu0 %v1375
      %1389 = vmatprep.subr.bf16.mxu0 0
      %1390 = vmatpush1.bf16.msra.mxu0 %v1374
      %1391 = vmatprep.subr.bf16.mxu0 0
      %1392 = vmatpush1.bf16.msra.mxu0 %v1373
      %1393 = vmatprep.subr.bf16.mxu0 0
      %1394 = vmatpush1.bf16.msra.mxu0 %v1372
      %1395 = vmatprep.subr.bf16.mxu0 0
      %1396 = vmatpush1.bf16.msra.mxu0 %v1371
      %1397 = vmatprep.subr.bf16.mxu0 0
      %1398 = vmatpush1.bf16.msra.mxu0 %v1370
      %1399 = vmatprep.subr.bf16.mxu0 0
      %1400 = vmatpush1.bf16.msra.mxu0 %v1369
      %1401 = vmatprep.subr.bf16.mxu0 0
      %1402 = vmatpush2.bf16.msra.mxu0 0
      %1403 = vmatprep.subr.bf16.mxu0 0
      %1404 = vmatpush2.bf16.msra.mxu0 0
      %1405 = vmatprep.subr.bf16.mxu0 0
      %1406 = vmatpush2.bf16.msra.mxu0 0
      %1407 = vmatprep.subr.bf16.mxu0 0
      %1408 = vmatpush2.bf16.msra.mxu0 0
      %1409 = vmatprep.subr.bf16.mxu0 0
      %1410 = vmatpush2.bf16.msra.mxu0 0
      %1411 = vmatprep.subr.bf16.mxu0 0
      %1412 = vmatpush2.bf16.msra.mxu0 0
      %1413 = vmatprep.subr.bf16.mxu0 0
      %1414 = vmatpush2.bf16.msra.mxu0 0
      %1415 = vmatprep.subr.bf16.mxu0 0
      %1416 = vmatpush2.bf16.msra.mxu0 0
      %1417 = vmatprep.mubr.bf16.mxu0 0
      %1418 = vmatmul.mubr.bf16.gmra.mxu0 %v1305
      %v1419 = vpop.f32.mrf.mxu0
      %v1420 = vadd.f32 0.0, %v1419
      %v1421 = vpop.f32.mrf.mxu0
      %v1422 = vpop.f32.mrf.mxu0
      %v1423 = vadd.f32 0.0, %v1422
      %v1424 = vpop.f32.mrf.mxu0
      %1425 = vmatprep.mubr.bf16.mxu0 0
      %1426 = vmatmul.mubr.bf16.gmra.mxu0 %v1306
      %v1427 = vpop.f32.mrf.mxu0
      %v1428 = vadd.f32 0.0, %v1427
      %v1429 = vpop.f32.mrf.mxu0
      %v1430 = vpop.f32.mrf.mxu0
      %v1431 = vadd.f32 0.0, %v1430
      %v1432 = vpop.f32.mrf.mxu0
      %1433 = vmatprep.mubr.bf16.mxu0 0
      %1434 = vmatmul.mubr.bf16.gmra.mxu0 %v1307
      %v1435 = vpop.f32.mrf.mxu0
      %v1436 = vadd.f32 0.0, %v1435
      %v1437 = vpop.f32.mrf.mxu0
      %v1438 = vpop.f32.mrf.mxu0
      %v1439 = vadd.f32 0.0, %v1438
      %v1440 = vpop.f32.mrf.mxu0
      %1441 = vmatprep.mubr.bf16.mxu0 0
      %1442 = vmatmul.mubr.bf16.gmra.mxu0 %v1308
      %v1443 = vpop.f32.mrf.mxu0
      %v1444 = vadd.f32 0.0, %v1443
      %v1445 = vpop.f32.mrf.mxu0
      %v1446 = vpop.f32.mrf.mxu0
      %v1447 = vadd.f32 0.0, %v1446
      %v1448 = vpop.f32.mrf.mxu0
      %1449 = vmatprep.mubr.bf16.mxu0 0
      %1450 = vmatmul.mubr.bf16.gmra.mxu0 %v1309
      %v1451 = vpop.f32.mrf.mxu0
      %v1452 = vadd.f32 0.0, %v1451
      %v1453 = vpop.f32.mrf.mxu0
      %v1454 = vpop.f32.mrf.mxu0
      %v1455 = vadd.f32 0.0, %v1454
      %v1456 = vpop.f32.mrf.mxu0
      %1457 = vmatprep.mubr.bf16.mxu0 0
      %1458 = vmatmul.mubr.bf16.gmra.mxu0 %v1310
      %v1459 = vpop.f32.mrf.mxu0
      %v1460 = vadd.f32 0.0, %v1459
      %v1461 = vpop.f32.mrf.mxu0
      %v1462 = vpop.f32.mrf.mxu0
      %v1463 = vadd.f32 0.0, %v1462
      %v1464 = vpop.f32.mrf.mxu0
      %1465 = vmatprep.mubr.bf16.mxu0 0
      %1466 = vmatmul.mubr.bf16.gmra.mxu0 %v1311
      %v1467 = vpop.f32.mrf.mxu0
      %v1468 = vadd.f32 0.0, %v1467
      %v1469 = vpop.f32.mrf.mxu0
      %v1470 = vpop.f32.mrf.mxu0
      %v1471 = vadd.f32 0.0, %v1470
      %v1472 = vpop.f32.mrf.mxu0
      %1473 = vmatprep.mubr.bf16.mxu0 0
      %1474 = vmatmul.mubr.bf16.gmra.mxu0 %v1312
      %v1475 = vpop.f32.mrf.mxu0
      %v1476 = vadd.f32 0.0, %v1475
      %v1477 = vpop.f32.mrf.mxu0
      %v1478 = vpop.f32.mrf.mxu0
      %v1479 = vadd.f32 0.0, %v1478
      %v1480 = vpop.f32.mrf.mxu0
      %1481 = vmatprep.mubr.bf16.mxu0 0
      %1482 = vmatmul.mubr.bf16.gmra.mxu0 %v1313
      %v1483 = vpop.f32.mrf.mxu0
      %v1484 = vadd.f32 0.0, %v1483
      %v1485 = vpop.f32.mrf.mxu0
      %v1486 = vpop.f32.mrf.mxu0
      %v1487 = vadd.f32 0.0, %v1486
      %v1488 = vpop.f32.mrf.mxu0
      %1489 = vmatprep.mubr.bf16.mxu0 0
      %1490 = vmatmul.mubr.bf16.gmra.mxu0 %v1314
      %v1491 = vpop.f32.mrf.mxu0
      %v1492 = vadd.f32 0.0, %v1491
      %v1493 = vpop.f32.mrf.mxu0
      %v1494 = vpop.f32.mrf.mxu0
      %v1495 = vadd.f32 0.0, %v1494
      %v1496 = vpop.f32.mrf.mxu0
      %1497 = vmatprep.mubr.bf16.mxu0 0
      %1498 = vmatmul.mubr.bf16.gmra.mxu0 %v1315
      %v1499 = vpop.f32.mrf.mxu0
      %v1500 = vadd.f32 0.0, %v1499
      %v1501 = vpop.f32.mrf.mxu0
      %v1502 = vpop.f32.mrf.mxu0
      %v1503 = vadd.f32 0.0, %v1502
      %v1504 = vpop.f32.mrf.mxu0
      %1505 = vmatprep.mubr.bf16.mxu0 0
      %1506 = vmatmul.mubr.bf16.gmra.mxu0 %v1316
      %v1507 = vpop.f32.mrf.mxu0
      %v1508 = vadd.f32 0.0, %v1507
      %v1509 = vpop.f32.mrf.mxu0
      %v1510 = vpop.f32.mrf.mxu0
      %v1511 = vadd.f32 0.0, %v1510
      %v1512 = vpop.f32.mrf.mxu0
      %1513 = vmatprep.mubr.bf16.mxu0 0
      %1514 = vmatmul.mubr.bf16.gmra.mxu0 %v1317
      %v1515 = vpop.f32.mrf.mxu0
      %v1516 = vadd.f32 0.0, %v1515
      %v1517 = vpop.f32.mrf.mxu0
      %v1518 = vpop.f32.mrf.mxu0
      %v1519 = vadd.f32 0.0, %v1518
      %v1520 = vpop.f32.mrf.mxu0
      %1521 = vmatprep.mubr.bf16.mxu0 0
      %1522 = vmatmul.mubr.bf16.gmra.mxu0 %v1318
      %v1523 = vpop.f32.mrf.mxu0
      %v1524 = vadd.f32 0.0, %v1523
      %v1525 = vpop.f32.mrf.mxu0
      %v1526 = vpop.f32.mrf.mxu0
      %v1527 = vadd.f32 0.0, %v1526
      %v1528 = vpop.f32.mrf.mxu0
      %1529 = vmatprep.mubr.bf16.mxu0 0
      %1530 = vmatmul.mubr.bf16.gmra.mxu0 %v1319
      %v1531 = vpop.f32.mrf.mxu0
      %v1532 = vadd.f32 0.0, %v1531
      %v1533 = vpop.f32.mrf.mxu0
      %v1534 = vpop.f32.mrf.mxu0
      %v1535 = vadd.f32 0.0, %v1534
      %v1536 = vpop.f32.mrf.mxu0
      %1537 = vmatprep.mubr.bf16.mxu0 0
      %1538 = vmatmul.mubr.bf16.gmra.mxu0 %v1320
      %v1539 = vpop.f32.mrf.mxu0
      %v1540 = vadd.f32 0.0, %v1539
      %v1541 = vpop.f32.mrf.mxu0
      %v1542 = vpop.f32.mrf.mxu0
      %v1543 = vadd.f32 0.0, %v1542
      %v1544 = vpop.f32.mrf.mxu0
      %1545 = vdwg.mxu0
      %v1578 = vunpack.c.l.b16 %v805
      %v1579 = vunpack.c.l.b16 %v806
      %v1580 = vunpack.c.l.b16 %v808
      %v1581 = vunpack.c.l.b16 %v809
      %v1582 = vunpack.c.l.b16 %v811
      %v1583 = vunpack.c.l.b16 %v812
      %v1584 = vunpack.c.l.b16 %v814
      %v1585 = vunpack.c.l.b16 %v815
      %v1586 = vunpack.c.l.b16 %v817
      %v1587 = vunpack.c.l.b16 %v818
      %v1588 = vunpack.c.l.b16 %v820
      %v1589 = vunpack.c.l.b16 %v821
      %v1590 = vunpack.c.l.b16 %v823
      %v1591 = vunpack.c.l.b16 %v824
      %v1592 = vunpack.c.l.b16 %v826
      %v1593 = vunpack.c.l.b16 %v827
      %v1594 = vunpack.c.l.b16 %v829
      %v1595 = vunpack.c.l.b16 %v830
      %v1596 = vunpack.c.l.b16 %v832
      %v1597 = vunpack.c.l.b16 %v833
      %v1598 = vunpack.c.l.b16 %v835
      %v1599 = vunpack.c.l.b16 %v836
      %v1600 = vunpack.c.l.b16 %v838
      %v1601 = vunpack.c.l.b16 %v839
      %v1602 = vunpack.c.l.b16 %v841
      %v1603 = vunpack.c.l.b16 %v842
      %v1604 = vunpack.c.l.b16 %v844
      %v1605 = vunpack.c.l.b16 %v845
      %v1606 = vunpack.c.l.b16 %v847
      %v1607 = vunpack.c.l.b16 %v848
      %v1608 = vunpack.c.l.b16 %v850
      %v1609 = vunpack.c.l.b16 %v851
      %v1610 = vpack.c.b16 %v1579, %v1578
      %v1611 = vpack.c.b16 %v1581, %v1580
      %v1612 = vpack.c.b16 %v1583, %v1582
      %v1613 = vpack.c.b16 %v1585, %v1584
      %v1614 = vpack.c.b16 %v1587, %v1586
      %v1615 = vpack.c.b16 %v1589, %v1588
      %v1616 = vpack.c.b16 %v1591, %v1590
      %v1617 = vpack.c.b16 %v1593, %v1592
      %v1618 = vpack.c.b16 %v1595, %v1594
      %v1619 = vpack.c.b16 %v1597, %v1596
      %v1620 = vpack.c.b16 %v1599, %v1598
      %v1621 = vpack.c.b16 %v1601, %v1600
      %v1622 = vpack.c.b16 %v1603, %v1602
      %v1623 = vpack.c.b16 %v1605, %v1604
      %v1624 = vpack.c.b16 %v1607, %v1606
      %v1625 = vpack.c.b16 %v1609, %v1608
      %v1658 = vunpack.c.l.b16 %v853
      %v1659 = vunpack.c.l.b16 %v854
      %v1660 = vunpack.c.l.b16 %v855
      %v1661 = vunpack.c.l.b16 %v856
      %v1662 = vunpack.c.l.b16 %v857
      %v1663 = vunpack.c.l.b16 %v858
      %v1664 = vunpack.c.l.b16 %v859
      %v1665 = vunpack.c.l.b16 %v860
      %v1666 = vunpack.c.l.b16 %v861
      %v1667 = vunpack.c.l.b16 %v862
      %v1668 = vunpack.c.l.b16 %v863
      %v1669 = vunpack.c.l.b16 %v864
      %v1670 = vunpack.c.l.b16 %v865
      %v1671 = vunpack.c.l.b16 %v866
      %v1672 = vunpack.c.l.b16 %v867
      %v1673 = vunpack.c.l.b16 %v868
      %v1674 = vpack.c.b16 %v1659, %v1658
      %v1675 = vpack.c.b16 %v1661, %v1660
      %v1676 = vpack.c.b16 %v1663, %v1662
      %v1677 = vpack.c.b16 %v1665, %v1664
      %v1678 = vpack.c.b16 %v1667, %v1666
      %v1679 = vpack.c.b16 %v1669, %v1668
      %v1680 = vpack.c.b16 %v1671, %v1670
      %v1681 = vpack.c.b16 %v1673, %v1672
      %1690 = vmatprep.subr.bf16.mxu0 0
      %1691 = vmatpush1.bf16.msra.mxu0 %v1681
      %1692 = vmatprep.subr.bf16.mxu0 0
      %1693 = vmatpush1.bf16.msra.mxu0 %v1680
      %1694 = vmatprep.subr.bf16.mxu0 0
      %1695 = vmatpush1.bf16.msra.mxu0 %v1679
      %1696 = vmatprep.subr.bf16.mxu0 0
      %1697 = vmatpush1.bf16.msra.mxu0 %v1678
      %1698 = vmatprep.subr.bf16.mxu0 0
      %1699 = vmatpush1.bf16.msra.mxu0 %v1677
      %1700 = vmatprep.subr.bf16.mxu0 0
      %1701 = vmatpush1.bf16.msra.mxu0 %v1676
      %1702 = vmatprep.subr.bf16.mxu0 0
      %1703 = vmatpush1.bf16.msra.mxu0 %v1675
      %1704 = vmatprep.subr.bf16.mxu0 0
      %1705 = vmatpush1.bf16.msra.mxu0 %v1674
      %1706 = vmatprep.subr.bf16.mxu0 0
      %1707 = vmatpush2.bf16.msra.mxu0 0
      %1708 = vmatprep.subr.bf16.mxu0 0
      %1709 = vmatpush2.bf16.msra.mxu0 0
      %1710 = vmatprep.subr.bf16.mxu0 0
      %1711 = vmatpush2.bf16.msra.mxu0 0
      %1712 = vmatprep.subr.bf16.mxu0 0
      %1713 = vmatpush2.bf16.msra.mxu0 0
      %1714 = vmatprep.subr.bf16.mxu0 0
      %1715 = vmatpush2.bf16.msra.mxu0 0
      %1716 = vmatprep.subr.bf16.mxu0 0
      %1717 = vmatpush2.bf16.msra.mxu0 0
      %1718 = vmatprep.subr.bf16.mxu0 0
      %1719 = vmatpush2.bf16.msra.mxu0 0
      %1720 = vmatprep.subr.bf16.mxu0 0
      %1721 = vmatpush2.bf16.msra.mxu0 0
      %1722 = vmatprep.mubr.bf16.mxu0 0
      %1723 = vmatmul.mubr.bf16.gmra.mxu0 %v1610
      %v1724 = vpop.f32.mrf.mxu0
      %v1725 = vadd.f32 %v1420, %v1724
      %v1726 = vpop.f32.mrf.mxu0
      %v1727 = vpop.f32.mrf.mxu0
      %v1728 = vadd.f32 %v1423, %v1727
      %v1729 = vpop.f32.mrf.mxu0
      %1730 = vmatprep.mubr.bf16.mxu0 0
      %1731 = vmatmul.mubr.bf16.gmra.mxu0 %v1611
      %v1732 = vpop.f32.mrf.mxu0
      %v1733 = vadd.f32 %v1428, %v1732
      %v1734 = vpop.f32.mrf.mxu0
      %v1735 = vpop.f32.mrf.mxu0
      %v1736 = vadd.f32 %v1431, %v1735
      %v1737 = vpop.f32.mrf.mxu0
      %1738 = vmatprep.mubr.bf16.mxu0 0
      %1739 = vmatmul.mubr.bf16.gmra.mxu0 %v1612
      %v1740 = vpop.f32.mrf.mxu0
      %v1741 = vadd.f32 %v1436, %v1740
      %v1742 = vpop.f32.mrf.mxu0
      %v1743 = vpop.f32.mrf.mxu0
      %v1744 = vadd.f32 %v1439, %v1743
      %v1745 = vpop.f32.mrf.mxu0
      %1746 = vmatprep.mubr.bf16.mxu0 0
      %1747 = vmatmul.mubr.bf16.gmra.mxu0 %v1613
      %v1748 = vpop.f32.mrf.mxu0
      %v1749 = vadd.f32 %v1444, %v1748
      %v1750 = vpop.f32.mrf.mxu0
      %v1751 = vpop.f32.mrf.mxu0
      %v1752 = vadd.f32 %v1447, %v1751
      %v1753 = vpop.f32.mrf.mxu0
      %1754 = vmatprep.mubr.bf16.mxu0 0
      %1755 = vmatmul.mubr.bf16.gmra.mxu0 %v1614
      %v1756 = vpop.f32.mrf.mxu0
      %v1757 = vadd.f32 %v1452, %v1756
      %v1758 = vpop.f32.mrf.mxu0
      %v1759 = vpop.f32.mrf.mxu0
      %v1760 = vadd.f32 %v1455, %v1759
      %v1761 = vpop.f32.mrf.mxu0
      %1762 = vmatprep.mubr.bf16.mxu0 0
      %1763 = vmatmul.mubr.bf16.gmra.mxu0 %v1615
      %v1764 = vpop.f32.mrf.mxu0
      %v1765 = vadd.f32 %v1460, %v1764
      %v1766 = vpop.f32.mrf.mxu0
      %v1767 = vpop.f32.mrf.mxu0
      %v1768 = vadd.f32 %v1463, %v1767
      %v1769 = vpop.f32.mrf.mxu0
      %1770 = vmatprep.mubr.bf16.mxu0 0
      %1771 = vmatmul.mubr.bf16.gmra.mxu0 %v1616
      %v1772 = vpop.f32.mrf.mxu0
      %v1773 = vadd.f32 %v1468, %v1772
      %v1774 = vpop.f32.mrf.mxu0
      %v1775 = vpop.f32.mrf.mxu0
      %v1776 = vadd.f32 %v1471, %v1775
      %v1777 = vpop.f32.mrf.mxu0
      %1778 = vmatprep.mubr.bf16.mxu0 0
      %1779 = vmatmul.mubr.bf16.gmra.mxu0 %v1617
      %v1780 = vpop.f32.mrf.mxu0
      %v1781 = vadd.f32 %v1476, %v1780
      %v1782 = vpop.f32.mrf.mxu0
      %v1783 = vpop.f32.mrf.mxu0
      %v1784 = vadd.f32 %v1479, %v1783
      %v1785 = vpop.f32.mrf.mxu0
      %1786 = vmatprep.mubr.bf16.mxu0 0
      %1787 = vmatmul.mubr.bf16.gmra.mxu0 %v1618
      %v1788 = vpop.f32.mrf.mxu0
      %v1789 = vadd.f32 %v1484, %v1788
      %v1790 = vpop.f32.mrf.mxu0
      %v1791 = vpop.f32.mrf.mxu0
      %v1792 = vadd.f32 %v1487, %v1791
      %v1793 = vpop.f32.mrf.mxu0
      %1794 = vmatprep.mubr.bf16.mxu0 0
      %1795 = vmatmul.mubr.bf16.gmra.mxu0 %v1619
      %v1796 = vpop.f32.mrf.mxu0
      %v1797 = vadd.f32 %v1492, %v1796
      %v1798 = vpop.f32.mrf.mxu0
      %v1799 = vpop.f32.mrf.mxu0
      %v1800 = vadd.f32 %v1495, %v1799
      %v1801 = vpop.f32.mrf.mxu0
      %1802 = vmatprep.mubr.bf16.mxu0 0
      %1803 = vmatmul.mubr.bf16.gmra.mxu0 %v1620
      %v1804 = vpop.f32.mrf.mxu0
      %v1805 = vadd.f32 %v1500, %v1804
      %v1806 = vpop.f32.mrf.mxu0
      %v1807 = vpop.f32.mrf.mxu0
      %v1808 = vadd.f32 %v1503, %v1807
      %v1809 = vpop.f32.mrf.mxu0
      %1810 = vmatprep.mubr.bf16.mxu0 0
      %1811 = vmatmul.mubr.bf16.gmra.mxu0 %v1621
      %v1812 = vpop.f32.mrf.mxu0
      %v1813 = vadd.f32 %v1508, %v1812
      %v1814 = vpop.f32.mrf.mxu0
      %v1815 = vpop.f32.mrf.mxu0
      %v1816 = vadd.f32 %v1511, %v1815
      %v1817 = vpop.f32.mrf.mxu0
      %1818 = vmatprep.mubr.bf16.mxu0 0
      %1819 = vmatmul.mubr.bf16.gmra.mxu0 %v1622
      %v1820 = vpop.f32.mrf.mxu0
      %v1821 = vadd.f32 %v1516, %v1820
      %v1822 = vpop.f32.mrf.mxu0
      %v1823 = vpop.f32.mrf.mxu0
      %v1824 = vadd.f32 %v1519, %v1823
      %v1825 = vpop.f32.mrf.mxu0
      %1826 = vmatprep.mubr.bf16.mxu0 0
      %1827 = vmatmul.mubr.bf16.gmra.mxu0 %v1623
      %v1828 = vpop.f32.mrf.mxu0
      %v1829 = vadd.f32 %v1524, %v1828
      %v1830 = vpop.f32.mrf.mxu0
      %v1831 = vpop.f32.mrf.mxu0
      %v1832 = vadd.f32 %v1527, %v1831
      %v1833 = vpop.f32.mrf.mxu0
      %1834 = vmatprep.mubr.bf16.mxu0 0
      %1835 = vmatmul.mubr.bf16.gmra.mxu0 %v1624
      %v1836 = vpop.f32.mrf.mxu0
      %v1837 = vadd.f32 %v1532, %v1836
      %v1838 = vpop.f32.mrf.mxu0
      %v1839 = vpop.f32.mrf.mxu0
      %v1840 = vadd.f32 %v1535, %v1839
      %v1841 = vpop.f32.mrf.mxu0
      %1842 = vmatprep.mubr.bf16.mxu0 0
      %1843 = vmatmul.mubr.bf16.gmra.mxu0 %v1625
      %v1844 = vpop.f32.mrf.mxu0
      %v1845 = vadd.f32 %v1540, %v1844
      %v1846 = vpop.f32.mrf.mxu0
      %v1847 = vpop.f32.mrf.mxu0
      %v1848 = vadd.f32 %v1543, %v1847
      %v1849 = vpop.f32.mrf.mxu0
      %1850 = vdwg.mxu0
      %vm1867 = vcmask 1042432
      %vm1868 = vcmask 1046532
      %vm1869 = vmor %vm1867, %vm1868
      %v1870 = vrot.slane %v805, 5
      %v1871 = vrot.slane %v1870, 4
      %v1872 = vrot.slane %v806, 5
      %v1873 = vsel %vm1869, %v1871, %v1872
      %v1874 = vrot.slane %v1872, 4
      %v1875 = vrot.slane %v807, 5
      %v1876 = vsel %vm1869, %v1874, %v1875
      %v1877 = vrot.slane %v808, 5
      %v1878 = vrot.slane %v1877, 4
      %v1879 = vrot.slane %v809, 5
      %v1880 = vsel %vm1869, %v1878, %v1879
      %v1881 = vrot.slane %v1879, 4
      %v1882 = vrot.slane %v810, 5
      %v1883 = vsel %vm1869, %v1881, %v1882
      %v1884 = vrot.slane %v811, 5
      %v1885 = vrot.slane %v1884, 4
      %v1886 = vrot.slane %v812, 5
      %v1887 = vsel %vm1869, %v1885, %v1886
      %v1888 = vrot.slane %v1886, 4
      %v1889 = vrot.slane %v813, 5
      %v1890 = vsel %vm1869, %v1888, %v1889
      %v1891 = vrot.slane %v814, 5
      %v1892 = vrot.slane %v1891, 4
      %v1893 = vrot.slane %v815, 5
      %v1894 = vsel %vm1869, %v1892, %v1893
      %v1895 = vrot.slane %v1893, 4
      %v1896 = vrot.slane %v816, 5
      %v1897 = vsel %vm1869, %v1895, %v1896
      %v1898 = vrot.slane %v817, 5
      %v1899 = vrot.slane %v1898, 4
      %v1900 = vrot.slane %v818, 5
      %v1901 = vsel %vm1869, %v1899, %v1900
      %v1902 = vrot.slane %v1900, 4
      %v1903 = vrot.slane %v819, 5
      %v1904 = vsel %vm1869, %v1902, %v1903
      %v1905 = vrot.slane %v820, 5
      %v1906 = vrot.slane %v1905, 4
      %v1907 = vrot.slane %v821, 5
      %v1908 = vsel %vm1869, %v1906, %v1907
      %v1909 = vrot.slane %v1907, 4
      %v1910 = vrot.slane %v822, 5
      %v1911 = vsel %vm1869, %v1909, %v1910
      %v1912 = vrot.slane %v823, 5
      %v1913 = vrot.slane %v1912, 4
      %v1914 = vrot.slane %v824, 5
      %v1915 = vsel %vm1869, %v1913, %v1914
      %v1916 = vrot.slane %v1914, 4
      %v1917 = vrot.slane %v825, 5
      %v1918 = vsel %vm1869, %v1916, %v1917
      %v1919 = vrot.slane %v826, 5
      %v1920 = vrot.slane %v1919, 4
      %v1921 = vrot.slane %v827, 5
      %v1922 = vsel %vm1869, %v1920, %v1921
      %v1923 = vrot.slane %v1921, 4
      %v1924 = vrot.slane %v828, 5
      %v1925 = vsel %vm1869, %v1923, %v1924
      %v1926 = vrot.slane %v829, 5
      %v1927 = vrot.slane %v1926, 4
      %v1928 = vrot.slane %v830, 5
      %v1929 = vsel %vm1869, %v1927, %v1928
      %v1930 = vrot.slane %v1928, 4
      %v1931 = vrot.slane %v831, 5
      %v1932 = vsel %vm1869, %v1930, %v1931
      %v1933 = vrot.slane %v832, 5
      %v1934 = vrot.slane %v1933, 4
      %v1935 = vrot.slane %v833, 5
      %v1936 = vsel %vm1869, %v1934, %v1935
      %v1937 = vrot.slane %v1935, 4
      %v1938 = vrot.slane %v834, 5
      %v1939 = vsel %vm1869, %v1937, %v1938
      %v1940 = vrot.slane %v835, 5
      %v1941 = vrot.slane %v1940, 4
      %v1942 = vrot.slane %v836, 5
      %v1943 = vsel %vm1869, %v1941, %v1942
      %v1944 = vrot.slane %v1942, 4
      %v1945 = vrot.slane %v837, 5
      %v1946 = vsel %vm1869, %v1944, %v1945
      %v1947 = vrot.slane %v838, 5
      %v1948 = vrot.slane %v1947, 4
      %v1949 = vrot.slane %v839, 5
      %v1950 = vsel %vm1869, %v1948, %v1949
      %v1951 = vrot.slane %v1949, 4
      %v1952 = vrot.slane %v840, 5
      %v1953 = vsel %vm1869, %v1951, %v1952
      %v1954 = vrot.slane %v841, 5
      %v1955 = vrot.slane %v1954, 4
      %v1956 = vrot.slane %v842, 5
      %v1957 = vsel %vm1869, %v1955, %v1956
      %v1958 = vrot.slane %v1956, 4
      %v1959 = vrot.slane %v843, 5
      %v1960 = vsel %vm1869, %v1958, %v1959
      %v1961 = vrot.slane %v844, 5
      %v1962 = vrot.slane %v1961, 4
      %v1963 = vrot.slane %v845, 5
      %v1964 = vsel %vm1869, %v1962, %v1963
      %v1965 = vrot.slane %v1963, 4
      %v1966 = vrot.slane %v846, 5
      %v1967 = vsel %vm1869, %v1965, %v1966
      %v1968 = vrot.slane %v847, 5
      %v1969 = vrot.slane %v1968, 4
      %v1970 = vrot.slane %v848, 5
      %v1971 = vsel %vm1869, %v1969, %v1970
      %v1972 = vrot.slane %v1970, 4
      %v1973 = vrot.slane %v849, 5
      %v1974 = vsel %vm1869, %v1972, %v1973
      %v1975 = vrot.slane %v850, 5
      %v1976 = vrot.slane %v1975, 4
      %v1977 = vrot.slane %v851, 5
      %v1978 = vsel %vm1869, %v1976, %v1977
      %v1979 = vrot.slane %v1977, 4
      %v1980 = vrot.slane %v852, 5
      %v1981 = vsel %vm1869, %v1979, %v1980
      %s1982 = scalar_lea.vmem %s1, 128
      %v1983 = vld [vmem:[%s1982] sm:$0xf]
      %v1984 = vld [vmem:[%s1982 + $0x4] sm:$0xf]
      %v1985 = vld [vmem:[%s1982 + $0x8] sm:$0xf]
      %v1986 = vld [vmem:[%s1982 + $0xc] sm:$0xf]
      %v1987 = vld [vmem:[%s1982 + $0x10] sm:$0xf]
      %v1988 = vld [vmem:[%s1982 + $0x14] sm:$0xf]
      %v1989 = vld [vmem:[%s1982 + $0x18] sm:$0xf]
      %v1990 = vld [vmem:[%s1982 + $0x1c] sm:$0xf]
      %v1991 = vld [vmem:[%s1982 + $0x20] sm:$0xf]
      %v1992 = vld [vmem:[%s1982 + $0x24] sm:$0xf]
      %v1993 = vld [vmem:[%s1982 + $0x28] sm:$0xf]
      %v1994 = vld [vmem:[%s1982 + $0x2c] sm:$0xf]
      %v1995 = vld [vmem:[%s1982 + $0x30] sm:$0xf]
      %v1996 = vld [vmem:[%s1982 + $0x34] sm:$0xf]
      %v1997 = vld [vmem:[%s1982 + $0x38] sm:$0xf]
      %v1998 = vld [vmem:[%s1982 + $0x3c] sm:$0xf]
      %v1999 = vunpack.c.l.b16 %v1873
      %v2000 = vunpack.c.l.b16 %v1876
      %v2001 = vunpack.c.l.b16 %v1880
      %v2002 = vunpack.c.l.b16 %v1883
      %v2003 = vunpack.c.l.b16 %v1887
      %v2004 = vunpack.c.l.b16 %v1890
      %v2005 = vunpack.c.l.b16 %v1894
      %v2006 = vunpack.c.l.b16 %v1897
      %v2007 = vunpack.c.l.b16 %v1901
      %v2008 = vunpack.c.l.b16 %v1904
      %v2009 = vunpack.c.l.b16 %v1908
      %v2010 = vunpack.c.l.b16 %v1911
      %v2011 = vunpack.c.l.b16 %v1915
      %v2012 = vunpack.c.l.b16 %v1918
      %v2013 = vunpack.c.l.b16 %v1922
      %v2014 = vunpack.c.l.b16 %v1925
      %v2015 = vunpack.c.l.b16 %v1929
      %v2016 = vunpack.c.l.b16 %v1932
      %v2017 = vunpack.c.l.b16 %v1936
      %v2018 = vunpack.c.l.b16 %v1939
      %v2019 = vunpack.c.l.b16 %v1943
      %v2020 = vunpack.c.l.b16 %v1946
      %v2021 = vunpack.c.l.b16 %v1950
      %v2022 = vunpack.c.l.b16 %v1953
      %v2023 = vunpack.c.l.b16 %v1957
      %v2024 = vunpack.c.l.b16 %v1960
      %v2025 = vunpack.c.l.b16 %v1964
      %v2026 = vunpack.c.l.b16 %v1967
      %v2027 = vunpack.c.l.b16 %v1971
      %v2028 = vunpack.c.l.b16 %v1974
      %v2029 = vunpack.c.l.b16 %v1978
      %v2030 = vunpack.c.l.b16 %v1981
      %v2031 = vpack.c.b16 %v2000, %v1999
      %v2032 = vpack.c.b16 %v2002, %v2001
      %v2033 = vpack.c.b16 %v2004, %v2003
      %v2034 = vpack.c.b16 %v2006, %v2005
      %v2035 = vpack.c.b16 %v2008, %v2007
      %v2036 = vpack.c.b16 %v2010, %v2009
      %v2037 = vpack.c.b16 %v2012, %v2011
      %v2038 = vpack.c.b16 %v2014, %v2013
      %v2039 = vpack.c.b16 %v2016, %v2015
      %v2040 = vpack.c.b16 %v2018, %v2017
      %v2041 = vpack.c.b16 %v2020, %v2019
      %v2042 = vpack.c.b16 %v2022, %v2021
      %v2043 = vpack.c.b16 %v2024, %v2023
      %v2044 = vpack.c.b16 %v2026, %v2025
      %v2045 = vpack.c.b16 %v2028, %v2027
      %v2046 = vpack.c.b16 %v2030, %v2029
      %v2079 = vunpack.c.l.b16 %v1983
      %v2080 = vunpack.c.l.b16 %v1984
      %v2081 = vunpack.c.l.b16 %v1985
      %v2082 = vunpack.c.l.b16 %v1986
      %v2083 = vunpack.c.l.b16 %v1987
      %v2084 = vunpack.c.l.b16 %v1988
      %v2085 = vunpack.c.l.b16 %v1989
      %v2086 = vunpack.c.l.b16 %v1990
      %v2087 = vunpack.c.l.b16 %v1991
      %v2088 = vunpack.c.l.b16 %v1992
      %v2089 = vunpack.c.l.b16 %v1993
      %v2090 = vunpack.c.l.b16 %v1994
      %v2091 = vunpack.c.l.b16 %v1995
      %v2092 = vunpack.c.l.b16 %v1996
      %v2093 = vunpack.c.l.b16 %v1997
      %v2094 = vunpack.c.l.b16 %v1998
      %v2095 = vpack.c.b16 %v2080, %v2079
      %v2096 = vpack.c.b16 %v2082, %v2081
      %v2097 = vpack.c.b16 %v2084, %v2083
      %v2098 = vpack.c.b16 %v2086, %v2085
      %v2099 = vpack.c.b16 %v2088, %v2087
      %v2100 = vpack.c.b16 %v2090, %v2089
      %v2101 = vpack.c.b16 %v2092, %v2091
      %v2102 = vpack.c.b16 %v2094, %v2093
      %2111 = vmatprep.subr.bf16.mxu0 0
      %2112 = vmatpush1.bf16.msra.mxu0 %v2102
      %2113 = vmatprep.subr.bf16.mxu0 0
      %2114 = vmatpush1.bf16.msra.mxu0 %v2101
      %2115 = vmatprep.subr.bf16.mxu0 0
      %2116 = vmatpush1.bf16.msra.mxu0 %v2100
      %2117 = vmatprep.subr.bf16.mxu0 0
      %2118 = vmatpush1.bf16.msra.mxu0 %v2099
      %2119 = vmatprep.subr.bf16.mxu0 0
      %2120 = vmatpush1.bf16.msra.mxu0 %v2098
      %2121 = vmatprep.subr.bf16.mxu0 0
      %2122 = vmatpush1.bf16.msra.mxu0 %v2097
      %2123 = vmatprep.subr.bf16.mxu0 0
      %2124 = vmatpush1.bf16.msra.mxu0 %v2096
      %2125 = vmatprep.subr.bf16.mxu0 0
      %2126 = vmatpush1.bf16.msra.mxu0 %v2095
      %2127 = vmatprep.subr.bf16.mxu0 0
      %2128 = vmatpush2.bf16.msra.mxu0 0
      %2129 = vmatprep.subr.bf16.mxu0 0
      %2130 = vmatpush2.bf16.msra.mxu0 0
      %2131 = vmatprep.subr.bf16.mxu0 0
      %2132 = vmatpush2.bf16.msra.mxu0 0
      %2133 = vmatprep.subr.bf16.mxu0 0
      %2134 = vmatpush2.bf16.msra.mxu0 0
      %2135 = vmatprep.subr.bf16.mxu0 0
      %2136 = vmatpush2.bf16.msra.mxu0 0
      %2137 = vmatprep.subr.bf16.mxu0 0
      %2138 = vmatpush2.bf16.msra.mxu0 0
      %2139 = vmatprep.subr.bf16.mxu0 0
      %2140 = vmatpush2.bf16.msra.mxu0 0
      %2141 = vmatprep.subr.bf16.mxu0 0
      %2142 = vmatpush2.bf16.msra.mxu0 0
      %2143 = vmatprep.mubr.bf16.mxu0 0
      %2144 = vmatmul.mubr.bf16.gmra.mxu0 %v2031
      %v2145 = vpop.f32.mrf.mxu0
      %v2146 = vadd.f32 0.0, %v2145
      %v2147 = vpop.f32.mrf.mxu0
      %v2148 = vpop.f32.mrf.mxu0
      %v2149 = vadd.f32 0.0, %v2148
      %v2150 = vpop.f32.mrf.mxu0
      %2151 = vmatprep.mubr.bf16.mxu0 0
      %2152 = vmatmul.mubr.bf16.gmra.mxu0 %v2032
      %v2153 = vpop.f32.mrf.mxu0
      %v2154 = vadd.f32 0.0, %v2153
      %v2155 = vpop.f32.mrf.mxu0
      %v2156 = vpop.f32.mrf.mxu0
      %v2157 = vadd.f32 0.0, %v2156
      %v2158 = vpop.f32.mrf.mxu0
      %2159 = vmatprep.mubr.bf16.mxu0 0
      %2160 = vmatmul.mubr.bf16.gmra.mxu0 %v2033
      %v2161 = vpop.f32.mrf.mxu0
      %v2162 = vadd.f32 0.0, %v2161
      %v2163 = vpop.f32.mrf.mxu0
      %v2164 = vpop.f32.mrf.mxu0
      %v2165 = vadd.f32 0.0, %v2164
      %v2166 = vpop.f32.mrf.mxu0
      %2167 = vmatprep.mubr.bf16.mxu0 0
      %2168 = vmatmul.mubr.bf16.gmra.mxu0 %v2034
      %v2169 = vpop.f32.mrf.mxu0
      %v2170 = vadd.f32 0.0, %v2169
      %v2171 = vpop.f32.mrf.mxu0
      %v2172 = vpop.f32.mrf.mxu0
      %v2173 = vadd.f32 0.0, %v2172
      %v2174 = vpop.f32.mrf.mxu0
      %2175 = vmatprep.mubr.bf16.mxu0 0
      %2176 = vmatmul.mubr.bf16.gmra.mxu0 %v2035
      %v2177 = vpop.f32.mrf.mxu0
      %v2178 = vadd.f32 0.0, %v2177
      %v2179 = vpop.f32.mrf.mxu0
      %v2180 = vpop.f32.mrf.mxu0
      %v2181 = vadd.f32 0.0, %v2180
      %v2182 = vpop.f32.mrf.mxu0
      %2183 = vmatprep.mubr.bf16.mxu0 0
      %2184 = vmatmul.mubr.bf16.gmra.mxu0 %v2036
      %v2185 = vpop.f32.mrf.mxu0
      %v2186 = vadd.f32 0.0, %v2185
      %v2187 = vpop.f32.mrf.mxu0
      %v2188 = vpop.f32.mrf.mxu0
      %v2189 = vadd.f32 0.0, %v2188
      %v2190 = vpop.f32.mrf.mxu0
      %2191 = vmatprep.mubr.bf16.mxu0 0
      %2192 = vmatmul.mubr.bf16.gmra.mxu0 %v2037
      %v2193 = vpop.f32.mrf.mxu0
      %v2194 = vadd.f32 0.0, %v2193
      %v2195 = vpop.f32.mrf.mxu0
      %v2196 = vpop.f32.mrf.mxu0
      %v2197 = vadd.f32 0.0, %v2196
      %v2198 = vpop.f32.mrf.mxu0
      %2199 = vmatprep.mubr.bf16.mxu0 0
      %2200 = vmatmul.mubr.bf16.gmra.mxu0 %v2038
      %v2201 = vpop.f32.mrf.mxu0
      %v2202 = vadd.f32 0.0, %v2201
      %v2203 = vpop.f32.mrf.mxu0
      %v2204 = vpop.f32.mrf.mxu0
      %v2205 = vadd.f32 0.0, %v2204
      %v2206 = vpop.f32.mrf.mxu0
      %2207 = vmatprep.mubr.bf16.mxu0 0
      %2208 = vmatmul.mubr.bf16.gmra.mxu0 %v2039
      %v2209 = vpop.f32.mrf.mxu0
      %v2210 = vadd.f32 0.0, %v2209
      %v2211 = vpop.f32.mrf.mxu0
      %v2212 = vpop.f32.mrf.mxu0
      %v2213 = vadd.f32 0.0, %v2212
      %v2214 = vpop.f32.mrf.mxu0
      %2215 = vmatprep.mubr.bf16.mxu0 0
      %2216 = vmatmul.mubr.bf16.gmra.mxu0 %v2040
      %v2217 = vpop.f32.mrf.mxu0
      %v2218 = vadd.f32 0.0, %v2217
      %v2219 = vpop.f32.mrf.mxu0
      %v2220 = vpop.f32.mrf.mxu0
      %v2221 = vadd.f32 0.0, %v2220
      %v2222 = vpop.f32.mrf.mxu0
      %2223 = vmatprep.mubr.bf16.mxu0 0
      %2224 = vmatmul.mubr.bf16.gmra.mxu0 %v2041
      %v2225 = vpop.f32.mrf.mxu0
      %v2226 = vadd.f32 0.0, %v2225
      %v2227 = vpop.f32.mrf.mxu0
      %v2228 = vpop.f32.mrf.mxu0
      %v2229 = vadd.f32 0.0, %v2228
      %v2230 = vpop.f32.mrf.mxu0
      %2231 = vmatprep.mubr.bf16.mxu0 0
      %2232 = vmatmul.mubr.bf16.gmra.mxu0 %v2042
      %v2233 = vpop.f32.mrf.mxu0
      %v2234 = vadd.f32 0.0, %v2233
      %v2235 = vpop.f32.mrf.mxu0
      %v2236 = vpop.f32.mrf.mxu0
      %v2237 = vadd.f32 0.0, %v2236
      %v2238 = vpop.f32.mrf.mxu0
      %2239 = vmatprep.mubr.bf16.mxu0 0
      %2240 = vmatmul.mubr.bf16.gmra.mxu0 %v2043
      %v2241 = vpop.f32.mrf.mxu0
      %v2242 = vadd.f32 0.0, %v2241
      %v2243 = vpop.f32.mrf.mxu0
      %v2244 = vpop.f32.mrf.mxu0
      %v2245 = vadd.f32 0.0, %v2244
      %v2246 = vpop.f32.mrf.mxu0
      %2247 = vmatprep.mubr.bf16.mxu0 0
      %2248 = vmatmul.mubr.bf16.gmra.mxu0 %v2044
      %v2249 = vpop.f32.mrf.mxu0
      %v2250 = vadd.f32 0.0, %v2249
      %v2251 = vpop.f32.mrf.mxu0
      %v2252 = vpop.f32.mrf.mxu0
      %v2253 = vadd.f32 0.0, %v2252
      %v2254 = vpop.f32.mrf.mxu0
      %2255 = vmatprep.mubr.bf16.mxu0 0
      %2256 = vmatmul.mubr.bf16.gmra.mxu0 %v2045
      %v2257 = vpop.f32.mrf.mxu0
      %v2258 = vadd.f32 0.0, %v2257
      %v2259 = vpop.f32.mrf.mxu0
      %v2260 = vpop.f32.mrf.mxu0
      %v2261 = vadd.f32 0.0, %v2260
      %v2262 = vpop.f32.mrf.mxu0
      %2263 = vmatprep.mubr.bf16.mxu0 0
      %2264 = vmatmul.mubr.bf16.gmra.mxu0 %v2046
      %v2265 = vpop.f32.mrf.mxu0
      %v2266 = vadd.f32 0.0, %v2265
      %v2267 = vpop.f32.mrf.mxu0
      %v2268 = vpop.f32.mrf.mxu0
      %v2269 = vadd.f32 0.0, %v2268
      %v2270 = vpop.f32.mrf.mxu0
      %2271 = vdwg.mxu0
      %v2272 = vadd.f32 %v1725, %v2146
      %v2273 = vadd.f32 %v1728, %v2149
      %v2274 = vadd.f32 %v1733, %v2154
      %v2275 = vadd.f32 %v1736, %v2157
      %v2276 = vadd.f32 %v1741, %v2162
      %v2277 = vadd.f32 %v1744, %v2165
      %v2278 = vadd.f32 %v1749, %v2170
      %v2279 = vadd.f32 %v1752, %v2173
      %v2280 = vadd.f32 %v1757, %v2178
      %v2281 = vadd.f32 %v1760, %v2181
      %v2282 = vadd.f32 %v1765, %v2186
      %v2283 = vadd.f32 %v1768, %v2189
      %v2284 = vadd.f32 %v1773, %v2194
      %v2285 = vadd.f32 %v1776, %v2197
      %v2286 = vadd.f32 %v1781, %v2202
      %v2287 = vadd.f32 %v1784, %v2205
      %v2288 = vadd.f32 %v1789, %v2210
      %v2289 = vadd.f32 %v1792, %v2213
      %v2290 = vadd.f32 %v1797, %v2218
      %v2291 = vadd.f32 %v1800, %v2221
      %v2292 = vadd.f32 %v1805, %v2226
      %v2293 = vadd.f32 %v1808, %v2229
      %v2294 = vadd.f32 %v1813, %v2234
      %v2295 = vadd.f32 %v1816, %v2237
      %v2296 = vadd.f32 %v1821, %v2242
      %v2297 = vadd.f32 %v1824, %v2245
      %v2298 = vadd.f32 %v1829, %v2250
      %v2299 = vadd.f32 %v1832, %v2253
      %v2300 = vadd.f32 %v1837, %v2258
      %v2301 = vadd.f32 %v1840, %v2261
      %v2302 = vadd.f32 %v1845, %v2266
      %v2303 = vadd.f32 %v1848, %v2269
      %s2304 = sadd.s32 %s801, 1
      %s2305 = smul.u32 %s2304, 3
      %s2306 = smul.addr %s2305, 4
      %s2307 = scalar_lea.vmem [#allocation2], %s2306
      %v2308 = vld [vmem:[%s2307] sm:$0xf]
      %v2309 = vld [vmem:[%s2307 + $0x4] sm:$0xf]
      %v2310 = vld [vmem:[%s2307 + $0x8] sm:$0x1]
      %v2311 = vld [vmem:[%s2307 + $0xc] sm:$0xf]
      %v2312 = vld [vmem:[%s2307 + $0x10] sm:$0xf]
      %v2313 = vld [vmem:[%s2307 + $0x14] sm:$0x1]
      %v2314 = vld [vmem:[%s2307 + $0x18] sm:$0xf]
      %v2315 = vld [vmem:[%s2307 + $0x1c] sm:$0xf]
      %v2316 = vld [vmem:[%s2307 + $0x20] sm:$0x1]
      %v2317 = vld [vmem:[%s2307 + $0x24] sm:$0xf]
      %v2318 = vld [vmem:[%s2307 + $0x28] sm:$0xf]
      %v2319 = vld [vmem:[%s2307 + $0x2c] sm:$0x1]
      %v2320 = vld [vmem:[%s2307 + $0x30] sm:$0xf]
      %v2321 = vld [vmem:[%s2307 + $0x34] sm:$0xf]
      %v2322 = vld [vmem:[%s2307 + $0x38] sm:$0x1]
      %v2323 = vld [vmem:[%s2307 + $0x3c] sm:$0xf]
      %v2324 = vld [vmem:[%s2307 + $0x40] sm:$0xf]
      %v2325 = vld [vmem:[%s2307 + $0x44] sm:$0x1]
      %v2326 = vld [vmem:[%s2307 + $0x48] sm:$0xf]
      %v2327 = vld [vmem:[%s2307 + $0x4c] sm:$0xf]
      %v2328 = vld [vmem:[%s2307 + $0x50] sm:$0x1]
      %v2329 = vld [vmem:[%s2307 + $0x54] sm:$0xf]
      %v2330 = vld [vmem:[%s2307 + $0x58] sm:$0xf]
      %v2331 = vld [vmem:[%s2307 + $0x5c] sm:$0x1]
      %v2332 = vld [vmem:[%s2307 + $0x60] sm:$0xf]
      %v2333 = vld [vmem:[%s2307 + $0x64] sm:$0xf]
      %v2334 = vld [vmem:[%s2307 + $0x68] sm:$0x1]
      %v2335 = vld [vmem:[%s2307 + $0x6c] sm:$0xf]
      %v2336 = vld [vmem:[%s2307 + $0x70] sm:$0xf]
      %v2337 = vld [vmem:[%s2307 + $0x74] sm:$0x1]
      %v2338 = vld [vmem:[%s2307 + $0x78] sm:$0xf]
      %v2339 = vld [vmem:[%s2307 + $0x7c] sm:$0xf]
      %v2340 = vld [vmem:[%s2307 + $0x80] sm:$0x1]
      %v2341 = vld [vmem:[%s2307 + $0x84] sm:$0xf]
      %v2342 = vld [vmem:[%s2307 + $0x88] sm:$0xf]
      %v2343 = vld [vmem:[%s2307 + $0x8c] sm:$0x1]
      %v2344 = vld [vmem:[%s2307 + $0x90] sm:$0xf]
      %v2345 = vld [vmem:[%s2307 + $0x94] sm:$0xf]
      %v2346 = vld [vmem:[%s2307 + $0x98] sm:$0x1]
      %v2347 = vld [vmem:[%s2307 + $0x9c] sm:$0xf]
      %v2348 = vld [vmem:[%s2307 + $0xa0] sm:$0xf]
      %v2349 = vld [vmem:[%s2307 + $0xa4] sm:$0x1]
      %v2350 = vld [vmem:[%s2307 + $0xa8] sm:$0xf]
      %v2351 = vld [vmem:[%s2307 + $0xac] sm:$0xf]
      %v2352 = vld [vmem:[%s2307 + $0xb0] sm:$0x1]
      %v2353 = vld [vmem:[%s2307 + $0xb4] sm:$0xf]
      %v2354 = vld [vmem:[%s2307 + $0xb8] sm:$0xf]
      %v2355 = vld [vmem:[%s2307 + $0xbc] sm:$0x1]
      %s2356 = scalar_lea.vmem %s1, 192
      %v2357 = vld [vmem:[%s2356] sm:$0xf]
      %v2358 = vld [vmem:[%s2356 + $0x4] sm:$0xf]
      %v2359 = vld [vmem:[%s2356 + $0x8] sm:$0xf]
      %v2360 = vld [vmem:[%s2356 + $0xc] sm:$0xf]
      %v2361 = vld [vmem:[%s2356 + $0x10] sm:$0xf]
      %v2362 = vld [vmem:[%s2356 + $0x14] sm:$0xf]
      %v2363 = vld [vmem:[%s2356 + $0x18] sm:$0xf]
      %v2364 = vld [vmem:[%s2356 + $0x1c] sm:$0xf]
      %v2365 = vld [vmem:[%s2356 + $0x20] sm:$0xf]
      %v2366 = vld [vmem:[%s2356 + $0x24] sm:$0xf]
      %v2367 = vld [vmem:[%s2356 + $0x28] sm:$0xf]
      %v2368 = vld [vmem:[%s2356 + $0x2c] sm:$0xf]
      %v2369 = vld [vmem:[%s2356 + $0x30] sm:$0xf]
      %v2370 = vld [vmem:[%s2356 + $0x34] sm:$0xf]
      %v2371 = vld [vmem:[%s2356 + $0x38] sm:$0xf]
      %v2372 = vld [vmem:[%s2356 + $0x3c] sm:$0xf]
      %v2405 = vunpack.c.l.b16 %v2308
      %v2406 = vunpack.c.l.b16 %v2309
      %v2407 = vunpack.c.l.b16 %v2311
      %v2408 = vunpack.c.l.b16 %v2312
      %v2409 = vunpack.c.l.b16 %v2314
      %v2410 = vunpack.c.l.b16 %v2315
      %v2411 = vunpack.c.l.b16 %v2317
      %v2412 = vunpack.c.l.b16 %v2318
      %v2413 = vunpack.c.l.b16 %v2320
      %v2414 = vunpack.c.l.b16 %v2321
      %v2415 = vunpack.c.l.b16 %v2323
      %v2416 = vunpack.c.l.b16 %v2324
      %v2417 = vunpack.c.l.b16 %v2326
      %v2418 = vunpack.c.l.b16 %v2327
      %v2419 = vunpack.c.l.b16 %v2329
      %v2420 = vunpack.c.l.b16 %v2330
      %v2421 = vunpack.c.l.b16 %v2332
      %v2422 = vunpack.c.l.b16 %v2333
      %v2423 = vunpack.c.l.b16 %v2335
      %v2424 = vunpack.c.l.b16 %v2336
      %v2425 = vunpack.c.l.b16 %v2338
      %v2426 = vunpack.c.l.b16 %v2339
      %v2427 = vunpack.c.l.b16 %v2341
      %v2428 = vunpack.c.l.b16 %v2342
      %v2429 = vunpack.c.l.b16 %v2344
      %v2430 = vunpack.c.l.b16 %v2345
      %v2431 = vunpack.c.l.b16 %v2347
      %v2432 = vunpack.c.l.b16 %v2348
      %v2433 = vunpack.c.l.b16 %v2350
      %v2434 = vunpack.c.l.b16 %v2351
      %v2435 = vunpack.c.l.b16 %v2353
      %v2436 = vunpack.c.l.b16 %v2354
      %v2437 = vpack.c.b16 %v2406, %v2405
      %v2438 = vpack.c.b16 %v2408, %v2407
      %v2439 = vpack.c.b16 %v2410, %v2409
      %v2440 = vpack.c.b16 %v2412, %v2411
      %v2441 = vpack.c.b16 %v2414, %v2413
      %v2442 = vpack.c.b16 %v2416, %v2415
      %v2443 = vpack.c.b16 %v2418, %v2417
      %v2444 = vpack.c.b16 %v2420, %v2419
      %v2445 = vpack.c.b16 %v2422, %v2421
      %v2446 = vpack.c.b16 %v2424, %v2423
      %v2447 = vpack.c.b16 %v2426, %v2425
      %v2448 = vpack.c.b16 %v2428, %v2427
      %v2449 = vpack.c.b16 %v2430, %v2429
      %v2450 = vpack.c.b16 %v2432, %v2431
      %v2451 = vpack.c.b16 %v2434, %v2433
      %v2452 = vpack.c.b16 %v2436, %v2435
      %v2485 = vunpack.c.l.b16 %v2357
      %v2486 = vunpack.c.l.b16 %v2358
      %v2487 = vunpack.c.l.b16 %v2359
      %v2488 = vunpack.c.l.b16 %v2360
      %v2489 = vunpack.c.l.b16 %v2361
      %v2490 = vunpack.c.l.b16 %v2362
      %v2491 = vunpack.c.l.b16 %v2363
      %v2492 = vunpack.c.l.b16 %v2364
      %v2493 = vunpack.c.l.b16 %v2365
      %v2494 = vunpack.c.l.b16 %v2366
      %v2495 = vunpack.c.l.b16 %v2367
      %v2496 = vunpack.c.l.b16 %v2368
      %v2497 = vunpack.c.l.b16 %v2369
      %v2498 = vunpack.c.l.b16 %v2370
      %v2499 = vunpack.c.l.b16 %v2371
      %v2500 = vunpack.c.l.b16 %v2372
      %v2501 = vpack.c.b16 %v2486, %v2485
      %v2502 = vpack.c.b16 %v2488, %v2487
      %v2503 = vpack.c.b16 %v2490, %v2489
      %v2504 = vpack.c.b16 %v2492, %v2491
      %v2505 = vpack.c.b16 %v2494, %v2493
      %v2506 = vpack.c.b16 %v2496, %v2495
      %v2507 = vpack.c.b16 %v2498, %v2497
      %v2508 = vpack.c.b16 %v2500, %v2499
      %2517 = vmatprep.subr.bf16.mxu0 0
      %2518 = vmatpush1.bf16.msra.mxu0 %v2508
      %2519 = vmatprep.subr.bf16.mxu0 0
      %2520 = vmatpush1.bf16.msra.mxu0 %v2507
      %2521 = vmatprep.subr.bf16.mxu0 0
      %2522 = vmatpush1.bf16.msra.mxu0 %v2506
      %2523 = vmatprep.subr.bf16.mxu0 0
      %2524 = vmatpush1.bf16.msra.mxu0 %v2505
      %2525 = vmatprep.subr.bf16.mxu0 0
      %2526 = vmatpush1.bf16.msra.mxu0 %v2504
      %2527 = vmatprep.subr.bf16.mxu0 0
      %2528 = vmatpush1.bf16.msra.mxu0 %v2503
      %2529 = vmatprep.subr.bf16.mxu0 0
      %2530 = vmatpush1.bf16.msra.mxu0 %v2502
      %2531 = vmatprep.subr.bf16.mxu0 0
      %2532 = vmatpush1.bf16.msra.mxu0 %v2501
      %2533 = vmatprep.subr.bf16.mxu0 0
      %2534 = vmatpush2.bf16.msra.mxu0 0
      %2535 = vmatprep.subr.bf16.mxu0 0
      %2536 = vmatpush2.bf16.msra.mxu0 0
      %2537 = vmatprep.subr.bf16.mxu0 0
      %2538 = vmatpush2.bf16.msra.mxu0 0
      %2539 = vmatprep.subr.bf16.mxu0 0
      %2540 = vmatpush2.bf16.msra.mxu0 0
      %2541 = vmatprep.subr.bf16.mxu0 0
      %2542 = vmatpush2.bf16.msra.mxu0 0
      %2543 = vmatprep.subr.bf16.mxu0 0
      %2544 = vmatpush2.bf16.msra.mxu0 0
      %2545 = vmatprep.subr.bf16.mxu0 0
      %2546 = vmatpush2.bf16.msra.mxu0 0
      %2547 = vmatprep.subr.bf16.mxu0 0
      %2548 = vmatpush2.bf16.msra.mxu0 0
      %2549 = vmatprep.mubr.bf16.mxu0 0
      %2550 = vmatmul.mubr.bf16.gmra.mxu0 %v2437
      %v2551 = vpop.f32.mrf.mxu0
      %v2552 = vadd.f32 0.0, %v2551
      %v2553 = vpop.f32.mrf.mxu0
      %v2554 = vpop.f32.mrf.mxu0
      %v2555 = vadd.f32 0.0, %v2554
      %v2556 = vpop.f32.mrf.mxu0
      %2557 = vmatprep.mubr.bf16.mxu0 0
      %2558 = vmatmul.mubr.bf16.gmra.mxu0 %v2438
      %v2559 = vpop.f32.mrf.mxu0
      %v2560 = vadd.f32 0.0, %v2559
      %v2561 = vpop.f32.mrf.mxu0
      %v2562 = vpop.f32.mrf.mxu0
      %v2563 = vadd.f32 0.0, %v2562
      %v2564 = vpop.f32.mrf.mxu0
      %2565 = vmatprep.mubr.bf16.mxu0 0
      %2566 = vmatmul.mubr.bf16.gmra.mxu0 %v2439
      %v2567 = vpop.f32.mrf.mxu0
      %v2568 = vadd.f32 0.0, %v2567
      %v2569 = vpop.f32.mrf.mxu0
      %v2570 = vpop.f32.mrf.mxu0
      %v2571 = vadd.f32 0.0, %v2570
      %v2572 = vpop.f32.mrf.mxu0
      %2573 = vmatprep.mubr.bf16.mxu0 0
      %2574 = vmatmul.mubr.bf16.gmra.mxu0 %v2440
      %v2575 = vpop.f32.mrf.mxu0
      %v2576 = vadd.f32 0.0, %v2575
      %v2577 = vpop.f32.mrf.mxu0
      %v2578 = vpop.f32.mrf.mxu0
      %v2579 = vadd.f32 0.0, %v2578
      %v2580 = vpop.f32.mrf.mxu0
      %2581 = vmatprep.mubr.bf16.mxu0 0
      %2582 = vmatmul.mubr.bf16.gmra.mxu0 %v2441
      %v2583 = vpop.f32.mrf.mxu0
      %v2584 = vadd.f32 0.0, %v2583
      %v2585 = vpop.f32.mrf.mxu0
      %v2586 = vpop.f32.mrf.mxu0
      %v2587 = vadd.f32 0.0, %v2586
      %v2588 = vpop.f32.mrf.mxu0
      %2589 = vmatprep.mubr.bf16.mxu0 0
      %2590 = vmatmul.mubr.bf16.gmra.mxu0 %v2442
      %v2591 = vpop.f32.mrf.mxu0
      %v2592 = vadd.f32 0.0, %v2591
      %v2593 = vpop.f32.mrf.mxu0
      %v2594 = vpop.f32.mrf.mxu0
      %v2595 = vadd.f32 0.0, %v2594
      %v2596 = vpop.f32.mrf.mxu0
      %2597 = vmatprep.mubr.bf16.mxu0 0
      %2598 = vmatmul.mubr.bf16.gmra.mxu0 %v2443
      %v2599 = vpop.f32.mrf.mxu0
      %v2600 = vadd.f32 0.0, %v2599
      %v2601 = vpop.f32.mrf.mxu0
      %v2602 = vpop.f32.mrf.mxu0
      %v2603 = vadd.f32 0.0, %v2602
      %v2604 = vpop.f32.mrf.mxu0
      %2605 = vmatprep.mubr.bf16.mxu0 0
      %2606 = vmatmul.mubr.bf16.gmra.mxu0 %v2444
      %v2607 = vpop.f32.mrf.mxu0
      %v2608 = vadd.f32 0.0, %v2607
      %v2609 = vpop.f32.mrf.mxu0
      %v2610 = vpop.f32.mrf.mxu0
      %v2611 = vadd.f32 0.0, %v2610
      %v2612 = vpop.f32.mrf.mxu0
      %2613 = vmatprep.mubr.bf16.mxu0 0
      %2614 = vmatmul.mubr.bf16.gmra.mxu0 %v2445
      %v2615 = vpop.f32.mrf.mxu0
      %v2616 = vadd.f32 0.0, %v2615
      %v2617 = vpop.f32.mrf.mxu0
      %v2618 = vpop.f32.mrf.mxu0
      %v2619 = vadd.f32 0.0, %v2618
      %v2620 = vpop.f32.mrf.mxu0
      %2621 = vmatprep.mubr.bf16.mxu0 0
      %2622 = vmatmul.mubr.bf16.gmra.mxu0 %v2446
      %v2623 = vpop.f32.mrf.mxu0
      %v2624 = vadd.f32 0.0, %v2623
      %v2625 = vpop.f32.mrf.mxu0
      %v2626 = vpop.f32.mrf.mxu0
      %v2627 = vadd.f32 0.0, %v2626
      %v2628 = vpop.f32.mrf.mxu0
      %2629 = vmatprep.mubr.bf16.mxu0 0
      %2630 = vmatmul.mubr.bf16.gmra.mxu0 %v2447
      %v2631 = vpop.f32.mrf.mxu0
      %v2632 = vadd.f32 0.0, %v2631
      %v2633 = vpop.f32.mrf.mxu0
      %v2634 = vpop.f32.mrf.mxu0
      %v2635 = vadd.f32 0.0, %v2634
      %v2636 = vpop.f32.mrf.mxu0
      %2637 = vmatprep.mubr.bf16.mxu0 0
      %2638 = vmatmul.mubr.bf16.gmra.mxu0 %v2448
      %v2639 = vpop.f32.mrf.mxu0
      %v2640 = vadd.f32 0.0, %v2639
      %v2641 = vpop.f32.mrf.mxu0
      %v2642 = vpop.f32.mrf.mxu0
      %v2643 = vadd.f32 0.0, %v2642
      %v2644 = vpop.f32.mrf.mxu0
      %2645 = vmatprep.mubr.bf16.mxu0 0
      %2646 = vmatmul.mubr.bf16.gmra.mxu0 %v2449
      %v2647 = vpop.f32.mrf.mxu0
      %v2648 = vadd.f32 0.0, %v2647
      %v2649 = vpop.f32.mrf.mxu0
      %v2650 = vpop.f32.mrf.mxu0
      %v2651 = vadd.f32 0.0, %v2650
      %v2652 = vpop.f32.mrf.mxu0
      %2653 = vmatprep.mubr.bf16.mxu0 0
      %2654 = vmatmul.mubr.bf16.gmra.mxu0 %v2450
      %v2655 = vpop.f32.mrf.mxu0
      %v2656 = vadd.f32 0.0, %v2655
      %v2657 = vpop.f32.mrf.mxu0
      %v2658 = vpop.f32.mrf.mxu0
      %v2659 = vadd.f32 0.0, %v2658
      %v2660 = vpop.f32.mrf.mxu0
      %2661 = vmatprep.mubr.bf16.mxu0 0
      %2662 = vmatmul.mubr.bf16.gmra.mxu0 %v2451
      %v2663 = vpop.f32.mrf.mxu0
      %v2664 = vadd.f32 0.0, %v2663
      %v2665 = vpop.f32.mrf.mxu0
      %v2666 = vpop.f32.mrf.mxu0
      %v2667 = vadd.f32 0.0, %v2666
      %v2668 = vpop.f32.mrf.mxu0
      %2669 = vmatprep.mubr.bf16.mxu0 0
      %2670 = vmatmul.mubr.bf16.gmra.mxu0 %v2452
      %v2671 = vpop.f32.mrf.mxu0
      %v2672 = vadd.f32 0.0, %v2671
      %v2673 = vpop.f32.mrf.mxu0
      %v2674 = vpop.f32.mrf.mxu0
      %v2675 = vadd.f32 0.0, %v2674
      %v2676 = vpop.f32.mrf.mxu0
      %2677 = vdwg.mxu0
      %v2678 = vadd.f32 %v2272, %v2552
      %v2679 = vadd.f32 %v2273, %v2555
      %v2680 = vadd.f32 %v2274, %v2560
      %v2681 = vadd.f32 %v2275, %v2563
      %v2682 = vadd.f32 %v2276, %v2568
      %v2683 = vadd.f32 %v2277, %v2571
      %v2684 = vadd.f32 %v2278, %v2576
      %v2685 = vadd.f32 %v2279, %v2579
      %v2686 = vadd.f32 %v2280, %v2584
      %v2687 = vadd.f32 %v2281, %v2587
      %v2688 = vadd.f32 %v2282, %v2592
      %v2689 = vadd.f32 %v2283, %v2595
      %v2690 = vadd.f32 %v2284, %v2600
      %v2691 = vadd.f32 %v2285, %v2603
      %v2692 = vadd.f32 %v2286, %v2608
      %v2693 = vadd.f32 %v2287, %v2611
      %v2694 = vadd.f32 %v2288, %v2616
      %v2695 = vadd.f32 %v2289, %v2619
      %v2696 = vadd.f32 %v2290, %v2624
      %v2697 = vadd.f32 %v2291, %v2627
      %v2698 = vadd.f32 %v2292, %v2632
      %v2699 = vadd.f32 %v2293, %v2635
      %v2700 = vadd.f32 %v2294, %v2640
      %v2701 = vadd.f32 %v2295, %v2643
      %v2702 = vadd.f32 %v2296, %v2648
      %v2703 = vadd.f32 %v2297, %v2651
      %v2704 = vadd.f32 %v2298, %v2656
      %v2705 = vadd.f32 %v2299, %v2659
      %v2706 = vadd.f32 %v2300, %v2664
      %v2707 = vadd.f32 %v2301, %v2667
      %v2708 = vadd.f32 %v2302, %v2672
      %v2709 = vadd.f32 %v2303, %v2675
      %v2711 = vshrl.u32 %v2308, 16
      %v2713 = vrot.slane %v2711, 4
      %v2714 = vshll.u32 %v2308, 16
      %v2716 = vrot.slane %v2714, 5
      %v2717 = vor.u32 %v2713, %v2716
      %v2718 = vrot.slane %v2717, 4
      %v2720 = vshll.u32 %v2309, 16
      %v2722 = vrot.slane %v2720, 5
      %v2723 = vsel %vm871, %v2718, %v2722
      %v2724 = vshrl.u32 %v2309, 16
      %v2726 = vrot.slane %v2724, 4
      %v2727 = vor.u32 %v2726, %v2722
      %v2728 = vrot.slane %v2727, 4
      %v2730 = vshll.u32 %v2310, 16
      %v2732 = vrot.slane %v2730, 5
      %v2733 = vsel %vm871, %v2728, %v2732
      %v2735 = vshrl.u32 %v2311, 16
      %v2737 = vrot.slane %v2735, 4
      %v2738 = vshll.u32 %v2311, 16
      %v2740 = vrot.slane %v2738, 5
      %v2741 = vor.u32 %v2737, %v2740
      %v2742 = vrot.slane %v2741, 4
      %v2744 = vshll.u32 %v2312, 16
      %v2746 = vrot.slane %v2744, 5
      %v2747 = vsel %vm871, %v2742, %v2746
      %v2748 = vshrl.u32 %v2312, 16
      %v2750 = vrot.slane %v2748, 4
      %v2751 = vor.u32 %v2750, %v2746
      %v2752 = vrot.slane %v2751, 4
      %v2754 = vshll.u32 %v2313, 16
      %v2756 = vrot.slane %v2754, 5
      %v2757 = vsel %vm871, %v2752, %v2756
      %v2759 = vshrl.u32 %v2314, 16
      %v2761 = vrot.slane %v2759, 4
      %v2762 = vshll.u32 %v2314, 16
      %v2764 = vrot.slane %v2762, 5
      %v2765 = vor.u32 %v2761, %v2764
      %v2766 = vrot.slane %v2765, 4
      %v2768 = vshll.u32 %v2315, 16
      %v2770 = vrot.slane %v2768, 5
      %v2771 = vsel %vm871, %v2766, %v2770
      %v2772 = vshrl.u32 %v2315, 16
      %v2774 = vrot.slane %v2772, 4
      %v2775 = vor.u32 %v2774, %v2770
      %v2776 = vrot.slane %v2775, 4
      %v2778 = vshll.u32 %v2316, 16
      %v2780 = vrot.slane %v2778, 5
      %v2781 = vsel %vm871, %v2776, %v2780
      %v2783 = vshrl.u32 %v2317, 16
      %v2785 = vrot.slane %v2783, 4
      %v2786 = vshll.u32 %v2317, 16
      %v2788 = vrot.slane %v2786, 5
      %v2789 = vor.u32 %v2785, %v2788
      %v2790 = vrot.slane %v2789, 4
      %v2792 = vshll.u32 %v2318, 16
      %v2794 = vrot.slane %v2792, 5
      %v2795 = vsel %vm871, %v2790, %v2794
      %v2796 = vshrl.u32 %v2318, 16
      %v2798 = vrot.slane %v2796, 4
      %v2799 = vor.u32 %v2798, %v2794
      %v2800 = vrot.slane %v2799, 4
      %v2802 = vshll.u32 %v2319, 16
      %v2804 = vrot.slane %v2802, 5
      %v2805 = vsel %vm871, %v2800, %v2804
      %v2807 = vshrl.u32 %v2320, 16
      %v2809 = vrot.slane %v2807, 4
      %v2810 = vshll.u32 %v2320, 16
      %v2812 = vrot.slane %v2810, 5
      %v2813 = vor.u32 %v2809, %v2812
      %v2814 = vrot.slane %v2813, 4
      %v2816 = vshll.u32 %v2321, 16
      %v2818 = vrot.slane %v2816, 5
      %v2819 = vsel %vm871, %v2814, %v2818
      %v2820 = vshrl.u32 %v2321, 16
      %v2822 = vrot.slane %v2820, 4
      %v2823 = vor.u32 %v2822, %v2818
      %v2824 = vrot.slane %v2823, 4
      %v2826 = vshll.u32 %v2322, 16
      %v2828 = vrot.slane %v2826, 5
      %v2829 = vsel %vm871, %v2824, %v2828
      %v2831 = vshrl.u32 %v2323, 16
      %v2833 = vrot.slane %v2831, 4
      %v2834 = vshll.u32 %v2323, 16
      %v2836 = vrot.slane %v2834, 5
      %v2837 = vor.u32 %v2833, %v2836
      %v2838 = vrot.slane %v2837, 4
      %v2840 = vshll.u32 %v2324, 16
      %v2842 = vrot.slane %v2840, 5
      %v2843 = vsel %vm871, %v2838, %v2842
      %v2844 = vshrl.u32 %v2324, 16
      %v2846 = vrot.slane %v2844, 4
      %v2847 = vor.u32 %v2846, %v2842
      %v2848 = vrot.slane %v2847, 4
      %v2850 = vshll.u32 %v2325, 16
      %v2852 = vrot.slane %v2850, 5
      %v2853 = vsel %vm871, %v2848, %v2852
      %v2855 = vshrl.u32 %v2326, 16
      %v2857 = vrot.slane %v2855, 4
      %v2858 = vshll.u32 %v2326, 16
      %v2860 = vrot.slane %v2858, 5
      %v2861 = vor.u32 %v2857, %v2860
      %v2862 = vrot.slane %v2861, 4
      %v2864 = vshll.u32 %v2327, 16
      %v2866 = vrot.slane %v2864, 5
      %v2867 = vsel %vm871, %v2862, %v2866
      %v2868 = vshrl.u32 %v2327, 16
      %v2870 = vrot.slane %v2868, 4
      %v2871 = vor.u32 %v2870, %v2866
      %v2872 = vrot.slane %v2871, 4
      %v2874 = vshll.u32 %v2328, 16
      %v2876 = vrot.slane %v2874, 5
      %v2877 = vsel %vm871, %v2872, %v2876
      %v2879 = vshrl.u32 %v2329, 16
      %v2881 = vrot.slane %v2879, 4
      %v2882 = vshll.u32 %v2329, 16
      %v2884 = vrot.slane %v2882, 5
      %v2885 = vor.u32 %v2881, %v2884
      %v2886 = vrot.slane %v2885, 4
      %v2888 = vshll.u32 %v2330, 16
      %v2890 = vrot.slane %v2888, 5
      %v2891 = vsel %vm871, %v2886, %v2890
      %v2892 = vshrl.u32 %v2330, 16
      %v2894 = vrot.slane %v2892, 4
      %v2895 = vor.u32 %v2894, %v2890
      %v2896 = vrot.slane %v2895, 4
      %v2898 = vshll.u32 %v2331, 16
      %v2900 = vrot.slane %v2898, 5
      %v2901 = vsel %vm871, %v2896, %v2900
      %v2903 = vshrl.u32 %v2332, 16
      %v2905 = vrot.slane %v2903, 4
      %v2906 = vshll.u32 %v2332, 16
      %v2908 = vrot.slane %v2906, 5
      %v2909 = vor.u32 %v2905, %v2908
      %v2910 = vrot.slane %v2909, 4
      %v2912 = vshll.u32 %v2333, 16
      %v2914 = vrot.slane %v2912, 5
      %v2915 = vsel %vm871, %v2910, %v2914
      %v2916 = vshrl.u32 %v2333, 16
      %v2918 = vrot.slane %v2916, 4
      %v2919 = vor.u32 %v2918, %v2914
      %v2920 = vrot.slane %v2919, 4
      %v2922 = vshll.u32 %v2334, 16
      %v2924 = vrot.slane %v2922, 5
      %v2925 = vsel %vm871, %v2920, %v2924
      %v2927 = vshrl.u32 %v2335, 16
      %v2929 = vrot.slane %v2927, 4
      %v2930 = vshll.u32 %v2335, 16
      %v2932 = vrot.slane %v2930, 5
      %v2933 = vor.u32 %v2929, %v2932
      %v2934 = vrot.slane %v2933, 4
      %v2936 = vshll.u32 %v2336, 16
      %v2938 = vrot.slane %v2936, 5
      %v2939 = vsel %vm871, %v2934, %v2938
      %v2940 = vshrl.u32 %v2336, 16
      %v2942 = vrot.slane %v2940, 4
      %v2943 = vor.u32 %v2942, %v2938
      %v2944 = vrot.slane %v2943, 4
      %v2946 = vshll.u32 %v2337, 16
      %v2948 = vrot.slane %v2946, 5
      %v2949 = vsel %vm871, %v2944, %v2948
      %v2951 = vshrl.u32 %v2338, 16
      %v2953 = vrot.slane %v2951, 4
      %v2954 = vshll.u32 %v2338, 16
      %v2956 = vrot.slane %v2954, 5
      %v2957 = vor.u32 %v2953, %v2956
      %v2958 = vrot.slane %v2957, 4
      %v2960 = vshll.u32 %v2339, 16
      %v2962 = vrot.slane %v2960, 5
      %v2963 = vsel %vm871, %v2958, %v2962
      %v2964 = vshrl.u32 %v2339, 16
      %v2966 = vrot.slane %v2964, 4
      %v2967 = vor.u32 %v2966, %v2962
      %v2968 = vrot.slane %v2967, 4
      %v2970 = vshll.u32 %v2340, 16
      %v2972 = vrot.slane %v2970, 5
      %v2973 = vsel %vm871, %v2968, %v2972
      %v2975 = vshrl.u32 %v2341, 16
      %v2977 = vrot.slane %v2975, 4
      %v2978 = vshll.u32 %v2341, 16
      %v2980 = vrot.slane %v2978, 5
      %v2981 = vor.u32 %v2977, %v2980
      %v2982 = vrot.slane %v2981, 4
      %v2984 = vshll.u32 %v2342, 16
      %v2986 = vrot.slane %v2984, 5
      %v2987 = vsel %vm871, %v2982, %v2986
      %v2988 = vshrl.u32 %v2342, 16
      %v2990 = vrot.slane %v2988, 4
      %v2991 = vor.u32 %v2990, %v2986
      %v2992 = vrot.slane %v2991, 4
      %v2994 = vshll.u32 %v2343, 16
      %v2996 = vrot.slane %v2994, 5
      %v2997 = vsel %vm871, %v2992, %v2996
      %v2999 = vshrl.u32 %v2344, 16
      %v3001 = vrot.slane %v2999, 4
      %v3002 = vshll.u32 %v2344, 16
      %v3004 = vrot.slane %v3002, 5
      %v3005 = vor.u32 %v3001, %v3004
      %v3006 = vrot.slane %v3005, 4
      %v3008 = vshll.u32 %v2345, 16
      %v3010 = vrot.slane %v3008, 5
      %v3011 = vsel %vm871, %v3006, %v3010
      %v3012 = vshrl.u32 %v2345, 16
      %v3014 = vrot.slane %v3012, 4
      %v3015 = vor.u32 %v3014, %v3010
      %v3016 = vrot.slane %v3015, 4
      %v3018 = vshll.u32 %v2346, 16
      %v3020 = vrot.slane %v3018, 5
      %v3021 = vsel %vm871, %v3016, %v3020
      %v3023 = vshrl.u32 %v2347, 16
      %v3025 = vrot.slane %v3023, 4
      %v3026 = vshll.u32 %v2347, 16
      %v3028 = vrot.slane %v3026, 5
      %v3029 = vor.u32 %v3025, %v3028
      %v3030 = vrot.slane %v3029, 4
      %v3032 = vshll.u32 %v2348, 16
      %v3034 = vrot.slane %v3032, 5
      %v3035 = vsel %vm871, %v3030, %v3034
      %v3036 = vshrl.u32 %v2348, 16
      %v3038 = vrot.slane %v3036, 4
      %v3039 = vor.u32 %v3038, %v3034
      %v3040 = vrot.slane %v3039, 4
      %v3042 = vshll.u32 %v2349, 16
      %v3044 = vrot.slane %v3042, 5
      %v3045 = vsel %vm871, %v3040, %v3044
      %v3047 = vshrl.u32 %v2350, 16
      %v3049 = vrot.slane %v3047, 4
      %v3050 = vshll.u32 %v2350, 16
      %v3052 = vrot.slane %v3050, 5
      %v3053 = vor.u32 %v3049, %v3052
      %v3054 = vrot.slane %v3053, 4
      %v3056 = vshll.u32 %v2351, 16
      %v3058 = vrot.slane %v3056, 5
      %v3059 = vsel %vm871, %v3054, %v3058
      %v3060 = vshrl.u32 %v2351, 16
      %v3062 = vrot.slane %v3060, 4
      %v3063 = vor.u32 %v3062, %v3058
      %v3064 = vrot.slane %v3063, 4
      %v3066 = vshll.u32 %v2352, 16
      %v3068 = vrot.slane %v3066, 5
      %v3069 = vsel %vm871, %v3064, %v3068
      %v3071 = vshrl.u32 %v2353, 16
      %v3073 = vrot.slane %v3071, 4
      %v3074 = vshll.u32 %v2353, 16
      %v3076 = vrot.slane %v3074, 5
      %v3077 = vor.u32 %v3073, %v3076
      %v3078 = vrot.slane %v3077, 4
      %v3080 = vshll.u32 %v2354, 16
      %v3082 = vrot.slane %v3080, 5
      %v3083 = vsel %vm871, %v3078, %v3082
      %v3084 = vshrl.u32 %v2354, 16
      %v3086 = vrot.slane %v3084, 4
      %v3087 = vor.u32 %v3086, %v3082
      %v3088 = vrot.slane %v3087, 4
      %v3090 = vshll.u32 %v2355, 16
      %v3092 = vrot.slane %v3090, 5
      %v3093 = vsel %vm871, %v3088, %v3092
      %s3094 = scalar_lea.vmem %s1, 256
      %v3095 = vld [vmem:[%s3094] sm:$0xf]
      %v3096 = vld [vmem:[%s3094 + $0x4] sm:$0xf]
      %v3097 = vld [vmem:[%s3094 + $0x8] sm:$0xf]
      %v3098 = vld [vmem:[%s3094 + $0xc] sm:$0xf]
      %v3099 = vld [vmem:[%s3094 + $0x10] sm:$0xf]
      %v3100 = vld [vmem:[%s3094 + $0x14] sm:$0xf]
      %v3101 = vld [vmem:[%s3094 + $0x18] sm:$0xf]
      %v3102 = vld [vmem:[%s3094 + $0x1c] sm:$0xf]
      %v3103 = vld [vmem:[%s3094 + $0x20] sm:$0xf]
      %v3104 = vld [vmem:[%s3094 + $0x24] sm:$0xf]
      %v3105 = vld [vmem:[%s3094 + $0x28] sm:$0xf]
      %v3106 = vld [vmem:[%s3094 + $0x2c] sm:$0xf]
      %v3107 = vld [vmem:[%s3094 + $0x30] sm:$0xf]
      %v3108 = vld [vmem:[%s3094 + $0x34] sm:$0xf]
      %v3109 = vld [vmem:[%s3094 + $0x38] sm:$0xf]
      %v3110 = vld [vmem:[%s3094 + $0x3c] sm:$0xf]
      %v3111 = vunpack.c.l.b16 %v2723
      %v3112 = vunpack.c.l.b16 %v2733
      %v3113 = vunpack.c.l.b16 %v2747
      %v3114 = vunpack.c.l.b16 %v2757
      %v3115 = vunpack.c.l.b16 %v2771
      %v3116 = vunpack.c.l.b16 %v2781
      %v3117 = vunpack.c.l.b16 %v2795
      %v3118 = vunpack.c.l.b16 %v2805
      %v3119 = vunpack.c.l.b16 %v2819
      %v3120 = vunpack.c.l.b16 %v2829
      %v3121 = vunpack.c.l.b16 %v2843
      %v3122 = vunpack.c.l.b16 %v2853
      %v3123 = vunpack.c.l.b16 %v2867
      %v3124 = vunpack.c.l.b16 %v2877
      %v3125 = vunpack.c.l.b16 %v2891
      %v3126 = vunpack.c.l.b16 %v2901
      %v3127 = vunpack.c.l.b16 %v2915
      %v3128 = vunpack.c.l.b16 %v2925
      %v3129 = vunpack.c.l.b16 %v2939
      %v3130 = vunpack.c.l.b16 %v2949
      %v3131 = vunpack.c.l.b16 %v2963
      %v3132 = vunpack.c.l.b16 %v2973
      %v3133 = vunpack.c.l.b16 %v2987
      %v3134 = vunpack.c.l.b16 %v2997
      %v3135 = vunpack.c.l.b16 %v3011
      %v3136 = vunpack.c.l.b16 %v3021
      %v3137 = vunpack.c.l.b16 %v3035
      %v3138 = vunpack.c.l.b16 %v3045
      %v3139 = vunpack.c.l.b16 %v3059
      %v3140 = vunpack.c.l.b16 %v3069
      %v3141 = vunpack.c.l.b16 %v3083
      %v3142 = vunpack.c.l.b16 %v3093
      %v3143 = vpack.c.b16 %v3112, %v3111
      %v3144 = vpack.c.b16 %v3114, %v3113
      %v3145 = vpack.c.b16 %v3116, %v3115
      %v3146 = vpack.c.b16 %v3118, %v3117
      %v3147 = vpack.c.b16 %v3120, %v3119
      %v3148 = vpack.c.b16 %v3122, %v3121
      %v3149 = vpack.c.b16 %v3124, %v3123
      %v3150 = vpack.c.b16 %v3126, %v3125
      %v3151 = vpack.c.b16 %v3128, %v3127
      %v3152 = vpack.c.b16 %v3130, %v3129
      %v3153 = vpack.c.b16 %v3132, %v3131
      %v3154 = vpack.c.b16 %v3134, %v3133
      %v3155 = vpack.c.b16 %v3136, %v3135
      %v3156 = vpack.c.b16 %v3138, %v3137
      %v3157 = vpack.c.b16 %v3140, %v3139
      %v3158 = vpack.c.b16 %v3142, %v3141
      %v3191 = vunpack.c.l.b16 %v3095
      %v3192 = vunpack.c.l.b16 %v3096
      %v3193 = vunpack.c.l.b16 %v3097
      %v3194 = vunpack.c.l.b16 %v3098
      %v3195 = vunpack.c.l.b16 %v3099
      %v3196 = vunpack.c.l.b16 %v3100
      %v3197 = vunpack.c.l.b16 %v3101
      %v3198 = vunpack.c.l.b16 %v3102
      %v3199 = vunpack.c.l.b16 %v3103
      %v3200 = vunpack.c.l.b16 %v3104
      %v3201 = vunpack.c.l.b16 %v3105
      %v3202 = vunpack.c.l.b16 %v3106
      %v3203 = vunpack.c.l.b16 %v3107
      %v3204 = vunpack.c.l.b16 %v3108
      %v3205 = vunpack.c.l.b16 %v3109
      %v3206 = vunpack.c.l.b16 %v3110
      %v3207 = vpack.c.b16 %v3192, %v3191
      %v3208 = vpack.c.b16 %v3194, %v3193
      %v3209 = vpack.c.b16 %v3196, %v3195
      %v3210 = vpack.c.b16 %v3198, %v3197
      %v3211 = vpack.c.b16 %v3200, %v3199
      %v3212 = vpack.c.b16 %v3202, %v3201
      %v3213 = vpack.c.b16 %v3204, %v3203
      %v3214 = vpack.c.b16 %v3206, %v3205
      %3223 = vmatprep.subr.bf16.mxu0 0
      %3224 = vmatpush1.bf16.msra.mxu0 %v3214
      %3225 = vmatprep.subr.bf16.mxu0 0
      %3226 = vmatpush1.bf16.msra.mxu0 %v3213
      %3227 = vmatprep.subr.bf16.mxu0 0
      %3228 = vmatpush1.bf16.msra.mxu0 %v3212
      %3229 = vmatprep.subr.bf16.mxu0 0
      %3230 = vmatpush1.bf16.msra.mxu0 %v3211
      %3231 = vmatprep.subr.bf16.mxu0 0
      %3232 = vmatpush1.bf16.msra.mxu0 %v3210
      %3233 = vmatprep.subr.bf16.mxu0 0
      %3234 = vmatpush1.bf16.msra.mxu0 %v3209
      %3235 = vmatprep.subr.bf16.mxu0 0
      %3236 = vmatpush1.bf16.msra.mxu0 %v3208
      %3237 = vmatprep.subr.bf16.mxu0 0
      %3238 = vmatpush1.bf16.msra.mxu0 %v3207
      %3239 = vmatprep.subr.bf16.mxu0 0
      %3240 = vmatpush2.bf16.msra.mxu0 0
      %3241 = vmatprep.subr.bf16.mxu0 0
      %3242 = vmatpush2.bf16.msra.mxu0 0
      %3243 = vmatprep.subr.bf16.mxu0 0
      %3244 = vmatpush2.bf16.msra.mxu0 0
      %3245 = vmatprep.subr.bf16.mxu0 0
      %3246 = vmatpush2.bf16.msra.mxu0 0
      %3247 = vmatprep.subr.bf16.mxu0 0
      %3248 = vmatpush2.bf16.msra.mxu0 0
      %3249 = vmatprep.subr.bf16.mxu0 0
      %3250 = vmatpush2.bf16.msra.mxu0 0
      %3251 = vmatprep.subr.bf16.mxu0 0
      %3252 = vmatpush2.bf16.msra.mxu0 0
      %3253 = vmatprep.subr.bf16.mxu0 0
      %3254 = vmatpush2.bf16.msra.mxu0 0
      %3255 = vmatprep.mubr.bf16.mxu0 0
      %3256 = vmatmul.mubr.bf16.gmra.mxu0 %v3143
      %v3257 = vpop.f32.mrf.mxu0
      %v3258 = vadd.f32 0.0, %v3257
      %v3259 = vpop.f32.mrf.mxu0
      %v3260 = vpop.f32.mrf.mxu0
      %v3261 = vadd.f32 0.0, %v3260
      %v3262 = vpop.f32.mrf.mxu0
      %3263 = vmatprep.mubr.bf16.mxu0 0
      %3264 = vmatmul.mubr.bf16.gmra.mxu0 %v3144
      %v3265 = vpop.f32.mrf.mxu0
      %v3266 = vadd.f32 0.0, %v3265
      %v3267 = vpop.f32.mrf.mxu0
      %v3268 = vpop.f32.mrf.mxu0
      %v3269 = vadd.f32 0.0, %v3268
      %v3270 = vpop.f32.mrf.mxu0
      %3271 = vmatprep.mubr.bf16.mxu0 0
      %3272 = vmatmul.mubr.bf16.gmra.mxu0 %v3145
      %v3273 = vpop.f32.mrf.mxu0
      %v3274 = vadd.f32 0.0, %v3273
      %v3275 = vpop.f32.mrf.mxu0
      %v3276 = vpop.f32.mrf.mxu0
      %v3277 = vadd.f32 0.0, %v3276
      %v3278 = vpop.f32.mrf.mxu0
      %3279 = vmatprep.mubr.bf16.mxu0 0
      %3280 = vmatmul.mubr.bf16.gmra.mxu0 %v3146
      %v3281 = vpop.f32.mrf.mxu0
      %v3282 = vadd.f32 0.0, %v3281
      %v3283 = vpop.f32.mrf.mxu0
      %v3284 = vpop.f32.mrf.mxu0
      %v3285 = vadd.f32 0.0, %v3284
      %v3286 = vpop.f32.mrf.mxu0
      %3287 = vmatprep.mubr.bf16.mxu0 0
      %3288 = vmatmul.mubr.bf16.gmra.mxu0 %v3147
      %v3289 = vpop.f32.mrf.mxu0
      %v3290 = vadd.f32 0.0, %v3289
      %v3291 = vpop.f32.mrf.mxu0
      %v3292 = vpop.f32.mrf.mxu0
      %v3293 = vadd.f32 0.0, %v3292
      %v3294 = vpop.f32.mrf.mxu0
      %3295 = vmatprep.mubr.bf16.mxu0 0
      %3296 = vmatmul.mubr.bf16.gmra.mxu0 %v3148
      %v3297 = vpop.f32.mrf.mxu0
      %v3298 = vadd.f32 0.0, %v3297
      %v3299 = vpop.f32.mrf.mxu0
      %v3300 = vpop.f32.mrf.mxu0
      %v3301 = vadd.f32 0.0, %v3300
      %v3302 = vpop.f32.mrf.mxu0
      %3303 = vmatprep.mubr.bf16.mxu0 0
      %3304 = vmatmul.mubr.bf16.gmra.mxu0 %v3149
      %v3305 = vpop.f32.mrf.mxu0
      %v3306 = vadd.f32 0.0, %v3305
      %v3307 = vpop.f32.mrf.mxu0
      %v3308 = vpop.f32.mrf.mxu0
      %v3309 = vadd.f32 0.0, %v3308
      %v3310 = vpop.f32.mrf.mxu0
      %3311 = vmatprep.mubr.bf16.mxu0 0
      %3312 = vmatmul.mubr.bf16.gmra.mxu0 %v3150
      %v3313 = vpop.f32.mrf.mxu0
      %v3314 = vadd.f32 0.0, %v3313
      %v3315 = vpop.f32.mrf.mxu0
      %v3316 = vpop.f32.mrf.mxu0
      %v3317 = vadd.f32 0.0, %v3316
      %v3318 = vpop.f32.mrf.mxu0
      %3319 = vmatprep.mubr.bf16.mxu0 0
      %3320 = vmatmul.mubr.bf16.gmra.mxu0 %v3151
      %v3321 = vpop.f32.mrf.mxu0
      %v3322 = vadd.f32 0.0, %v3321
      %v3323 = vpop.f32.mrf.mxu0
      %v3324 = vpop.f32.mrf.mxu0
      %v3325 = vadd.f32 0.0, %v3324
      %v3326 = vpop.f32.mrf.mxu0
      %3327 = vmatprep.mubr.bf16.mxu0 0
      %3328 = vmatmul.mubr.bf16.gmra.mxu0 %v3152
      %v3329 = vpop.f32.mrf.mxu0
      %v3330 = vadd.f32 0.0, %v3329
      %v3331 = vpop.f32.mrf.mxu0
      %v3332 = vpop.f32.mrf.mxu0
      %v3333 = vadd.f32 0.0, %v3332
      %v3334 = vpop.f32.mrf.mxu0
      %3335 = vmatprep.mubr.bf16.mxu0 0
      %3336 = vmatmul.mubr.bf16.gmra.mxu0 %v3153
      %v3337 = vpop.f32.mrf.mxu0
      %v3338 = vadd.f32 0.0, %v3337
      %v3339 = vpop.f32.mrf.mxu0
      %v3340 = vpop.f32.mrf.mxu0
      %v3341 = vadd.f32 0.0, %v3340
      %v3342 = vpop.f32.mrf.mxu0
      %3343 = vmatprep.mubr.bf16.mxu0 0
      %3344 = vmatmul.mubr.bf16.gmra.mxu0 %v3154
      %v3345 = vpop.f32.mrf.mxu0
      %v3346 = vadd.f32 0.0, %v3345
      %v3347 = vpop.f32.mrf.mxu0
      %v3348 = vpop.f32.mrf.mxu0
      %v3349 = vadd.f32 0.0, %v3348
      %v3350 = vpop.f32.mrf.mxu0
      %3351 = vmatprep.mubr.bf16.mxu0 0
      %3352 = vmatmul.mubr.bf16.gmra.mxu0 %v3155
      %v3353 = vpop.f32.mrf.mxu0
      %v3354 = vadd.f32 0.0, %v3353
      %v3355 = vpop.f32.mrf.mxu0
      %v3356 = vpop.f32.mrf.mxu0
      %v3357 = vadd.f32 0.0, %v3356
      %v3358 = vpop.f32.mrf.mxu0
      %3359 = vmatprep.mubr.bf16.mxu0 0
      %3360 = vmatmul.mubr.bf16.gmra.mxu0 %v3156
      %v3361 = vpop.f32.mrf.mxu0
      %v3362 = vadd.f32 0.0, %v3361
      %v3363 = vpop.f32.mrf.mxu0
      %v3364 = vpop.f32.mrf.mxu0
      %v3365 = vadd.f32 0.0, %v3364
      %v3366 = vpop.f32.mrf.mxu0
      %3367 = vmatprep.mubr.bf16.mxu0 0
      %3368 = vmatmul.mubr.bf16.gmra.mxu0 %v3157
      %v3369 = vpop.f32.mrf.mxu0
      %v3370 = vadd.f32 0.0, %v3369
      %v3371 = vpop.f32.mrf.mxu0
      %v3372 = vpop.f32.mrf.mxu0
      %v3373 = vadd.f32 0.0, %v3372
      %v3374 = vpop.f32.mrf.mxu0
      %3375 = vmatprep.mubr.bf16.mxu0 0
      %3376 = vmatmul.mubr.bf16.gmra.mxu0 %v3158
      %v3377 = vpop.f32.mrf.mxu0
      %v3378 = vadd.f32 0.0, %v3377
      %v3379 = vpop.f32.mrf.mxu0
      %v3380 = vpop.f32.mrf.mxu0
      %v3381 = vadd.f32 0.0, %v3380
      %v3382 = vpop.f32.mrf.mxu0
      %3383 = vdwg.mxu0
      %v3384 = vadd.f32 %v2678, %v3258
      %v3385 = vadd.f32 %v2679, %v3261
      %v3386 = vadd.f32 %v2680, %v3266
      %v3387 = vadd.f32 %v2681, %v3269
      %v3388 = vadd.f32 %v2682, %v3274
      %v3389 = vadd.f32 %v2683, %v3277
      %v3390 = vadd.f32 %v2684, %v3282
      %v3391 = vadd.f32 %v2685, %v3285
      %v3392 = vadd.f32 %v2686, %v3290
      %v3393 = vadd.f32 %v2687, %v3293
      %v3394 = vadd.f32 %v2688, %v3298
      %v3395 = vadd.f32 %v2689, %v3301
      %v3396 = vadd.f32 %v2690, %v3306
      %v3397 = vadd.f32 %v2691, %v3309
      %v3398 = vadd.f32 %v2692, %v3314
      %v3399 = vadd.f32 %v2693, %v3317
      %v3400 = vadd.f32 %v2694, %v3322
      %v3401 = vadd.f32 %v2695, %v3325
      %v3402 = vadd.f32 %v2696, %v3330
      %v3403 = vadd.f32 %v2697, %v3333
      %v3404 = vadd.f32 %v2698, %v3338
      %v3405 = vadd.f32 %v2699, %v3341
      %v3406 = vadd.f32 %v2700, %v3346
      %v3407 = vadd.f32 %v2701, %v3349
      %v3408 = vadd.f32 %v2702, %v3354
      %v3409 = vadd.f32 %v2703, %v3357
      %v3410 = vadd.f32 %v2704, %v3362
      %v3411 = vadd.f32 %v2705, %v3365
      %v3412 = vadd.f32 %v2706, %v3370
      %v3413 = vadd.f32 %v2707, %v3373
      %v3414 = vadd.f32 %v2708, %v3378
      %v3415 = vadd.f32 %v2709, %v3381
      %v3432 = vrot.slane %v2308, 5
      %v3433 = vrot.slane %v3432, 4
      %v3434 = vrot.slane %v2309, 5
      %v3435 = vsel %vm1869, %v3433, %v3434
      %v3436 = vrot.slane %v3434, 4
      %v3437 = vrot.slane %v2310, 5
      %v3438 = vsel %vm1869, %v3436, %v3437
      %v3439 = vrot.slane %v2311, 5
      %v3440 = vrot.slane %v3439, 4
      %v3441 = vrot.slane %v2312, 5
      %v3442 = vsel %vm1869, %v3440, %v3441
      %v3443 = vrot.slane %v3441, 4
      %v3444 = vrot.slane %v2313, 5
      %v3445 = vsel %vm1869, %v3443, %v3444
      %v3446 = vrot.slane %v2314, 5
      %v3447 = vrot.slane %v3446, 4
      %v3448 = vrot.slane %v2315, 5
      %v3449 = vsel %vm1869, %v3447, %v3448
      %v3450 = vrot.slane %v3448, 4
      %v3451 = vrot.slane %v2316, 5
      %v3452 = vsel %vm1869, %v3450, %v3451
      %v3453 = vrot.slane %v2317, 5
      %v3454 = vrot.slane %v3453, 4
      %v3455 = vrot.slane %v2318, 5
      %v3456 = vsel %vm1869, %v3454, %v3455
      %v3457 = vrot.slane %v3455, 4
      %v3458 = vrot.slane %v2319, 5
      %v3459 = vsel %vm1869, %v3457, %v3458
      %v3460 = vrot.slane %v2320, 5
      %v3461 = vrot.slane %v3460, 4
      %v3462 = vrot.slane %v2321, 5
      %v3463 = vsel %vm1869, %v3461, %v3462
      %v3464 = vrot.slane %v3462, 4
      %v3465 = vrot.slane %v2322, 5
      %v3466 = vsel %vm1869, %v3464, %v3465
      %v3467 = vrot.slane %v2323, 5
      %v3468 = vrot.slane %v3467, 4
      %v3469 = vrot.slane %v2324, 5
      %v3470 = vsel %vm1869, %v3468, %v3469
      %v3471 = vrot.slane %v3469, 4
      %v3472 = vrot.slane %v2325, 5
      %v3473 = vsel %vm1869, %v3471, %v3472
      %v3474 = vrot.slane %v2326, 5
      %v3475 = vrot.slane %v3474, 4
      %v3476 = vrot.slane %v2327, 5
      %v3477 = vsel %vm1869, %v3475, %v3476
      %v3478 = vrot.slane %v3476, 4
      %v3479 = vrot.slane %v2328, 5
      %v3480 = vsel %vm1869, %v3478, %v3479
      %v3481 = vrot.slane %v2329, 5
      %v3482 = vrot.slane %v3481, 4
      %v3483 = vrot.slane %v2330, 5
      %v3484 = vsel %vm1869, %v3482, %v3483
      %v3485 = vrot.slane %v3483, 4
      %v3486 = vrot.slane %v2331, 5
      %v3487 = vsel %vm1869, %v3485, %v3486
      %v3488 = vrot.slane %v2332, 5
      %v3489 = vrot.slane %v3488, 4
      %v3490 = vrot.slane %v2333, 5
      %v3491 = vsel %vm1869, %v3489, %v3490
      %v3492 = vrot.slane %v3490, 4
      %v3493 = vrot.slane %v2334, 5
      %v3494 = vsel %vm1869, %v3492, %v3493
      %v3495 = vrot.slane %v2335, 5
      %v3496 = vrot.slane %v3495, 4
      %v3497 = vrot.slane %v2336, 5
      %v3498 = vsel %vm1869, %v3496, %v3497
      %v3499 = vrot.slane %v3497, 4
      %v3500 = vrot.slane %v2337, 5
      %v3501 = vsel %vm1869, %v3499, %v3500
      %v3502 = vrot.slane %v2338, 5
      %v3503 = vrot.slane %v3502, 4
      %v3504 = vrot.slane %v2339, 5
      %v3505 = vsel %vm1869, %v3503, %v3504
      %v3506 = vrot.slane %v3504, 4
      %v3507 = vrot.slane %v2340, 5
      %v3508 = vsel %vm1869, %v3506, %v3507
      %v3509 = vrot.slane %v2341, 5
      %v3510 = vrot.slane %v3509, 4
      %v3511 = vrot.slane %v2342, 5
      %v3512 = vsel %vm1869, %v3510, %v3511
      %v3513 = vrot.slane %v3511, 4
      %v3514 = vrot.slane %v2343, 5
      %v3515 = vsel %vm1869, %v3513, %v3514
      %v3516 = vrot.slane %v2344, 5
      %v3517 = vrot.slane %v3516, 4
      %v3518 = vrot.slane %v2345, 5
      %v3519 = vsel %vm1869, %v3517, %v3518
      %v3520 = vrot.slane %v3518, 4
      %v3521 = vrot.slane %v2346, 5
      %v3522 = vsel %vm1869, %v3520, %v3521
      %v3523 = vrot.slane %v2347, 5
      %v3524 = vrot.slane %v3523, 4
      %v3525 = vrot.slane %v2348, 5
      %v3526 = vsel %vm1869, %v3524, %v3525
      %v3527 = vrot.slane %v3525, 4
      %v3528 = vrot.slane %v2349, 5
      %v3529 = vsel %vm1869, %v3527, %v3528
      %v3530 = vrot.slane %v2350, 5
      %v3531 = vrot.slane %v3530, 4
      %v3532 = vrot.slane %v2351, 5
      %v3533 = vsel %vm1869, %v3531, %v3532
      %v3534 = vrot.slane %v3532, 4
      %v3535 = vrot.slane %v2352, 5
      %v3536 = vsel %vm1869, %v3534, %v3535
      %v3537 = vrot.slane %v2353, 5
      %v3538 = vrot.slane %v3537, 4
      %v3539 = vrot.slane %v2354, 5
      %v3540 = vsel %vm1869, %v3538, %v3539
      %v3541 = vrot.slane %v3539, 4
      %v3542 = vrot.slane %v2355, 5
      %v3543 = vsel %vm1869, %v3541, %v3542
      %s3544 = scalar_lea.vmem %s1, 320
      %v3545 = vld [vmem:[%s3544] sm:$0xf]
      %v3546 = vld [vmem:[%s3544 + $0x4] sm:$0xf]
      %v3547 = vld [vmem:[%s3544 + $0x8] sm:$0xf]
      %v3548 = vld [vmem:[%s3544 + $0xc] sm:$0xf]
      %v3549 = vld [vmem:[%s3544 + $0x10] sm:$0xf]
      %v3550 = vld [vmem:[%s3544 + $0x14] sm:$0xf]
      %v3551 = vld [vmem:[%s3544 + $0x18] sm:$0xf]
      %v3552 = vld [vmem:[%s3544 + $0x1c] sm:$0xf]
      %v3553 = vld [vmem:[%s3544 + $0x20] sm:$0xf]
      %v3554 = vld [vmem:[%s3544 + $0x24] sm:$0xf]
      %v3555 = vld [vmem:[%s3544 + $0x28] sm:$0xf]
      %v3556 = vld [vmem:[%s3544 + $0x2c] sm:$0xf]
      %v3557 = vld [vmem:[%s3544 + $0x30] sm:$0xf]
      %v3558 = vld [vmem:[%s3544 + $0x34] sm:$0xf]
      %v3559 = vld [vmem:[%s3544 + $0x38] sm:$0xf]
      %v3560 = vld [vmem:[%s3544 + $0x3c] sm:$0xf]
      %v3561 = vunpack.c.l.b16 %v3435
      %v3562 = vunpack.c.l.b16 %v3438
      %v3563 = vunpack.c.l.b16 %v3442
      %v3564 = vunpack.c.l.b16 %v3445
      %v3565 = vunpack.c.l.b16 %v3449
      %v3566 = vunpack.c.l.b16 %v3452
      %v3567 = vunpack.c.l.b16 %v3456
      %v3568 = vunpack.c.l.b16 %v3459
      %v3569 = vunpack.c.l.b16 %v3463
      %v3570 = vunpack.c.l.b16 %v3466
      %v3571 = vunpack.c.l.b16 %v3470
      %v3572 = vunpack.c.l.b16 %v3473
      %v3573 = vunpack.c.l.b16 %v3477
      %v3574 = vunpack.c.l.b16 %v3480
      %v3575 = vunpack.c.l.b16 %v3484
      %v3576 = vunpack.c.l.b16 %v3487
      %v3577 = vunpack.c.l.b16 %v3491
      %v3578 = vunpack.c.l.b16 %v3494
      %v3579 = vunpack.c.l.b16 %v3498
      %v3580 = vunpack.c.l.b16 %v3501
      %v3581 = vunpack.c.l.b16 %v3505
      %v3582 = vunpack.c.l.b16 %v3508
      %v3583 = vunpack.c.l.b16 %v3512
      %v3584 = vunpack.c.l.b16 %v3515
      %v3585 = vunpack.c.l.b16 %v3519
      %v3586 = vunpack.c.l.b16 %v3522
      %v3587 = vunpack.c.l.b16 %v3526
      %v3588 = vunpack.c.l.b16 %v3529
      %v3589 = vunpack.c.l.b16 %v3533
      %v3590 = vunpack.c.l.b16 %v3536
      %v3591 = vunpack.c.l.b16 %v3540
      %v3592 = vunpack.c.l.b16 %v3543
      %v3593 = vpack.c.b16 %v3562, %v3561
      %v3594 = vpack.c.b16 %v3564, %v3563
      %v3595 = vpack.c.b16 %v3566, %v3565
      %v3596 = vpack.c.b16 %v3568, %v3567
      %v3597 = vpack.c.b16 %v3570, %v3569
      %v3598 = vpack.c.b16 %v3572, %v3571
      %v3599 = vpack.c.b16 %v3574, %v3573
      %v3600 = vpack.c.b16 %v3576, %v3575
      %v3601 = vpack.c.b16 %v3578, %v3577
      %v3602 = vpack.c.b16 %v3580, %v3579
      %v3603 = vpack.c.b16 %v3582, %v3581
      %v3604 = vpack.c.b16 %v3584, %v3583
      %v3605 = vpack.c.b16 %v3586, %v3585
      %v3606 = vpack.c.b16 %v3588, %v3587
      %v3607 = vpack.c.b16 %v3590, %v3589
      %v3608 = vpack.c.b16 %v3592, %v3591
      %v3641 = vunpack.c.l.b16 %v3545
      %v3642 = vunpack.c.l.b16 %v3546
      %v3643 = vunpack.c.l.b16 %v3547
      %v3644 = vunpack.c.l.b16 %v3548
      %v3645 = vunpack.c.l.b16 %v3549
      %v3646 = vunpack.c.l.b16 %v3550
      %v3647 = vunpack.c.l.b16 %v3551
      %v3648 = vunpack.c.l.b16 %v3552
      %v3649 = vunpack.c.l.b16 %v3553
      %v3650 = vunpack.c.l.b16 %v3554
      %v3651 = vunpack.c.l.b16 %v3555
      %v3652 = vunpack.c.l.b16 %v3556
      %v3653 = vunpack.c.l.b16 %v3557
      %v3654 = vunpack.c.l.b16 %v3558
      %v3655 = vunpack.c.l.b16 %v3559
      %v3656 = vunpack.c.l.b16 %v3560
      %v3657 = vpack.c.b16 %v3642, %v3641
      %v3658 = vpack.c.b16 %v3644, %v3643
      %v3659 = vpack.c.b16 %v3646, %v3645
      %v3660 = vpack.c.b16 %v3648, %v3647
      %v3661 = vpack.c.b16 %v3650, %v3649
      %v3662 = vpack.c.b16 %v3652, %v3651
      %v3663 = vpack.c.b16 %v3654, %v3653
      %v3664 = vpack.c.b16 %v3656, %v3655
      %3673 = vmatprep.subr.bf16.mxu0 0
      %3674 = vmatpush1.bf16.msra.mxu0 %v3664
      %3675 = vmatprep.subr.bf16.mxu0 0
      %3676 = vmatpush1.bf16.msra.mxu0 %v3663
      %3677 = vmatprep.subr.bf16.mxu0 0
      %3678 = vmatpush1.bf16.msra.mxu0 %v3662
      %3679 = vmatprep.subr.bf16.mxu0 0
      %3680 = vmatpush1.bf16.msra.mxu0 %v3661
      %3681 = vmatprep.subr.bf16.mxu0 0
      %3682 = vmatpush1.bf16.msra.mxu0 %v3660
      %3683 = vmatprep.subr.bf16.mxu0 0
      %3684 = vmatpush1.bf16.msra.mxu0 %v3659
      %3685 = vmatprep.subr.bf16.mxu0 0
      %3686 = vmatpush1.bf16.msra.mxu0 %v3658
      %3687 = vmatprep.subr.bf16.mxu0 0
      %3688 = vmatpush1.bf16.msra.mxu0 %v3657
      %3689 = vmatprep.subr.bf16.mxu0 0
      %3690 = vmatpush2.bf16.msra.mxu0 0
      %3691 = vmatprep.subr.bf16.mxu0 0
      %3692 = vmatpush2.bf16.msra.mxu0 0
      %3693 = vmatprep.subr.bf16.mxu0 0
      %3694 = vmatpush2.bf16.msra.mxu0 0
      %3695 = vmatprep.subr.bf16.mxu0 0
      %3696 = vmatpush2.bf16.msra.mxu0 0
      %3697 = vmatprep.subr.bf16.mxu0 0
      %3698 = vmatpush2.bf16.msra.mxu0 0
      %3699 = vmatprep.subr.bf16.mxu0 0
      %3700 = vmatpush2.bf16.msra.mxu0 0
      %3701 = vmatprep.subr.bf16.mxu0 0
      %3702 = vmatpush2.bf16.msra.mxu0 0
      %3703 = vmatprep.subr.bf16.mxu0 0
      %3704 = vmatpush2.bf16.msra.mxu0 0
      %3705 = vmatprep.mubr.bf16.mxu0 0
      %3706 = vmatmul.mubr.bf16.gmra.mxu0 %v3593
      %v3707 = vpop.f32.mrf.mxu0
      %v3708 = vadd.f32 0.0, %v3707
      %v3709 = vpop.f32.mrf.mxu0
      %v3710 = vpop.f32.mrf.mxu0
      %v3711 = vadd.f32 0.0, %v3710
      %v3712 = vpop.f32.mrf.mxu0
      %3713 = vmatprep.mubr.bf16.mxu0 0
      %3714 = vmatmul.mubr.bf16.gmra.mxu0 %v3594
      %v3715 = vpop.f32.mrf.mxu0
      %v3716 = vadd.f32 0.0, %v3715
      %v3717 = vpop.f32.mrf.mxu0
      %v3718 = vpop.f32.mrf.mxu0
      %v3719 = vadd.f32 0.0, %v3718
      %v3720 = vpop.f32.mrf.mxu0
      %3721 = vmatprep.mubr.bf16.mxu0 0
      %3722 = vmatmul.mubr.bf16.gmra.mxu0 %v3595
      %v3723 = vpop.f32.mrf.mxu0
      %v3724 = vadd.f32 0.0, %v3723
      %v3725 = vpop.f32.mrf.mxu0
      %v3726 = vpop.f32.mrf.mxu0
      %v3727 = vadd.f32 0.0, %v3726
      %v3728 = vpop.f32.mrf.mxu0
      %3729 = vmatprep.mubr.bf16.mxu0 0
      %3730 = vmatmul.mubr.bf16.gmra.mxu0 %v3596
      %v3731 = vpop.f32.mrf.mxu0
      %v3732 = vadd.f32 0.0, %v3731
      %v3733 = vpop.f32.mrf.mxu0
      %v3734 = vpop.f32.mrf.mxu0
      %v3735 = vadd.f32 0.0, %v3734
      %v3736 = vpop.f32.mrf.mxu0
      %3737 = vmatprep.mubr.bf16.mxu0 0
      %3738 = vmatmul.mubr.bf16.gmra.mxu0 %v3597
      %v3739 = vpop.f32.mrf.mxu0
      %v3740 = vadd.f32 0.0, %v3739
      %v3741 = vpop.f32.mrf.mxu0
      %v3742 = vpop.f32.mrf.mxu0
      %v3743 = vadd.f32 0.0, %v3742
      %v3744 = vpop.f32.mrf.mxu0
      %3745 = vmatprep.mubr.bf16.mxu0 0
      %3746 = vmatmul.mubr.bf16.gmra.mxu0 %v3598
      %v3747 = vpop.f32.mrf.mxu0
      %v3748 = vadd.f32 0.0, %v3747
      %v3749 = vpop.f32.mrf.mxu0
      %v3750 = vpop.f32.mrf.mxu0
      %v3751 = vadd.f32 0.0, %v3750
      %v3752 = vpop.f32.mrf.mxu0
      %3753 = vmatprep.mubr.bf16.mxu0 0
      %3754 = vmatmul.mubr.bf16.gmra.mxu0 %v3599
      %v3755 = vpop.f32.mrf.mxu0
      %v3756 = vadd.f32 0.0, %v3755
      %v3757 = vpop.f32.mrf.mxu0
      %v3758 = vpop.f32.mrf.mxu0
      %v3759 = vadd.f32 0.0, %v3758
      %v3760 = vpop.f32.mrf.mxu0
      %3761 = vmatprep.mubr.bf16.mxu0 0
      %3762 = vmatmul.mubr.bf16.gmra.mxu0 %v3600
      %v3763 = vpop.f32.mrf.mxu0
      %v3764 = vadd.f32 0.0, %v3763
      %v3765 = vpop.f32.mrf.mxu0
      %v3766 = vpop.f32.mrf.mxu0
      %v3767 = vadd.f32 0.0, %v3766
      %v3768 = vpop.f32.mrf.mxu0
      %3769 = vmatprep.mubr.bf16.mxu0 0
      %3770 = vmatmul.mubr.bf16.gmra.mxu0 %v3601
      %v3771 = vpop.f32.mrf.mxu0
      %v3772 = vadd.f32 0.0, %v3771
      %v3773 = vpop.f32.mrf.mxu0
      %v3774 = vpop.f32.mrf.mxu0
      %v3775 = vadd.f32 0.0, %v3774
      %v3776 = vpop.f32.mrf.mxu0
      %3777 = vmatprep.mubr.bf16.mxu0 0
      %3778 = vmatmul.mubr.bf16.gmra.mxu0 %v3602
      %v3779 = vpop.f32.mrf.mxu0
      %v3780 = vadd.f32 0.0, %v3779
      %v3781 = vpop.f32.mrf.mxu0
      %v3782 = vpop.f32.mrf.mxu0
      %v3783 = vadd.f32 0.0, %v3782
      %v3784 = vpop.f32.mrf.mxu0
      %3785 = vmatprep.mubr.bf16.mxu0 0
      %3786 = vmatmul.mubr.bf16.gmra.mxu0 %v3603
      %v3787 = vpop.f32.mrf.mxu0
      %v3788 = vadd.f32 0.0, %v3787
      %v3789 = vpop.f32.mrf.mxu0
      %v3790 = vpop.f32.mrf.mxu0
      %v3791 = vadd.f32 0.0, %v3790
      %v3792 = vpop.f32.mrf.mxu0
      %3793 = vmatprep.mubr.bf16.mxu0 0
      %3794 = vmatmul.mubr.bf16.gmra.mxu0 %v3604
      %v3795 = vpop.f32.mrf.mxu0
      %v3796 = vadd.f32 0.0, %v3795
      %v3797 = vpop.f32.mrf.mxu0
      %v3798 = vpop.f32.mrf.mxu0
      %v3799 = vadd.f32 0.0, %v3798
      %v3800 = vpop.f32.mrf.mxu0
      %3801 = vmatprep.mubr.bf16.mxu0 0
      %3802 = vmatmul.mubr.bf16.gmra.mxu0 %v3605
      %v3803 = vpop.f32.mrf.mxu0
      %v3804 = vadd.f32 0.0, %v3803
      %v3805 = vpop.f32.mrf.mxu0
      %v3806 = vpop.f32.mrf.mxu0
      %v3807 = vadd.f32 0.0, %v3806
      %v3808 = vpop.f32.mrf.mxu0
      %3809 = vmatprep.mubr.bf16.mxu0 0
      %3810 = vmatmul.mubr.bf16.gmra.mxu0 %v3606
      %v3811 = vpop.f32.mrf.mxu0
      %v3812 = vadd.f32 0.0, %v3811
      %v3813 = vpop.f32.mrf.mxu0
      %v3814 = vpop.f32.mrf.mxu0
      %v3815 = vadd.f32 0.0, %v3814
      %v3816 = vpop.f32.mrf.mxu0
      %3817 = vmatprep.mubr.bf16.mxu0 0
      %3818 = vmatmul.mubr.bf16.gmra.mxu0 %v3607
      %v3819 = vpop.f32.mrf.mxu0
      %v3820 = vadd.f32 0.0, %v3819
      %v3821 = vpop.f32.mrf.mxu0
      %v3822 = vpop.f32.mrf.mxu0
      %v3823 = vadd.f32 0.0, %v3822
      %v3824 = vpop.f32.mrf.mxu0
      %3825 = vmatprep.mubr.bf16.mxu0 0
      %3826 = vmatmul.mubr.bf16.gmra.mxu0 %v3608
      %v3827 = vpop.f32.mrf.mxu0
      %v3828 = vadd.f32 0.0, %v3827
      %v3829 = vpop.f32.mrf.mxu0
      %v3830 = vpop.f32.mrf.mxu0
      %v3831 = vadd.f32 0.0, %v3830
      %v3832 = vpop.f32.mrf.mxu0
      %3833 = vdwg.mxu0
      %v3834 = vadd.f32 %v3384, %v3708
      %v3835 = vadd.f32 %v3385, %v3711
      %v3836 = vadd.f32 %v3386, %v3716
      %v3837 = vadd.f32 %v3387, %v3719
      %v3838 = vadd.f32 %v3388, %v3724
      %v3839 = vadd.f32 %v3389, %v3727
      %v3840 = vadd.f32 %v3390, %v3732
      %v3841 = vadd.f32 %v3391, %v3735
      %v3842 = vadd.f32 %v3392, %v3740
      %v3843 = vadd.f32 %v3393, %v3743
      %v3844 = vadd.f32 %v3394, %v3748
      %v3845 = vadd.f32 %v3395, %v3751
      %v3846 = vadd.f32 %v3396, %v3756
      %v3847 = vadd.f32 %v3397, %v3759
      %v3848 = vadd.f32 %v3398, %v3764
      %v3849 = vadd.f32 %v3399, %v3767
      %v3850 = vadd.f32 %v3400, %v3772
      %v3851 = vadd.f32 %v3401, %v3775
      %v3852 = vadd.f32 %v3402, %v3780
      %v3853 = vadd.f32 %v3403, %v3783
      %v3854 = vadd.f32 %v3404, %v3788
      %v3855 = vadd.f32 %v3405, %v3791
      %v3856 = vadd.f32 %v3406, %v3796
      %v3857 = vadd.f32 %v3407, %v3799
      %v3858 = vadd.f32 %v3408, %v3804
      %v3859 = vadd.f32 %v3409, %v3807
      %v3860 = vadd.f32 %v3410, %v3812
      %v3861 = vadd.f32 %v3411, %v3815
      %v3862 = vadd.f32 %v3412, %v3820
      %v3863 = vadd.f32 %v3413, %v3823
      %v3864 = vadd.f32 %v3414, %v3828
      %v3865 = vadd.f32 %v3415, %v3831
      %s3866 = sadd.s32 %s801, 2
      %s3867 = smul.u32 %s3866, 3
      %s3868 = smul.addr %s3867, 4
      %s3869 = scalar_lea.vmem [#allocation2], %s3868
      %v3870 = vld [vmem:[%s3869] sm:$0xf]
      %v3871 = vld [vmem:[%s3869 + $0x4] sm:$0xf]
      %v3872 = vld [vmem:[%s3869 + $0x8] sm:$0x1]
      %v3873 = vld [vmem:[%s3869 + $0xc] sm:$0xf]
      %v3874 = vld [vmem:[%s3869 + $0x10] sm:$0xf]
      %v3875 = vld [vmem:[%s3869 + $0x14] sm:$0x1]
      %v3876 = vld [vmem:[%s3869 + $0x18] sm:$0xf]
      %v3877 = vld [vmem:[%s3869 + $0x1c] sm:$0xf]
      %v3878 = vld [vmem:[%s3869 + $0x20] sm:$0x1]
      %v3879 = vld [vmem:[%s3869 + $0x24] sm:$0xf]
      %v3880 = vld [vmem:[%s3869 + $0x28] sm:$0xf]
      %v3881 = vld [vmem:[%s3869 + $0x2c] sm:$0x1]
      %v3882 = vld [vmem:[%s3869 + $0x30] sm:$0xf]
      %v3883 = vld [vmem:[%s3869 + $0x34] sm:$0xf]
      %v3884 = vld [vmem:[%s3869 + $0x38] sm:$0x1]
      %v3885 = vld [vmem:[%s3869 + $0x3c] sm:$0xf]
      %v3886 = vld [vmem:[%s3869 + $0x40] sm:$0xf]
      %v3887 = vld [vmem:[%s3869 + $0x44] sm:$0x1]
      %v3888 = vld [vmem:[%s3869 + $0x48] sm:$0xf]
      %v3889 = vld [vmem:[%s3869 + $0x4c] sm:$0xf]
      %v3890 = vld [vmem:[%s3869 + $0x50] sm:$0x1]
      %v3891 = vld [vmem:[%s3869 + $0x54] sm:$0xf]
      %v3892 = vld [vmem:[%s3869 + $0x58] sm:$0xf]
      %v3893 = vld [vmem:[%s3869 + $0x5c] sm:$0x1]
      %v3894 = vld [vmem:[%s3869 + $0x60] sm:$0xf]
      %v3895 = vld [vmem:[%s3869 + $0x64] sm:$0xf]
      %v3896 = vld [vmem:[%s3869 + $0x68] sm:$0x1]
      %v3897 = vld [vmem:[%s3869 + $0x6c] sm:$0xf]
      %v3898 = vld [vmem:[%s3869 + $0x70] sm:$0xf]
      %v3899 = vld [vmem:[%s3869 + $0x74] sm:$0x1]
      %v3900 = vld [vmem:[%s3869 + $0x78] sm:$0xf]
      %v3901 = vld [vmem:[%s3869 + $0x7c] sm:$0xf]
      %v3902 = vld [vmem:[%s3869 + $0x80] sm:$0x1]
      %v3903 = vld [vmem:[%s3869 + $0x84] sm:$0xf]
      %v3904 = vld [vmem:[%s3869 + $0x88] sm:$0xf]
      %v3905 = vld [vmem:[%s3869 + $0x8c] sm:$0x1]
      %v3906 = vld [vmem:[%s3869 + $0x90] sm:$0xf]
      %v3907 = vld [vmem:[%s3869 + $0x94] sm:$0xf]
      %v3908 = vld [vmem:[%s3869 + $0x98] sm:$0x1]
      %v3909 = vld [vmem:[%s3869 + $0x9c] sm:$0xf]
      %v3910 = vld [vmem:[%s3869 + $0xa0] sm:$0xf]
      %v3911 = vld [vmem:[%s3869 + $0xa4] sm:$0x1]
      %v3912 = vld [vmem:[%s3869 + $0xa8] sm:$0xf]
      %v3913 = vld [vmem:[%s3869 + $0xac] sm:$0xf]
      %v3914 = vld [vmem:[%s3869 + $0xb0] sm:$0x1]
      %v3915 = vld [vmem:[%s3869 + $0xb4] sm:$0xf]
      %v3916 = vld [vmem:[%s3869 + $0xb8] sm:$0xf]
      %v3917 = vld [vmem:[%s3869 + $0xbc] sm:$0x1]
      %s3918 = scalar_lea.vmem %s1, 384
      %v3919 = vld [vmem:[%s3918] sm:$0xf]
      %v3920 = vld [vmem:[%s3918 + $0x4] sm:$0xf]
      %v3921 = vld [vmem:[%s3918 + $0x8] sm:$0xf]
      %v3922 = vld [vmem:[%s3918 + $0xc] sm:$0xf]
      %v3923 = vld [vmem:[%s3918 + $0x10] sm:$0xf]
      %v3924 = vld [vmem:[%s3918 + $0x14] sm:$0xf]
      %v3925 = vld [vmem:[%s3918 + $0x18] sm:$0xf]
      %v3926 = vld [vmem:[%s3918 + $0x1c] sm:$0xf]
      %v3927 = vld [vmem:[%s3918 + $0x20] sm:$0xf]
      %v3928 = vld [vmem:[%s3918 + $0x24] sm:$0xf]
      %v3929 = vld [vmem:[%s3918 + $0x28] sm:$0xf]
      %v3930 = vld [vmem:[%s3918 + $0x2c] sm:$0xf]
      %v3931 = vld [vmem:[%s3918 + $0x30] sm:$0xf]
      %v3932 = vld [vmem:[%s3918 + $0x34] sm:$0xf]
      %v3933 = vld [vmem:[%s3918 + $0x38] sm:$0xf]
      %v3934 = vld [vmem:[%s3918 + $0x3c] sm:$0xf]
      %v3967 = vunpack.c.l.b16 %v3870
      %v3968 = vunpack.c.l.b16 %v3871
      %v3969 = vunpack.c.l.b16 %v3873
      %v3970 = vunpack.c.l.b16 %v3874
      %v3971 = vunpack.c.l.b16 %v3876
      %v3972 = vunpack.c.l.b16 %v3877
      %v3973 = vunpack.c.l.b16 %v3879
      %v3974 = vunpack.c.l.b16 %v3880
      %v3975 = vunpack.c.l.b16 %v3882
      %v3976 = vunpack.c.l.b16 %v3883
      %v3977 = vunpack.c.l.b16 %v3885
      %v3978 = vunpack.c.l.b16 %v3886
      %v3979 = vunpack.c.l.b16 %v3888
      %v3980 = vunpack.c.l.b16 %v3889
      %v3981 = vunpack.c.l.b16 %v3891
      %v3982 = vunpack.c.l.b16 %v3892
      %v3983 = vunpack.c.l.b16 %v3894
      %v3984 = vunpack.c.l.b16 %v3895
      %v3985 = vunpack.c.l.b16 %v3897
      %v3986 = vunpack.c.l.b16 %v3898
      %v3987 = vunpack.c.l.b16 %v3900
      %v3988 = vunpack.c.l.b16 %v3901
      %v3989 = vunpack.c.l.b16 %v3903
      %v3990 = vunpack.c.l.b16 %v3904
      %v3991 = vunpack.c.l.b16 %v3906
      %v3992 = vunpack.c.l.b16 %v3907
      %v3993 = vunpack.c.l.b16 %v3909
      %v3994 = vunpack.c.l.b16 %v3910
      %v3995 = vunpack.c.l.b16 %v3912
      %v3996 = vunpack.c.l.b16 %v3913
      %v3997 = vunpack.c.l.b16 %v3915
      %v3998 = vunpack.c.l.b16 %v3916
      %v3999 = vpack.c.b16 %v3968, %v3967
      %v4000 = vpack.c.b16 %v3970, %v3969
      %v4001 = vpack.c.b16 %v3972, %v3971
      %v4002 = vpack.c.b16 %v3974, %v3973
      %v4003 = vpack.c.b16 %v3976, %v3975
      %v4004 = vpack.c.b16 %v3978, %v3977
      %v4005 = vpack.c.b16 %v3980, %v3979
      %v4006 = vpack.c.b16 %v3982, %v3981
      %v4007 = vpack.c.b16 %v3984, %v3983
      %v4008 = vpack.c.b16 %v3986, %v3985
      %v4009 = vpack.c.b16 %v3988, %v3987
      %v4010 = vpack.c.b16 %v3990, %v3989
      %v4011 = vpack.c.b16 %v3992, %v3991
      %v4012 = vpack.c.b16 %v3994, %v3993
      %v4013 = vpack.c.b16 %v3996, %v3995
      %v4014 = vpack.c.b16 %v3998, %v3997
      %v4047 = vunpack.c.l.b16 %v3919
      %v4048 = vunpack.c.l.b16 %v3920
      %v4049 = vunpack.c.l.b16 %v3921
      %v4050 = vunpack.c.l.b16 %v3922
      %v4051 = vunpack.c.l.b16 %v3923
      %v4052 = vunpack.c.l.b16 %v3924
      %v4053 = vunpack.c.l.b16 %v3925
      %v4054 = vunpack.c.l.b16 %v3926
      %v4055 = vunpack.c.l.b16 %v3927
      %v4056 = vunpack.c.l.b16 %v3928
      %v4057 = vunpack.c.l.b16 %v3929
      %v4058 = vunpack.c.l.b16 %v3930
      %v4059 = vunpack.c.l.b16 %v3931
      %v4060 = vunpack.c.l.b16 %v3932
      %v4061 = vunpack.c.l.b16 %v3933
      %v4062 = vunpack.c.l.b16 %v3934
      %v4063 = vpack.c.b16 %v4048, %v4047
      %v4064 = vpack.c.b16 %v4050, %v4049
      %v4065 = vpack.c.b16 %v4052, %v4051
      %v4066 = vpack.c.b16 %v4054, %v4053
      %v4067 = vpack.c.b16 %v4056, %v4055
      %v4068 = vpack.c.b16 %v4058, %v4057
      %v4069 = vpack.c.b16 %v4060, %v4059
      %v4070 = vpack.c.b16 %v4062, %v4061
      %4079 = vmatprep.subr.bf16.mxu0 0
      %4080 = vmatpush1.bf16.msra.mxu0 %v4070
      %4081 = vmatprep.subr.bf16.mxu0 0
      %4082 = vmatpush1.bf16.msra.mxu0 %v4069
      %4083 = vmatprep.subr.bf16.mxu0 0
      %4084 = vmatpush1.bf16.msra.mxu0 %v4068
      %4085 = vmatprep.subr.bf16.mxu0 0
      %4086 = vmatpush1.bf16.msra.mxu0 %v4067
      %4087 = vmatprep.subr.bf16.mxu0 0
      %4088 = vmatpush1.bf16.msra.mxu0 %v4066
      %4089 = vmatprep.subr.bf16.mxu0 0
      %4090 = vmatpush1.bf16.msra.mxu0 %v4065
      %4091 = vmatprep.subr.bf16.mxu0 0
      %4092 = vmatpush1.bf16.msra.mxu0 %v4064
      %4093 = vmatprep.subr.bf16.mxu0 0
      %4094 = vmatpush1.bf16.msra.mxu0 %v4063
      %4095 = vmatprep.subr.bf16.mxu0 0
      %4096 = vmatpush2.bf16.msra.mxu0 0
      %4097 = vmatprep.subr.bf16.mxu0 0
      %4098 = vmatpush2.bf16.msra.mxu0 0
      %4099 = vmatprep.subr.bf16.mxu0 0
      %4100 = vmatpush2.bf16.msra.mxu0 0
      %4101 = vmatprep.subr.bf16.mxu0 0
      %4102 = vmatpush2.bf16.msra.mxu0 0
      %4103 = vmatprep.subr.bf16.mxu0 0
      %4104 = vmatpush2.bf16.msra.mxu0 0
      %4105 = vmatprep.subr.bf16.mxu0 0
      %4106 = vmatpush2.bf16.msra.mxu0 0
      %4107 = vmatprep.subr.bf16.mxu0 0
      %4108 = vmatpush2.bf16.msra.mxu0 0
      %4109 = vmatprep.subr.bf16.mxu0 0
      %4110 = vmatpush2.bf16.msra.mxu0 0
      %4111 = vmatprep.mubr.bf16.mxu0 0
      %4112 = vmatmul.mubr.bf16.gmra.mxu0 %v3999
      %v4113 = vpop.f32.mrf.mxu0
      %v4114 = vadd.f32 0.0, %v4113
      %v4115 = vpop.f32.mrf.mxu0
      %v4116 = vpop.f32.mrf.mxu0
      %v4117 = vadd.f32 0.0, %v4116
      %v4118 = vpop.f32.mrf.mxu0
      %4119 = vmatprep.mubr.bf16.mxu0 0
      %4120 = vmatmul.mubr.bf16.gmra.mxu0 %v4000
      %v4121 = vpop.f32.mrf.mxu0
      %v4122 = vadd.f32 0.0, %v4121
      %v4123 = vpop.f32.mrf.mxu0
      %v4124 = vpop.f32.mrf.mxu0
      %v4125 = vadd.f32 0.0, %v4124
      %v4126 = vpop.f32.mrf.mxu0
      %4127 = vmatprep.mubr.bf16.mxu0 0
      %4128 = vmatmul.mubr.bf16.gmra.mxu0 %v4001
      %v4129 = vpop.f32.mrf.mxu0
      %v4130 = vadd.f32 0.0, %v4129
      %v4131 = vpop.f32.mrf.mxu0
      %v4132 = vpop.f32.mrf.mxu0
      %v4133 = vadd.f32 0.0, %v4132
      %v4134 = vpop.f32.mrf.mxu0
      %4135 = vmatprep.mubr.bf16.mxu0 0
      %4136 = vmatmul.mubr.bf16.gmra.mxu0 %v4002
      %v4137 = vpop.f32.mrf.mxu0
      %v4138 = vadd.f32 0.0, %v4137
      %v4139 = vpop.f32.mrf.mxu0
      %v4140 = vpop.f32.mrf.mxu0
      %v4141 = vadd.f32 0.0, %v4140
      %v4142 = vpop.f32.mrf.mxu0
      %4143 = vmatprep.mubr.bf16.mxu0 0
      %4144 = vmatmul.mubr.bf16.gmra.mxu0 %v4003
      %v4145 = vpop.f32.mrf.mxu0
      %v4146 = vadd.f32 0.0, %v4145
      %v4147 = vpop.f32.mrf.mxu0
      %v4148 = vpop.f32.mrf.mxu0
      %v4149 = vadd.f32 0.0, %v4148
      %v4150 = vpop.f32.mrf.mxu0
      %4151 = vmatprep.mubr.bf16.mxu0 0
      %4152 = vmatmul.mubr.bf16.gmra.mxu0 %v4004
      %v4153 = vpop.f32.mrf.mxu0
      %v4154 = vadd.f32 0.0, %v4153
      %v4155 = vpop.f32.mrf.mxu0
      %v4156 = vpop.f32.mrf.mxu0
      %v4157 = vadd.f32 0.0, %v4156
      %v4158 = vpop.f32.mrf.mxu0
      %4159 = vmatprep.mubr.bf16.mxu0 0
      %4160 = vmatmul.mubr.bf16.gmra.mxu0 %v4005
      %v4161 = vpop.f32.mrf.mxu0
      %v4162 = vadd.f32 0.0, %v4161
      %v4163 = vpop.f32.mrf.mxu0
      %v4164 = vpop.f32.mrf.mxu0
      %v4165 = vadd.f32 0.0, %v4164
      %v4166 = vpop.f32.mrf.mxu0
      %4167 = vmatprep.mubr.bf16.mxu0 0
      %4168 = vmatmul.mubr.bf16.gmra.mxu0 %v4006
      %v4169 = vpop.f32.mrf.mxu0
      %v4170 = vadd.f32 0.0, %v4169
      %v4171 = vpop.f32.mrf.mxu0
      %v4172 = vpop.f32.mrf.mxu0
      %v4173 = vadd.f32 0.0, %v4172
      %v4174 = vpop.f32.mrf.mxu0
      %4175 = vmatprep.mubr.bf16.mxu0 0
      %4176 = vmatmul.mubr.bf16.gmra.mxu0 %v4007
      %v4177 = vpop.f32.mrf.mxu0
      %v4178 = vadd.f32 0.0, %v4177
      %v4179 = vpop.f32.mrf.mxu0
      %v4180 = vpop.f32.mrf.mxu0
      %v4181 = vadd.f32 0.0, %v4180
      %v4182 = vpop.f32.mrf.mxu0
      %4183 = vmatprep.mubr.bf16.mxu0 0
      %4184 = vmatmul.mubr.bf16.gmra.mxu0 %v4008
      %v4185 = vpop.f32.mrf.mxu0
      %v4186 = vadd.f32 0.0, %v4185
      %v4187 = vpop.f32.mrf.mxu0
      %v4188 = vpop.f32.mrf.mxu0
      %v4189 = vadd.f32 0.0, %v4188
      %v4190 = vpop.f32.mrf.mxu0
      %4191 = vmatprep.mubr.bf16.mxu0 0
      %4192 = vmatmul.mubr.bf16.gmra.mxu0 %v4009
      %v4193 = vpop.f32.mrf.mxu0
      %v4194 = vadd.f32 0.0, %v4193
      %v4195 = vpop.f32.mrf.mxu0
      %v4196 = vpop.f32.mrf.mxu0
      %v4197 = vadd.f32 0.0, %v4196
      %v4198 = vpop.f32.mrf.mxu0
      %4199 = vmatprep.mubr.bf16.mxu0 0
      %4200 = vmatmul.mubr.bf16.gmra.mxu0 %v4010
      %v4201 = vpop.f32.mrf.mxu0
      %v4202 = vadd.f32 0.0, %v4201
      %v4203 = vpop.f32.mrf.mxu0
      %v4204 = vpop.f32.mrf.mxu0
      %v4205 = vadd.f32 0.0, %v4204
      %v4206 = vpop.f32.mrf.mxu0
      %4207 = vmatprep.mubr.bf16.mxu0 0
      %4208 = vmatmul.mubr.bf16.gmra.mxu0 %v4011
      %v4209 = vpop.f32.mrf.mxu0
      %v4210 = vadd.f32 0.0, %v4209
      %v4211 = vpop.f32.mrf.mxu0
      %v4212 = vpop.f32.mrf.mxu0
      %v4213 = vadd.f32 0.0, %v4212
      %v4214 = vpop.f32.mrf.mxu0
      %4215 = vmatprep.mubr.bf16.mxu0 0
      %4216 = vmatmul.mubr.bf16.gmra.mxu0 %v4012
      %v4217 = vpop.f32.mrf.mxu0
      %v4218 = vadd.f32 0.0, %v4217
      %v4219 = vpop.f32.mrf.mxu0
      %v4220 = vpop.f32.mrf.mxu0
      %v4221 = vadd.f32 0.0, %v4220
      %v4222 = vpop.f32.mrf.mxu0
      %4223 = vmatprep.mubr.bf16.mxu0 0
      %4224 = vmatmul.mubr.bf16.gmra.mxu0 %v4013
      %v4225 = vpop.f32.mrf.mxu0
      %v4226 = vadd.f32 0.0, %v4225
      %v4227 = vpop.f32.mrf.mxu0
      %v4228 = vpop.f32.mrf.mxu0
      %v4229 = vadd.f32 0.0, %v4228
      %v4230 = vpop.f32.mrf.mxu0
      %4231 = vmatprep.mubr.bf16.mxu0 0
      %4232 = vmatmul.mubr.bf16.gmra.mxu0 %v4014
      %v4233 = vpop.f32.mrf.mxu0
      %v4234 = vadd.f32 0.0, %v4233
      %v4235 = vpop.f32.mrf.mxu0
      %v4236 = vpop.f32.mrf.mxu0
      %v4237 = vadd.f32 0.0, %v4236
      %v4238 = vpop.f32.mrf.mxu0
      %4239 = vdwg.mxu0
      %v4240 = vadd.f32 %v3834, %v4114
      %v4241 = vadd.f32 %v3835, %v4117
      %v4242 = vadd.f32 %v3836, %v4122
      %v4243 = vadd.f32 %v3837, %v4125
      %v4244 = vadd.f32 %v3838, %v4130
      %v4245 = vadd.f32 %v3839, %v4133
      %v4246 = vadd.f32 %v3840, %v4138
      %v4247 = vadd.f32 %v3841, %v4141
      %v4248 = vadd.f32 %v3842, %v4146
      %v4249 = vadd.f32 %v3843, %v4149
      %v4250 = vadd.f32 %v3844, %v4154
      %v4251 = vadd.f32 %v3845, %v4157
      %v4252 = vadd.f32 %v3846, %v4162
      %v4253 = vadd.f32 %v3847, %v4165
      %v4254 = vadd.f32 %v3848, %v4170
      %v4255 = vadd.f32 %v3849, %v4173
      %v4256 = vadd.f32 %v3850, %v4178
      %v4257 = vadd.f32 %v3851, %v4181
      %v4258 = vadd.f32 %v3852, %v4186
      %v4259 = vadd.f32 %v3853, %v4189
      %v4260 = vadd.f32 %v3854, %v4194
      %v4261 = vadd.f32 %v3855, %v4197
      %v4262 = vadd.f32 %v3856, %v4202
      %v4263 = vadd.f32 %v3857, %v4205
      %v4264 = vadd.f32 %v3858, %v4210
      %v4265 = vadd.f32 %v3859, %v4213
      %v4266 = vadd.f32 %v3860, %v4218
      %v4267 = vadd.f32 %v3861, %v4221
      %v4268 = vadd.f32 %v3862, %v4226
      %v4269 = vadd.f32 %v3863, %v4229
      %v4270 = vadd.f32 %v3864, %v4234
      %v4271 = vadd.f32 %v3865, %v4237
      %v4273 = vshrl.u32 %v3870, 16
      %v4275 = vrot.slane %v4273, 4
      %v4276 = vshll.u32 %v3870, 16
      %v4278 = vrot.slane %v4276, 5
      %v4279 = vor.u32 %v4275, %v4278
      %v4280 = vrot.slane %v4279, 4
      %v4282 = vshll.u32 %v3871, 16
      %v4284 = vrot.slane %v4282, 5
      %v4285 = vsel %vm871, %v4280, %v4284
      %v4286 = vshrl.u32 %v3871, 16
      %v4288 = vrot.slane %v4286, 4
      %v4289 = vor.u32 %v4288, %v4284
      %v4290 = vrot.slane %v4289, 4
      %v4292 = vshll.u32 %v3872, 16
      %v4294 = vrot.slane %v4292, 5
      %v4295 = vsel %vm871, %v4290, %v4294
      %v4297 = vshrl.u32 %v3873, 16
      %v4299 = vrot.slane %v4297, 4
      %v4300 = vshll.u32 %v3873, 16
      %v4302 = vrot.slane %v4300, 5
      %v4303 = vor.u32 %v4299, %v4302
      %v4304 = vrot.slane %v4303, 4
      %v4306 = vshll.u32 %v3874, 16
      %v4308 = vrot.slane %v4306, 5
      %v4309 = vsel %vm871, %v4304, %v4308
      %v4310 = vshrl.u32 %v3874, 16
      %v4312 = vrot.slane %v4310, 4
      %v4313 = vor.u32 %v4312, %v4308
      %v4314 = vrot.slane %v4313, 4
      %v4316 = vshll.u32 %v3875, 16
      %v4318 = vrot.slane %v4316, 5
      %v4319 = vsel %vm871, %v4314, %v4318
      %v4321 = vshrl.u32 %v3876, 16
      %v4323 = vrot.slane %v4321, 4
      %v4324 = vshll.u32 %v3876, 16
      %v4326 = vrot.slane %v4324, 5
      %v4327 = vor.u32 %v4323, %v4326
      %v4328 = vrot.slane %v4327, 4
      %v4330 = vshll.u32 %v3877, 16
      %v4332 = vrot.slane %v4330, 5
      %v4333 = vsel %vm871, %v4328, %v4332
      %v4334 = vshrl.u32 %v3877, 16
      %v4336 = vrot.slane %v4334, 4
      %v4337 = vor.u32 %v4336, %v4332
      %v4338 = vrot.slane %v4337, 4
      %v4340 = vshll.u32 %v3878, 16
      %v4342 = vrot.slane %v4340, 5
      %v4343 = vsel %vm871, %v4338, %v4342
      %v4345 = vshrl.u32 %v3879, 16
      %v4347 = vrot.slane %v4345, 4
      %v4348 = vshll.u32 %v3879, 16
      %v4350 = vrot.slane %v4348, 5
      %v4351 = vor.u32 %v4347, %v4350
      %v4352 = vrot.slane %v4351, 4
      %v4354 = vshll.u32 %v3880, 16
      %v4356 = vrot.slane %v4354, 5
      %v4357 = vsel %vm871, %v4352, %v4356
      %v4358 = vshrl.u32 %v3880, 16
      %v4360 = vrot.slane %v4358, 4
      %v4361 = vor.u32 %v4360, %v4356
      %v4362 = vrot.slane %v4361, 4
      %v4364 = vshll.u32 %v3881, 16
      %v4366 = vrot.slane %v4364, 5
      %v4367 = vsel %vm871, %v4362, %v4366
      %v4369 = vshrl.u32 %v3882, 16
      %v4371 = vrot.slane %v4369, 4
      %v4372 = vshll.u32 %v3882, 16
      %v4374 = vrot.slane %v4372, 5
      %v4375 = vor.u32 %v4371, %v4374
      %v4376 = vrot.slane %v4375, 4
      %v4378 = vshll.u32 %v3883, 16
      %v4380 = vrot.slane %v4378, 5
      %v4381 = vsel %vm871, %v4376, %v4380
      %v4382 = vshrl.u32 %v3883, 16
      %v4384 = vrot.slane %v4382, 4
      %v4385 = vor.u32 %v4384, %v4380
      %v4386 = vrot.slane %v4385, 4
      %v4388 = vshll.u32 %v3884, 16
      %v4390 = vrot.slane %v4388, 5
      %v4391 = vsel %vm871, %v4386, %v4390
      %v4393 = vshrl.u32 %v3885, 16
      %v4395 = vrot.slane %v4393, 4
      %v4396 = vshll.u32 %v3885, 16
      %v4398 = vrot.slane %v4396, 5
      %v4399 = vor.u32 %v4395, %v4398
      %v4400 = vrot.slane %v4399, 4
      %v4402 = vshll.u32 %v3886, 16
      %v4404 = vrot.slane %v4402, 5
      %v4405 = vsel %vm871, %v4400, %v4404
      %v4406 = vshrl.u32 %v3886, 16
      %v4408 = vrot.slane %v4406, 4
      %v4409 = vor.u32 %v4408, %v4404
      %v4410 = vrot.slane %v4409, 4
      %v4412 = vshll.u32 %v3887, 16
      %v4414 = vrot.slane %v4412, 5
      %v4415 = vsel %vm871, %v4410, %v4414
      %v4417 = vshrl.u32 %v3888, 16
      %v4419 = vrot.slane %v4417, 4
      %v4420 = vshll.u32 %v3888, 16
      %v4422 = vrot.slane %v4420, 5
      %v4423 = vor.u32 %v4419, %v4422
      %v4424 = vrot.slane %v4423, 4
      %v4426 = vshll.u32 %v3889, 16
      %v4428 = vrot.slane %v4426, 5
      %v4429 = vsel %vm871, %v4424, %v4428
      %v4430 = vshrl.u32 %v3889, 16
      %v4432 = vrot.slane %v4430, 4
      %v4433 = vor.u32 %v4432, %v4428
      %v4434 = vrot.slane %v4433, 4
      %v4436 = vshll.u32 %v3890, 16
      %v4438 = vrot.slane %v4436, 5
      %v4439 = vsel %vm871, %v4434, %v4438
      %v4441 = vshrl.u32 %v3891, 16
      %v4443 = vrot.slane %v4441, 4
      %v4444 = vshll.u32 %v3891, 16
      %v4446 = vrot.slane %v4444, 5
      %v4447 = vor.u32 %v4443, %v4446
      %v4448 = vrot.slane %v4447, 4
      %v4450 = vshll.u32 %v3892, 16
      %v4452 = vrot.slane %v4450, 5
      %v4453 = vsel %vm871, %v4448, %v4452
      %v4454 = vshrl.u32 %v3892, 16
      %v4456 = vrot.slane %v4454, 4
      %v4457 = vor.u32 %v4456, %v4452
      %v4458 = vrot.slane %v4457, 4
      %v4460 = vshll.u32 %v3893, 16
      %v4462 = vrot.slane %v4460, 5
      %v4463 = vsel %vm871, %v4458, %v4462
      %v4465 = vshrl.u32 %v3894, 16
      %v4467 = vrot.slane %v4465, 4
      %v4468 = vshll.u32 %v3894, 16
      %v4470 = vrot.slane %v4468, 5
      %v4471 = vor.u32 %v4467, %v4470
      %v4472 = vrot.slane %v4471, 4
      %v4474 = vshll.u32 %v3895, 16
      %v4476 = vrot.slane %v4474, 5
      %v4477 = vsel %vm871, %v4472, %v4476
      %v4478 = vshrl.u32 %v3895, 16
      %v4480 = vrot.slane %v4478, 4
      %v4481 = vor.u32 %v4480, %v4476
      %v4482 = vrot.slane %v4481, 4
      %v4484 = vshll.u32 %v3896, 16
      %v4486 = vrot.slane %v4484, 5
      %v4487 = vsel %vm871, %v4482, %v4486
      %v4489 = vshrl.u32 %v3897, 16
      %v4491 = vrot.slane %v4489, 4
      %v4492 = vshll.u32 %v3897, 16
      %v4494 = vrot.slane %v4492, 5
      %v4495 = vor.u32 %v4491, %v4494
      %v4496 = vrot.slane %v4495, 4
      %v4498 = vshll.u32 %v3898, 16
      %v4500 = vrot.slane %v4498, 5
      %v4501 = vsel %vm871, %v4496, %v4500
      %v4502 = vshrl.u32 %v3898, 16
      %v4504 = vrot.slane %v4502, 4
      %v4505 = vor.u32 %v4504, %v4500
      %v4506 = vrot.slane %v4505, 4
      %v4508 = vshll.u32 %v3899, 16
      %v4510 = vrot.slane %v4508, 5
      %v4511 = vsel %vm871, %v4506, %v4510
      %v4513 = vshrl.u32 %v3900, 16
      %v4515 = vrot.slane %v4513, 4
      %v4516 = vshll.u32 %v3900, 16
      %v4518 = vrot.slane %v4516, 5
      %v4519 = vor.u32 %v4515, %v4518
      %v4520 = vrot.slane %v4519, 4
      %v4522 = vshll.u32 %v3901, 16
      %v4524 = vrot.slane %v4522, 5
      %v4525 = vsel %vm871, %v4520, %v4524
      %v4526 = vshrl.u32 %v3901, 16
      %v4528 = vrot.slane %v4526, 4
      %v4529 = vor.u32 %v4528, %v4524
      %v4530 = vrot.slane %v4529, 4
      %v4532 = vshll.u32 %v3902, 16
      %v4534 = vrot.slane %v4532, 5
      %v4535 = vsel %vm871, %v4530, %v4534
      %v4537 = vshrl.u32 %v3903, 16
      %v4539 = vrot.slane %v4537, 4
      %v4540 = vshll.u32 %v3903, 16
      %v4542 = vrot.slane %v4540, 5
      %v4543 = vor.u32 %v4539, %v4542
      %v4544 = vrot.slane %v4543, 4
      %v4546 = vshll.u32 %v3904, 16
      %v4548 = vrot.slane %v4546, 5
      %v4549 = vsel %vm871, %v4544, %v4548
      %v4550 = vshrl.u32 %v3904, 16
      %v4552 = vrot.slane %v4550, 4
      %v4553 = vor.u32 %v4552, %v4548
      %v4554 = vrot.slane %v4553, 4
      %v4556 = vshll.u32 %v3905, 16
      %v4558 = vrot.slane %v4556, 5
      %v4559 = vsel %vm871, %v4554, %v4558
      %v4561 = vshrl.u32 %v3906, 16
      %v4563 = vrot.slane %v4561, 4
      %v4564 = vshll.u32 %v3906, 16
      %v4566 = vrot.slane %v4564, 5
      %v4567 = vor.u32 %v4563, %v4566
      %v4568 = vrot.slane %v4567, 4
      %v4570 = vshll.u32 %v3907, 16
      %v4572 = vrot.slane %v4570, 5
      %v4573 = vsel %vm871, %v4568, %v4572
      %v4574 = vshrl.u32 %v3907, 16
      %v4576 = vrot.slane %v4574, 4
      %v4577 = vor.u32 %v4576, %v4572
      %v4578 = vrot.slane %v4577, 4
      %v4580 = vshll.u32 %v3908, 16
      %v4582 = vrot.slane %v4580, 5
      %v4583 = vsel %vm871, %v4578, %v4582
      %v4585 = vshrl.u32 %v3909, 16
      %v4587 = vrot.slane %v4585, 4
      %v4588 = vshll.u32 %v3909, 16
      %v4590 = vrot.slane %v4588, 5
      %v4591 = vor.u32 %v4587, %v4590
      %v4592 = vrot.slane %v4591, 4
      %v4594 = vshll.u32 %v3910, 16
      %v4596 = vrot.slane %v4594, 5
      %v4597 = vsel %vm871, %v4592, %v4596
      %v4598 = vshrl.u32 %v3910, 16
      %v4600 = vrot.slane %v4598, 4
      %v4601 = vor.u32 %v4600, %v4596
      %v4602 = vrot.slane %v4601, 4
      %v4604 = vshll.u32 %v3911, 16
      %v4606 = vrot.slane %v4604, 5
      %v4607 = vsel %vm871, %v4602, %v4606
      %v4609 = vshrl.u32 %v3912, 16
      %v4611 = vrot.slane %v4609, 4
      %v4612 = vshll.u32 %v3912, 16
      %v4614 = vrot.slane %v4612, 5
      %v4615 = vor.u32 %v4611, %v4614
      %v4616 = vrot.slane %v4615, 4
      %v4618 = vshll.u32 %v3913, 16
      %v4620 = vrot.slane %v4618, 5
      %v4621 = vsel %vm871, %v4616, %v4620
      %v4622 = vshrl.u32 %v3913, 16
      %v4624 = vrot.slane %v4622, 4
      %v4625 = vor.u32 %v4624, %v4620
      %v4626 = vrot.slane %v4625, 4
      %v4628 = vshll.u32 %v3914, 16
      %v4630 = vrot.slane %v4628, 5
      %v4631 = vsel %vm871, %v4626, %v4630
      %v4633 = vshrl.u32 %v3915, 16
      %v4635 = vrot.slane %v4633, 4
      %v4636 = vshll.u32 %v3915, 16
      %v4638 = vrot.slane %v4636, 5
      %v4639 = vor.u32 %v4635, %v4638
      %v4640 = vrot.slane %v4639, 4
      %v4642 = vshll.u32 %v3916, 16
      %v4644 = vrot.slane %v4642, 5
      %v4645 = vsel %vm871, %v4640, %v4644
      %v4646 = vshrl.u32 %v3916, 16
      %v4648 = vrot.slane %v4646, 4
      %v4649 = vor.u32 %v4648, %v4644
      %v4650 = vrot.slane %v4649, 4
      %v4652 = vshll.u32 %v3917, 16
      %v4654 = vrot.slane %v4652, 5
      %v4655 = vsel %vm871, %v4650, %v4654
      %s4656 = scalar_lea.vmem %s1, 448
      %v4657 = vld [vmem:[%s4656] sm:$0xf]
      %v4658 = vld [vmem:[%s4656 + $0x4] sm:$0xf]
      %v4659 = vld [vmem:[%s4656 + $0x8] sm:$0xf]
      %v4660 = vld [vmem:[%s4656 + $0xc] sm:$0xf]
      %v4661 = vld [vmem:[%s4656 + $0x10] sm:$0xf]
      %v4662 = vld [vmem:[%s4656 + $0x14] sm:$0xf]
      %v4663 = vld [vmem:[%s4656 + $0x18] sm:$0xf]
      %v4664 = vld [vmem:[%s4656 + $0x1c] sm:$0xf]
      %v4665 = vld [vmem:[%s4656 + $0x20] sm:$0xf]
      %v4666 = vld [vmem:[%s4656 + $0x24] sm:$0xf]
      %v4667 = vld [vmem:[%s4656 + $0x28] sm:$0xf]
      %v4668 = vld [vmem:[%s4656 + $0x2c] sm:$0xf]
      %v4669 = vld [vmem:[%s4656 + $0x30] sm:$0xf]
      %v4670 = vld [vmem:[%s4656 + $0x34] sm:$0xf]
      %v4671 = vld [vmem:[%s4656 + $0x38] sm:$0xf]
      %v4672 = vld [vmem:[%s4656 + $0x3c] sm:$0xf]
      %v4673 = vunpack.c.l.b16 %v4285
      %v4674 = vunpack.c.l.b16 %v4295
      %v4675 = vunpack.c.l.b16 %v4309
      %v4676 = vunpack.c.l.b16 %v4319
      %v4677 = vunpack.c.l.b16 %v4333
      %v4678 = vunpack.c.l.b16 %v4343
      %v4679 = vunpack.c.l.b16 %v4357
      %v4680 = vunpack.c.l.b16 %v4367
      %v4681 = vunpack.c.l.b16 %v4381
      %v4682 = vunpack.c.l.b16 %v4391
      %v4683 = vunpack.c.l.b16 %v4405
      %v4684 = vunpack.c.l.b16 %v4415
      %v4685 = vunpack.c.l.b16 %v4429
      %v4686 = vunpack.c.l.b16 %v4439
      %v4687 = vunpack.c.l.b16 %v4453
      %v4688 = vunpack.c.l.b16 %v4463
      %v4689 = vunpack.c.l.b16 %v4477
      %v4690 = vunpack.c.l.b16 %v4487
      %v4691 = vunpack.c.l.b16 %v4501
      %v4692 = vunpack.c.l.b16 %v4511
      %v4693 = vunpack.c.l.b16 %v4525
      %v4694 = vunpack.c.l.b16 %v4535
      %v4695 = vunpack.c.l.b16 %v4549
      %v4696 = vunpack.c.l.b16 %v4559
      %v4697 = vunpack.c.l.b16 %v4573
      %v4698 = vunpack.c.l.b16 %v4583
      %v4699 = vunpack.c.l.b16 %v4597
      %v4700 = vunpack.c.l.b16 %v4607
      %v4701 = vunpack.c.l.b16 %v4621
      %v4702 = vunpack.c.l.b16 %v4631
      %v4703 = vunpack.c.l.b16 %v4645
      %v4704 = vunpack.c.l.b16 %v4655
      %v4705 = vpack.c.b16 %v4674, %v4673
      %v4706 = vpack.c.b16 %v4676, %v4675
      %v4707 = vpack.c.b16 %v4678, %v4677
      %v4708 = vpack.c.b16 %v4680, %v4679
      %v4709 = vpack.c.b16 %v4682, %v4681
      %v4710 = vpack.c.b16 %v4684, %v4683
      %v4711 = vpack.c.b16 %v4686, %v4685
      %v4712 = vpack.c.b16 %v4688, %v4687
      %v4713 = vpack.c.b16 %v4690, %v4689
      %v4714 = vpack.c.b16 %v4692, %v4691
      %v4715 = vpack.c.b16 %v4694, %v4693
      %v4716 = vpack.c.b16 %v4696, %v4695
      %v4717 = vpack.c.b16 %v4698, %v4697
      %v4718 = vpack.c.b16 %v4700, %v4699
      %v4719 = vpack.c.b16 %v4702, %v4701
      %v4720 = vpack.c.b16 %v4704, %v4703
      %v4753 = vunpack.c.l.b16 %v4657
      %v4754 = vunpack.c.l.b16 %v4658
      %v4755 = vunpack.c.l.b16 %v4659
      %v4756 = vunpack.c.l.b16 %v4660
      %v4757 = vunpack.c.l.b16 %v4661
      %v4758 = vunpack.c.l.b16 %v4662
      %v4759 = vunpack.c.l.b16 %v4663
      %v4760 = vunpack.c.l.b16 %v4664
      %v4761 = vunpack.c.l.b16 %v4665
      %v4762 = vunpack.c.l.b16 %v4666
      %v4763 = vunpack.c.l.b16 %v4667
      %v4764 = vunpack.c.l.b16 %v4668
      %v4765 = vunpack.c.l.b16 %v4669
      %v4766 = vunpack.c.l.b16 %v4670
      %v4767 = vunpack.c.l.b16 %v4671
      %v4768 = vunpack.c.l.b16 %v4672
      %v4769 = vpack.c.b16 %v4754, %v4753
      %v4770 = vpack.c.b16 %v4756, %v4755
      %v4771 = vpack.c.b16 %v4758, %v4757
      %v4772 = vpack.c.b16 %v4760, %v4759
      %v4773 = vpack.c.b16 %v4762, %v4761
      %v4774 = vpack.c.b16 %v4764, %v4763
      %v4775 = vpack.c.b16 %v4766, %v4765
      %v4776 = vpack.c.b16 %v4768, %v4767
      %4785 = vmatprep.subr.bf16.mxu0 0
      %4786 = vmatpush1.bf16.msra.mxu0 %v4776
      %4787 = vmatprep.subr.bf16.mxu0 0
      %4788 = vmatpush1.bf16.msra.mxu0 %v4775
      %4789 = vmatprep.subr.bf16.mxu0 0
      %4790 = vmatpush1.bf16.msra.mxu0 %v4774
      %4791 = vmatprep.subr.bf16.mxu0 0
      %4792 = vmatpush1.bf16.msra.mxu0 %v4773
      %4793 = vmatprep.subr.bf16.mxu0 0
      %4794 = vmatpush1.bf16.msra.mxu0 %v4772
      %4795 = vmatprep.subr.bf16.mxu0 0
      %4796 = vmatpush1.bf16.msra.mxu0 %v4771
      %4797 = vmatprep.subr.bf16.mxu0 0
      %4798 = vmatpush1.bf16.msra.mxu0 %v4770
      %4799 = vmatprep.subr.bf16.mxu0 0
      %4800 = vmatpush1.bf16.msra.mxu0 %v4769
      %4801 = vmatprep.subr.bf16.mxu0 0
      %4802 = vmatpush2.bf16.msra.mxu0 0
      %4803 = vmatprep.subr.bf16.mxu0 0
      %4804 = vmatpush2.bf16.msra.mxu0 0
      %4805 = vmatprep.subr.bf16.mxu0 0
      %4806 = vmatpush2.bf16.msra.mxu0 0
      %4807 = vmatprep.subr.bf16.mxu0 0
      %4808 = vmatpush2.bf16.msra.mxu0 0
      %4809 = vmatprep.subr.bf16.mxu0 0
      %4810 = vmatpush2.bf16.msra.mxu0 0
      %4811 = vmatprep.subr.bf16.mxu0 0
      %4812 = vmatpush2.bf16.msra.mxu0 0
      %4813 = vmatprep.subr.bf16.mxu0 0
      %4814 = vmatpush2.bf16.msra.mxu0 0
      %4815 = vmatprep.subr.bf16.mxu0 0
      %4816 = vmatpush2.bf16.msra.mxu0 0
      %4817 = vmatprep.mubr.bf16.mxu0 0
      %4818 = vmatmul.mubr.bf16.gmra.mxu0 %v4705
      %v4819 = vpop.f32.mrf.mxu0
      %v4820 = vadd.f32 0.0, %v4819
      %v4821 = vpop.f32.mrf.mxu0
      %v4822 = vpop.f32.mrf.mxu0
      %v4823 = vadd.f32 0.0, %v4822
      %v4824 = vpop.f32.mrf.mxu0
      %4825 = vmatprep.mubr.bf16.mxu0 0
      %4826 = vmatmul.mubr.bf16.gmra.mxu0 %v4706
      %v4827 = vpop.f32.mrf.mxu0
      %v4828 = vadd.f32 0.0, %v4827
      %v4829 = vpop.f32.mrf.mxu0
      %v4830 = vpop.f32.mrf.mxu0
      %v4831 = vadd.f32 0.0, %v4830
      %v4832 = vpop.f32.mrf.mxu0
      %4833 = vmatprep.mubr.bf16.mxu0 0
      %4834 = vmatmul.mubr.bf16.gmra.mxu0 %v4707
      %v4835 = vpop.f32.mrf.mxu0
      %v4836 = vadd.f32 0.0, %v4835
      %v4837 = vpop.f32.mrf.mxu0
      %v4838 = vpop.f32.mrf.mxu0
      %v4839 = vadd.f32 0.0, %v4838
      %v4840 = vpop.f32.mrf.mxu0
      %4841 = vmatprep.mubr.bf16.mxu0 0
      %4842 = vmatmul.mubr.bf16.gmra.mxu0 %v4708
      %v4843 = vpop.f32.mrf.mxu0
      %v4844 = vadd.f32 0.0, %v4843
      %v4845 = vpop.f32.mrf.mxu0
      %v4846 = vpop.f32.mrf.mxu0
      %v4847 = vadd.f32 0.0, %v4846
      %v4848 = vpop.f32.mrf.mxu0
      %4849 = vmatprep.mubr.bf16.mxu0 0
      %4850 = vmatmul.mubr.bf16.gmra.mxu0 %v4709
      %v4851 = vpop.f32.mrf.mxu0
      %v4852 = vadd.f32 0.0, %v4851
      %v4853 = vpop.f32.mrf.mxu0
      %v4854 = vpop.f32.mrf.mxu0
      %v4855 = vadd.f32 0.0, %v4854
      %v4856 = vpop.f32.mrf.mxu0
      %4857 = vmatprep.mubr.bf16.mxu0 0
      %4858 = vmatmul.mubr.bf16.gmra.mxu0 %v4710
      %v4859 = vpop.f32.mrf.mxu0
      %v4860 = vadd.f32 0.0, %v4859
      %v4861 = vpop.f32.mrf.mxu0
      %v4862 = vpop.f32.mrf.mxu0
      %v4863 = vadd.f32 0.0, %v4862
      %v4864 = vpop.f32.mrf.mxu0
      %4865 = vmatprep.mubr.bf16.mxu0 0
      %4866 = vmatmul.mubr.bf16.gmra.mxu0 %v4711
      %v4867 = vpop.f32.mrf.mxu0
      %v4868 = vadd.f32 0.0, %v4867
      %v4869 = vpop.f32.mrf.mxu0
      %v4870 = vpop.f32.mrf.mxu0
      %v4871 = vadd.f32 0.0, %v4870
      %v4872 = vpop.f32.mrf.mxu0
      %4873 = vmatprep.mubr.bf16.mxu0 0
      %4874 = vmatmul.mubr.bf16.gmra.mxu0 %v4712
      %v4875 = vpop.f32.mrf.mxu0
      %v4876 = vadd.f32 0.0, %v4875
      %v4877 = vpop.f32.mrf.mxu0
      %v4878 = vpop.f32.mrf.mxu0
      %v4879 = vadd.f32 0.0, %v4878
      %v4880 = vpop.f32.mrf.mxu0
      %4881 = vmatprep.mubr.bf16.mxu0 0
      %4882 = vmatmul.mubr.bf16.gmra.mxu0 %v4713
      %v4883 = vpop.f32.mrf.mxu0
      %v4884 = vadd.f32 0.0, %v4883
      %v4885 = vpop.f32.mrf.mxu0
      %v4886 = vpop.f32.mrf.mxu0
      %v4887 = vadd.f32 0.0, %v4886
      %v4888 = vpop.f32.mrf.mxu0
      %4889 = vmatprep.mubr.bf16.mxu0 0
      %4890 = vmatmul.mubr.bf16.gmra.mxu0 %v4714
      %v4891 = vpop.f32.mrf.mxu0
      %v4892 = vadd.f32 0.0, %v4891
      %v4893 = vpop.f32.mrf.mxu0
      %v4894 = vpop.f32.mrf.mxu0
      %v4895 = vadd.f32 0.0, %v4894
      %v4896 = vpop.f32.mrf.mxu0
      %4897 = vmatprep.mubr.bf16.mxu0 0
      %4898 = vmatmul.mubr.bf16.gmra.mxu0 %v4715
      %v4899 = vpop.f32.mrf.mxu0
      %v4900 = vadd.f32 0.0, %v4899
      %v4901 = vpop.f32.mrf.mxu0
      %v4902 = vpop.f32.mrf.mxu0
      %v4903 = vadd.f32 0.0, %v4902
      %v4904 = vpop.f32.mrf.mxu0
      %4905 = vmatprep.mubr.bf16.mxu0 0
      %4906 = vmatmul.mubr.bf16.gmra.mxu0 %v4716
      %v4907 = vpop.f32.mrf.mxu0
      %v4908 = vadd.f32 0.0, %v4907
      %v4909 = vpop.f32.mrf.mxu0
      %v4910 = vpop.f32.mrf.mxu0
      %v4911 = vadd.f32 0.0, %v4910
      %v4912 = vpop.f32.mrf.mxu0
      %4913 = vmatprep.mubr.bf16.mxu0 0
      %4914 = vmatmul.mubr.bf16.gmra.mxu0 %v4717
      %v4915 = vpop.f32.mrf.mxu0
      %v4916 = vadd.f32 0.0, %v4915
      %v4917 = vpop.f32.mrf.mxu0
      %v4918 = vpop.f32.mrf.mxu0
      %v4919 = vadd.f32 0.0, %v4918
      %v4920 = vpop.f32.mrf.mxu0
      %4921 = vmatprep.mubr.bf16.mxu0 0
      %4922 = vmatmul.mubr.bf16.gmra.mxu0 %v4718
      %v4923 = vpop.f32.mrf.mxu0
      %v4924 = vadd.f32 0.0, %v4923
      %v4925 = vpop.f32.mrf.mxu0
      %v4926 = vpop.f32.mrf.mxu0
      %v4927 = vadd.f32 0.0, %v4926
      %v4928 = vpop.f32.mrf.mxu0
      %4929 = vmatprep.mubr.bf16.mxu0 0
      %4930 = vmatmul.mubr.bf16.gmra.mxu0 %v4719
      %v4931 = vpop.f32.mrf.mxu0
      %v4932 = vadd.f32 0.0, %v4931
      %v4933 = vpop.f32.mrf.mxu0
      %v4934 = vpop.f32.mrf.mxu0
      %v4935 = vadd.f32 0.0, %v4934
      %v4936 = vpop.f32.mrf.mxu0
      %4937 = vmatprep.mubr.bf16.mxu0 0
      %4938 = vmatmul.mubr.bf16.gmra.mxu0 %v4720
      %v4939 = vpop.f32.mrf.mxu0
      %v4940 = vadd.f32 0.0, %v4939
      %v4941 = vpop.f32.mrf.mxu0
      %v4942 = vpop.f32.mrf.mxu0
      %v4943 = vadd.f32 0.0, %v4942
      %v4944 = vpop.f32.mrf.mxu0
      %4945 = vdwg.mxu0
      %v4946 = vadd.f32 %v4240, %v4820
      %v4947 = vadd.f32 %v4241, %v4823
      %v4948 = vadd.f32 %v4242, %v4828
      %v4949 = vadd.f32 %v4243, %v4831
      %v4950 = vadd.f32 %v4244, %v4836
      %v4951 = vadd.f32 %v4245, %v4839
      %v4952 = vadd.f32 %v4246, %v4844
      %v4953 = vadd.f32 %v4247, %v4847
      %v4954 = vadd.f32 %v4248, %v4852
      %v4955 = vadd.f32 %v4249, %v4855
      %v4956 = vadd.f32 %v4250, %v4860
      %v4957 = vadd.f32 %v4251, %v4863
      %v4958 = vadd.f32 %v4252, %v4868
      %v4959 = vadd.f32 %v4253, %v4871
      %v4960 = vadd.f32 %v4254, %v4876
      %v4961 = vadd.f32 %v4255, %v4879
      %v4962 = vadd.f32 %v4256, %v4884
      %v4963 = vadd.f32 %v4257, %v4887
      %v4964 = vadd.f32 %v4258, %v4892
      %v4965 = vadd.f32 %v4259, %v4895
      %v4966 = vadd.f32 %v4260, %v4900
      %v4967 = vadd.f32 %v4261, %v4903
      %v4968 = vadd.f32 %v4262, %v4908
      %v4969 = vadd.f32 %v4263, %v4911
      %v4970 = vadd.f32 %v4264, %v4916
      %v4971 = vadd.f32 %v4265, %v4919
      %v4972 = vadd.f32 %v4266, %v4924
      %v4973 = vadd.f32 %v4267, %v4927
      %v4974 = vadd.f32 %v4268, %v4932
      %v4975 = vadd.f32 %v4269, %v4935
      %v4976 = vadd.f32 %v4270, %v4940
      %v4977 = vadd.f32 %v4271, %v4943
      %v4994 = vrot.slane %v3870, 5
      %v4995 = vrot.slane %v4994, 4
      %v4996 = vrot.slane %v3871, 5
      %v4997 = vsel %vm1869, %v4995, %v4996
      %v4998 = vrot.slane %v4996, 4
      %v4999 = vrot.slane %v3872, 5
      %v5000 = vsel %vm1869, %v4998, %v4999
      %v5001 = vrot.slane %v3873, 5
      %v5002 = vrot.slane %v5001, 4
      %v5003 = vrot.slane %v3874, 5
      %v5004 = vsel %vm1869, %v5002, %v5003
      %v5005 = vrot.slane %v5003, 4
      %v5006 = vrot.slane %v3875, 5
      %v5007 = vsel %vm1869, %v5005, %v5006
      %v5008 = vrot.slane %v3876, 5
      %v5009 = vrot.slane %v5008, 4
      %v5010 = vrot.slane %v3877, 5
      %v5011 = vsel %vm1869, %v5009, %v5010
      %v5012 = vrot.slane %v5010, 4
      %v5013 = vrot.slane %v3878, 5
      %v5014 = vsel %vm1869, %v5012, %v5013
      %v5015 = vrot.slane %v3879, 5
      %v5016 = vrot.slane %v5015, 4
      %v5017 = vrot.slane %v3880, 5
      %v5018 = vsel %vm1869, %v5016, %v5017
      %v5019 = vrot.slane %v5017, 4
      %v5020 = vrot.slane %v3881, 5
      %v5021 = vsel %vm1869, %v5019, %v5020
      %v5022 = vrot.slane %v3882, 5
      %v5023 = vrot.slane %v5022, 4
      %v5024 = vrot.slane %v3883, 5
      %v5025 = vsel %vm1869, %v5023, %v5024
      %v5026 = vrot.slane %v5024, 4
      %v5027 = vrot.slane %v3884, 5
      %v5028 = vsel %vm1869, %v5026, %v5027
      %v5029 = vrot.slane %v3885, 5
      %v5030 = vrot.slane %v5029, 4
      %v5031 = vrot.slane %v3886, 5
      %v5032 = vsel %vm1869, %v5030, %v5031
      %v5033 = vrot.slane %v5031, 4
      %v5034 = vrot.slane %v3887, 5
      %v5035 = vsel %vm1869, %v5033, %v5034
      %v5036 = vrot.slane %v3888, 5
      %v5037 = vrot.slane %v5036, 4
      %v5038 = vrot.slane %v3889, 5
      %v5039 = vsel %vm1869, %v5037, %v5038
      %v5040 = vrot.slane %v5038, 4
      %v5041 = vrot.slane %v3890, 5
      %v5042 = vsel %vm1869, %v5040, %v5041
      %v5043 = vrot.slane %v3891, 5
      %v5044 = vrot.slane %v5043, 4
      %v5045 = vrot.slane %v3892, 5
      %v5046 = vsel %vm1869, %v5044, %v5045
      %v5047 = vrot.slane %v5045, 4
      %v5048 = vrot.slane %v3893, 5
      %v5049 = vsel %vm1869, %v5047, %v5048
      %v5050 = vrot.slane %v3894, 5
      %v5051 = vrot.slane %v5050, 4
      %v5052 = vrot.slane %v3895, 5
      %v5053 = vsel %vm1869, %v5051, %v5052
      %v5054 = vrot.slane %v5052, 4
      %v5055 = vrot.slane %v3896, 5
      %v5056 = vsel %vm1869, %v5054, %v5055
      %v5057 = vrot.slane %v3897, 5
      %v5058 = vrot.slane %v5057, 4
      %v5059 = vrot.slane %v3898, 5
      %v5060 = vsel %vm1869, %v5058, %v5059
      %v5061 = vrot.slane %v5059, 4
      %v5062 = vrot.slane %v3899, 5
      %v5063 = vsel %vm1869, %v5061, %v5062
      %v5064 = vrot.slane %v3900, 5
      %v5065 = vrot.slane %v5064, 4
      %v5066 = vrot.slane %v3901, 5
      %v5067 = vsel %vm1869, %v5065, %v5066
      %v5068 = vrot.slane %v5066, 4
      %v5069 = vrot.slane %v3902, 5
      %v5070 = vsel %vm1869, %v5068, %v5069
      %v5071 = vrot.slane %v3903, 5
      %v5072 = vrot.slane %v5071, 4
      %v5073 = vrot.slane %v3904, 5
      %v5074 = vsel %vm1869, %v5072, %v5073
      %v5075 = vrot.slane %v5073, 4
      %v5076 = vrot.slane %v3905, 5
      %v5077 = vsel %vm1869, %v5075, %v5076
      %v5078 = vrot.slane %v3906, 5
      %v5079 = vrot.slane %v5078, 4
      %v5080 = vrot.slane %v3907, 5
      %v5081 = vsel %vm1869, %v5079, %v5080
      %v5082 = vrot.slane %v5080, 4
      %v5083 = vrot.slane %v3908, 5
      %v5084 = vsel %vm1869, %v5082, %v5083
      %v5085 = vrot.slane %v3909, 5
      %v5086 = vrot.slane %v5085, 4
      %v5087 = vrot.slane %v3910, 5
      %v5088 = vsel %vm1869, %v5086, %v5087
      %v5089 = vrot.slane %v5087, 4
      %v5090 = vrot.slane %v3911, 5
      %v5091 = vsel %vm1869, %v5089, %v5090
      %v5092 = vrot.slane %v3912, 5
      %v5093 = vrot.slane %v5092, 4
      %v5094 = vrot.slane %v3913, 5
      %v5095 = vsel %vm1869, %v5093, %v5094
      %v5096 = vrot.slane %v5094, 4
      %v5097 = vrot.slane %v3914, 5
      %v5098 = vsel %vm1869, %v5096, %v5097
      %v5099 = vrot.slane %v3915, 5
      %v5100 = vrot.slane %v5099, 4
      %v5101 = vrot.slane %v3916, 5
      %v5102 = vsel %vm1869, %v5100, %v5101
      %v5103 = vrot.slane %v5101, 4
      %v5104 = vrot.slane %v3917, 5
      %v5105 = vsel %vm1869, %v5103, %v5104
      %s5106 = scalar_lea.vmem %s1, 512
      %v5107 = vld [vmem:[%s5106] sm:$0xf]
      %v5108 = vld [vmem:[%s5106 + $0x4] sm:$0xf]
      %v5109 = vld [vmem:[%s5106 + $0x8] sm:$0xf]
      %v5110 = vld [vmem:[%s5106 + $0xc] sm:$0xf]
      %v5111 = vld [vmem:[%s5106 + $0x10] sm:$0xf]
      %v5112 = vld [vmem:[%s5106 + $0x14] sm:$0xf]
      %v5113 = vld [vmem:[%s5106 + $0x18] sm:$0xf]
      %v5114 = vld [vmem:[%s5106 + $0x1c] sm:$0xf]
      %v5115 = vld [vmem:[%s5106 + $0x20] sm:$0xf]
      %v5116 = vld [vmem:[%s5106 + $0x24] sm:$0xf]
      %v5117 = vld [vmem:[%s5106 + $0x28] sm:$0xf]
      %v5118 = vld [vmem:[%s5106 + $0x2c] sm:$0xf]
      %v5119 = vld [vmem:[%s5106 + $0x30] sm:$0xf]
      %v5120 = vld [vmem:[%s5106 + $0x34] sm:$0xf]
      %v5121 = vld [vmem:[%s5106 + $0x38] sm:$0xf]
      %v5122 = vld [vmem:[%s5106 + $0x3c] sm:$0xf]
      %v5123 = vunpack.c.l.b16 %v4997
      %v5124 = vunpack.c.l.b16 %v5000
      %v5125 = vunpack.c.l.b16 %v5004
      %v5126 = vunpack.c.l.b16 %v5007
      %v5127 = vunpack.c.l.b16 %v5011
      %v5128 = vunpack.c.l.b16 %v5014
      %v5129 = vunpack.c.l.b16 %v5018
      %v5130 = vunpack.c.l.b16 %v5021
      %v5131 = vunpack.c.l.b16 %v5025
      %v5132 = vunpack.c.l.b16 %v5028
      %v5133 = vunpack.c.l.b16 %v5032
      %v5134 = vunpack.c.l.b16 %v5035
      %v5135 = vunpack.c.l.b16 %v5039
      %v5136 = vunpack.c.l.b16 %v5042
      %v5137 = vunpack.c.l.b16 %v5046
      %v5138 = vunpack.c.l.b16 %v5049
      %v5139 = vunpack.c.l.b16 %v5053
      %v5140 = vunpack.c.l.b16 %v5056
      %v5141 = vunpack.c.l.b16 %v5060
      %v5142 = vunpack.c.l.b16 %v5063
      %v5143 = vunpack.c.l.b16 %v5067
      %v5144 = vunpack.c.l.b16 %v5070
      %v5145 = vunpack.c.l.b16 %v5074
      %v5146 = vunpack.c.l.b16 %v5077
      %v5147 = vunpack.c.l.b16 %v5081
      %v5148 = vunpack.c.l.b16 %v5084
      %v5149 = vunpack.c.l.b16 %v5088
      %v5150 = vunpack.c.l.b16 %v5091
      %v5151 = vunpack.c.l.b16 %v5095
      %v5152 = vunpack.c.l.b16 %v5098
      %v5153 = vunpack.c.l.b16 %v5102
      %v5154 = vunpack.c.l.b16 %v5105
      %v5155 = vpack.c.b16 %v5124, %v5123
      %v5156 = vpack.c.b16 %v5126, %v5125
      %v5157 = vpack.c.b16 %v5128, %v5127
      %v5158 = vpack.c.b16 %v5130, %v5129
      %v5159 = vpack.c.b16 %v5132, %v5131
      %v5160 = vpack.c.b16 %v5134, %v5133
      %v5161 = vpack.c.b16 %v5136, %v5135
      %v5162 = vpack.c.b16 %v5138, %v5137
      %v5163 = vpack.c.b16 %v5140, %v5139
      %v5164 = vpack.c.b16 %v5142, %v5141
      %v5165 = vpack.c.b16 %v5144, %v5143
      %v5166 = vpack.c.b16 %v5146, %v5145
      %v5167 = vpack.c.b16 %v5148, %v5147
      %v5168 = vpack.c.b16 %v5150, %v5149
      %v5169 = vpack.c.b16 %v5152, %v5151
      %v5170 = vpack.c.b16 %v5154, %v5153
      %v5203 = vunpack.c.l.b16 %v5107
      %v5204 = vunpack.c.l.b16 %v5108
      %v5205 = vunpack.c.l.b16 %v5109
      %v5206 = vunpack.c.l.b16 %v5110
      %v5207 = vunpack.c.l.b16 %v5111
      %v5208 = vunpack.c.l.b16 %v5112
      %v5209 = vunpack.c.l.b16 %v5113
      %v5210 = vunpack.c.l.b16 %v5114
      %v5211 = vunpack.c.l.b16 %v5115
      %v5212 = vunpack.c.l.b16 %v5116
      %v5213 = vunpack.c.l.b16 %v5117
      %v5214 = vunpack.c.l.b16 %v5118
      %v5215 = vunpack.c.l.b16 %v5119
      %v5216 = vunpack.c.l.b16 %v5120
      %v5217 = vunpack.c.l.b16 %v5121
      %v5218 = vunpack.c.l.b16 %v5122
      %v5219 = vpack.c.b16 %v5204, %v5203
      %v5220 = vpack.c.b16 %v5206, %v5205
      %v5221 = vpack.c.b16 %v5208, %v5207
      %v5222 = vpack.c.b16 %v5210, %v5209
      %v5223 = vpack.c.b16 %v5212, %v5211
      %v5224 = vpack.c.b16 %v5214, %v5213
      %v5225 = vpack.c.b16 %v5216, %v5215
      %v5226 = vpack.c.b16 %v5218, %v5217
      %5235 = vmatprep.subr.bf16.mxu0 0
      %5236 = vmatpush1.bf16.msra.mxu0 %v5226
      %5237 = vmatprep.subr.bf16.mxu0 0
      %5238 = vmatpush1.bf16.msra.mxu0 %v5225
      %5239 = vmatprep.subr.bf16.mxu0 0
      %5240 = vmatpush1.bf16.msra.mxu0 %v5224
      %5241 = vmatprep.subr.bf16.mxu0 0
      %5242 = vmatpush1.bf16.msra.mxu0 %v5223
      %5243 = vmatprep.subr.bf16.mxu0 0
      %5244 = vmatpush1.bf16.msra.mxu0 %v5222
      %5245 = vmatprep.subr.bf16.mxu0 0
      %5246 = vmatpush1.bf16.msra.mxu0 %v5221
      %5247 = vmatprep.subr.bf16.mxu0 0
      %5248 = vmatpush1.bf16.msra.mxu0 %v5220
      %5249 = vmatprep.subr.bf16.mxu0 0
      %5250 = vmatpush1.bf16.msra.mxu0 %v5219
      %5251 = vmatprep.subr.bf16.mxu0 0
      %5252 = vmatpush2.bf16.msra.mxu0 0
      %5253 = vmatprep.subr.bf16.mxu0 0
      %5254 = vmatpush2.bf16.msra.mxu0 0
      %5255 = vmatprep.subr.bf16.mxu0 0
      %5256 = vmatpush2.bf16.msra.mxu0 0
      %5257 = vmatprep.subr.bf16.mxu0 0
      %5258 = vmatpush2.bf16.msra.mxu0 0
      %5259 = vmatprep.subr.bf16.mxu0 0
      %5260 = vmatpush2.bf16.msra.mxu0 0
      %5261 = vmatprep.subr.bf16.mxu0 0
      %5262 = vmatpush2.bf16.msra.mxu0 0
      %5263 = vmatprep.subr.bf16.mxu0 0
      %5264 = vmatpush2.bf16.msra.mxu0 0
      %5265 = vmatprep.subr.bf16.mxu0 0
      %5266 = vmatpush2.bf16.msra.mxu0 0
      %5267 = vmatprep.mubr.bf16.mxu0 0
      %5268 = vmatmul.mubr.bf16.gmra.mxu0 %v5155
      %v5269 = vpop.f32.mrf.mxu0
      %v5270 = vadd.f32 0.0, %v5269
      %v5271 = vpop.f32.mrf.mxu0
      %v5272 = vpop.f32.mrf.mxu0
      %v5273 = vadd.f32 0.0, %v5272
      %v5274 = vpop.f32.mrf.mxu0
      %5275 = vmatprep.mubr.bf16.mxu0 0
      %5276 = vmatmul.mubr.bf16.gmra.mxu0 %v5156
      %v5277 = vpop.f32.mrf.mxu0
      %v5278 = vadd.f32 0.0, %v5277
      %v5279 = vpop.f32.mrf.mxu0
      %v5280 = vpop.f32.mrf.mxu0
      %v5281 = vadd.f32 0.0, %v5280
      %v5282 = vpop.f32.mrf.mxu0
      %5283 = vmatprep.mubr.bf16.mxu0 0
      %5284 = vmatmul.mubr.bf16.gmra.mxu0 %v5157
      %v5285 = vpop.f32.mrf.mxu0
      %v5286 = vadd.f32 0.0, %v5285
      %v5287 = vpop.f32.mrf.mxu0
      %v5288 = vpop.f32.mrf.mxu0
      %v5289 = vadd.f32 0.0, %v5288
      %v5290 = vpop.f32.mrf.mxu0
      %5291 = vmatprep.mubr.bf16.mxu0 0
      %5292 = vmatmul.mubr.bf16.gmra.mxu0 %v5158
      %v5293 = vpop.f32.mrf.mxu0
      %v5294 = vadd.f32 0.0, %v5293
      %v5295 = vpop.f32.mrf.mxu0
      %v5296 = vpop.f32.mrf.mxu0
      %v5297 = vadd.f32 0.0, %v5296
      %v5298 = vpop.f32.mrf.mxu0
      %5299 = vmatprep.mubr.bf16.mxu0 0
      %5300 = vmatmul.mubr.bf16.gmra.mxu0 %v5159
      %v5301 = vpop.f32.mrf.mxu0
      %v5302 = vadd.f32 0.0, %v5301
      %v5303 = vpop.f32.mrf.mxu0
      %v5304 = vpop.f32.mrf.mxu0
      %v5305 = vadd.f32 0.0, %v5304
      %v5306 = vpop.f32.mrf.mxu0
      %5307 = vmatprep.mubr.bf16.mxu0 0
      %5308 = vmatmul.mubr.bf16.gmra.mxu0 %v5160
      %v5309 = vpop.f32.mrf.mxu0
      %v5310 = vadd.f32 0.0, %v5309
      %v5311 = vpop.f32.mrf.mxu0
      %v5312 = vpop.f32.mrf.mxu0
      %v5313 = vadd.f32 0.0, %v5312
      %v5314 = vpop.f32.mrf.mxu0
      %5315 = vmatprep.mubr.bf16.mxu0 0
      %5316 = vmatmul.mubr.bf16.gmra.mxu0 %v5161
      %v5317 = vpop.f32.mrf.mxu0
      %v5318 = vadd.f32 0.0, %v5317
      %v5319 = vpop.f32.mrf.mxu0
      %v5320 = vpop.f32.mrf.mxu0
      %v5321 = vadd.f32 0.0, %v5320
      %v5322 = vpop.f32.mrf.mxu0
      %5323 = vmatprep.mubr.bf16.mxu0 0
      %5324 = vmatmul.mubr.bf16.gmra.mxu0 %v5162
      %v5325 = vpop.f32.mrf.mxu0
      %v5326 = vadd.f32 0.0, %v5325
      %v5327 = vpop.f32.mrf.mxu0
      %v5328 = vpop.f32.mrf.mxu0
      %v5329 = vadd.f32 0.0, %v5328
      %v5330 = vpop.f32.mrf.mxu0
      %5331 = vmatprep.mubr.bf16.mxu0 0
      %5332 = vmatmul.mubr.bf16.gmra.mxu0 %v5163
      %v5333 = vpop.f32.mrf.mxu0
      %v5334 = vadd.f32 0.0, %v5333
      %v5335 = vpop.f32.mrf.mxu0
      %v5336 = vpop.f32.mrf.mxu0
      %v5337 = vadd.f32 0.0, %v5336
      %v5338 = vpop.f32.mrf.mxu0
      %5339 = vmatprep.mubr.bf16.mxu0 0
      %5340 = vmatmul.mubr.bf16.gmra.mxu0 %v5164
      %v5341 = vpop.f32.mrf.mxu0
      %v5342 = vadd.f32 0.0, %v5341
      %v5343 = vpop.f32.mrf.mxu0
      %v5344 = vpop.f32.mrf.mxu0
      %v5345 = vadd.f32 0.0, %v5344
      %v5346 = vpop.f32.mrf.mxu0
      %5347 = vmatprep.mubr.bf16.mxu0 0
      %5348 = vmatmul.mubr.bf16.gmra.mxu0 %v5165
      %v5349 = vpop.f32.mrf.mxu0
      %v5350 = vadd.f32 0.0, %v5349
      %v5351 = vpop.f32.mrf.mxu0
      %v5352 = vpop.f32.mrf.mxu0
      %v5353 = vadd.f32 0.0, %v5352
      %v5354 = vpop.f32.mrf.mxu0
      %5355 = vmatprep.mubr.bf16.mxu0 0
      %5356 = vmatmul.mubr.bf16.gmra.mxu0 %v5166
      %v5357 = vpop.f32.mrf.mxu0
      %v5358 = vadd.f32 0.0, %v5357
      %v5359 = vpop.f32.mrf.mxu0
      %v5360 = vpop.f32.mrf.mxu0
      %v5361 = vadd.f32 0.0, %v5360
      %v5362 = vpop.f32.mrf.mxu0
      %5363 = vmatprep.mubr.bf16.mxu0 0
      %5364 = vmatmul.mubr.bf16.gmra.mxu0 %v5167
      %v5365 = vpop.f32.mrf.mxu0
      %v5366 = vadd.f32 0.0, %v5365
      %v5367 = vpop.f32.mrf.mxu0
      %v5368 = vpop.f32.mrf.mxu0
      %v5369 = vadd.f32 0.0, %v5368
      %v5370 = vpop.f32.mrf.mxu0
      %5371 = vmatprep.mubr.bf16.mxu0 0
      %5372 = vmatmul.mubr.bf16.gmra.mxu0 %v5168
      %v5373 = vpop.f32.mrf.mxu0
      %v5374 = vadd.f32 0.0, %v5373
      %v5375 = vpop.f32.mrf.mxu0
      %v5376 = vpop.f32.mrf.mxu0
      %v5377 = vadd.f32 0.0, %v5376
      %v5378 = vpop.f32.mrf.mxu0
      %5379 = vmatprep.mubr.bf16.mxu0 0
      %5380 = vmatmul.mubr.bf16.gmra.mxu0 %v5169
      %v5381 = vpop.f32.mrf.mxu0
      %v5382 = vadd.f32 0.0, %v5381
      %v5383 = vpop.f32.mrf.mxu0
      %v5384 = vpop.f32.mrf.mxu0
      %v5385 = vadd.f32 0.0, %v5384
      %v5386 = vpop.f32.mrf.mxu0
      %5387 = vmatprep.mubr.bf16.mxu0 0
      %5388 = vmatmul.mubr.bf16.gmra.mxu0 %v5170
      %v5389 = vpop.f32.mrf.mxu0
      %v5390 = vadd.f32 0.0, %v5389
      %v5391 = vpop.f32.mrf.mxu0
      %v5392 = vpop.f32.mrf.mxu0
      %v5393 = vadd.f32 0.0, %v5392
      %v5394 = vpop.f32.mrf.mxu0
      %5395 = vdwg.mxu0
      %v5396 = vadd.f32 %v4946, %v5270
      %v5397 = vadd.f32 %v4947, %v5273
      %v5398 = vadd.f32 %v4948, %v5278
      %v5399 = vadd.f32 %v4949, %v5281
      %v5400 = vadd.f32 %v4950, %v5286
      %v5401 = vadd.f32 %v4951, %v5289
      %v5402 = vadd.f32 %v4952, %v5294
      %v5403 = vadd.f32 %v4953, %v5297
      %v5404 = vadd.f32 %v4954, %v5302
      %v5405 = vadd.f32 %v4955, %v5305
      %v5406 = vadd.f32 %v4956, %v5310
      %v5407 = vadd.f32 %v4957, %v5313
      %v5408 = vadd.f32 %v4958, %v5318
      %v5409 = vadd.f32 %v4959, %v5321
      %v5410 = vadd.f32 %v4960, %v5326
      %v5411 = vadd.f32 %v4961, %v5329
      %v5412 = vadd.f32 %v4962, %v5334
      %v5413 = vadd.f32 %v4963, %v5337
      %v5414 = vadd.f32 %v4964, %v5342
      %v5415 = vadd.f32 %v4965, %v5345
      %v5416 = vadd.f32 %v4966, %v5350
      %v5417 = vadd.f32 %v4967, %v5353
      %v5418 = vadd.f32 %v4968, %v5358
      %v5419 = vadd.f32 %v4969, %v5361
      %v5420 = vadd.f32 %v4970, %v5366
      %v5421 = vadd.f32 %v4971, %v5369
      %v5422 = vadd.f32 %v4972, %v5374
      %v5423 = vadd.f32 %v4973, %v5377
      %v5424 = vadd.f32 %v4974, %v5382
      %v5425 = vadd.f32 %v4975, %v5385
      %v5426 = vadd.f32 %v4976, %v5390
      %v5427 = vadd.f32 %v4977, %v5393
      %v5428 = vpack.c.bf16 %v5397, %v5396
      %v5429 = vpack.c.bf16 %v5399, %v5398
      %v5430 = vpack.c.bf16 %v5401, %v5400
      %v5431 = vpack.c.bf16 %v5403, %v5402
      %v5432 = vpack.c.bf16 %v5405, %v5404
      %v5433 = vpack.c.bf16 %v5407, %v5406
      %v5434 = vpack.c.bf16 %v5409, %v5408
      %v5435 = vpack.c.bf16 %v5411, %v5410
      %v5436 = vpack.c.bf16 %v5413, %v5412
      %v5437 = vpack.c.bf16 %v5415, %v5414
      %v5438 = vpack.c.bf16 %v5417, %v5416
      %v5439 = vpack.c.bf16 %v5419, %v5418
      %v5440 = vpack.c.bf16 %v5421, %v5420
      %v5441 = vpack.c.bf16 %v5423, %v5422
      %v5442 = vpack.c.bf16 %v5425, %v5424
      %v5443 = vpack.c.bf16 %v5427, %v5426
      %v5460 = vunpack.c.l.b16 %v5428
      %v5461 = vunpack.c.h.b16 %v5428
      %v5462 = vunpack.c.l.b16 %v5429
      %v5463 = vunpack.c.h.b16 %v5429
      %v5464 = vunpack.c.l.b16 %v5430
      %v5465 = vunpack.c.h.b16 %v5430
      %v5466 = vunpack.c.l.b16 %v5431
      %v5467 = vunpack.c.h.b16 %v5431
      %v5468 = vunpack.c.l.b16 %v5432
      %v5469 = vunpack.c.h.b16 %v5432
      %v5470 = vunpack.c.l.b16 %v5433
      %v5471 = vunpack.c.h.b16 %v5433
      %v5472 = vunpack.c.l.b16 %v5434
      %v5473 = vunpack.c.h.b16 %v5434
      %v5474 = vunpack.c.l.b16 %v5435
      %v5475 = vunpack.c.h.b16 %v5435
      %v5476 = vunpack.c.l.b16 %v5436
      %v5477 = vunpack.c.h.b16 %v5436
      %v5478 = vunpack.c.l.b16 %v5437
      %v5479 = vunpack.c.h.b16 %v5437
      %v5480 = vunpack.c.l.b16 %v5438
      %v5481 = vunpack.c.h.b16 %v5438
      %v5482 = vunpack.c.l.b16 %v5439
      %v5483 = vunpack.c.h.b16 %v5439
      %v5484 = vunpack.c.l.b16 %v5440
      %v5485 = vunpack.c.h.b16 %v5440
      %v5486 = vunpack.c.l.b16 %v5441
      %v5487 = vunpack.c.h.b16 %v5441
      %v5488 = vunpack.c.l.b16 %v5442
      %v5489 = vunpack.c.h.b16 %v5442
      %v5490 = vunpack.c.l.b16 %v5443
      %v5491 = vunpack.c.h.b16 %v5443
      %v5492 = vpack.c.b16 %v5460, %v5460
      %v5493 = vpack.c.b16 %v5461, %v5461
      %v5494 = vpack.c.b16 %v5462, %v5462
      %v5495 = vpack.c.b16 %v5463, %v5463
      %v5496 = vpack.c.b16 %v5464, %v5464
      %v5497 = vpack.c.b16 %v5465, %v5465
      %v5498 = vpack.c.b16 %v5466, %v5466
      %v5499 = vpack.c.b16 %v5467, %v5467
      %v5500 = vpack.c.b16 %v5468, %v5468
      %v5501 = vpack.c.b16 %v5469, %v5469
      %v5502 = vpack.c.b16 %v5470, %v5470
      %v5503 = vpack.c.b16 %v5471, %v5471
      %v5504 = vpack.c.b16 %v5472, %v5472
      %v5505 = vpack.c.b16 %v5473, %v5473
      %v5506 = vpack.c.b16 %v5474, %v5474
      %v5507 = vpack.c.b16 %v5475, %v5475
      %v5508 = vpack.c.b16 %v5476, %v5476
      %v5509 = vpack.c.b16 %v5477, %v5477
      %v5510 = vpack.c.b16 %v5478, %v5478
      %v5511 = vpack.c.b16 %v5479, %v5479
      %v5512 = vpack.c.b16 %v5480, %v5480
      %v5513 = vpack.c.b16 %v5481, %v5481
      %v5514 = vpack.c.b16 %v5482, %v5482
      %v5515 = vpack.c.b16 %v5483, %v5483
      %v5516 = vpack.c.b16 %v5484, %v5484
      %v5517 = vpack.c.b16 %v5485, %v5485
      %v5518 = vpack.c.b16 %v5486, %v5486
      %v5519 = vpack.c.b16 %v5487, %v5487
      %v5520 = vpack.c.b16 %v5488, %v5488
      %v5521 = vpack.c.b16 %v5489, %v5489
      %v5522 = vpack.c.b16 %v5490, %v5490
      %v5523 = vpack.c.b16 %v5491, %v5491
      %5556 = vst [vmem:[%s260] sm:$0xf] %v5492
      %5557 = vst [vmem:[%s260 + $0x4] sm:$0xf] %v5493
      %5558 = vst [vmem:[%s260 + $0x8] sm:$0xf] %v5494
      %5559 = vst [vmem:[%s260 + $0xc] sm:$0xf] %v5495
      %5560 = vst [vmem:[%s260 + $0x10] sm:$0xf] %v5496
      %5561 = vst [vmem:[%s260 + $0x14] sm:$0xf] %v5497
      %5562 = vst [vmem:[%s260 + $0x18] sm:$0xf] %v5498
      %5563 = vst [vmem:[%s260 + $0x1c] sm:$0xf] %v5499
      %5564 = vst [vmem:[%s260 + $0x20] sm:$0xf] %v5500
      %5565 = vst [vmem:[%s260 + $0x24] sm:$0xf] %v5501
      %5566 = vst [vmem:[%s260 + $0x28] sm:$0xf] %v5502
      %5567 = vst [vmem:[%s260 + $0x2c] sm:$0xf] %v5503
      %5568 = vst [vmem:[%s260 + $0x30] sm:$0xf] %v5504
      %5569 = vst [vmem:[%s260 + $0x34] sm:$0xf] %v5505
      %5570 = vst [vmem:[%s260 + $0x38] sm:$0xf] %v5506
      %5571 = vst [vmem:[%s260 + $0x3c] sm:$0xf] %v5507
      %5572 = vst [vmem:[%s260 + $0x40] sm:$0xf] %v5508
      %5573 = vst [vmem:[%s260 + $0x44] sm:$0xf] %v5509
      %5574 = vst [vmem:[%s260 + $0x48] sm:$0xf] %v5510
      %5575 = vst [vmem:[%s260 + $0x4c] sm:$0xf] %v5511
      %5576 = vst [vmem:[%s260 + $0x50] sm:$0xf] %v5512
      %5577 = vst [vmem:[%s260 + $0x54] sm:$0xf] %v5513
      %5578 = vst [vmem:[%s260 + $0x58] sm:$0xf] %v5514
      %5579 = vst [vmem:[%s260 + $0x5c] sm:$0xf] %v5515
      %5580 = vst [vmem:[%s260 + $0x60] sm:$0xf] %v5516
      %5581 = vst [vmem:[%s260 + $0x64] sm:$0xf] %v5517
      %5582 = vst [vmem:[%s260 + $0x68] sm:$0xf] %v5518
      %5583 = vst [vmem:[%s260 + $0x6c] sm:$0xf] %v5519
      %5584 = vst [vmem:[%s260 + $0x70] sm:$0xf] %v5520
      %5585 = vst [vmem:[%s260 + $0x74] sm:$0xf] %v5521
      %5586 = vst [vmem:[%s260 + $0x78] sm:$0xf] %v5522
      %5587 = vst [vmem:[%s260 + $0x7c] sm:$0xf] %v5523
      %v5588 = vadd.f32 %v5396, %v5397
      %v5589 = vadd.f32 %v5588, %v5398
      %v5590 = vadd.f32 %v5589, %v5399
      %v5591 = vadd.f32 %v5590, %v5400
      %v5592 = vadd.f32 %v5591, %v5401
      %v5593 = vadd.f32 %v5592, %v5402
      %v5594 = vadd.f32 %v5593, %v5403
      %v5595 = vadd.f32 %v5594, %v5404
      %v5596 = vadd.f32 %v5595, %v5405
      %v5597 = vadd.f32 %v5596, %v5406
      %v5598 = vadd.f32 %v5597, %v5407
      %v5599 = vadd.f32 %v5598, %v5408
      %v5600 = vadd.f32 %v5599, %v5409
      %v5601 = vadd.f32 %v5600, %v5410
      %v5602 = vadd.f32 %v5601, %v5411
      %v5603 = vadd.f32 %v5602, %v5412
      %v5604 = vadd.f32 %v5603, %v5413
      %v5605 = vadd.f32 %v5604, %v5414
      %v5606 = vadd.f32 %v5605, %v5415
      %v5607 = vadd.f32 %v5606, %v5416
      %v5608 = vadd.f32 %v5607, %v5417
      %v5609 = vadd.f32 %v5608, %v5418
      %v5610 = vadd.f32 %v5609, %v5419
      %v5611 = vadd.f32 %v5610, %v5420
      %v5612 = vadd.f32 %v5611, %v5421
      %v5613 = vadd.f32 %v5612, %v5422
      %v5614 = vadd.f32 %v5613, %v5423
      %v5615 = vadd.f32 %v5614, %v5424
      %v5616 = vadd.f32 %v5615, %v5425
      %v5617 = vadd.f32 %v5616, %v5426
      %v5618 = vadd.f32 %v5617, %v5427
      %v5619 = vrot.slane %v5618, 4
      %v5620 = vadd.f32 %v5618, %v5619
      %v5621 = vrot.slane %v5620, 2
      %v5622 = vadd.f32 %v5620, %v5621
      %v5623 = vrot.slane %v5622, 1
      %v5624 = vadd.f32 %v5622, %v5623
      %v5625 = vrcp.pop 256.0
      %v5626 = vmul.f32 %v5624, %v5625
      %v5627 = vsub.f32 %v5396, %v5626
      %v5628 = vsub.f32 %v5397, %v5626
      %v5629 = vsub.f32 %v5398, %v5626
      %v5630 = vsub.f32 %v5399, %v5626
      %v5631 = vsub.f32 %v5400, %v5626
      %v5632 = vsub.f32 %v5401, %v5626
      %v5633 = vsub.f32 %v5402, %v5626
      %v5634 = vsub.f32 %v5403, %v5626
      %v5635 = vsub.f32 %v5404, %v5626
      %v5636 = vsub.f32 %v5405, %v5626
      %v5637 = vsub.f32 %v5406, %v5626
      %v5638 = vsub.f32 %v5407, %v5626
      %v5639 = vsub.f32 %v5408, %v5626
      %v5640 = vsub.f32 %v5409, %v5626
      %v5641 = vsub.f32 %v5410, %v5626
      %v5642 = vsub.f32 %v5411, %v5626
      %v5643 = vsub.f32 %v5412, %v5626
      %v5644 = vsub.f32 %v5413, %v5626
      %v5645 = vsub.f32 %v5414, %v5626
      %v5646 = vsub.f32 %v5415, %v5626
      %v5647 = vsub.f32 %v5416, %v5626
      %v5648 = vsub.f32 %v5417, %v5626
      %v5649 = vsub.f32 %v5418, %v5626
      %v5650 = vsub.f32 %v5419, %v5626
      %v5651 = vsub.f32 %v5420, %v5626
      %v5652 = vsub.f32 %v5421, %v5626
      %v5653 = vsub.f32 %v5422, %v5626
      %v5654 = vsub.f32 %v5423, %v5626
      %v5655 = vsub.f32 %v5424, %v5626
      %v5656 = vsub.f32 %v5425, %v5626
      %v5657 = vsub.f32 %v5426, %v5626
      %v5658 = vsub.f32 %v5427, %v5626
      %v5659 = vmul.f32 %v5627, %v5627
      %v5660 = vmul.f32 %v5628, %v5628
      %v5661 = vmul.f32 %v5629, %v5629
      %v5662 = vmul.f32 %v5630, %v5630
      %v5663 = vmul.f32 %v5631, %v5631
      %v5664 = vmul.f32 %v5632, %v5632
      %v5665 = vmul.f32 %v5633, %v5633
      %v5666 = vmul.f32 %v5634, %v5634
      %v5667 = vmul.f32 %v5635, %v5635
      %v5668 = vmul.f32 %v5636, %v5636
      %v5669 = vmul.f32 %v5637, %v5637
      %v5670 = vmul.f32 %v5638, %v5638
      %v5671 = vmul.f32 %v5639, %v5639
      %v5672 = vmul.f32 %v5640, %v5640
      %v5673 = vmul.f32 %v5641, %v5641
      %v5674 = vmul.f32 %v5642, %v5642
      %v5675 = vmul.f32 %v5643, %v5643
      %v5676 = vmul.f32 %v5644, %v5644
      %v5677 = vmul.f32 %v5645, %v5645
      %v5678 = vmul.f32 %v5646, %v5646
      %v5679 = vmul.f32 %v5647, %v5647
      %v5680 = vmul.f32 %v5648, %v5648
      %v5681 = vmul.f32 %v5649, %v5649
      %v5682 = vmul.f32 %v5650, %v5650
      %v5683 = vmul.f32 %v5651, %v5651
      %v5684 = vmul.f32 %v5652, %v5652
      %v5685 = vmul.f32 %v5653, %v5653
      %v5686 = vmul.f32 %v5654, %v5654
      %v5687 = vmul.f32 %v5655, %v5655
      %v5688 = vmul.f32 %v5656, %v5656
      %v5689 = vmul.f32 %v5657, %v5657
      %v5690 = vmul.f32 %v5658, %v5658
      %v5691 = vadd.f32 %v5659, %v5660
      %v5692 = vadd.f32 %v5691, %v5661
      %v5693 = vadd.f32 %v5692, %v5662
      %v5694 = vadd.f32 %v5693, %v5663
      %v5695 = vadd.f32 %v5694, %v5664
      %v5696 = vadd.f32 %v5695, %v5665
      %v5697 = vadd.f32 %v5696, %v5666
      %v5698 = vadd.f32 %v5697, %v5667
      %v5699 = vadd.f32 %v5698, %v5668
      %v5700 = vadd.f32 %v5699, %v5669
      %v5701 = vadd.f32 %v5700, %v5670
      %v5702 = vadd.f32 %v5701, %v5671
      %v5703 = vadd.f32 %v5702, %v5672
      %v5704 = vadd.f32 %v5703, %v5673
      %v5705 = vadd.f32 %v5704, %v5674
      %v5706 = vadd.f32 %v5705, %v5675
      %v5707 = vadd.f32 %v5706, %v5676
      %v5708 = vadd.f32 %v5707, %v5677
      %v5709 = vadd.f32 %v5708, %v5678
      %v5710 = vadd.f32 %v5709, %v5679
      %v5711 = vadd.f32 %v5710, %v5680
      %v5712 = vadd.f32 %v5711, %v5681
      %v5713 = vadd.f32 %v5712, %v5682
      %v5714 = vadd.f32 %v5713, %v5683
      %v5715 = vadd.f32 %v5714, %v5684
      %v5716 = vadd.f32 %v5715, %v5685
      %v5717 = vadd.f32 %v5716, %v5686
      %v5718 = vadd.f32 %v5717, %v5687
      %v5719 = vadd.f32 %v5718, %v5688
      %v5720 = vadd.f32 %v5719, %v5689
      %v5721 = vadd.f32 %v5720, %v5690
      %v5722 = vrot.slane %v5721, 4
      %v5723 = vadd.f32 %v5721, %v5722
      %v5724 = vrot.slane %v5723, 2
      %v5725 = vadd.f32 %v5723, %v5724
      %v5726 = vrot.slane %v5725, 1
      %v5727 = vadd.f32 %v5725, %v5726
      %5728 = vst [vmem:[%s268] sm:$0x1] %v5624
      %5729 = vst [vmem:[%s268 + $0x1] sm:$0x1] %v5727
      %s5730 = smul.u32 16, %s22
      %p5731 = scmp.lt.s32.totalorder %s21, 1
      %s5732 = scalar_select %p5731, %s21, 1
      %p5733 = scmp.lt.s32.totalorder %s5730, 15
      %s5734 = scalar_select %p5733, %s5730, 15
      %s5735 = smul.addr %s5734, 2
      %s5736 = smul.addr %s5732, 32
      %s5737 = sadd.s32 %s5735, %s5736
      %s5738 = smul.addr %s5737, 4
      %s5739 = scalar_lea.vmem %s4, %s5738
      %p5740 = scmp.lt.s32.totalorder %s21, 1
      %s5741 = scalar_select %p5740, %s21, 1
      %p5742 = scmp.lt.s32.totalorder %s22, 0
      %s5743 = scalar_select %p5742, %s22, 0
      %s5744 = sadd.s32 %s5743, %s5741
      %s5745 = smul.addr %s5744, 2
      %s5746 = scalar_lea.vmem %s5, %s5745
      // Predicated region
      $region41: #{double_conv_forward.3} parent=35 // pred_check
        %p5747 = pneg %p138
      $region42: #{double_conv_forward.3} parent=35 // pred_check_branch
        %5749 = sbr.rel (%p5747) target = $region44
      $region43: #{double_conv_forward.3} parent=35 // pred_region
        %s5750 = smul.u32 16, %s22
      $region44: #{double_conv_forward.3} parent=35 // pred_fallthru
        _
      // Predicated region
      $region45: #{double_conv_forward.3} parent=35 // pred_check
        %p5751 = pneg %p166
      $region46: #{double_conv_forward.3} parent=35 // pred_check_branch
        %5753 = sbr.rel (%p5751) target = $region48
      $region47: #{double_conv_forward.3} parent=35 // pred_region
        _
      $region48: #{double_conv_forward.3} parent=35 // pred_fallthru
        _
    $region36: #{double_conv_forward.3} parent=5 // pred_fallthru
      _
    %p5754 = scmp.le.s32.totalorder 2, %s12
    // Predicated region
    $region49: #{double_conv_forward.3} parent=5 // pred_check
      %p5755 = pneg %p5754
    $region50: #{double_conv_forward.3} parent=5 // pred_check_branch
      %5757 = sbr.rel (%p5755) target = $region52
    $region51: #{double_conv_forward.3} parent=5 // pred_region
      %s5758 = ssub.s32 %s12, 2
      // Predicated region
      $region53: #{double_conv_forward.3} parent=51 // pred_check
        %p5759 = pneg %p144
      $region54: #{double_conv_forward.3} parent=51 // pred_check_branch
        %5761 = sbr.rel (%p5759) target = $region56
      $region55: #{double_conv_forward.3} parent=51 // pred_region
        %s5762 = smul.u32 16, %s24
        %p5763 = scmp.lt.s32.totalorder %s23, 1
        %s5764 = scalar_select %p5763, %s23, 1
        %p5765 = scmp.lt.s32.totalorder %s5762, 15
        %s5766 = scalar_select %p5765, %s5762, 15
        %s5767 = smul.addr %s5766, 2
        %s5768 = smul.addr %s5764, 32
        %s5769 = sadd.s32 %s5767, %s5768
        %s5770 = smul.addr %s5769, 4
        %s5771 = scalar_lea.vmem %s4, %s5770
      $region56: #{double_conv_forward.3} parent=51 // pred_fallthru
        _
      // Predicated region
      $region57: #{double_conv_forward.3} parent=51 // pred_check
        %p5772 = pneg %p172
      $region58: #{double_conv_forward.3} parent=51 // pred_check_branch
        %5774 = sbr.rel (%p5772) target = $region60
      $region59: #{double_conv_forward.3} parent=51 // pred_region
        %p5775 = scmp.lt.s32.totalorder %s23, 1
        %s5776 = scalar_select %p5775, %s23, 1
        %p5777 = scmp.lt.s32.totalorder %s24, 0
        %s5778 = scalar_select %p5777, %s24, 0
        %s5779 = sadd.s32 %s5778, %s5776
        %s5780 = smul.addr %s5779, 2
        %s5781 = scalar_lea.vmem %s5, %s5780
      $region60: #{double_conv_forward.3} parent=51 // pred_fallthru
        _
    $region52: #{double_conv_forward.3} parent=5 // pred_fallthru
      _
  $region6: #{double_conv_forward.3} parent=0 // loop_footer
    %s16 = sadd.s32 1, %s12
  $region7: #{double_conv_forward.3} parent=0 // loop_footer_branch
    %11 = sbr.rel target = $region3
  $region8: #{double_conv_forward.3} parent=0 // loop_exit
    _

// kernel: double_conv_forward.4
$region0: #{double_conv_forward.4}
  #allocation0 [shape = 'u32[]', space=smem, size = 0x4, offset = 0x4, fixed_abs, tag = 'smem constant byte address 0x4 - core index']
  #allocation1 [shape = 'u32[144,128]{1,0:T(1,128)}', space=vmem, size = 0x12000, scoped, tag = 'internal scratch']
  #allocation2 [shape = 'bf16[1,18,18,128]{3,2,1,0:T(8,128)(2,1)}', space=vmem, size = 0x1b000, scoped, tag = 'scratch operand']
  %s0 = inlined_call_operand.vmem [shape: bf16[2,16,16,128], index: 0, kind: input, shape index: {}]
  %s1 = inlined_call_operand.vmem [shape: bf16[9,128,128], index: 1, kind: input, shape index: {}]
  %s2 = inlined_call_operand.vmem [shape: f32[1,128], index: 2, kind: input, shape index: {}]
  %s3 = inlined_call_operand.vmem [shape: f32[1,128], index: 3, kind: input, shape index: {}]
  %s4 = inlined_call_operand.vmem [shape: bf16[2,16,16,128], index: 4, kind: output, shape index: {0}]
  %s5 = inlined_call_operand.vmem [shape: f32[2,1,2,128], index: 5, kind: output, shape index: {1}]
  %6 = xla_tuple %s4, %s5
  %s7 = sld [smem:[#allocation0]]
  $region61: #{double_conv_forward.4} parent=0
    _
  %s9 = ssub.s32 1, %s7
  %s10 = scalar_select 0, %s9, %s7
  loop: start=0, step=1, limit=4
  $region2: #{double_conv_forward.4} parent=0 // loop_pre_header
    _
  $region3: #{double_conv_forward.4} parent=0 // loop_header
    %s12 = sphi 0, %s16
    %p13 = scmp.ge.s32.totalorder %s12, 4
    %s19 = sphi 0, %s31
    %s20 = sphi 0, %s27
    %s21 = sphi 0, %s19
    %s22 = sphi 0, %s20
    %s23 = sphi 0, %s21
    %s24 = sphi 0, %s22
    %s34 = sphi 0, %s36
    %s37 = sphi 0, %s34
    %s38 = sphi 0, %s37
    %s54 = sphi 0, %s38
    %s58 = sphi 0, %s58
    %s60 = sphi 0, %s58
    %s61 = sphi 0, %s60
    %s75 = sphi 0, %s61
    %s79 = sphi 0, %s79
    %s81 = sphi 0, %s79
    %s82 = sphi 0, %s81
    %s96 = sphi 0, %s82
    %s100 = sphi 0, %s100
    %s102 = sphi 0, %s100
    %s103 = sphi 0, %s102
    %s117 = sphi 0, %s103
    %s125 = sphi 0, %s127
    %s128 = sphi 0, %s125
    %s129 = sphi 0, %s128
    %s145 = sphi 0, %s129
    %s153 = sphi 0, %s155
    %s156 = sphi 0, %s153
    %s157 = sphi 0, %s156
    %s173 = sphi 0, %s157
  $region4: #{double_conv_forward.4} parent=0 // loop_header_branch
    %15 = sbr.rel (%p13) target = $region8
  $region5: #{double_conv_forward.4} parent=0 // loop_body
    %s17 = ssub.s32 %s12, 1
    %s18 = ssub.s32 %s12, 2
    %s25 = sadd.s32 1, %s20
    %p26 = scmp.ge.s32.totalorder %s25, 1
    %s27 = scalar_select %p26, 0, %s25
    %s28 = sadd.s32 1, %s19
    %s29 = scalar_select %p26, %s28, %s19
    %p30 = scmp.ge.s32.totalorder %s29, 2
    %s31 = scalar_select %p30, 0, %s29
    %s32 = ssub.s32 %s19, %s31
    %p33 = scmp.eq.s32.totalorder %s32, 0
    %s35 = sadd.s32 %s34, 1
    %s36 = scalar_select %p33, %s34, %s35
    %p39 = pneg %p33
    %p40 = scmp.eq.s32.totalorder %s12, 1
    %p41 = por %p39, %p40
    %p42 = scmp.ne.s32.totalorder %s34, %s37
    %p43 = scmp.eq.s32.totalorder %s12, 0
    %p44 = por %p42, %p43
    %p45 = scmp.ne.s32.totalorder %s34, %s37
    %p46 = scmp.eq.s32.totalorder %s17, 1
    %p47 = por %p45, %p46
    %p48 = scmp.ne.s32.totalorder %s37, %s38
    %p49 = scmp.eq.s32.totalorder %s17, 0
    %p50 = por %p48, %p49
    %p51 = scmp.ne.s32.totalorder %s37, %s38
    %p52 = scmp.eq.s32.totalorder %s18, 1
    %p53 = por %p51, %p52
    %p55 = scmp.ne.s32.totalorder %s38, %s54
    %p56 = scmp.eq.s32.totalorder %s18, 0
    %p57 = por %p55, %p56
    %s59 = sadd.s32 %s58, 1
    %p62 = scmp.eq.s32.totalorder %s12, 1
    %p63 = scmp.ne.s32.totalorder %s58, %s60
    %p64 = scmp.eq.s32.totalorder %s12, 0
    %p65 = por %p63, %p64
    %p66 = scmp.ne.s32.totalorder %s58, %s60
    %p67 = scmp.eq.s32.totalorder %s17, 1
    %p68 = por %p66, %p67
    %p69 = scmp.ne.s32.totalorder %s60, %s61
    %p70 = scmp.eq.s32.totalorder %s17, 0
    %p71 = por %p69, %p70
    %p72 = scmp.ne.s32.totalorder %s60, %s61
    %p73 = scmp.eq.s32.totalorder %s18, 1
    %p74 = por %p72, %p73
    %p76 = scmp.ne.s32.totalorder %s61, %s75
    %p77 = scmp.eq.s32.totalorder %s18, 0
    %p78 = por %p76, %p77
    %s80 = sadd.s32 %s79, 1
    %p83 = scmp.eq.s32.totalorder %s12, 1
    %p84 = scmp.ne.s32.totalorder %s79, %s81
    %p85 = scmp.eq.s32.totalorder %s12, 0
    %p86 = por %p84, %p85
    %p87 = scmp.ne.s32.totalorder %s79, %s81
    %p88 = scmp.eq.s32.totalorder %s17, 1
    %p89 = por %p87, %p88
    %p90 = scmp.ne.s32.totalorder %s81, %s82
    %p91 = scmp.eq.s32.totalorder %s17, 0
    %p92 = por %p90, %p91
    %p93 = scmp.ne.s32.totalorder %s81, %s82
    %p94 = scmp.eq.s32.totalorder %s18, 1
    %p95 = por %p93, %p94
    %p97 = scmp.ne.s32.totalorder %s82, %s96
    %p98 = scmp.eq.s32.totalorder %s18, 0
    %p99 = por %p97, %p98
    %s101 = sadd.s32 %s100, 1
    %p104 = scmp.eq.s32.totalorder %s12, 1
    %p105 = scmp.ne.s32.totalorder %s100, %s102
    %p106 = scmp.eq.s32.totalorder %s12, 0
    %p107 = por %p105, %p106
    %p108 = scmp.ne.s32.totalorder %s100, %s102
    %p109 = scmp.eq.s32.totalorder %s17, 1
    %p110 = por %p108, %p109
    %p111 = scmp.ne.s32.totalorder %s102, %s103
    %p112 = scmp.eq.s32.totalorder %s17, 0
    %p113 = por %p111, %p112
    %p114 = scmp.ne.s32.totalorder %s102, %s103
    %p115 = scmp.eq.s32.totalorder %s18, 1
    %p116 = por %p114, %p115
    %p118 = scmp.ne.s32.totalorder %s103, %s117
    %p119 = scmp.eq.s32.totalorder %s18, 0
    %p120 = por %p118, %p119
    %s121 = ssub.s32 %s19, %s31
    %s122 = ssub.s32 %s20, %s27
    %s123 = sor.u32 %s121, %s122
    %p124 = scmp.eq.s32.totalorder %s123, 0
    %s126 = sadd.s32 %s125, 1
    %s127 = scalar_select %p124, %s125, %s126
    %p130 = pneg %p124
    %p131 = scmp.eq.s32.totalorder %s12, 1
    %p132 = por %p130, %p131
    %p133 = scmp.ne.s32.totalorder %s125, %s128
    %p134 = scmp.eq.s32.totalorder %s12, 0
    %p135 = por %p133, %p134
    %p136 = scmp.ne.s32.totalorder %s125, %s128
    %p137 = scmp.eq.s32.totalorder %s17, 1
    %p138 = por %p136, %p137
    %p139 = scmp.ne.s32.totalorder %s128, %s129
    %p140 = scmp.eq.s32.totalorder %s17, 0
    %p141 = por %p139, %p140
    %p142 = scmp.ne.s32.totalorder %s128, %s129
    %p143 = scmp.eq.s32.totalorder %s18, 1
    %p144 = por %p142, %p143
    %p146 = scmp.ne.s32.totalorder %s129, %s145
    %p147 = scmp.eq.s32.totalorder %s18, 0
    %p148 = por %p146, %p147
    %s149 = ssub.s32 %s19, %s31
    %s150 = ssub.s32 %s20, %s27
    %s151 = sor.u32 %s149, %s150
    %p152 = scmp.eq.s32.totalorder %s151, 0
    %s154 = sadd.s32 %s153, 1
    %s155 = scalar_select %p152, %s153, %s154
    %p158 = pneg %p152
    %p159 = scmp.eq.s32.totalorder %s12, 1
    %p160 = por %p158, %p159
    %p161 = scmp.ne.s32.totalorder %s153, %s156
    %p162 = scmp.eq.s32.totalorder %s12, 0
    %p163 = por %p161, %p162
    %p164 = scmp.ne.s32.totalorder %s153, %s156
    %p165 = scmp.eq.s32.totalorder %s17, 1
    %p166 = por %p164, %p165
    %p167 = scmp.ne.s32.totalorder %s156, %s157
    %p168 = scmp.eq.s32.totalorder %s17, 0
    %p169 = por %p167, %p168
    %p170 = scmp.ne.s32.totalorder %s156, %s157
    %p171 = scmp.eq.s32.totalorder %s18, 1
    %p172 = por %p170, %p171
    %p174 = scmp.ne.s32.totalorder %s157, %s173
    %p175 = scmp.eq.s32.totalorder %s18, 0
    %p176 = por %p174, %p175
    %p177 = scmp.le.s32.totalorder 1, %s12
    %p178 = scmp.lt.s32.totalorder %s12, 3
    %p179 = pnand %p177, %p178
    %p180 = pneg %p179
    // Predicated region
    $region9: #{double_conv_forward.4} parent=5 // pred_check
      _
    $region10: #{double_conv_forward.4} parent=5 // pred_check_branch
      %182 = sbr.rel (%p179) target = $region12
    $region11: #{double_conv_forward.4} parent=5 // pred_region
      %s183 = ssub.s32 %s12, 1
      // Predicated region
      $region13: #{double_conv_forward.4} parent=11 // pred_check
        %p184 = pneg %p71
      $region14: #{double_conv_forward.4} parent=11 // pred_check_branch
        %186 = sbr.rel (%p184) target = $region16
      $region15: #{double_conv_forward.4} parent=11 // pred_region
        _
      $region16: #{double_conv_forward.4} parent=11 // pred_fallthru
        _
      // Predicated region
      $region17: #{double_conv_forward.4} parent=11 // pred_check
        %p187 = pneg %p92
      $region18: #{double_conv_forward.4} parent=11 // pred_check_branch
        %189 = sbr.rel (%p187) target = $region20
      $region19: #{double_conv_forward.4} parent=11 // pred_region
        _
      $region20: #{double_conv_forward.4} parent=11 // pred_fallthru
        _
      // Predicated region
      $region21: #{double_conv_forward.4} parent=11 // pred_check
        %p190 = pneg %p113
      $region22: #{double_conv_forward.4} parent=11 // pred_check_branch
        %192 = sbr.rel (%p190) target = $region24
      $region23: #{double_conv_forward.4} parent=11 // pred_region
        _
      $region24: #{double_conv_forward.4} parent=11 // pred_fallthru
        _
    $region12: #{double_conv_forward.4} parent=5 // pred_fallthru
      _
    %p193 = scmp.lt.s32.totalorder %s12, 2
    // Predicated region
    $region25: #{double_conv_forward.4} parent=5 // pred_check
      %p194 = pneg %p193
    $region26: #{double_conv_forward.4} parent=5 // pred_check_branch
      %196 = sbr.rel (%p194) target = $region28
    $region27: #{double_conv_forward.4} parent=5 // pred_region
      // Predicated region
      $region29: #{double_conv_forward.4} parent=27 // pred_check
        %p197 = pneg %p44
      $region30: #{double_conv_forward.4} parent=27 // pred_check_branch
        %199 = sbr.rel (%p197) target = $region32
      $region31: #{double_conv_forward.4} parent=27 // pred_region
        %p200 = scmp.lt.s32.totalorder %s19, 1
        %s201 = scalar_select %p200, %s19, 1
        %s202 = smul.addr %s201, 32
        %s203 = smul.addr %s202, 4
        %s204 = scalar_lea.vmem %s0, %s203
      $region32: #{double_conv_forward.4} parent=27 // pred_fallthru
        _
    $region28: #{double_conv_forward.4} parent=5 // pred_fallthru
      _
    %p205 = scmp.le.s32.totalorder 1, %s12
    %p206 = scmp.lt.s32.totalorder %s12, 3
    %p207 = pnand %p205, %p206
    %p208 = pneg %p207
    // Predicated region
    $region33: #{double_conv_forward.4} parent=5 // pred_check
      _
    $region34: #{double_conv_forward.4} parent=5 // pred_check_branch
      %210 = sbr.rel (%p207) target = $region36
    $region35: #{double_conv_forward.4} parent=5 // pred_region
      %s211 = ssub.s32 %s12, 1
      %p212 = scmp.lt.s32.totalorder %s21, 1
      %s213 = scalar_select %p212, %s21, 1
      %s214 = smul.addr %s213, 32
      %s215 = smul.addr %s214, 4
      %s216 = scalar_lea.vmem %s0, %s215
      %p217 = pneg %p50
      %p218 = pneg %p47
      %p219 = pneg %p71
      %p220 = pneg %p68
      %p221 = pneg %p92
      %p222 = pneg %p89
      %p223 = pneg %p113
      %p224 = pneg %p110
      %p225 = pneg %p141
      %p226 = pneg %p138
      %s227 = smul.u32 16, %s22
      %p228 = scmp.lt.s32.totalorder %s21, 1
      %s229 = scalar_select %p228, %s21, 1
      %p230 = scmp.lt.s32.totalorder %s227, 15
      %s231 = scalar_select %p230, %s227, 15
      %s232 = smul.addr %s231, 2
      %s233 = smul.addr %s229, 32
      %s234 = sadd.s32 %s232, %s233
      %s235 = smul.addr %s234, 4
      %s236 = scalar_lea.vmem %s4, %s235
      %p237 = pneg %p169
      %p238 = pneg %p166
      %p239 = scmp.lt.s32.totalorder %s21, 1
      %s240 = scalar_select %p239, %s21, 1
      %p241 = scmp.lt.s32.totalorder %s22, 0
      %s242 = scalar_select %p241, %s22, 0
      %s243 = sadd.s32 %s242, %s240
      %s244 = smul.addr %s243, 2
      %s245 = scalar_lea.vmem %s5, %s244
      %p246 = scmp.lt.s32.totalorder %s21, 1
      %s247 = scalar_select %p246, %s21, 1
      %s248 = smul.addr %s247, 32
      %s249 = smul.addr %s248, 4
      %s250 = scalar_lea.vmem %s0, %s249
      %s251 = smul.u32 16, %s22
      %p252 = scmp.lt.s32.totalorder %s21, 1
      %s253 = scalar_select %p252, %s21, 1
      %p254 = scmp.lt.s32.totalorder %s251, 15
      %s255 = scalar_select %p254, %s251, 15
      %s256 = smul.addr %s255, 2
      %s257 = smul.addr %s253, 32
      %s258 = sadd.s32 %s256, %s257
      %s259 = smul.addr %s258, 4
      %s260 = scalar_lea.vmem %s4, %s259
      %s261 = smul.u32 16, %s22
      %p262 = scmp.lt.s32.totalorder %s21, 1
      %s263 = scalar_select %p262, %s21, 1
      %p264 = scmp.lt.s32.totalorder %s22, 0
      %s265 = scalar_select %p264, %s22, 0
      %s266 = sadd.s32 %s265, %s263
      %s267 = smul.addr %s266, 2
      %s268 = scalar_lea.vmem %s5, %s267
      %p270 = scmp.eq.s32.totalorder %s22, 0
      // Predicated region
      $region37: #{double_conv_forward.4} parent=35 // pred_check
        %p271 = pneg %p270
      $region38: #{double_conv_forward.4} parent=35 // pred_check_branch
        %273 = sbr.rel (%p271) target = $region40
      $region39: #{double_conv_forward.4} parent=35 // pred_region
        %v274 = vld [vmem:[%s250] sm:$0xf]
        %v275 = vld [vmem:[%s250 + $0x4] sm:$0xf]
        %v276 = vld [vmem:[%s250 + $0x8] sm:$0xf]
        %v277 = vld [vmem:[%s250 + $0xc] sm:$0xf]
        %v278 = vld [vmem:[%s250 + $0x10] sm:$0xf]
        %v279 = vld [vmem:[%s250 + $0x14] sm:$0xf]
        %v280 = vld [vmem:[%s250 + $0x18] sm:$0xf]
        %v281 = vld [vmem:[%s250 + $0x1c] sm:$0xf]
        %v282 = vld [vmem:[%s250 + $0x20] sm:$0xf]
        %v283 = vld [vmem:[%s250 + $0x24] sm:$0xf]
        %v284 = vld [vmem:[%s250 + $0x28] sm:$0xf]
        %v285 = vld [vmem:[%s250 + $0x2c] sm:$0xf]
        %v286 = vld [vmem:[%s250 + $0x30] sm:$0xf]
        %v287 = vld [vmem:[%s250 + $0x34] sm:$0xf]
        %v288 = vld [vmem:[%s250 + $0x38] sm:$0xf]
        %v289 = vld [vmem:[%s250 + $0x3c] sm:$0xf]
        %v290 = vld [vmem:[%s250 + $0x40] sm:$0xf]
        %v291 = vld [vmem:[%s250 + $0x44] sm:$0xf]
        %v292 = vld [vmem:[%s250 + $0x48] sm:$0xf]
        %v293 = vld [vmem:[%s250 + $0x4c] sm:$0xf]
        %v294 = vld [vmem:[%s250 + $0x50] sm:$0xf]
        %v295 = vld [vmem:[%s250 + $0x54] sm:$0xf]
        %v296 = vld [vmem:[%s250 + $0x58] sm:$0xf]
        %v297 = vld [vmem:[%s250 + $0x5c] sm:$0xf]
        %v298 = vld [vmem:[%s250 + $0x60] sm:$0xf]
        %v299 = vld [vmem:[%s250 + $0x64] sm:$0xf]
        %v300 = vld [vmem:[%s250 + $0x68] sm:$0xf]
        %v301 = vld [vmem:[%s250 + $0x6c] sm:$0xf]
        %v302 = vld [vmem:[%s250 + $0x70] sm:$0xf]
        %v303 = vld [vmem:[%s250 + $0x74] sm:$0xf]
        %v304 = vld [vmem:[%s250 + $0x78] sm:$0xf]
        %v305 = vld [vmem:[%s250 + $0x7c] sm:$0xf]
        %v306 = vunpack.c.l.bf16 %v274
        %v307 = vunpack.c.l.bf16 %v275
        %v308 = vunpack.c.l.bf16 %v276
        %v309 = vunpack.c.l.bf16 %v277
        %v310 = vunpack.c.l.bf16 %v278
        %v311 = vunpack.c.l.bf16 %v279
        %v312 = vunpack.c.l.bf16 %v280
        %v313 = vunpack.c.l.bf16 %v281
        %v314 = vunpack.c.l.bf16 %v282
        %v315 = vunpack.c.l.bf16 %v283
        %v316 = vunpack.c.l.bf16 %v284
        %v317 = vunpack.c.l.bf16 %v285
        %v318 = vunpack.c.l.bf16 %v286
        %v319 = vunpack.c.l.bf16 %v287
        %v320 = vunpack.c.l.bf16 %v288
        %v321 = vunpack.c.l.bf16 %v289
        %v322 = vunpack.c.l.bf16 %v290
        %v323 = vunpack.c.l.bf16 %v291
        %v324 = vunpack.c.l.bf16 %v292
        %v325 = vunpack.c.l.bf16 %v293
        %v326 = vunpack.c.l.bf16 %v294
        %v327 = vunpack.c.l.bf16 %v295
        %v328 = vunpack.c.l.bf16 %v296
        %v329 = vunpack.c.l.bf16 %v297
        %v330 = vunpack.c.l.bf16 %v298
        %v331 = vunpack.c.l.bf16 %v299
        %v332 = vunpack.c.l.bf16 %v300
        %v333 = vunpack.c.l.bf16 %v301
        %v334 = vunpack.c.l.bf16 %v302
        %v335 = vunpack.c.l.bf16 %v303
        %v336 = vunpack.c.l.bf16 %v304
        %v337 = vunpack.c.l.bf16 %v305
        %v338 = vld [vmem:[%s2] sm:$0x1]
        %v339 = vld [vmem:[%s3] sm:$0x1]
        %v341 = vlaneseq
        %v342 = vshrl.u32 %v341, 7
        %v343 = vsub.s32 0, %v342
        %v344 = vrot.slane %v338, %v343
        %v346 = vmul.f32 %v306, %v344
        %v347 = vmul.f32 %v307, %v344
        %v348 = vmul.f32 %v308, %v344
        %v349 = vmul.f32 %v309, %v344
        %v350 = vmul.f32 %v310, %v344
        %v351 = vmul.f32 %v311, %v344
        %v352 = vmul.f32 %v312, %v344
        %v353 = vmul.f32 %v313, %v344
        %v354 = vmul.f32 %v314, %v344
        %v355 = vmul.f32 %v315, %v344
        %v356 = vmul.f32 %v316, %v344
        %v357 = vmul.f32 %v317, %v344
        %v358 = vmul.f32 %v318, %v344
        %v359 = vmul.f32 %v319, %v344
        %v360 = vmul.f32 %v320, %v344
        %v361 = vmul.f32 %v321, %v344
        %v362 = vmul.f32 %v322, %v344
        %v363 = vmul.f32 %v323, %v344
        %v364 = vmul.f32 %v324, %v344
        %v365 = vmul.f32 %v325, %v344
        %v366 = vmul.f32 %v326, %v344
        %v367 = vmul.f32 %v327, %v344
        %v368 = vmul.f32 %v328, %v344
        %v369 = vmul.f32 %v329, %v344
        %v370 = vmul.f32 %v330, %v344
        %v371 = vmul.f32 %v331, %v344
        %v372 = vmul.f32 %v332, %v344
        %v373 = vmul.f32 %v333, %v344
        %v374 = vmul.f32 %v334, %v344
        %v375 = vmul.f32 %v335, %v344
        %v376 = vmul.f32 %v336, %v344
        %v377 = vmul.f32 %v337, %v344
        %v379 = vlaneseq
        %v380 = vshrl.u32 %v379, 7
        %v381 = vsub.s32 0, %v380
        %v382 = vrot.slane %v339, %v381
        %v384 = vadd.f32 %v346, %v382
        %v385 = vadd.f32 %v347, %v382
        %v386 = vadd.f32 %v348, %v382
        %v387 = vadd.f32 %v349, %v382
        %v388 = vadd.f32 %v350, %v382
        %v389 = vadd.f32 %v351, %v382
        %v390 = vadd.f32 %v352, %v382
        %v391 = vadd.f32 %v353, %v382
        %v392 = vadd.f32 %v354, %v382
        %v393 = vadd.f32 %v355, %v382
        %v394 = vadd.f32 %v356, %v382
        %v395 = vadd.f32 %v357, %v382
        %v396 = vadd.f32 %v358, %v382
        %v397 = vadd.f32 %v359, %v382
        %v398 = vadd.f32 %v360, %v382
        %v399 = vadd.f32 %v361, %v382
        %v400 = vadd.f32 %v362, %v382
        %v401 = vadd.f32 %v363, %v382
        %v402 = vadd.f32 %v364, %v382
        %v403 = vadd.f32 %v365, %v382
        %v404 = vadd.f32 %v366, %v382
        %v405 = vadd.f32 %v367, %v382
        %v406 = vadd.f32 %v368, %v382
        %v407 = vadd.f32 %v369, %v382
        %v408 = vadd.f32 %v370, %v382
        %v409 = vadd.f32 %v371, %v382
        %v410 = vadd.f32 %v372, %v382
        %v411 = vadd.f32 %v373, %v382
        %v412 = vadd.f32 %v374, %v382
        %v413 = vadd.f32 %v375, %v382
        %v414 = vadd.f32 %v376, %v382
        %v415 = vadd.f32 %v377, %v382
        %v416 = vmax.f32 %v384, 0.0
        %v417 = vmax.f32 %v385, 0.0
        %v418 = vmax.f32 %v386, 0.0
        %v419 = vmax.f32 %v387, 0.0
        %v420 = vmax.f32 %v388, 0.0
        %v421 = vmax.f32 %v389, 0.0
        %v422 = vmax.f32 %v390, 0.0
        %v423 = vmax.f32 %v391, 0.0
        %v424 = vmax.f32 %v392, 0.0
        %v425 = vmax.f32 %v393, 0.0
        %v426 = vmax.f32 %v394, 0.0
        %v427 = vmax.f32 %v395, 0.0
        %v428 = vmax.f32 %v396, 0.0
        %v429 = vmax.f32 %v397, 0.0
        %v430 = vmax.f32 %v398, 0.0
        %v431 = vmax.f32 %v399, 0.0
        %v432 = vmax.f32 %v400, 0.0
        %v433 = vmax.f32 %v401, 0.0
        %v434 = vmax.f32 %v402, 0.0
        %v435 = vmax.f32 %v403, 0.0
        %v436 = vmax.f32 %v404, 0.0
        %v437 = vmax.f32 %v405, 0.0
        %v438 = vmax.f32 %v406, 0.0
        %v439 = vmax.f32 %v407, 0.0
        %v440 = vmax.f32 %v408, 0.0
        %v441 = vmax.f32 %v409, 0.0
        %v442 = vmax.f32 %v410, 0.0
        %v443 = vmax.f32 %v411, 0.0
        %v444 = vmax.f32 %v412, 0.0
        %v445 = vmax.f32 %v413, 0.0
        %v446 = vmax.f32 %v414, 0.0
        %v447 = vmax.f32 %v415, 0.0
        %v448 = vpack.c.bf16 %v417, %v416
        %v449 = vpack.c.bf16 %v419, %v418
        %v450 = vpack.c.bf16 %v421, %v420
        %v451 = vpack.c.bf16 %v423, %v422
        %v452 = vpack.c.bf16 %v425, %v424
        %v453 = vpack.c.bf16 %v427, %v426
        %v454 = vpack.c.bf16 %v429, %v428
        %v455 = vpack.c.bf16 %v431, %v430
        %v456 = vpack.c.bf16 %v433, %v432
        %v457 = vpack.c.bf16 %v435, %v434
        %v458 = vpack.c.bf16 %v437, %v436
        %v459 = vpack.c.bf16 %v439, %v438
        %v460 = vpack.c.bf16 %v441, %v440
        %v461 = vpack.c.bf16 %v443, %v442
        %v462 = vpack.c.bf16 %v445, %v444
        %v463 = vpack.c.bf16 %v447, %v446
        %464 = vst [vmem:[#allocation2] sm:$0xf] 0
        %465 = vst [vmem:[#allocation2 + $0x4] sm:$0xf] 0
        %466 = vst [vmem:[#allocation2 + $0x8] sm:$0x1] 0
        %467 = vst [vmem:[#allocation2 + $0xc] sm:$0xf] 0
        %468 = vst [vmem:[#allocation2 + $0x10] sm:$0xf] 0
        %469 = vst [vmem:[#allocation2 + $0x14] sm:$0x1] 0
        %470 = vst [vmem:[#allocation2 + $0x18] sm:$0xf] 0
        %471 = vst [vmem:[#allocation2 + $0x1c] sm:$0xf] 0
        %472 = vst [vmem:[#allocation2 + $0x20] sm:$0x1] 0
        %473 = vst [vmem:[#allocation2 + $0x24] sm:$0xf] 0
        %474 = vst [vmem:[#allocation2 + $0x28] sm:$0xf] 0
        %475 = vst [vmem:[#allocation2 + $0x2c] sm:$0x1] 0
        %476 = vst [vmem:[#allocation2 + $0x30] sm:$0xf] 0
        %477 = vst [vmem:[#allocation2 + $0x34] sm:$0xf] 0
        %478 = vst [vmem:[#allocation2 + $0x38] sm:$0x1] 0
        %479 = vst [vmem:[#allocation2 + $0x3c] sm:$0xf] 0
        %480 = vst [vmem:[#allocation2 + $0x40] sm:$0xf] 0
        %481 = vst [vmem:[#allocation2 + $0x44] sm:$0x1] 0
        %482 = vst [vmem:[#allocation2 + $0x48] sm:$0xf] 0
        %483 = vst [vmem:[#allocation2 + $0x4c] sm:$0xf] 0
        %484 = vst [vmem:[#allocation2 + $0x50] sm:$0x1] 0
        %485 = vst [vmem:[#allocation2 + $0x54] sm:$0xf] 0
        %486 = vst [vmem:[#allocation2 + $0x58] sm:$0xf] 0
        %487 = vst [vmem:[#allocation2 + $0x5c] sm:$0x1] 0
        %488 = vst [vmem:[#allocation2 + $0x60] sm:$0xf] 0
        %489 = vst [vmem:[#allocation2 + $0x64] sm:$0xf] 0
        %490 = vst [vmem:[#allocation2 + $0x68] sm:$0x1] 0
        %491 = vst [vmem:[#allocation2 + $0x6c] sm:$0xf] 0
        %492 = vst [vmem:[#allocation2 + $0x70] sm:$0xf] 0
        %493 = vst [vmem:[#allocation2 + $0x74] sm:$0x1] 0
        %494 = vst [vmem:[#allocation2 + $0x78] sm:$0xf] 0
        %495 = vst [vmem:[#allocation2 + $0x7c] sm:$0xf] 0
        %496 = vst [vmem:[#allocation2 + $0x80] sm:$0x1] 0
        %497 = vst [vmem:[#allocation2 + $0x84] sm:$0xf] 0
        %498 = vst [vmem:[#allocation2 + $0x88] sm:$0xf] 0
        %499 = vst [vmem:[#allocation2 + $0x8c] sm:$0x1] 0
        %500 = vst [vmem:[#allocation2 + $0x90] sm:$0xf] 0
        %501 = vst [vmem:[#allocation2 + $0x94] sm:$0xf] 0
        %502 = vst [vmem:[#allocation2 + $0x98] sm:$0x1] 0
        %503 = vst [vmem:[#allocation2 + $0x9c] sm:$0xf] 0
        %504 = vst [vmem:[#allocation2 + $0xa0] sm:$0xf] 0
        %505 = vst [vmem:[#allocation2 + $0xa4] sm:$0x1] 0
        %506 = vst [vmem:[#allocation2 + $0xa8] sm:$0xf] 0
        %507 = vst [vmem:[#allocation2 + $0xac] sm:$0xf] 0
        %508 = vst [vmem:[#allocation2 + $0xb0] sm:$0x1] 0
        %509 = vst [vmem:[#allocation2 + $0xb4] sm:$0xf] 0
        %510 = vst [vmem:[#allocation2 + $0xb8] sm:$0xf] 0
        %511 = vst [vmem:[#allocation2 + $0xbc] sm:$0x1] 0
        %512 = vst [vmem:[#allocation2 + $0xc0] sm:$0xf] 0
        %513 = vst [vmem:[#allocation2 + $0xc4] sm:$0xf] 0
        %514 = vst [vmem:[#allocation2 + $0xc8] sm:$0x1] 0
        %515 = vst [vmem:[#allocation2 + $0xcc] sm:$0xf] 0
        %516 = vst [vmem:[#allocation2 + $0xd0] sm:$0xf] 0
        %517 = vst [vmem:[#allocation2 + $0xd4] sm:$0x1] 0
        %v534 = vunpack.c.l.b16 %v448
        %v535 = vunpack.c.h.b16 %v448
        %v536 = vunpack.c.l.b16 %v449
        %v537 = vunpack.c.h.b16 %v449
        %v538 = vunpack.c.l.b16 %v450
        %v539 = vunpack.c.h.b16 %v450
        %v540 = vunpack.c.l.b16 %v451
        %v541 = vunpack.c.h.b16 %v451
        %v542 = vunpack.c.l.b16 %v452
        %v543 = vunpack.c.h.b16 %v452
        %v544 = vunpack.c.l.b16 %v453
        %v545 = vunpack.c.h.b16 %v453
        %v546 = vunpack.c.l.b16 %v454
        %v547 = vunpack.c.h.b16 %v454
        %v548 = vunpack.c.l.b16 %v455
        %v549 = vunpack.c.h.b16 %v455
        %v550 = vunpack.c.l.b16 %v456
        %v551 = vunpack.c.h.b16 %v456
        %v552 = vunpack.c.l.b16 %v457
        %v553 = vunpack.c.h.b16 %v457
        %v554 = vunpack.c.l.b16 %v458
        %v555 = vunpack.c.h.b16 %v458
        %v556 = vunpack.c.l.b16 %v459
        %v557 = vunpack.c.h.b16 %v459
        %v558 = vunpack.c.l.b16 %v460
        %v559 = vunpack.c.h.b16 %v460
        %v560 = vunpack.c.l.b16 %v461
        %v561 = vunpack.c.h.b16 %v461
        %v562 = vunpack.c.l.b16 %v462
        %v563 = vunpack.c.h.b16 %v462
        %v564 = vunpack.c.l.b16 %v463
        %v565 = vunpack.c.h.b16 %v463
        %v566 = vpack.c.b16 %v534, %v534
        %v567 = vpack.c.b16 %v535, %v535
        %v568 = vpack.c.b16 %v536, %v536
        %v569 = vpack.c.b16 %v537, %v537
        %v570 = vpack.c.b16 %v538, %v538
        %v571 = vpack.c.b16 %v539, %v539
        %v572 = vpack.c.b16 %v540, %v540
        %v573 = vpack.c.b16 %v541, %v541
        %v574 = vpack.c.b16 %v542, %v542
        %v575 = vpack.c.b16 %v543, %v543
        %v576 = vpack.c.b16 %v544, %v544
        %v577 = vpack.c.b16 %v545, %v545
        %v578 = vpack.c.b16 %v546, %v546
        %v579 = vpack.c.b16 %v547, %v547
        %v580 = vpack.c.b16 %v548, %v548
        %v581 = vpack.c.b16 %v549, %v549
        %v582 = vpack.c.b16 %v550, %v550
        %v583 = vpack.c.b16 %v551, %v551
        %v584 = vpack.c.b16 %v552, %v552
        %v585 = vpack.c.b16 %v553, %v553
        %v586 = vpack.c.b16 %v554, %v554
        %v587 = vpack.c.b16 %v555, %v555
        %v588 = vpack.c.b16 %v556, %v556
        %v589 = vpack.c.b16 %v557, %v557
        %v590 = vpack.c.b16 %v558, %v558
        %v591 = vpack.c.b16 %v559, %v559
        %v592 = vpack.c.b16 %v560, %v560
        %v593 = vpack.c.b16 %v561, %v561
        %v594 = vpack.c.b16 %v562, %v562
        %v595 = vpack.c.b16 %v563, %v563
        %v596 = vpack.c.b16 %v564, %v564
        %v597 = vpack.c.b16 %v565, %v565
        %vm598 = vsmask.f32 256
        %vm599 = vsmask.f32 4368
        %vm600 = vmor %vm598, %vm599
        %v602 = vshrl.u32 %v566, 16
        %v604 = vrot.slane %v602, 7
        %v605 = vshll.u32 %v566, 16
        %v607 = vor.u32 %v604, %v605
        %v608 = vrot.slane %v604, 4
        %v610 = vshrl.u32 %v567, 16
        %v612 = vrot.slane %v610, 7
        %v613 = vshll.u32 %v567, 16
        %v615 = vor.u32 %v612, %v613
        %v616 = vsel %vm600, %v608, %v615
        %v617 = vrot.slane %v612, 4
        %v619 = vshrl.u32 %v568, 16
        %v621 = vrot.slane %v619, 7
        %v622 = vshll.u32 %v568, 16
        %v624 = vor.u32 %v621, %v622
        %v625 = vrot.slane %v621, 4
        %v627 = vshrl.u32 %v569, 16
        %v629 = vrot.slane %v627, 7
        %v630 = vshll.u32 %v569, 16
        %v632 = vor.u32 %v629, %v630
        %v633 = vsel %vm600, %v625, %v632
        %v634 = vrot.slane %v629, 4
        %v636 = vshrl.u32 %v570, 16
        %v638 = vrot.slane %v636, 7
        %v639 = vshll.u32 %v570, 16
        %v641 = vor.u32 %v638, %v639
        %v642 = vrot.slane %v638, 4
        %v644 = vshrl.u32 %v571, 16
        %v646 = vrot.slane %v644, 7
        %v647 = vshll.u32 %v571, 16
        %v649 = vor.u32 %v646, %v647
        %v650 = vsel %vm600, %v642, %v649
        %v651 = vrot.slane %v646, 4
        %v653 = vshrl.u32 %v572, 16
        %v655 = vrot.slane %v653, 7
        %v656 = vshll.u32 %v572, 16
        %v658 = vor.u32 %v655, %v656
        %v659 = vrot.slane %v655, 4
        %v661 = vshrl.u32 %v573, 16
        %v663 = vrot.slane %v661, 7
        %v664 = vshll.u32 %v573, 16
        %v666 = vor.u32 %v663, %v664
        %v667 = vsel %vm600, %v659, %v666
        %v668 = vrot.slane %v663, 4
        %v670 = vshrl.u32 %v574, 16
        %v672 = vrot.slane %v670, 7
        %v673 = vshll.u32 %v574, 16
        %v675 = vor.u32 %v672, %v673
        %v676 = vrot.slane %v672, 4
        %v678 = vshrl.u32 %v575, 16
        %v680 = vrot.slane %v678, 7
        %v681 = vshll.u32 %v575, 16
        %v683 = vor.u32 %v680, %v681
        %v684 = vsel %vm600, %v676, %v683
        %v685 = vrot.slane %v680, 4
        %v687 = vshrl.u32 %v576, 16
        %v689 = vrot.slane %v687, 7
        %v690 = vshll.u32 %v576, 16
        %v692 = vor.u32 %v689, %v690
        %v693 = vrot.slane %v689, 4
        %v695 = vshrl.u32 %v577, 16
        %v697 = vrot.slane %v695, 7
        %v698 = vshll.u32 %v577, 16
        %v700 = vor.u32 %v697, %v698
        %v701 = vsel %vm600, %v693, %v700
        %v702 = vrot.slane %v697, 4
        %v704 = vshrl.u32 %v578, 16
        %v706 = vrot.slane %v704, 7
        %v707 = vshll.u32 %v578, 16
        %v709 = vor.u32 %v706, %v707
        %v710 = vrot.slane %v706, 4
        %v712 = vshrl.u32 %v579, 16
        %v714 = vrot.slane %v712, 7
        %v715 = vshll.u32 %v579, 16
        %v717 = vor.u32 %v714, %v715
        %v718 = vsel %vm600, %v710, %v717
        %v719 = vrot.slane %v714, 4
        %v721 = vshrl.u32 %v580, 16
        %v723 = vrot.slane %v721, 7
        %v724 = vshll.u32 %v580, 16
        %v726 = vor.u32 %v723, %v724
        %v727 = vrot.slane %v723, 4
        %v729 = vshrl.u32 %v581, 16
        %v731 = vrot.slane %v729, 7
        %v732 = vshll.u32 %v581, 16
        %v734 = vor.u32 %v731, %v732
        %v735 = vsel %vm600, %v727, %v734
        %v736 = vrot.slane %v731, 4
        %v738 = vshrl.u32 %v582, 16
        %v740 = vrot.slane %v738, 7
        %v741 = vshll.u32 %v582, 16
        %v743 = vor.u32 %v740, %v741
        %v744 = vrot.slane %v740, 4
        %v746 = vshrl.u32 %v583, 16
        %v748 = vrot.slane %v746, 7
        %v749 = vshll.u32 %v583, 16
        %v751 = vor.u32 %v748, %v749
        %v752 = vsel %vm600, %v744, %v751
        %v753 = vrot.slane %v748, 4
        %v755 = vshrl.u32 %v584, 16
        %v757 = vrot.slane %v755, 7
        %v758 = vshll.u32 %v584, 16
        %v760 = vor.u32 %v757, %v758
        %v761 = vrot.slane %v757, 4
        %v763 = vshrl.u32 %v585, 16
        %v765 = vrot.slane %v763, 7
        %v766 = vshll.u32 %v585, 16
        %v768 = vor.u32 %v765, %v766
        %v769 = vsel %vm600, %v761, %v768
        %v770 = vrot.slane %v765, 4
        %v772 = vshrl.u32 %v586, 16
        %v774 = vrot.slane %v772, 7
        %v775 = vshll.u32 %v586, 16
        %v777 = vor.u32 %v774, %v775
        %v778 = vrot.slane %v774, 4
        %v780 = vshrl.u32 %v587, 16
        %v782 = vrot.slane %v780, 7
        %v783 = vshll.u32 %v587, 16
        %v785 = vor.u32 %v782, %v783
        %v786 = vsel %vm600, %v778, %v785
        %v787 = vrot.slane %v782, 4
        %v789 = vshrl.u32 %v588, 16
        %v791 = vrot.slane %v789, 7
        %v792 = vshll.u32 %v588, 16
        %v794 = vor.u32 %v791, %v792
        %v795 = vrot.slane %v791, 4
        %v797 = vshrl.u32 %v589, 16
        %v799 = vrot.slane %v797, 7
        %v800 = vshll.u32 %v589, 16
        %v802 = vor.u32 %v799, %v800
        %v803 = vsel %vm600, %v795, %v802
        %v804 = vrot.slane %v799, 4
        %v806 = vshrl.u32 %v590, 16
        %v808 = vrot.slane %v806, 7
        %v809 = vshll.u32 %v590, 16
        %v811 = vor.u32 %v808, %v809
        %v812 = vrot.slane %v808, 4
        %v814 = vshrl.u32 %v591, 16
        %v816 = vrot.slane %v814, 7
        %v817 = vshll.u32 %v591, 16
        %v819 = vor.u32 %v816, %v817
        %v820 = vsel %vm600, %v812, %v819
        %v821 = vrot.slane %v816, 4
        %v823 = vshrl.u32 %v592, 16
        %v825 = vrot.slane %v823, 7
        %v826 = vshll.u32 %v592, 16
        %v828 = vor.u32 %v825, %v826
        %v829 = vrot.slane %v825, 4
        %v831 = vshrl.u32 %v593, 16
        %v833 = vrot.slane %v831, 7
        %v834 = vshll.u32 %v593, 16
        %v836 = vor.u32 %v833, %v834
        %v837 = vsel %vm600, %v829, %v836
        %v838 = vrot.slane %v833, 4
        %v840 = vshrl.u32 %v594, 16
        %v842 = vrot.slane %v840, 7
        %v843 = vshll.u32 %v594, 16
        %v845 = vor.u32 %v842, %v843
        %v846 = vrot.slane %v842, 4
        %v848 = vshrl.u32 %v595, 16
        %v850 = vrot.slane %v848, 7
        %v851 = vshll.u32 %v595, 16
        %v853 = vor.u32 %v850, %v851
        %v854 = vsel %vm600, %v846, %v853
        %v855 = vrot.slane %v850, 4
        %v857 = vshrl.u32 %v596, 16
        %v859 = vrot.slane %v857, 7
        %v860 = vshll.u32 %v596, 16
        %v862 = vor.u32 %v859, %v860
        %v863 = vrot.slane %v859, 4
        %v865 = vshrl.u32 %v597, 16
        %v867 = vrot.slane %v865, 7
        %v868 = vshll.u32 %v597, 16
        %v870 = vor.u32 %v867, %v868
        %v871 = vsel %vm600, %v863, %v870
        %v872 = vrot.slane %v867, 4
        %s921 = scalar_lea.vmem [#allocation2], 12
        %vm922 = vcmask 1043456
        %vm923 = vsmask.f32 7938
        %vm924 = vmand %vm922, %vm923
        %v925 = vld [vmem:[%s921] sm:$0xf]
        %v926 = vsel %vm924, %v607, %v925
        %927 = vst [vmem:[%s921] sm:$0xf] %v926
        %928 = vst [vmem:[%s921 + $0x4] sm:$0xf] %v616
        %vm929 = vcmask 1040384
        %vm930 = vmand %vm929, %vm598
        %v931 = vld [vmem:[%s921 + $0x8] sm:$0x1]
        %v932 = vsel %vm930, %v617, %v931
        %933 = vst [vmem:[%s921 + $0x8] sm:$0x1] %v932
        %v934 = vld [vmem:[%s921 + $0xc] sm:$0xf]
        %v935 = vsel %vm924, %v624, %v934
        %936 = vst [vmem:[%s921 + $0xc] sm:$0xf] %v935
        %937 = vst [vmem:[%s921 + $0x10] sm:$0xf] %v633
        %v938 = vld [vmem:[%s921 + $0x14] sm:$0x1]
        %v939 = vsel %vm930, %v634, %v938
        %940 = vst [vmem:[%s921 + $0x14] sm:$0x1] %v939
        %v941 = vld [vmem:[%s921 + $0x18] sm:$0xf]
        %v942 = vsel %vm924, %v641, %v941
        %943 = vst [vmem:[%s921 + $0x18] sm:$0xf] %v942
        %944 = vst [vmem:[%s921 + $0x1c] sm:$0xf] %v650
        %v945 = vld [vmem:[%s921 + $0x20] sm:$0x1]
        %v946 = vsel %vm930, %v651, %v945
        %947 = vst [vmem:[%s921 + $0x20] sm:$0x1] %v946
        %v948 = vld [vmem:[%s921 + $0x24] sm:$0xf]
        %v949 = vsel %vm924, %v658, %v948
        %950 = vst [vmem:[%s921 + $0x24] sm:$0xf] %v949
        %951 = vst [vmem:[%s921 + $0x28] sm:$0xf] %v667
        %v952 = vld [vmem:[%s921 + $0x2c] sm:$0x1]
        %v953 = vsel %vm930, %v668, %v952
        %954 = vst [vmem:[%s921 + $0x2c] sm:$0x1] %v953
        %v955 = vld [vmem:[%s921 + $0x30] sm:$0xf]
        %v956 = vsel %vm924, %v675, %v955
        %957 = vst [vmem:[%s921 + $0x30] sm:$0xf] %v956
        %958 = vst [vmem:[%s921 + $0x34] sm:$0xf] %v684
        %v959 = vld [vmem:[%s921 + $0x38] sm:$0x1]
        %v960 = vsel %vm930, %v685, %v959
        %961 = vst [vmem:[%s921 + $0x38] sm:$0x1] %v960
        %v962 = vld [vmem:[%s921 + $0x3c] sm:$0xf]
        %v963 = vsel %vm924, %v692, %v962
        %964 = vst [vmem:[%s921 + $0x3c] sm:$0xf] %v963
        %965 = vst [vmem:[%s921 + $0x40] sm:$0xf] %v701
        %v966 = vld [vmem:[%s921 + $0x44] sm:$0x1]
        %v967 = vsel %vm930, %v702, %v966
        %968 = vst [vmem:[%s921 + $0x44] sm:$0x1] %v967
        %v969 = vld [vmem:[%s921 + $0x48] sm:$0xf]
        %v970 = vsel %vm924, %v709, %v969
        %971 = vst [vmem:[%s921 + $0x48] sm:$0xf] %v970
        %972 = vst [vmem:[%s921 + $0x4c] sm:$0xf] %v718
        %v973 = vld [vmem:[%s921 + $0x50] sm:$0x1]
        %v974 = vsel %vm930, %v719, %v973
        %975 = vst [vmem:[%s921 + $0x50] sm:$0x1] %v974
        %v976 = vld [vmem:[%s921 + $0x54] sm:$0xf]
        %v977 = vsel %vm924, %v726, %v976
        %978 = vst [vmem:[%s921 + $0x54] sm:$0xf] %v977
        %979 = vst [vmem:[%s921 + $0x58] sm:$0xf] %v735
        %v980 = vld [vmem:[%s921 + $0x5c] sm:$0x1]
        %v981 = vsel %vm930, %v736, %v980
        %982 = vst [vmem:[%s921 + $0x5c] sm:$0x1] %v981
        %v983 = vld [vmem:[%s921 + $0x60] sm:$0xf]
        %v984 = vsel %vm924, %v743, %v983
        %985 = vst [vmem:[%s921 + $0x60] sm:$0xf] %v984
        %986 = vst [vmem:[%s921 + $0x64] sm:$0xf] %v752
        %v987 = vld [vmem:[%s921 + $0x68] sm:$0x1]
        %v988 = vsel %vm930, %v753, %v987
        %989 = vst [vmem:[%s921 + $0x68] sm:$0x1] %v988
        %v990 = vld [vmem:[%s921 + $0x6c] sm:$0xf]
        %v991 = vsel %vm924, %v760, %v990
        %992 = vst [vmem:[%s921 + $0x6c] sm:$0xf] %v991
        %993 = vst [vmem:[%s921 + $0x70] sm:$0xf] %v769
        %v994 = vld [vmem:[%s921 + $0x74] sm:$0x1]
        %v995 = vsel %vm930, %v770, %v994
        %996 = vst [vmem:[%s921 + $0x74] sm:$0x1] %v995
        %v997 = vld [vmem:[%s921 + $0x78] sm:$0xf]
        %v998 = vsel %vm924, %v777, %v997
        %999 = vst [vmem:[%s921 + $0x78] sm:$0xf] %v998
        %1000 = vst [vmem:[%s921 + $0x7c] sm:$0xf] %v786
        %v1001 = vld [vmem:[%s921 + $0x80] sm:$0x1]
        %v1002 = vsel %vm930, %v787, %v1001
        %1003 = vst [vmem:[%s921 + $0x80] sm:$0x1] %v1002
        %v1004 = vld [vmem:[%s921 + $0x84] sm:$0xf]
        %v1005 = vsel %vm924, %v794, %v1004
        %1006 = vst [vmem:[%s921 + $0x84] sm:$0xf] %v1005
        %1007 = vst [vmem:[%s921 + $0x88] sm:$0xf] %v803
        %v1008 = vld [vmem:[%s921 + $0x8c] sm:$0x1]
        %v1009 = vsel %vm930, %v804, %v1008
        %1010 = vst [vmem:[%s921 + $0x8c] sm:$0x1] %v1009
        %v1011 = vld [vmem:[%s921 + $0x90] sm:$0xf]
        %v1012 = vsel %vm924, %v811, %v1011
        %1013 = vst [vmem:[%s921 + $0x90] sm:$0xf] %v1012
        %1014 = vst [vmem:[%s921 + $0x94] sm:$0xf] %v820
        %v1015 = vld [vmem:[%s921 + $0x98] sm:$0x1]
        %v1016 = vsel %vm930, %v821, %v1015
        %1017 = vst [vmem:[%s921 + $0x98] sm:$0x1] %v1016
        %v1018 = vld [vmem:[%s921 + $0x9c] sm:$0xf]
        %v1019 = vsel %vm924, %v828, %v1018
        %1020 = vst [vmem:[%s921 + $0x9c] sm:$0xf] %v1019
        %1021 = vst [vmem:[%s921 + $0xa0] sm:$0xf] %v837
        %v1022 = vld [vmem:[%s921 + $0xa4] sm:$0x1]
        %v1023 = vsel %vm930, %v838, %v1022
        %1024 = vst [vmem:[%s921 + $0xa4] sm:$0x1] %v1023
        %v1025 = vld [vmem:[%s921 + $0xa8] sm:$0xf]
        %v1026 = vsel %vm924, %v845, %v1025
        %1027 = vst [vmem:[%s921 + $0xa8] sm:$0xf] %v1026
        %1028 = vst [vmem:[%s921 + $0xac] sm:$0xf] %v854
        %v1029 = vld [vmem:[%s921 + $0xb0] sm:$0x1]
        %v1030 = vsel %vm930, %v855, %v1029
        %1031 = vst [vmem:[%s921 + $0xb0] sm:$0x1] %v1030
        %v1032 = vld [vmem:[%s921 + $0xb4] sm:$0xf]
        %v1033 = vsel %vm924, %v862, %v1032
        %1034 = vst [vmem:[%s921 + $0xb4] sm:$0xf] %v1033
        %1035 = vst [vmem:[%s921 + $0xb8] sm:$0xf] %v871
        %v1036 = vld [vmem:[%s921 + $0xbc] sm:$0x1]
        %v1037 = vsel %vm930, %v872, %v1036
        %1038 = vst [vmem:[%s921 + $0xbc] sm:$0x1] %v1037
      $region40: #{double_conv_forward.4} parent=35 // pred_fallthru
        _
      %s1039 = smul.u32 %s22, 16
      %s1040 = smul.u32 %s1039, 3
      %s1041 = smul.addr %s1040, 4
      %s1042 = scalar_lea.vmem [#allocation2], %s1041
      %v1043 = vld [vmem:[%s1042] sm:$0xf]
      %v1044 = vld [vmem:[%s1042 + $0x4] sm:$0xf]
      %v1045 = vld [vmem:[%s1042 + $0x8] sm:$0x1]
      %v1046 = vld [vmem:[%s1042 + $0xc] sm:$0xf]
      %v1047 = vld [vmem:[%s1042 + $0x10] sm:$0xf]
      %v1048 = vld [vmem:[%s1042 + $0x14] sm:$0x1]
      %v1049 = vld [vmem:[%s1042 + $0x18] sm:$0xf]
      %v1050 = vld [vmem:[%s1042 + $0x1c] sm:$0xf]
      %v1051 = vld [vmem:[%s1042 + $0x20] sm:$0x1]
      %v1052 = vld [vmem:[%s1042 + $0x24] sm:$0xf]
      %v1053 = vld [vmem:[%s1042 + $0x28] sm:$0xf]
      %v1054 = vld [vmem:[%s1042 + $0x2c] sm:$0x1]
      %v1055 = vld [vmem:[%s1042 + $0x30] sm:$0xf]
      %v1056 = vld [vmem:[%s1042 + $0x34] sm:$0xf]
      %v1057 = vld [vmem:[%s1042 + $0x38] sm:$0x1]
      %v1058 = vld [vmem:[%s1042 + $0x3c] sm:$0xf]
      %v1059 = vld [vmem:[%s1042 + $0x40] sm:$0xf]
      %v1060 = vld [vmem:[%s1042 + $0x44] sm:$0x1]
      %v1061 = vld [vmem:[%s1042 + $0x48] sm:$0xf]
      %v1062 = vld [vmem:[%s1042 + $0x4c] sm:$0xf]
      %v1063 = vld [vmem:[%s1042 + $0x50] sm:$0x1]
      %v1064 = vld [vmem:[%s1042 + $0x54] sm:$0xf]
      %v1065 = vld [vmem:[%s1042 + $0x58] sm:$0xf]
      %v1066 = vld [vmem:[%s1042 + $0x5c] sm:$0x1]
      %v1067 = vld [vmem:[%s1042 + $0x60] sm:$0xf]
      %v1068 = vld [vmem:[%s1042 + $0x64] sm:$0xf]
      %v1069 = vld [vmem:[%s1042 + $0x68] sm:$0x1]
      %v1070 = vld [vmem:[%s1042 + $0x6c] sm:$0xf]
      %v1071 = vld [vmem:[%s1042 + $0x70] sm:$0xf]
      %v1072 = vld [vmem:[%s1042 + $0x74] sm:$0x1]
      %v1073 = vld [vmem:[%s1042 + $0x78] sm:$0xf]
      %v1074 = vld [vmem:[%s1042 + $0x7c] sm:$0xf]
      %v1075 = vld [vmem:[%s1042 + $0x80] sm:$0x1]
      %v1076 = vld [vmem:[%s1042 + $0x84] sm:$0xf]
      %v1077 = vld [vmem:[%s1042 + $0x88] sm:$0xf]
      %v1078 = vld [vmem:[%s1042 + $0x8c] sm:$0x1]
      %v1079 = vld [vmem:[%s1042 + $0x90] sm:$0xf]
      %v1080 = vld [vmem:[%s1042 + $0x94] sm:$0xf]
      %v1081 = vld [vmem:[%s1042 + $0x98] sm:$0x1]
      %v1082 = vld [vmem:[%s1042 + $0x9c] sm:$0xf]
      %v1083 = vld [vmem:[%s1042 + $0xa0] sm:$0xf]
      %v1084 = vld [vmem:[%s1042 + $0xa4] sm:$0x1]
      %v1085 = vld [vmem:[%s1042 + $0xa8] sm:$0xf]
      %v1086 = vld [vmem:[%s1042 + $0xac] sm:$0xf]
      %v1087 = vld [vmem:[%s1042 + $0xb0] sm:$0x1]
      %v1088 = vld [vmem:[%s1042 + $0xb4] sm:$0xf]
      %v1089 = vld [vmem:[%s1042 + $0xb8] sm:$0xf]
      %v1090 = vld [vmem:[%s1042 + $0xbc] sm:$0x1]
      %v1091 = vld [vmem:[%s1] sm:$0xf]
      %v1092 = vld [vmem:[%s1 + $0x4] sm:$0xf]
      %v1093 = vld [vmem:[%s1 + $0x8] sm:$0xf]
      %v1094 = vld [vmem:[%s1 + $0xc] sm:$0xf]
      %v1095 = vld [vmem:[%s1 + $0x10] sm:$0xf]
      %v1096 = vld [vmem:[%s1 + $0x14] sm:$0xf]
      %v1097 = vld [vmem:[%s1 + $0x18] sm:$0xf]
      %v1098 = vld [vmem:[%s1 + $0x1c] sm:$0xf]
      %v1099 = vld [vmem:[%s1 + $0x20] sm:$0xf]
      %v1100 = vld [vmem:[%s1 + $0x24] sm:$0xf]
      %v1101 = vld [vmem:[%s1 + $0x28] sm:$0xf]
      %v1102 = vld [vmem:[%s1 + $0x2c] sm:$0xf]
      %v1103 = vld [vmem:[%s1 + $0x30] sm:$0xf]
      %v1104 = vld [vmem:[%s1 + $0x34] sm:$0xf]
      %v1105 = vld [vmem:[%s1 + $0x38] sm:$0xf]
      %v1106 = vld [vmem:[%s1 + $0x3c] sm:$0xf]
      %vm1107 = vsmask.f32 3328
      %vm1108 = vsmask.f32 7440
      %vm1109 = vmor %vm1107, %vm1108
      %v1111 = vshrl.u32 %v1043, 16
      %v1113 = vrot.slane %v1111, 4
      %v1114 = vshll.u32 %v1043, 16
      %v1116 = vrot.slane %v1114, 5
      %v1117 = vor.u32 %v1113, %v1116
      %v1118 = vrot.slane %v1117, 4
      %v1120 = vshll.u32 %v1044, 16
      %v1122 = vrot.slane %v1120, 5
      %v1123 = vsel %vm1109, %v1118, %v1122
      %v1124 = vshrl.u32 %v1044, 16
      %v1126 = vrot.slane %v1124, 4
      %v1127 = vor.u32 %v1126, %v1122
      %v1128 = vrot.slane %v1127, 4
      %v1130 = vshll.u32 %v1045, 16
      %v1132 = vrot.slane %v1130, 5
      %v1133 = vsel %vm1109, %v1128, %v1132
      %v1135 = vshrl.u32 %v1046, 16
      %v1137 = vrot.slane %v1135, 4
      %v1138 = vshll.u32 %v1046, 16
      %v1140 = vrot.slane %v1138, 5
      %v1141 = vor.u32 %v1137, %v1140
      %v1142 = vrot.slane %v1141, 4
      %v1144 = vshll.u32 %v1047, 16
      %v1146 = vrot.slane %v1144, 5
      %v1147 = vsel %vm1109, %v1142, %v1146
      %v1148 = vshrl.u32 %v1047, 16
      %v1150 = vrot.slane %v1148, 4
      %v1151 = vor.u32 %v1150, %v1146
      %v1152 = vrot.slane %v1151, 4
      %v1154 = vshll.u32 %v1048, 16
      %v1156 = vrot.slane %v1154, 5
      %v1157 = vsel %vm1109, %v1152, %v1156
      %v1159 = vshrl.u32 %v1049, 16
      %v1161 = vrot.slane %v1159, 4
      %v1162 = vshll.u32 %v1049, 16
      %v1164 = vrot.slane %v1162, 5
      %v1165 = vor.u32 %v1161, %v1164
      %v1166 = vrot.slane %v1165, 4
      %v1168 = vshll.u32 %v1050, 16
      %v1170 = vrot.slane %v1168, 5
      %v1171 = vsel %vm1109, %v1166, %v1170
      %v1172 = vshrl.u32 %v1050, 16
      %v1174 = vrot.slane %v1172, 4
      %v1175 = vor.u32 %v1174, %v1170
      %v1176 = vrot.slane %v1175, 4
      %v1178 = vshll.u32 %v1051, 16
      %v1180 = vrot.slane %v1178, 5
      %v1181 = vsel %vm1109, %v1176, %v1180
      %v1183 = vshrl.u32 %v1052, 16
      %v1185 = vrot.slane %v1183, 4
      %v1186 = vshll.u32 %v1052, 16
      %v1188 = vrot.slane %v1186, 5
      %v1189 = vor.u32 %v1185, %v1188
      %v1190 = vrot.slane %v1189, 4
      %v1192 = vshll.u32 %v1053, 16
      %v1194 = vrot.slane %v1192, 5
      %v1195 = vsel %vm1109, %v1190, %v1194
      %v1196 = vshrl.u32 %v1053, 16
      %v1198 = vrot.slane %v1196, 4
      %v1199 = vor.u32 %v1198, %v1194
      %v1200 = vrot.slane %v1199, 4
      %v1202 = vshll.u32 %v1054, 16
      %v1204 = vrot.slane %v1202, 5
      %v1205 = vsel %vm1109, %v1200, %v1204
      %v1207 = vshrl.u32 %v1055, 16
      %v1209 = vrot.slane %v1207, 4
      %v1210 = vshll.u32 %v1055, 16
      %v1212 = vrot.slane %v1210, 5
      %v1213 = vor.u32 %v1209, %v1212
      %v1214 = vrot.slane %v1213, 4
      %v1216 = vshll.u32 %v1056, 16
      %v1218 = vrot.slane %v1216, 5
      %v1219 = vsel %vm1109, %v1214, %v1218
      %v1220 = vshrl.u32 %v1056, 16
      %v1222 = vrot.slane %v1220, 4
      %v1223 = vor.u32 %v1222, %v1218
      %v1224 = vrot.slane %v1223, 4
      %v1226 = vshll.u32 %v1057, 16
      %v1228 = vrot.slane %v1226, 5
      %v1229 = vsel %vm1109, %v1224, %v1228
      %v1231 = vshrl.u32 %v1058, 16
      %v1233 = vrot.slane %v1231, 4
      %v1234 = vshll.u32 %v1058, 16
      %v1236 = vrot.slane %v1234, 5
      %v1237 = vor.u32 %v1233, %v1236
      %v1238 = vrot.slane %v1237, 4
      %v1240 = vshll.u32 %v1059, 16
      %v1242 = vrot.slane %v1240, 5
      %v1243 = vsel %vm1109, %v1238, %v1242
      %v1244 = vshrl.u32 %v1059, 16
      %v1246 = vrot.slane %v1244, 4
      %v1247 = vor.u32 %v1246, %v1242
      %v1248 = vrot.slane %v1247, 4
      %v1250 = vshll.u32 %v1060, 16
      %v1252 = vrot.slane %v1250, 5
      %v1253 = vsel %vm1109, %v1248, %v1252
      %v1255 = vshrl.u32 %v1061, 16
      %v1257 = vrot.slane %v1255, 4
      %v1258 = vshll.u32 %v1061, 16
      %v1260 = vrot.slane %v1258, 5
      %v1261 = vor.u32 %v1257, %v1260
      %v1262 = vrot.slane %v1261, 4
      %v1264 = vshll.u32 %v1062, 16
      %v1266 = vrot.slane %v1264, 5
      %v1267 = vsel %vm1109, %v1262, %v1266
      %v1268 = vshrl.u32 %v1062, 16
      %v1270 = vrot.slane %v1268, 4
      %v1271 = vor.u32 %v1270, %v1266
      %v1272 = vrot.slane %v1271, 4
      %v1274 = vshll.u32 %v1063, 16
      %v1276 = vrot.slane %v1274, 5
      %v1277 = vsel %vm1109, %v1272, %v1276
      %v1279 = vshrl.u32 %v1064, 16
      %v1281 = vrot.slane %v1279, 4
      %v1282 = vshll.u32 %v1064, 16
      %v1284 = vrot.slane %v1282, 5
      %v1285 = vor.u32 %v1281, %v1284
      %v1286 = vrot.slane %v1285, 4
      %v1288 = vshll.u32 %v1065, 16
      %v1290 = vrot.slane %v1288, 5
      %v1291 = vsel %vm1109, %v1286, %v1290
      %v1292 = vshrl.u32 %v1065, 16
      %v1294 = vrot.slane %v1292, 4
      %v1295 = vor.u32 %v1294, %v1290
      %v1296 = vrot.slane %v1295, 4
      %v1298 = vshll.u32 %v1066, 16
      %v1300 = vrot.slane %v1298, 5
      %v1301 = vsel %vm1109, %v1296, %v1300
      %v1303 = vshrl.u32 %v1067, 16
      %v1305 = vrot.slane %v1303, 4
      %v1306 = vshll.u32 %v1067, 16
      %v1308 = vrot.slane %v1306, 5
      %v1309 = vor.u32 %v1305, %v1308
      %v1310 = vrot.slane %v1309, 4
      %v1312 = vshll.u32 %v1068, 16
      %v1314 = vrot.slane %v1312, 5
      %v1315 = vsel %vm1109, %v1310, %v1314
      %v1316 = vshrl.u32 %v1068, 16
      %v1318 = vrot.slane %v1316, 4
      %v1319 = vor.u32 %v1318, %v1314
      %v1320 = vrot.slane %v1319, 4
      %v1322 = vshll.u32 %v1069, 16
      %v1324 = vrot.slane %v1322, 5
      %v1325 = vsel %vm1109, %v1320, %v1324
      %v1327 = vshrl.u32 %v1070, 16
      %v1329 = vrot.slane %v1327, 4
      %v1330 = vshll.u32 %v1070, 16
      %v1332 = vrot.slane %v1330, 5
      %v1333 = vor.u32 %v1329, %v1332
      %v1334 = vrot.slane %v1333, 4
      %v1336 = vshll.u32 %v1071, 16
      %v1338 = vrot.slane %v1336, 5
      %v1339 = vsel %vm1109, %v1334, %v1338
      %v1340 = vshrl.u32 %v1071, 16
      %v1342 = vrot.slane %v1340, 4
      %v1343 = vor.u32 %v1342, %v1338
      %v1344 = vrot.slane %v1343, 4
      %v1346 = vshll.u32 %v1072, 16
      %v1348 = vrot.slane %v1346, 5
      %v1349 = vsel %vm1109, %v1344, %v1348
      %v1351 = vshrl.u32 %v1073, 16
      %v1353 = vrot.slane %v1351, 4
      %v1354 = vshll.u32 %v1073, 16
      %v1356 = vrot.slane %v1354, 5
      %v1357 = vor.u32 %v1353, %v1356
      %v1358 = vrot.slane %v1357, 4
      %v1360 = vshll.u32 %v1074, 16
      %v1362 = vrot.slane %v1360, 5
      %v1363 = vsel %vm1109, %v1358, %v1362
      %v1364 = vshrl.u32 %v1074, 16
      %v1366 = vrot.slane %v1364, 4
      %v1367 = vor.u32 %v1366, %v1362
      %v1368 = vrot.slane %v1367, 4
      %v1370 = vshll.u32 %v1075, 16
      %v1372 = vrot.slane %v1370, 5
      %v1373 = vsel %vm1109, %v1368, %v1372
      %v1375 = vshrl.u32 %v1076, 16
      %v1377 = vrot.slane %v1375, 4
      %v1378 = vshll.u32 %v1076, 16
      %v1380 = vrot.slane %v1378, 5
      %v1381 = vor.u32 %v1377, %v1380
      %v1382 = vrot.slane %v1381, 4
      %v1384 = vshll.u32 %v1077, 16
      %v1386 = vrot.slane %v1384, 5
      %v1387 = vsel %vm1109, %v1382, %v1386
      %v1388 = vshrl.u32 %v1077, 16
      %v1390 = vrot.slane %v1388, 4
      %v1391 = vor.u32 %v1390, %v1386
      %v1392 = vrot.slane %v1391, 4
      %v1394 = vshll.u32 %v1078, 16
      %v1396 = vrot.slane %v1394, 5
      %v1397 = vsel %vm1109, %v1392, %v1396
      %v1399 = vshrl.u32 %v1079, 16
      %v1401 = vrot.slane %v1399, 4
      %v1402 = vshll.u32 %v1079, 16
      %v1404 = vrot.slane %v1402, 5
      %v1405 = vor.u32 %v1401, %v1404
      %v1406 = vrot.slane %v1405, 4
      %v1408 = vshll.u32 %v1080, 16
      %v1410 = vrot.slane %v1408, 5
      %v1411 = vsel %vm1109, %v1406, %v1410
      %v1412 = vshrl.u32 %v1080, 16
      %v1414 = vrot.slane %v1412, 4
      %v1415 = vor.u32 %v1414, %v1410
      %v1416 = vrot.slane %v1415, 4
      %v1418 = vshll.u32 %v1081, 16
      %v1420 = vrot.slane %v1418, 5
      %v1421 = vsel %vm1109, %v1416, %v1420
      %v1423 = vshrl.u32 %v1082, 16
      %v1425 = vrot.slane %v1423, 4
      %v1426 = vshll.u32 %v1082, 16
      %v1428 = vrot.slane %v1426, 5
      %v1429 = vor.u32 %v1425, %v1428
      %v1430 = vrot.slane %v1429, 4
      %v1432 = vshll.u32 %v1083, 16
      %v1434 = vrot.slane %v1432, 5
      %v1435 = vsel %vm1109, %v1430, %v1434
      %v1436 = vshrl.u32 %v1083, 16
      %v1438 = vrot.slane %v1436, 4
      %v1439 = vor.u32 %v1438, %v1434
      %v1440 = vrot.slane %v1439, 4
      %v1442 = vshll.u32 %v1084, 16
      %v1444 = vrot.slane %v1442, 5
      %v1445 = vsel %vm1109, %v1440, %v1444
      %v1447 = vshrl.u32 %v1085, 16
      %v1449 = vrot.slane %v1447, 4
      %v1450 = vshll.u32 %v1085, 16
      %v1452 = vrot.slane %v1450, 5
      %v1453 = vor.u32 %v1449, %v1452
      %v1454 = vrot.slane %v1453, 4
      %v1456 = vshll.u32 %v1086, 16
      %v1458 = vrot.slane %v1456, 5
      %v1459 = vsel %vm1109, %v1454, %v1458
      %v1460 = vshrl.u32 %v1086, 16
      %v1462 = vrot.slane %v1460, 4
      %v1463 = vor.u32 %v1462, %v1458
      %v1464 = vrot.slane %v1463, 4
      %v1466 = vshll.u32 %v1087, 16
      %v1468 = vrot.slane %v1466, 5
      %v1469 = vsel %vm1109, %v1464, %v1468
      %v1471 = vshrl.u32 %v1088, 16
      %v1473 = vrot.slane %v1471, 4
      %v1474 = vshll.u32 %v1088, 16
      %v1476 = vrot.slane %v1474, 5
      %v1477 = vor.u32 %v1473, %v1476
      %v1478 = vrot.slane %v1477, 4
      %v1480 = vshll.u32 %v1089, 16
      %v1482 = vrot.slane %v1480, 5
      %v1483 = vsel %vm1109, %v1478, %v1482
      %v1484 = vshrl.u32 %v1089, 16
      %v1486 = vrot.slane %v1484, 4
      %v1487 = vor.u32 %v1486, %v1482
      %v1488 = vrot.slane %v1487, 4
      %v1490 = vshll.u32 %v1090, 16
      %v1492 = vrot.slane %v1490, 5
      %v1493 = vsel %vm1109, %v1488, %v1492
      %s1494 = scalar_lea.vmem %s1, 64
      %v1495 = vld [vmem:[%s1494] sm:$0xf]
      %v1496 = vld [vmem:[%s1494 + $0x4] sm:$0xf]
      %v1497 = vld [vmem:[%s1494 + $0x8] sm:$0xf]
      %v1498 = vld [vmem:[%s1494 + $0xc] sm:$0xf]
      %v1499 = vld [vmem:[%s1494 + $0x10] sm:$0xf]
      %v1500 = vld [vmem:[%s1494 + $0x14] sm:$0xf]
      %v1501 = vld [vmem:[%s1494 + $0x18] sm:$0xf]
      %v1502 = vld [vmem:[%s1494 + $0x1c] sm:$0xf]
      %v1503 = vld [vmem:[%s1494 + $0x20] sm:$0xf]
      %v1504 = vld [vmem:[%s1494 + $0x24] sm:$0xf]
      %v1505 = vld [vmem:[%s1494 + $0x28] sm:$0xf]
      %v1506 = vld [vmem:[%s1494 + $0x2c] sm:$0xf]
      %v1507 = vld [vmem:[%s1494 + $0x30] sm:$0xf]
      %v1508 = vld [vmem:[%s1494 + $0x34] sm:$0xf]
      %v1509 = vld [vmem:[%s1494 + $0x38] sm:$0xf]
      %v1510 = vld [vmem:[%s1494 + $0x3c] sm:$0xf]
      %v1511 = vunpack.c.l.b16 %v1123
      %v1512 = vunpack.c.l.b16 %v1133
      %v1513 = vunpack.c.l.b16 %v1147
      %v1514 = vunpack.c.l.b16 %v1157
      %v1515 = vunpack.c.l.b16 %v1171
      %v1516 = vunpack.c.l.b16 %v1181
      %v1517 = vunpack.c.l.b16 %v1195
      %v1518 = vunpack.c.l.b16 %v1205
      %v1519 = vunpack.c.l.b16 %v1219
      %v1520 = vunpack.c.l.b16 %v1229
      %v1521 = vunpack.c.l.b16 %v1243
      %v1522 = vunpack.c.l.b16 %v1253
      %v1523 = vunpack.c.l.b16 %v1267
      %v1524 = vunpack.c.l.b16 %v1277
      %v1525 = vunpack.c.l.b16 %v1291
      %v1526 = vunpack.c.l.b16 %v1301
      %v1527 = vunpack.c.l.b16 %v1315
      %v1528 = vunpack.c.l.b16 %v1325
      %v1529 = vunpack.c.l.b16 %v1339
      %v1530 = vunpack.c.l.b16 %v1349
      %v1531 = vunpack.c.l.b16 %v1363
      %v1532 = vunpack.c.l.b16 %v1373
      %v1533 = vunpack.c.l.b16 %v1387
      %v1534 = vunpack.c.l.b16 %v1397
      %v1535 = vunpack.c.l.b16 %v1411
      %v1536 = vunpack.c.l.b16 %v1421
      %v1537 = vunpack.c.l.b16 %v1435
      %v1538 = vunpack.c.l.b16 %v1445
      %v1539 = vunpack.c.l.b16 %v1459
      %v1540 = vunpack.c.l.b16 %v1469
      %v1541 = vunpack.c.l.b16 %v1483
      %v1542 = vunpack.c.l.b16 %v1493
      %v1543 = vpack.c.b16 %v1512, %v1511
      %v1544 = vpack.c.b16 %v1514, %v1513
      %v1545 = vpack.c.b16 %v1516, %v1515
      %v1546 = vpack.c.b16 %v1518, %v1517
      %v1547 = vpack.c.b16 %v1520, %v1519
      %v1548 = vpack.c.b16 %v1522, %v1521
      %v1549 = vpack.c.b16 %v1524, %v1523
      %v1550 = vpack.c.b16 %v1526, %v1525
      %v1551 = vpack.c.b16 %v1528, %v1527
      %v1552 = vpack.c.b16 %v1530, %v1529
      %v1553 = vpack.c.b16 %v1532, %v1531
      %v1554 = vpack.c.b16 %v1534, %v1533
      %v1555 = vpack.c.b16 %v1536, %v1535
      %v1556 = vpack.c.b16 %v1538, %v1537
      %v1557 = vpack.c.b16 %v1540, %v1539
      %v1558 = vpack.c.b16 %v1542, %v1541
      %v1591 = vunpack.c.l.b16 %v1495
      %v1592 = vunpack.c.l.b16 %v1496
      %v1593 = vunpack.c.l.b16 %v1497
      %v1594 = vunpack.c.l.b16 %v1498
      %v1595 = vunpack.c.l.b16 %v1499
      %v1596 = vunpack.c.l.b16 %v1500
      %v1597 = vunpack.c.l.b16 %v1501
      %v1598 = vunpack.c.l.b16 %v1502
      %v1599 = vunpack.c.l.b16 %v1503
      %v1600 = vunpack.c.l.b16 %v1504
      %v1601 = vunpack.c.l.b16 %v1505
      %v1602 = vunpack.c.l.b16 %v1506
      %v1603 = vunpack.c.l.b16 %v1507
      %v1604 = vunpack.c.l.b16 %v1508
      %v1605 = vunpack.c.l.b16 %v1509
      %v1606 = vunpack.c.l.b16 %v1510
      %v1607 = vpack.c.b16 %v1592, %v1591
      %v1608 = vpack.c.b16 %v1594, %v1593
      %v1609 = vpack.c.b16 %v1596, %v1595
      %v1610 = vpack.c.b16 %v1598, %v1597
      %v1611 = vpack.c.b16 %v1600, %v1599
      %v1612 = vpack.c.b16 %v1602, %v1601
      %v1613 = vpack.c.b16 %v1604, %v1603
      %v1614 = vpack.c.b16 %v1606, %v1605
      %1623 = vmatprep.subr.bf16.mxu0 0
      %1624 = vmatpush1.bf16.msra.mxu0 %v1614
      %1625 = vmatprep.subr.bf16.mxu0 0
      %1626 = vmatpush1.bf16.msra.mxu0 %v1613
      %1627 = vmatprep.subr.bf16.mxu0 0
      %1628 = vmatpush1.bf16.msra.mxu0 %v1612
      %1629 = vmatprep.subr.bf16.mxu0 0
      %1630 = vmatpush1.bf16.msra.mxu0 %v1611
      %1631 = vmatprep.subr.bf16.mxu0 0
      %1632 = vmatpush1.bf16.msra.mxu0 %v1610
      %1633 = vmatprep.subr.bf16.mxu0 0
      %1634 = vmatpush1.bf16.msra.mxu0 %v1609
      %1635 = vmatprep.subr.bf16.mxu0 0
      %1636 = vmatpush1.bf16.msra.mxu0 %v1608
      %1637 = vmatprep.subr.bf16.mxu0 0
      %1638 = vmatpush1.bf16.msra.mxu0 %v1607
      %1639 = vmatprep.subr.bf16.mxu0 0
      %1640 = vmatpush2.bf16.msra.mxu0 0
      %1641 = vmatprep.subr.bf16.mxu0 0
      %1642 = vmatpush2.bf16.msra.mxu0 0
      %1643 = vmatprep.subr.bf16.mxu0 0
      %1644 = vmatpush2.bf16.msra.mxu0 0
      %1645 = vmatprep.subr.bf16.mxu0 0
      %1646 = vmatpush2.bf16.msra.mxu0 0
      %1647 = vmatprep.subr.bf16.mxu0 0
      %1648 = vmatpush2.bf16.msra.mxu0 0
      %1649 = vmatprep.subr.bf16.mxu0 0
      %1650 = vmatpush2.bf16.msra.mxu0 0
      %1651 = vmatprep.subr.bf16.mxu0 0
      %1652 = vmatpush2.bf16.msra.mxu0 0
      %1653 = vmatprep.subr.bf16.mxu0 0
      %1654 = vmatpush2.bf16.msra.mxu0 0
      %1655 = vmatprep.mubr.bf16.mxu0 0
      %1656 = vmatmul.mubr.bf16.gmra.mxu0 %v1543
      %v1657 = vpop.f32.mrf.mxu0
      %v1658 = vadd.f32 0.0, %v1657
      %v1659 = vpop.f32.mrf.mxu0
      %v1660 = vpop.f32.mrf.mxu0
      %v1661 = vadd.f32 0.0, %v1660
      %v1662 = vpop.f32.mrf.mxu0
      %1663 = vmatprep.mubr.bf16.mxu0 0
      %1664 = vmatmul.mubr.bf16.gmra.mxu0 %v1544
      %v1665 = vpop.f32.mrf.mxu0
      %v1666 = vadd.f32 0.0, %v1665
      %v1667 = vpop.f32.mrf.mxu0
      %v1668 = vpop.f32.mrf.mxu0
      %v1669 = vadd.f32 0.0, %v1668
      %v1670 = vpop.f32.mrf.mxu0
      %1671 = vmatprep.mubr.bf16.mxu0 0
      %1672 = vmatmul.mubr.bf16.gmra.mxu0 %v1545
      %v1673 = vpop.f32.mrf.mxu0
      %v1674 = vadd.f32 0.0, %v1673
      %v1675 = vpop.f32.mrf.mxu0
      %v1676 = vpop.f32.mrf.mxu0
      %v1677 = vadd.f32 0.0, %v1676
      %v1678 = vpop.f32.mrf.mxu0
      %1679 = vmatprep.mubr.bf16.mxu0 0
      %1680 = vmatmul.mubr.bf16.gmra.mxu0 %v1546
      %v1681 = vpop.f32.mrf.mxu0
      %v1682 = vadd.f32 0.0, %v1681
      %v1683 = vpop.f32.mrf.mxu0
      %v1684 = vpop.f32.mrf.mxu0
      %v1685 = vadd.f32 0.0, %v1684
      %v1686 = vpop.f32.mrf.mxu0
      %1687 = vmatprep.mubr.bf16.mxu0 0
      %1688 = vmatmul.mubr.bf16.gmra.mxu0 %v1547
      %v1689 = vpop.f32.mrf.mxu0
      %v1690 = vadd.f32 0.0, %v1689
      %v1691 = vpop.f32.mrf.mxu0
      %v1692 = vpop.f32.mrf.mxu0
      %v1693 = vadd.f32 0.0, %v1692
      %v1694 = vpop.f32.mrf.mxu0
      %1695 = vmatprep.mubr.bf16.mxu0 0
      %1696 = vmatmul.mubr.bf16.gmra.mxu0 %v1548
      %v1697 = vpop.f32.mrf.mxu0
      %v1698 = vadd.f32 0.0, %v1697
      %v1699 = vpop.f32.mrf.mxu0
      %v1700 = vpop.f32.mrf.mxu0
      %v1701 = vadd.f32 0.0, %v1700
      %v1702 = vpop.f32.mrf.mxu0
      %1703 = vmatprep.mubr.bf16.mxu0 0
      %1704 = vmatmul.mubr.bf16.gmra.mxu0 %v1549
      %v1705 = vpop.f32.mrf.mxu0
      %v1706 = vadd.f32 0.0, %v1705
      %v1707 = vpop.f32.mrf.mxu0
      %v1708 = vpop.f32.mrf.mxu0
      %v1709 = vadd.f32 0.0, %v1708
      %v1710 = vpop.f32.mrf.mxu0
      %1711 = vmatprep.mubr.bf16.mxu0 0
      %1712 = vmatmul.mubr.bf16.gmra.mxu0 %v1550
      %v1713 = vpop.f32.mrf.mxu0
      %v1714 = vadd.f32 0.0, %v1713
      %v1715 = vpop.f32.mrf.mxu0
      %v1716 = vpop.f32.mrf.mxu0
      %v1717 = vadd.f32 0.0, %v1716
      %v1718 = vpop.f32.mrf.mxu0
      %1719 = vmatprep.mubr.bf16.mxu0 0
      %1720 = vmatmul.mubr.bf16.gmra.mxu0 %v1551
      %v1721 = vpop.f32.mrf.mxu0
      %v1722 = vadd.f32 0.0, %v1721
      %v1723 = vpop.f32.mrf.mxu0
      %v1724 = vpop.f32.mrf.mxu0
      %v1725 = vadd.f32 0.0, %v1724
      %v1726 = vpop.f32.mrf.mxu0
      %1727 = vmatprep.mubr.bf16.mxu0 0
      %1728 = vmatmul.mubr.bf16.gmra.mxu0 %v1552
      %v1729 = vpop.f32.mrf.mxu0
      %v1730 = vadd.f32 0.0, %v1729
      %v1731 = vpop.f32.mrf.mxu0
      %v1732 = vpop.f32.mrf.mxu0
      %v1733 = vadd.f32 0.0, %v1732
      %v1734 = vpop.f32.mrf.mxu0
      %1735 = vmatprep.mubr.bf16.mxu0 0
      %1736 = vmatmul.mubr.bf16.gmra.mxu0 %v1553
      %v1737 = vpop.f32.mrf.mxu0
      %v1738 = vadd.f32 0.0, %v1737
      %v1739 = vpop.f32.mrf.mxu0
      %v1740 = vpop.f32.mrf.mxu0
      %v1741 = vadd.f32 0.0, %v1740
      %v1742 = vpop.f32.mrf.mxu0
      %1743 = vmatprep.mubr.bf16.mxu0 0
      %1744 = vmatmul.mubr.bf16.gmra.mxu0 %v1554
      %v1745 = vpop.f32.mrf.mxu0
      %v1746 = vadd.f32 0.0, %v1745
      %v1747 = vpop.f32.mrf.mxu0
      %v1748 = vpop.f32.mrf.mxu0
      %v1749 = vadd.f32 0.0, %v1748
      %v1750 = vpop.f32.mrf.mxu0
      %1751 = vmatprep.mubr.bf16.mxu0 0
      %1752 = vmatmul.mubr.bf16.gmra.mxu0 %v1555
      %v1753 = vpop.f32.mrf.mxu0
      %v1754 = vadd.f32 0.0, %v1753
      %v1755 = vpop.f32.mrf.mxu0
      %v1756 = vpop.f32.mrf.mxu0
      %v1757 = vadd.f32 0.0, %v1756
      %v1758 = vpop.f32.mrf.mxu0
      %1759 = vmatprep.mubr.bf16.mxu0 0
      %1760 = vmatmul.mubr.bf16.gmra.mxu0 %v1556
      %v1761 = vpop.f32.mrf.mxu0
      %v1762 = vadd.f32 0.0, %v1761
      %v1763 = vpop.f32.mrf.mxu0
      %v1764 = vpop.f32.mrf.mxu0
      %v1765 = vadd.f32 0.0, %v1764
      %v1766 = vpop.f32.mrf.mxu0
      %1767 = vmatprep.mubr.bf16.mxu0 0
      %1768 = vmatmul.mubr.bf16.gmra.mxu0 %v1557
      %v1769 = vpop.f32.mrf.mxu0
      %v1770 = vadd.f32 0.0, %v1769
      %v1771 = vpop.f32.mrf.mxu0
      %v1772 = vpop.f32.mrf.mxu0
      %v1773 = vadd.f32 0.0, %v1772
      %v1774 = vpop.f32.mrf.mxu0
      %1775 = vmatprep.mubr.bf16.mxu0 0
      %1776 = vmatmul.mubr.bf16.gmra.mxu0 %v1558
      %v1777 = vpop.f32.mrf.mxu0
      %v1778 = vadd.f32 0.0, %v1777
      %v1779 = vpop.f32.mrf.mxu0
      %v1780 = vpop.f32.mrf.mxu0
      %v1781 = vadd.f32 0.0, %v1780
      %v1782 = vpop.f32.mrf.mxu0
      %1783 = vdwg.mxu0
      %v1816 = vunpack.c.l.b16 %v1043
      %v1817 = vunpack.c.l.b16 %v1044
      %v1818 = vunpack.c.l.b16 %v1046
      %v1819 = vunpack.c.l.b16 %v1047
      %v1820 = vunpack.c.l.b16 %v1049
      %v1821 = vunpack.c.l.b16 %v1050
      %v1822 = vunpack.c.l.b16 %v1052
      %v1823 = vunpack.c.l.b16 %v1053
      %v1824 = vunpack.c.l.b16 %v1055
      %v1825 = vunpack.c.l.b16 %v1056
      %v1826 = vunpack.c.l.b16 %v1058
      %v1827 = vunpack.c.l.b16 %v1059
      %v1828 = vunpack.c.l.b16 %v1061
      %v1829 = vunpack.c.l.b16 %v1062
      %v1830 = vunpack.c.l.b16 %v1064
      %v1831 = vunpack.c.l.b16 %v1065
      %v1832 = vunpack.c.l.b16 %v1067
      %v1833 = vunpack.c.l.b16 %v1068
      %v1834 = vunpack.c.l.b16 %v1070
      %v1835 = vunpack.c.l.b16 %v1071
      %v1836 = vunpack.c.l.b16 %v1073
      %v1837 = vunpack.c.l.b16 %v1074
      %v1838 = vunpack.c.l.b16 %v1076
      %v1839 = vunpack.c.l.b16 %v1077
      %v1840 = vunpack.c.l.b16 %v1079
      %v1841 = vunpack.c.l.b16 %v1080
      %v1842 = vunpack.c.l.b16 %v1082
      %v1843 = vunpack.c.l.b16 %v1083
      %v1844 = vunpack.c.l.b16 %v1085
      %v1845 = vunpack.c.l.b16 %v1086
      %v1846 = vunpack.c.l.b16 %v1088
      %v1847 = vunpack.c.l.b16 %v1089
      %v1848 = vpack.c.b16 %v1817, %v1816
      %v1849 = vpack.c.b16 %v1819, %v1818
      %v1850 = vpack.c.b16 %v1821, %v1820
      %v1851 = vpack.c.b16 %v1823, %v1822
      %v1852 = vpack.c.b16 %v1825, %v1824
      %v1853 = vpack.c.b16 %v1827, %v1826
      %v1854 = vpack.c.b16 %v1829, %v1828
      %v1855 = vpack.c.b16 %v1831, %v1830
      %v1856 = vpack.c.b16 %v1833, %v1832
      %v1857 = vpack.c.b16 %v1835, %v1834
      %v1858 = vpack.c.b16 %v1837, %v1836
      %v1859 = vpack.c.b16 %v1839, %v1838
      %v1860 = vpack.c.b16 %v1841, %v1840
      %v1861 = vpack.c.b16 %v1843, %v1842
      %v1862 = vpack.c.b16 %v1845, %v1844
      %v1863 = vpack.c.b16 %v1847, %v1846
      %v1896 = vunpack.c.l.b16 %v1091
      %v1897 = vunpack.c.l.b16 %v1092
      %v1898 = vunpack.c.l.b16 %v1093
      %v1899 = vunpack.c.l.b16 %v1094
      %v1900 = vunpack.c.l.b16 %v1095
      %v1901 = vunpack.c.l.b16 %v1096
      %v1902 = vunpack.c.l.b16 %v1097
      %v1903 = vunpack.c.l.b16 %v1098
      %v1904 = vunpack.c.l.b16 %v1099
      %v1905 = vunpack.c.l.b16 %v1100
      %v1906 = vunpack.c.l.b16 %v1101
      %v1907 = vunpack.c.l.b16 %v1102
      %v1908 = vunpack.c.l.b16 %v1103
      %v1909 = vunpack.c.l.b16 %v1104
      %v1910 = vunpack.c.l.b16 %v1105
      %v1911 = vunpack.c.l.b16 %v1106
      %v1912 = vpack.c.b16 %v1897, %v1896
      %v1913 = vpack.c.b16 %v1899, %v1898
      %v1914 = vpack.c.b16 %v1901, %v1900
      %v1915 = vpack.c.b16 %v1903, %v1902
      %v1916 = vpack.c.b16 %v1905, %v1904
      %v1917 = vpack.c.b16 %v1907, %v1906
      %v1918 = vpack.c.b16 %v1909, %v1908
      %v1919 = vpack.c.b16 %v1911, %v1910
      %1928 = vmatprep.subr.bf16.mxu0 0
      %1929 = vmatpush1.bf16.msra.mxu0 %v1919
      %1930 = vmatprep.subr.bf16.mxu0 0
      %1931 = vmatpush1.bf16.msra.mxu0 %v1918
      %1932 = vmatprep.subr.bf16.mxu0 0
      %1933 = vmatpush1.bf16.msra.mxu0 %v1917
      %1934 = vmatprep.subr.bf16.mxu0 0
      %1935 = vmatpush1.bf16.msra.mxu0 %v1916
      %1936 = vmatprep.subr.bf16.mxu0 0
      %1937 = vmatpush1.bf16.msra.mxu0 %v1915
      %1938 = vmatprep.subr.bf16.mxu0 0
      %1939 = vmatpush1.bf16.msra.mxu0 %v1914
      %1940 = vmatprep.subr.bf16.mxu0 0
      %1941 = vmatpush1.bf16.msra.mxu0 %v1913
      %1942 = vmatprep.subr.bf16.mxu0 0
      %1943 = vmatpush1.bf16.msra.mxu0 %v1912
      %1944 = vmatprep.subr.bf16.mxu0 0
      %1945 = vmatpush2.bf16.msra.mxu0 0
      %1946 = vmatprep.subr.bf16.mxu0 0
      %1947 = vmatpush2.bf16.msra.mxu0 0
      %1948 = vmatprep.subr.bf16.mxu0 0
      %1949 = vmatpush2.bf16.msra.mxu0 0
      %1950 = vmatprep.subr.bf16.mxu0 0
      %1951 = vmatpush2.bf16.msra.mxu0 0
      %1952 = vmatprep.subr.bf16.mxu0 0
      %1953 = vmatpush2.bf16.msra.mxu0 0
      %1954 = vmatprep.subr.bf16.mxu0 0
      %1955 = vmatpush2.bf16.msra.mxu0 0
      %1956 = vmatprep.subr.bf16.mxu0 0
      %1957 = vmatpush2.bf16.msra.mxu0 0
      %1958 = vmatprep.subr.bf16.mxu0 0
      %1959 = vmatpush2.bf16.msra.mxu0 0
      %1960 = vmatprep.mubr.bf16.mxu0 0
      %1961 = vmatmul.mubr.bf16.gmra.mxu0 %v1848
      %v1962 = vpop.f32.mrf.mxu0
      %v1963 = vadd.f32 %v1658, %v1962
      %v1964 = vpop.f32.mrf.mxu0
      %v1965 = vpop.f32.mrf.mxu0
      %v1966 = vadd.f32 %v1661, %v1965
      %v1967 = vpop.f32.mrf.mxu0
      %1968 = vmatprep.mubr.bf16.mxu0 0
      %1969 = vmatmul.mubr.bf16.gmra.mxu0 %v1849
      %v1970 = vpop.f32.mrf.mxu0
      %v1971 = vadd.f32 %v1666, %v1970
      %v1972 = vpop.f32.mrf.mxu0
      %v1973 = vpop.f32.mrf.mxu0
      %v1974 = vadd.f32 %v1669, %v1973
      %v1975 = vpop.f32.mrf.mxu0
      %1976 = vmatprep.mubr.bf16.mxu0 0
      %1977 = vmatmul.mubr.bf16.gmra.mxu0 %v1850
      %v1978 = vpop.f32.mrf.mxu0
      %v1979 = vadd.f32 %v1674, %v1978
      %v1980 = vpop.f32.mrf.mxu0
      %v1981 = vpop.f32.mrf.mxu0
      %v1982 = vadd.f32 %v1677, %v1981
      %v1983 = vpop.f32.mrf.mxu0
      %1984 = vmatprep.mubr.bf16.mxu0 0
      %1985 = vmatmul.mubr.bf16.gmra.mxu0 %v1851
      %v1986 = vpop.f32.mrf.mxu0
      %v1987 = vadd.f32 %v1682, %v1986
      %v1988 = vpop.f32.mrf.mxu0
      %v1989 = vpop.f32.mrf.mxu0
      %v1990 = vadd.f32 %v1685, %v1989
      %v1991 = vpop.f32.mrf.mxu0
      %1992 = vmatprep.mubr.bf16.mxu0 0
      %1993 = vmatmul.mubr.bf16.gmra.mxu0 %v1852
      %v1994 = vpop.f32.mrf.mxu0
      %v1995 = vadd.f32 %v1690, %v1994
      %v1996 = vpop.f32.mrf.mxu0
      %v1997 = vpop.f32.mrf.mxu0
      %v1998 = vadd.f32 %v1693, %v1997
      %v1999 = vpop.f32.mrf.mxu0
      %2000 = vmatprep.mubr.bf16.mxu0 0
      %2001 = vmatmul.mubr.bf16.gmra.mxu0 %v1853
      %v2002 = vpop.f32.mrf.mxu0
      %v2003 = vadd.f32 %v1698, %v2002
      %v2004 = vpop.f32.mrf.mxu0
      %v2005 = vpop.f32.mrf.mxu0
      %v2006 = vadd.f32 %v1701, %v2005
      %v2007 = vpop.f32.mrf.mxu0
      %2008 = vmatprep.mubr.bf16.mxu0 0
      %2009 = vmatmul.mubr.bf16.gmra.mxu0 %v1854
      %v2010 = vpop.f32.mrf.mxu0
      %v2011 = vadd.f32 %v1706, %v2010
      %v2012 = vpop.f32.mrf.mxu0
      %v2013 = vpop.f32.mrf.mxu0
      %v2014 = vadd.f32 %v1709, %v2013
      %v2015 = vpop.f32.mrf.mxu0
      %2016 = vmatprep.mubr.bf16.mxu0 0
      %2017 = vmatmul.mubr.bf16.gmra.mxu0 %v1855
      %v2018 = vpop.f32.mrf.mxu0
      %v2019 = vadd.f32 %v1714, %v2018
      %v2020 = vpop.f32.mrf.mxu0
      %v2021 = vpop.f32.mrf.mxu0
      %v2022 = vadd.f32 %v1717, %v2021
      %v2023 = vpop.f32.mrf.mxu0
      %2024 = vmatprep.mubr.bf16.mxu0 0
      %2025 = vmatmul.mubr.bf16.gmra.mxu0 %v1856
      %v2026 = vpop.f32.mrf.mxu0
      %v2027 = vadd.f32 %v1722, %v2026
      %v2028 = vpop.f32.mrf.mxu0
      %v2029 = vpop.f32.mrf.mxu0
      %v2030 = vadd.f32 %v1725, %v2029
      %v2031 = vpop.f32.mrf.mxu0
      %2032 = vmatprep.mubr.bf16.mxu0 0
      %2033 = vmatmul.mubr.bf16.gmra.mxu0 %v1857
      %v2034 = vpop.f32.mrf.mxu0
      %v2035 = vadd.f32 %v1730, %v2034
      %v2036 = vpop.f32.mrf.mxu0
      %v2037 = vpop.f32.mrf.mxu0
      %v2038 = vadd.f32 %v1733, %v2037
      %v2039 = vpop.f32.mrf.mxu0
      %2040 = vmatprep.mubr.bf16.mxu0 0
      %2041 = vmatmul.mubr.bf16.gmra.mxu0 %v1858
      %v2042 = vpop.f32.mrf.mxu0
      %v2043 = vadd.f32 %v1738, %v2042
      %v2044 = vpop.f32.mrf.mxu0
      %v2045 = vpop.f32.mrf.mxu0
      %v2046 = vadd.f32 %v1741, %v2045
      %v2047 = vpop.f32.mrf.mxu0
      %2048 = vmatprep.mubr.bf16.mxu0 0
      %2049 = vmatmul.mubr.bf16.gmra.mxu0 %v1859
      %v2050 = vpop.f32.mrf.mxu0
      %v2051 = vadd.f32 %v1746, %v2050
      %v2052 = vpop.f32.mrf.mxu0
      %v2053 = vpop.f32.mrf.mxu0
      %v2054 = vadd.f32 %v1749, %v2053
      %v2055 = vpop.f32.mrf.mxu0
      %2056 = vmatprep.mubr.bf16.mxu0 0
      %2057 = vmatmul.mubr.bf16.gmra.mxu0 %v1860
      %v2058 = vpop.f32.mrf.mxu0
      %v2059 = vadd.f32 %v1754, %v2058
      %v2060 = vpop.f32.mrf.mxu0
      %v2061 = vpop.f32.mrf.mxu0
      %v2062 = vadd.f32 %v1757, %v2061
      %v2063 = vpop.f32.mrf.mxu0
      %2064 = vmatprep.mubr.bf16.mxu0 0
      %2065 = vmatmul.mubr.bf16.gmra.mxu0 %v1861
      %v2066 = vpop.f32.mrf.mxu0
      %v2067 = vadd.f32 %v1762, %v2066
      %v2068 = vpop.f32.mrf.mxu0
      %v2069 = vpop.f32.mrf.mxu0
      %v2070 = vadd.f32 %v1765, %v2069
      %v2071 = vpop.f32.mrf.mxu0
      %2072 = vmatprep.mubr.bf16.mxu0 0
      %2073 = vmatmul.mubr.bf16.gmra.mxu0 %v1862
      %v2074 = vpop.f32.mrf.mxu0
      %v2075 = vadd.f32 %v1770, %v2074
      %v2076 = vpop.f32.mrf.mxu0
      %v2077 = vpop.f32.mrf.mxu0
      %v2078 = vadd.f32 %v1773, %v2077
      %v2079 = vpop.f32.mrf.mxu0
      %2080 = vmatprep.mubr.bf16.mxu0 0
      %2081 = vmatmul.mubr.bf16.gmra.mxu0 %v1863
      %v2082 = vpop.f32.mrf.mxu0
      %v2083 = vadd.f32 %v1778, %v2082
      %v2084 = vpop.f32.mrf.mxu0
      %v2085 = vpop.f32.mrf.mxu0
      %v2086 = vadd.f32 %v1781, %v2085
      %v2087 = vpop.f32.mrf.mxu0
      %2088 = vdwg.mxu0
      %vm2105 = vcmask 1042432
      %vm2106 = vcmask 1046532
      %vm2107 = vmor %vm2105, %vm2106
      %v2108 = vrot.slane %v1043, 5
      %v2109 = vrot.slane %v2108, 4
      %v2110 = vrot.slane %v1044, 5
      %v2111 = vsel %vm2107, %v2109, %v2110
      %v2112 = vrot.slane %v2110, 4
      %v2113 = vrot.slane %v1045, 5
      %v2114 = vsel %vm2107, %v2112, %v2113
      %v2115 = vrot.slane %v1046, 5
      %v2116 = vrot.slane %v2115, 4
      %v2117 = vrot.slane %v1047, 5
      %v2118 = vsel %vm2107, %v2116, %v2117
      %v2119 = vrot.slane %v2117, 4
      %v2120 = vrot.slane %v1048, 5
      %v2121 = vsel %vm2107, %v2119, %v2120
      %v2122 = vrot.slane %v1049, 5
      %v2123 = vrot.slane %v2122, 4
      %v2124 = vrot.slane %v1050, 5
      %v2125 = vsel %vm2107, %v2123, %v2124
      %v2126 = vrot.slane %v2124, 4
      %v2127 = vrot.slane %v1051, 5
      %v2128 = vsel %vm2107, %v2126, %v2127
      %v2129 = vrot.slane %v1052, 5
      %v2130 = vrot.slane %v2129, 4
      %v2131 = vrot.slane %v1053, 5
      %v2132 = vsel %vm2107, %v2130, %v2131
      %v2133 = vrot.slane %v2131, 4
      %v2134 = vrot.slane %v1054, 5
      %v2135 = vsel %vm2107, %v2133, %v2134
      %v2136 = vrot.slane %v1055, 5
      %v2137 = vrot.slane %v2136, 4
      %v2138 = vrot.slane %v1056, 5
      %v2139 = vsel %vm2107, %v2137, %v2138
      %v2140 = vrot.slane %v2138, 4
      %v2141 = vrot.slane %v1057, 5
      %v2142 = vsel %vm2107, %v2140, %v2141
      %v2143 = vrot.slane %v1058, 5
      %v2144 = vrot.slane %v2143, 4
      %v2145 = vrot.slane %v1059, 5
      %v2146 = vsel %vm2107, %v2144, %v2145
      %v2147 = vrot.slane %v2145, 4
      %v2148 = vrot.slane %v1060, 5
      %v2149 = vsel %vm2107, %v2147, %v2148
      %v2150 = vrot.slane %v1061, 5
      %v2151 = vrot.slane %v2150, 4
      %v2152 = vrot.slane %v1062, 5
      %v2153 = vsel %vm2107, %v2151, %v2152
      %v2154 = vrot.slane %v2152, 4
      %v2155 = vrot.slane %v1063, 5
      %v2156 = vsel %vm2107, %v2154, %v2155
      %v2157 = vrot.slane %v1064, 5
      %v2158 = vrot.slane %v2157, 4
      %v2159 = vrot.slane %v1065, 5
      %v2160 = vsel %vm2107, %v2158, %v2159
      %v2161 = vrot.slane %v2159, 4
      %v2162 = vrot.slane %v1066, 5
      %v2163 = vsel %vm2107, %v2161, %v2162
      %v2164 = vrot.slane %v1067, 5
      %v2165 = vrot.slane %v2164, 4
      %v2166 = vrot.slane %v1068, 5
      %v2167 = vsel %vm2107, %v2165, %v2166
      %v2168 = vrot.slane %v2166, 4
      %v2169 = vrot.slane %v1069, 5
      %v2170 = vsel %vm2107, %v2168, %v2169
      %v2171 = vrot.slane %v1070, 5
      %v2172 = vrot.slane %v2171, 4
      %v2173 = vrot.slane %v1071, 5
      %v2174 = vsel %vm2107, %v2172, %v2173
      %v2175 = vrot.slane %v2173, 4
      %v2176 = vrot.slane %v1072, 5
      %v2177 = vsel %vm2107, %v2175, %v2176
      %v2178 = vrot.slane %v1073, 5
      %v2179 = vrot.slane %v2178, 4
      %v2180 = vrot.slane %v1074, 5
      %v2181 = vsel %vm2107, %v2179, %v2180
      %v2182 = vrot.slane %v2180, 4
      %v2183 = vrot.slane %v1075, 5
      %v2184 = vsel %vm2107, %v2182, %v2183
      %v2185 = vrot.slane %v1076, 5
      %v2186 = vrot.slane %v2185, 4
      %v2187 = vrot.slane %v1077, 5
      %v2188 = vsel %vm2107, %v2186, %v2187
      %v2189 = vrot.slane %v2187, 4
      %v2190 = vrot.slane %v1078, 5
      %v2191 = vsel %vm2107, %v2189, %v2190
      %v2192 = vrot.slane %v1079, 5
      %v2193 = vrot.slane %v2192, 4
      %v2194 = vrot.slane %v1080, 5
      %v2195 = vsel %vm2107, %v2193, %v2194
      %v2196 = vrot.slane %v2194, 4
      %v2197 = vrot.slane %v1081, 5
      %v2198 = vsel %vm2107, %v2196, %v2197
      %v2199 = vrot.slane %v1082, 5
      %v2200 = vrot.slane %v2199, 4
      %v2201 = vrot.slane %v1083, 5
      %v2202 = vsel %vm2107, %v2200, %v2201
      %v2203 = vrot.slane %v2201, 4
      %v2204 = vrot.slane %v1084, 5
      %v2205 = vsel %vm2107, %v2203, %v2204
      %v2206 = vrot.slane %v1085, 5
      %v2207 = vrot.slane %v2206, 4
      %v2208 = vrot.slane %v1086, 5
      %v2209 = vsel %vm2107, %v2207, %v2208
      %v2210 = vrot.slane %v2208, 4
      %v2211 = vrot.slane %v1087, 5
      %v2212 = vsel %vm2107, %v2210, %v2211
      %v2213 = vrot.slane %v1088, 5
      %v2214 = vrot.slane %v2213, 4
      %v2215 = vrot.slane %v1089, 5
      %v2216 = vsel %vm2107, %v2214, %v2215
      %v2217 = vrot.slane %v2215, 4
      %v2218 = vrot.slane %v1090, 5
      %v2219 = vsel %vm2107, %v2217, %v2218
      %s2220 = scalar_lea.vmem %s1, 128
      %v2221 = vld [vmem:[%s2220] sm:$0xf]
      %v2222 = vld [vmem:[%s2220 + $0x4] sm:$0xf]
      %v2223 = vld [vmem:[%s2220 + $0x8] sm:$0xf]
      %v2224 = vld [vmem:[%s2220 + $0xc] sm:$0xf]
      %v2225 = vld [vmem:[%s2220 + $0x10] sm:$0xf]
      %v2226 = vld [vmem:[%s2220 + $0x14] sm:$0xf]
      %v2227 = vld [vmem:[%s2220 + $0x18] sm:$0xf]
      %v2228 = vld [vmem:[%s2220 + $0x1c] sm:$0xf]
      %v2229 = vld [vmem:[%s2220 + $0x20] sm:$0xf]
      %v2230 = vld [vmem:[%s2220 + $0x24] sm:$0xf]
      %v2231 = vld [vmem:[%s2220 + $0x28] sm:$0xf]
      %v2232 = vld [vmem:[%s2220 + $0x2c] sm:$0xf]
      %v2233 = vld [vmem:[%s2220 + $0x30] sm:$0xf]
      %v2234 = vld [vmem:[%s2220 + $0x34] sm:$0xf]
      %v2235 = vld [vmem:[%s2220 + $0x38] sm:$0xf]
      %v2236 = vld [vmem:[%s2220 + $0x3c] sm:$0xf]
      %v2237 = vunpack.c.l.b16 %v2111
      %v2238 = vunpack.c.l.b16 %v2114
      %v2239 = vunpack.c.l.b16 %v2118
      %v2240 = vunpack.c.l.b16 %v2121
      %v2241 = vunpack.c.l.b16 %v2125
      %v2242 = vunpack.c.l.b16 %v2128
      %v2243 = vunpack.c.l.b16 %v2132
      %v2244 = vunpack.c.l.b16 %v2135
      %v2245 = vunpack.c.l.b16 %v2139
      %v2246 = vunpack.c.l.b16 %v2142
      %v2247 = vunpack.c.l.b16 %v2146
      %v2248 = vunpack.c.l.b16 %v2149
      %v2249 = vunpack.c.l.b16 %v2153
      %v2250 = vunpack.c.l.b16 %v2156
      %v2251 = vunpack.c.l.b16 %v2160
      %v2252 = vunpack.c.l.b16 %v2163
      %v2253 = vunpack.c.l.b16 %v2167
      %v2254 = vunpack.c.l.b16 %v2170
      %v2255 = vunpack.c.l.b16 %v2174
      %v2256 = vunpack.c.l.b16 %v2177
      %v2257 = vunpack.c.l.b16 %v2181
      %v2258 = vunpack.c.l.b16 %v2184
      %v2259 = vunpack.c.l.b16 %v2188
      %v2260 = vunpack.c.l.b16 %v2191
      %v2261 = vunpack.c.l.b16 %v2195
      %v2262 = vunpack.c.l.b16 %v2198
      %v2263 = vunpack.c.l.b16 %v2202
      %v2264 = vunpack.c.l.b16 %v2205
      %v2265 = vunpack.c.l.b16 %v2209
      %v2266 = vunpack.c.l.b16 %v2212
      %v2267 = vunpack.c.l.b16 %v2216
      %v2268 = vunpack.c.l.b16 %v2219
      %v2269 = vpack.c.b16 %v2238, %v2237
      %v2270 = vpack.c.b16 %v2240, %v2239
      %v2271 = vpack.c.b16 %v2242, %v2241
      %v2272 = vpack.c.b16 %v2244, %v2243
      %v2273 = vpack.c.b16 %v2246, %v2245
      %v2274 = vpack.c.b16 %v2248, %v2247
      %v2275 = vpack.c.b16 %v2250, %v2249
      %v2276 = vpack.c.b16 %v2252, %v2251
      %v2277 = vpack.c.b16 %v2254, %v2253
      %v2278 = vpack.c.b16 %v2256, %v2255
      %v2279 = vpack.c.b16 %v2258, %v2257
      %v2280 = vpack.c.b16 %v2260, %v2259
      %v2281 = vpack.c.b16 %v2262, %v2261
      %v2282 = vpack.c.b16 %v2264, %v2263
      %v2283 = vpack.c.b16 %v2266, %v2265
      %v2284 = vpack.c.b16 %v2268, %v2267
      %v2317 = vunpack.c.l.b16 %v2221
      %v2318 = vunpack.c.l.b16 %v2222
      %v2319 = vunpack.c.l.b16 %v2223
      %v2320 = vunpack.c.l.b16 %v2224
      %v2321 = vunpack.c.l.b16 %v2225
      %v2322 = vunpack.c.l.b16 %v2226
      %v2323 = vunpack.c.l.b16 %v2227
      %v2324 = vunpack.c.l.b16 %v2228
      %v2325 = vunpack.c.l.b16 %v2229
      %v2326 = vunpack.c.l.b16 %v2230
      %v2327 = vunpack.c.l.b16 %v2231
      %v2328 = vunpack.c.l.b16 %v2232
      %v2329 = vunpack.c.l.b16 %v2233
      %v2330 = vunpack.c.l.b16 %v2234
      %v2331 = vunpack.c.l.b16 %v2235
      %v2332 = vunpack.c.l.b16 %v2236
      %v2333 = vpack.c.b16 %v2318, %v2317
      %v2334 = vpack.c.b16 %v2320, %v2319
      %v2335 = vpack.c.b16 %v2322, %v2321
      %v2336 = vpack.c.b16 %v2324, %v2323
      %v2337 = vpack.c.b16 %v2326, %v2325
      %v2338 = vpack.c.b16 %v2328, %v2327
      %v2339 = vpack.c.b16 %v2330, %v2329
      %v2340 = vpack.c.b16 %v2332, %v2331
      %2349 = vmatprep.subr.bf16.mxu0 0
      %2350 = vmatpush1.bf16.msra.mxu0 %v2340
      %2351 = vmatprep.subr.bf16.mxu0 0
      %2352 = vmatpush1.bf16.msra.mxu0 %v2339
      %2353 = vmatprep.subr.bf16.mxu0 0
      %2354 = vmatpush1.bf16.msra.mxu0 %v2338
      %2355 = vmatprep.subr.bf16.mxu0 0
      %2356 = vmatpush1.bf16.msra.mxu0 %v2337
      %2357 = vmatprep.subr.bf16.mxu0 0
      %2358 = vmatpush1.bf16.msra.mxu0 %v2336
      %2359 = vmatprep.subr.bf16.mxu0 0
      %2360 = vmatpush1.bf16.msra.mxu0 %v2335
      %2361 = vmatprep.subr.bf16.mxu0 0
      %2362 = vmatpush1.bf16.msra.mxu0 %v2334
      %2363 = vmatprep.subr.bf16.mxu0 0
      %2364 = vmatpush1.bf16.msra.mxu0 %v2333
      %2365 = vmatprep.subr.bf16.mxu0 0
      %2366 = vmatpush2.bf16.msra.mxu0 0
      %2367 = vmatprep.subr.bf16.mxu0 0
      %2368 = vmatpush2.bf16.msra.mxu0 0
      %2369 = vmatprep.subr.bf16.mxu0 0
      %2370 = vmatpush2.bf16.msra.mxu0 0
      %2371 = vmatprep.subr.bf16.mxu0 0
      %2372 = vmatpush2.bf16.msra.mxu0 0
      %2373 = vmatprep.subr.bf16.mxu0 0
      %2374 = vmatpush2.bf16.msra.mxu0 0
      %2375 = vmatprep.subr.bf16.mxu0 0
      %2376 = vmatpush2.bf16.msra.mxu0 0
      %2377 = vmatprep.subr.bf16.mxu0 0
      %2378 = vmatpush2.bf16.msra.mxu0 0
      %2379 = vmatprep.subr.bf16.mxu0 0
      %2380 = vmatpush2.bf16.msra.mxu0 0
      %2381 = vmatprep.mubr.bf16.mxu0 0
      %2382 = vmatmul.mubr.bf16.gmra.mxu0 %v2269
      %v2383 = vpop.f32.mrf.mxu0
      %v2384 = vadd.f32 0.0, %v2383
      %v2385 = vpop.f32.mrf.mxu0
      %v2386 = vpop.f32.mrf.mxu0
      %v2387 = vadd.f32 0.0, %v2386
      %v2388 = vpop.f32.mrf.mxu0
      %2389 = vmatprep.mubr.bf16.mxu0 0
      %2390 = vmatmul.mubr.bf16.gmra.mxu0 %v2270
      %v2391 = vpop.f32.mrf.mxu0
      %v2392 = vadd.f32 0.0, %v2391
      %v2393 = vpop.f32.mrf.mxu0
      %v2394 = vpop.f32.mrf.mxu0
      %v2395 = vadd.f32 0.0, %v2394
      %v2396 = vpop.f32.mrf.mxu0
      %2397 = vmatprep.mubr.bf16.mxu0 0
      %2398 = vmatmul.mubr.bf16.gmra.mxu0 %v2271
      %v2399 = vpop.f32.mrf.mxu0
      %v2400 = vadd.f32 0.0, %v2399
      %v2401 = vpop.f32.mrf.mxu0
      %v2402 = vpop.f32.mrf.mxu0
      %v2403 = vadd.f32 0.0, %v2402
      %v2404 = vpop.f32.mrf.mxu0
      %2405 = vmatprep.mubr.bf16.mxu0 0
      %2406 = vmatmul.mubr.bf16.gmra.mxu0 %v2272
      %v2407 = vpop.f32.mrf.mxu0
      %v2408 = vadd.f32 0.0, %v2407
      %v2409 = vpop.f32.mrf.mxu0
      %v2410 = vpop.f32.mrf.mxu0
      %v2411 = vadd.f32 0.0, %v2410
      %v2412 = vpop.f32.mrf.mxu0
      %2413 = vmatprep.mubr.bf16.mxu0 0
      %2414 = vmatmul.mubr.bf16.gmra.mxu0 %v2273
      %v2415 = vpop.f32.mrf.mxu0
      %v2416 = vadd.f32 0.0, %v2415
      %v2417 = vpop.f32.mrf.mxu0
      %v2418 = vpop.f32.mrf.mxu0
      %v2419 = vadd.f32 0.0, %v2418
      %v2420 = vpop.f32.mrf.mxu0
      %2421 = vmatprep.mubr.bf16.mxu0 0
      %2422 = vmatmul.mubr.bf16.gmra.mxu0 %v2274
      %v2423 = vpop.f32.mrf.mxu0
      %v2424 = vadd.f32 0.0, %v2423
      %v2425 = vpop.f32.mrf.mxu0
      %v2426 = vpop.f32.mrf.mxu0
      %v2427 = vadd.f32 0.0, %v2426
      %v2428 = vpop.f32.mrf.mxu0
      %2429 = vmatprep.mubr.bf16.mxu0 0
      %2430 = vmatmul.mubr.bf16.gmra.mxu0 %v2275
      %v2431 = vpop.f32.mrf.mxu0
      %v2432 = vadd.f32 0.0, %v2431
      %v2433 = vpop.f32.mrf.mxu0
      %v2434 = vpop.f32.mrf.mxu0
      %v2435 = vadd.f32 0.0, %v2434
      %v2436 = vpop.f32.mrf.mxu0
      %2437 = vmatprep.mubr.bf16.mxu0 0
      %2438 = vmatmul.mubr.bf16.gmra.mxu0 %v2276
      %v2439 = vpop.f32.mrf.mxu0
      %v2440 = vadd.f32 0.0, %v2439
      %v2441 = vpop.f32.mrf.mxu0
      %v2442 = vpop.f32.mrf.mxu0
      %v2443 = vadd.f32 0.0, %v2442
      %v2444 = vpop.f32.mrf.mxu0
      %2445 = vmatprep.mubr.bf16.mxu0 0
      %2446 = vmatmul.mubr.bf16.gmra.mxu0 %v2277
      %v2447 = vpop.f32.mrf.mxu0
      %v2448 = vadd.f32 0.0, %v2447
      %v2449 = vpop.f32.mrf.mxu0
      %v2450 = vpop.f32.mrf.mxu0
      %v2451 = vadd.f32 0.0, %v2450
      %v2452 = vpop.f32.mrf.mxu0
      %2453 = vmatprep.mubr.bf16.mxu0 0
      %2454 = vmatmul.mubr.bf16.gmra.mxu0 %v2278
      %v2455 = vpop.f32.mrf.mxu0
      %v2456 = vadd.f32 0.0, %v2455
      %v2457 = vpop.f32.mrf.mxu0
      %v2458 = vpop.f32.mrf.mxu0
      %v2459 = vadd.f32 0.0, %v2458
      %v2460 = vpop.f32.mrf.mxu0
      %2461 = vmatprep.mubr.bf16.mxu0 0
      %2462 = vmatmul.mubr.bf16.gmra.mxu0 %v2279
      %v2463 = vpop.f32.mrf.mxu0
      %v2464 = vadd.f32 0.0, %v2463
      %v2465 = vpop.f32.mrf.mxu0
      %v2466 = vpop.f32.mrf.mxu0
      %v2467 = vadd.f32 0.0, %v2466
      %v2468 = vpop.f32.mrf.mxu0
      %2469 = vmatprep.mubr.bf16.mxu0 0
      %2470 = vmatmul.mubr.bf16.gmra.mxu0 %v2280
      %v2471 = vpop.f32.mrf.mxu0
      %v2472 = vadd.f32 0.0, %v2471
      %v2473 = vpop.f32.mrf.mxu0
      %v2474 = vpop.f32.mrf.mxu0
      %v2475 = vadd.f32 0.0, %v2474
      %v2476 = vpop.f32.mrf.mxu0
      %2477 = vmatprep.mubr.bf16.mxu0 0
      %2478 = vmatmul.mubr.bf16.gmra.mxu0 %v2281
      %v2479 = vpop.f32.mrf.mxu0
      %v2480 = vadd.f32 0.0, %v2479
      %v2481 = vpop.f32.mrf.mxu0
      %v2482 = vpop.f32.mrf.mxu0
      %v2483 = vadd.f32 0.0, %v2482
      %v2484 = vpop.f32.mrf.mxu0
      %2485 = vmatprep.mubr.bf16.mxu0 0
      %2486 = vmatmul.mubr.bf16.gmra.mxu0 %v2282
      %v2487 = vpop.f32.mrf.mxu0
      %v2488 = vadd.f32 0.0, %v2487
      %v2489 = vpop.f32.mrf.mxu0
      %v2490 = vpop.f32.mrf.mxu0
      %v2491 = vadd.f32 0.0, %v2490
      %v2492 = vpop.f32.mrf.mxu0
      %2493 = vmatprep.mubr.bf16.mxu0 0
      %2494 = vmatmul.mubr.bf16.gmra.mxu0 %v2283
      %v2495 = vpop.f32.mrf.mxu0
      %v2496 = vadd.f32 0.0, %v2495
      %v2497 = vpop.f32.mrf.mxu0
      %v2498 = vpop.f32.mrf.mxu0
      %v2499 = vadd.f32 0.0, %v2498
      %v2500 = vpop.f32.mrf.mxu0
      %2501 = vmatprep.mubr.bf16.mxu0 0
      %2502 = vmatmul.mubr.bf16.gmra.mxu0 %v2284
      %v2503 = vpop.f32.mrf.mxu0
      %v2504 = vadd.f32 0.0, %v2503
      %v2505 = vpop.f32.mrf.mxu0
      %v2506 = vpop.f32.mrf.mxu0
      %v2507 = vadd.f32 0.0, %v2506
      %v2508 = vpop.f32.mrf.mxu0
      %2509 = vdwg.mxu0
      %v2510 = vadd.f32 %v1963, %v2384
      %v2511 = vadd.f32 %v1966, %v2387
      %v2512 = vadd.f32 %v1971, %v2392
      %v2513 = vadd.f32 %v1974, %v2395
      %v2514 = vadd.f32 %v1979, %v2400
      %v2515 = vadd.f32 %v1982, %v2403
      %v2516 = vadd.f32 %v1987, %v2408
      %v2517 = vadd.f32 %v1990, %v2411
      %v2518 = vadd.f32 %v1995, %v2416
      %v2519 = vadd.f32 %v1998, %v2419
      %v2520 = vadd.f32 %v2003, %v2424
      %v2521 = vadd.f32 %v2006, %v2427
      %v2522 = vadd.f32 %v2011, %v2432
      %v2523 = vadd.f32 %v2014, %v2435
      %v2524 = vadd.f32 %v2019, %v2440
      %v2525 = vadd.f32 %v2022, %v2443
      %v2526 = vadd.f32 %v2027, %v2448
      %v2527 = vadd.f32 %v2030, %v2451
      %v2528 = vadd.f32 %v2035, %v2456
      %v2529 = vadd.f32 %v2038, %v2459
      %v2530 = vadd.f32 %v2043, %v2464
      %v2531 = vadd.f32 %v2046, %v2467
      %v2532 = vadd.f32 %v2051, %v2472
      %v2533 = vadd.f32 %v2054, %v2475
      %v2534 = vadd.f32 %v2059, %v2480
      %v2535 = vadd.f32 %v2062, %v2483
      %v2536 = vadd.f32 %v2067, %v2488
      %v2537 = vadd.f32 %v2070, %v2491
      %v2538 = vadd.f32 %v2075, %v2496
      %v2539 = vadd.f32 %v2078, %v2499
      %v2540 = vadd.f32 %v2083, %v2504
      %v2541 = vadd.f32 %v2086, %v2507
      %s2542 = sadd.s32 %s1039, 1
      %s2543 = smul.u32 %s2542, 3
      %s2544 = smul.addr %s2543, 4
      %s2545 = scalar_lea.vmem [#allocation2], %s2544
      %v2546 = vld [vmem:[%s2545] sm:$0xf]
      %v2547 = vld [vmem:[%s2545 + $0x4] sm:$0xf]
      %v2548 = vld [vmem:[%s2545 + $0x8] sm:$0x1]
      %v2549 = vld [vmem:[%s2545 + $0xc] sm:$0xf]
      %v2550 = vld [vmem:[%s2545 + $0x10] sm:$0xf]
      %v2551 = vld [vmem:[%s2545 + $0x14] sm:$0x1]
      %v2552 = vld [vmem:[%s2545 + $0x18] sm:$0xf]
      %v2553 = vld [vmem:[%s2545 + $0x1c] sm:$0xf]
      %v2554 = vld [vmem:[%s2545 + $0x20] sm:$0x1]
      %v2555 = vld [vmem:[%s2545 + $0x24] sm:$0xf]
      %v2556 = vld [vmem:[%s2545 + $0x28] sm:$0xf]
      %v2557 = vld [vmem:[%s2545 + $0x2c] sm:$0x1]
      %v2558 = vld [vmem:[%s2545 + $0x30] sm:$0xf]
      %v2559 = vld [vmem:[%s2545 + $0x34] sm:$0xf]
      %v2560 = vld [vmem:[%s2545 + $0x38] sm:$0x1]
      %v2561 = vld [vmem:[%s2545 + $0x3c] sm:$0xf]
      %v2562 = vld [vmem:[%s2545 + $0x40] sm:$0xf]
      %v2563 = vld [vmem:[%s2545 + $0x44] sm:$0x1]
      %v2564 = vld [vmem:[%s2545 + $0x48] sm:$0xf]
      %v2565 = vld [vmem:[%s2545 + $0x4c] sm:$0xf]
      %v2566 = vld [vmem:[%s2545 + $0x50] sm:$0x1]
      %v2567 = vld [vmem:[%s2545 + $0x54] sm:$0xf]
      %v2568 = vld [vmem:[%s2545 + $0x58] sm:$0xf]
      %v2569 = vld [vmem:[%s2545 + $0x5c] sm:$0x1]
      %v2570 = vld [vmem:[%s2545 + $0x60] sm:$0xf]
      %v2571 = vld [vmem:[%s2545 + $0x64] sm:$0xf]
      %v2572 = vld [vmem:[%s2545 + $0x68] sm:$0x1]
      %v2573 = vld [vmem:[%s2545 + $0x6c] sm:$0xf]
      %v2574 = vld [vmem:[%s2545 + $0x70] sm:$0xf]
      %v2575 = vld [vmem:[%s2545 + $0x74] sm:$0x1]
      %v2576 = vld [vmem:[%s2545 + $0x78] sm:$0xf]
      %v2577 = vld [vmem:[%s2545 + $0x7c] sm:$0xf]
      %v2578 = vld [vmem:[%s2545 + $0x80] sm:$0x1]
      %v2579 = vld [vmem:[%s2545 + $0x84] sm:$0xf]
      %v2580 = vld [vmem:[%s2545 + $0x88] sm:$0xf]
      %v2581 = vld [vmem:[%s2545 + $0x8c] sm:$0x1]
      %v2582 = vld [vmem:[%s2545 + $0x90] sm:$0xf]
      %v2583 = vld [vmem:[%s2545 + $0x94] sm:$0xf]
      %v2584 = vld [vmem:[%s2545 + $0x98] sm:$0x1]
      %v2585 = vld [vmem:[%s2545 + $0x9c] sm:$0xf]
      %v2586 = vld [vmem:[%s2545 + $0xa0] sm:$0xf]
      %v2587 = vld [vmem:[%s2545 + $0xa4] sm:$0x1]
      %v2588 = vld [vmem:[%s2545 + $0xa8] sm:$0xf]
      %v2589 = vld [vmem:[%s2545 + $0xac] sm:$0xf]
      %v2590 = vld [vmem:[%s2545 + $0xb0] sm:$0x1]
      %v2591 = vld [vmem:[%s2545 + $0xb4] sm:$0xf]
      %v2592 = vld [vmem:[%s2545 + $0xb8] sm:$0xf]
      %v2593 = vld [vmem:[%s2545 + $0xbc] sm:$0x1]
      %s2594 = scalar_lea.vmem %s1, 192
      %v2595 = vld [vmem:[%s2594] sm:$0xf]
      %v2596 = vld [vmem:[%s2594 + $0x4] sm:$0xf]
      %v2597 = vld [vmem:[%s2594 + $0x8] sm:$0xf]
      %v2598 = vld [vmem:[%s2594 + $0xc] sm:$0xf]
      %v2599 = vld [vmem:[%s2594 + $0x10] sm:$0xf]
      %v2600 = vld [vmem:[%s2594 + $0x14] sm:$0xf]
      %v2601 = vld [vmem:[%s2594 + $0x18] sm:$0xf]
      %v2602 = vld [vmem:[%s2594 + $0x1c] sm:$0xf]
      %v2603 = vld [vmem:[%s2594 + $0x20] sm:$0xf]
      %v2604 = vld [vmem:[%s2594 + $0x24] sm:$0xf]
      %v2605 = vld [vmem:[%s2594 + $0x28] sm:$0xf]
      %v2606 = vld [vmem:[%s2594 + $0x2c] sm:$0xf]
      %v2607 = vld [vmem:[%s2594 + $0x30] sm:$0xf]
      %v2608 = vld [vmem:[%s2594 + $0x34] sm:$0xf]
      %v2609 = vld [vmem:[%s2594 + $0x38] sm:$0xf]
      %v2610 = vld [vmem:[%s2594 + $0x3c] sm:$0xf]
      %v2643 = vunpack.c.l.b16 %v2546
      %v2644 = vunpack.c.l.b16 %v2547
      %v2645 = vunpack.c.l.b16 %v2549
      %v2646 = vunpack.c.l.b16 %v2550
      %v2647 = vunpack.c.l.b16 %v2552
      %v2648 = vunpack.c.l.b16 %v2553
      %v2649 = vunpack.c.l.b16 %v2555
      %v2650 = vunpack.c.l.b16 %v2556
      %v2651 = vunpack.c.l.b16 %v2558
      %v2652 = vunpack.c.l.b16 %v2559
      %v2653 = vunpack.c.l.b16 %v2561
      %v2654 = vunpack.c.l.b16 %v2562
      %v2655 = vunpack.c.l.b16 %v2564
      %v2656 = vunpack.c.l.b16 %v2565
      %v2657 = vunpack.c.l.b16 %v2567
      %v2658 = vunpack.c.l.b16 %v2568
      %v2659 = vunpack.c.l.b16 %v2570
      %v2660 = vunpack.c.l.b16 %v2571
      %v2661 = vunpack.c.l.b16 %v2573
      %v2662 = vunpack.c.l.b16 %v2574
      %v2663 = vunpack.c.l.b16 %v2576
      %v2664 = vunpack.c.l.b16 %v2577
      %v2665 = vunpack.c.l.b16 %v2579
      %v2666 = vunpack.c.l.b16 %v2580
      %v2667 = vunpack.c.l.b16 %v2582
      %v2668 = vunpack.c.l.b16 %v2583
      %v2669 = vunpack.c.l.b16 %v2585
      %v2670 = vunpack.c.l.b16 %v2586
      %v2671 = vunpack.c.l.b16 %v2588
      %v2672 = vunpack.c.l.b16 %v2589
      %v2673 = vunpack.c.l.b16 %v2591
      %v2674 = vunpack.c.l.b16 %v2592
      %v2675 = vpack.c.b16 %v2644, %v2643
      %v2676 = vpack.c.b16 %v2646, %v2645
      %v2677 = vpack.c.b16 %v2648, %v2647
      %v2678 = vpack.c.b16 %v2650, %v2649
      %v2679 = vpack.c.b16 %v2652, %v2651
      %v2680 = vpack.c.b16 %v2654, %v2653
      %v2681 = vpack.c.b16 %v2656, %v2655
      %v2682 = vpack.c.b16 %v2658, %v2657
      %v2683 = vpack.c.b16 %v2660, %v2659
      %v2684 = vpack.c.b16 %v2662, %v2661
      %v2685 = vpack.c.b16 %v2664, %v2663
      %v2686 = vpack.c.b16 %v2666, %v2665
      %v2687 = vpack.c.b16 %v2668, %v2667
      %v2688 = vpack.c.b16 %v2670, %v2669
      %v2689 = vpack.c.b16 %v2672, %v2671
      %v2690 = vpack.c.b16 %v2674, %v2673
      %v2723 = vunpack.c.l.b16 %v2595
      %v2724 = vunpack.c.l.b16 %v2596
      %v2725 = vunpack.c.l.b16 %v2597
      %v2726 = vunpack.c.l.b16 %v2598
      %v2727 = vunpack.c.l.b16 %v2599
      %v2728 = vunpack.c.l.b16 %v2600
      %v2729 = vunpack.c.l.b16 %v2601
      %v2730 = vunpack.c.l.b16 %v2602
      %v2731 = vunpack.c.l.b16 %v2603
      %v2732 = vunpack.c.l.b16 %v2604
      %v2733 = vunpack.c.l.b16 %v2605
      %v2734 = vunpack.c.l.b16 %v2606
      %v2735 = vunpack.c.l.b16 %v2607
      %v2736 = vunpack.c.l.b16 %v2608
      %v2737 = vunpack.c.l.b16 %v2609
      %v2738 = vunpack.c.l.b16 %v2610
      %v2739 = vpack.c.b16 %v2724, %v2723
      %v2740 = vpack.c.b16 %v2726, %v2725
      %v2741 = vpack.c.b16 %v2728, %v2727
      %v2742 = vpack.c.b16 %v2730, %v2729
      %v2743 = vpack.c.b16 %v2732, %v2731
      %v2744 = vpack.c.b16 %v2734, %v2733
      %v2745 = vpack.c.b16 %v2736, %v2735
      %v2746 = vpack.c.b16 %v2738, %v2737
      %2755 = vmatprep.subr.bf16.mxu0 0
      %2756 = vmatpush1.bf16.msra.mxu0 %v2746
      %2757 = vmatprep.subr.bf16.mxu0 0
      %2758 = vmatpush1.bf16.msra.mxu0 %v2745
      %2759 = vmatprep.subr.bf16.mxu0 0
      %2760 = vmatpush1.bf16.msra.mxu0 %v2744
      %2761 = vmatprep.subr.bf16.mxu0 0
      %2762 = vmatpush1.bf16.msra.mxu0 %v2743
      %2763 = vmatprep.subr.bf16.mxu0 0
      %2764 = vmatpush1.bf16.msra.mxu0 %v2742
      %2765 = vmatprep.subr.bf16.mxu0 0
      %2766 = vmatpush1.bf16.msra.mxu0 %v2741
      %2767 = vmatprep.subr.bf16.mxu0 0
      %2768 = vmatpush1.bf16.msra.mxu0 %v2740
      %2769 = vmatprep.subr.bf16.mxu0 0
      %2770 = vmatpush1.bf16.msra.mxu0 %v2739
      %2771 = vmatprep.subr.bf16.mxu0 0
      %2772 = vmatpush2.bf16.msra.mxu0 0
      %2773 = vmatprep.subr.bf16.mxu0 0
      %2774 = vmatpush2.bf16.msra.mxu0 0
      %2775 = vmatprep.subr.bf16.mxu0 0
      %2776 = vmatpush2.bf16.msra.mxu0 0
      %2777 = vmatprep.subr.bf16.mxu0 0
      %2778 = vmatpush2.bf16.msra.mxu0 0
      %2779 = vmatprep.subr.bf16.mxu0 0
      %2780 = vmatpush2.bf16.msra.mxu0 0
      %2781 = vmatprep.subr.bf16.mxu0 0
      %2782 = vmatpush2.bf16.msra.mxu0 0
      %2783 = vmatprep.subr.bf16.mxu0 0
      %2784 = vmatpush2.bf16.msra.mxu0 0
      %2785 = vmatprep.subr.bf16.mxu0 0
      %2786 = vmatpush2.bf16.msra.mxu0 0
      %2787 = vmatprep.mubr.bf16.mxu0 0
      %2788 = vmatmul.mubr.bf16.gmra.mxu0 %v2675
      %v2789 = vpop.f32.mrf.mxu0
      %v2790 = vadd.f32 0.0, %v2789
      %v2791 = vpop.f32.mrf.mxu0
      %v2792 = vpop.f32.mrf.mxu0
      %v2793 = vadd.f32 0.0, %v2792
      %v2794 = vpop.f32.mrf.mxu0
      %2795 = vmatprep.mubr.bf16.mxu0 0
      %2796 = vmatmul.mubr.bf16.gmra.mxu0 %v2676
      %v2797 = vpop.f32.mrf.mxu0
      %v2798 = vadd.f32 0.0, %v2797
      %v2799 = vpop.f32.mrf.mxu0
      %v2800 = vpop.f32.mrf.mxu0
      %v2801 = vadd.f32 0.0, %v2800
      %v2802 = vpop.f32.mrf.mxu0
      %2803 = vmatprep.mubr.bf16.mxu0 0
      %2804 = vmatmul.mubr.bf16.gmra.mxu0 %v2677
      %v2805 = vpop.f32.mrf.mxu0
      %v2806 = vadd.f32 0.0, %v2805
      %v2807 = vpop.f32.mrf.mxu0
      %v2808 = vpop.f32.mrf.mxu0
      %v2809 = vadd.f32 0.0, %v2808
      %v2810 = vpop.f32.mrf.mxu0
      %2811 = vmatprep.mubr.bf16.mxu0 0
      %2812 = vmatmul.mubr.bf16.gmra.mxu0 %v2678
      %v2813 = vpop.f32.mrf.mxu0
      %v2814 = vadd.f32 0.0, %v2813
      %v2815 = vpop.f32.mrf.mxu0
      %v2816 = vpop.f32.mrf.mxu0
      %v2817 = vadd.f32 0.0, %v2816
      %v2818 = vpop.f32.mrf.mxu0
      %2819 = vmatprep.mubr.bf16.mxu0 0
      %2820 = vmatmul.mubr.bf16.gmra.mxu0 %v2679
      %v2821 = vpop.f32.mrf.mxu0
      %v2822 = vadd.f32 0.0, %v2821
      %v2823 = vpop.f32.mrf.mxu0
      %v2824 = vpop.f32.mrf.mxu0
      %v2825 = vadd.f32 0.0, %v2824
      %v2826 = vpop.f32.mrf.mxu0
      %2827 = vmatprep.mubr.bf16.mxu0 0
      %2828 = vmatmul.mubr.bf16.gmra.mxu0 %v2680
      %v2829 = vpop.f32.mrf.mxu0
      %v2830 = vadd.f32 0.0, %v2829
      %v2831 = vpop.f32.mrf.mxu0
      %v2832 = vpop.f32.mrf.mxu0
      %v2833 = vadd.f32 0.0, %v2832
      %v2834 = vpop.f32.mrf.mxu0
      %2835 = vmatprep.mubr.bf16.mxu0 0
      %2836 = vmatmul.mubr.bf16.gmra.mxu0 %v2681
      %v2837 = vpop.f32.mrf.mxu0
      %v2838 = vadd.f32 0.0, %v2837
      %v2839 = vpop.f32.mrf.mxu0
      %v2840 = vpop.f32.mrf.mxu0
      %v2841 = vadd.f32 0.0, %v2840
      %v2842 = vpop.f32.mrf.mxu0
      %2843 = vmatprep.mubr.bf16.mxu0 0
      %2844 = vmatmul.mubr.bf16.gmra.mxu0 %v2682
      %v2845 = vpop.f32.mrf.mxu0
      %v2846 = vadd.f32 0.0, %v2845
      %v2847 = vpop.f32.mrf.mxu0
      %v2848 = vpop.f32.mrf.mxu0
      %v2849 = vadd.f32 0.0, %v2848
      %v2850 = vpop.f32.mrf.mxu0
      %2851 = vmatprep.mubr.bf16.mxu0 0
      %2852 = vmatmul.mubr.bf16.gmra.mxu0 %v2683
      %v2853 = vpop.f32.mrf.mxu0
      %v2854 = vadd.f32 0.0, %v2853
      %v2855 = vpop.f32.mrf.mxu0
      %v2856 = vpop.f32.mrf.mxu0
      %v2857 = vadd.f32 0.0, %v2856
      %v2858 = vpop.f32.mrf.mxu0
      %2859 = vmatprep.mubr.bf16.mxu0 0
      %2860 = vmatmul.mubr.bf16.gmra.mxu0 %v2684
      %v2861 = vpop.f32.mrf.mxu0
      %v2862 = vadd.f32 0.0, %v2861
      %v2863 = vpop.f32.mrf.mxu0
      %v2864 = vpop.f32.mrf.mxu0
      %v2865 = vadd.f32 0.0, %v2864
      %v2866 = vpop.f32.mrf.mxu0
      %2867 = vmatprep.mubr.bf16.mxu0 0
      %2868 = vmatmul.mubr.bf16.gmra.mxu0 %v2685
      %v2869 = vpop.f32.mrf.mxu0
      %v2870 = vadd.f32 0.0, %v2869
      %v2871 = vpop.f32.mrf.mxu0
      %v2872 = vpop.f32.mrf.mxu0
      %v2873 = vadd.f32 0.0, %v2872
      %v2874 = vpop.f32.mrf.mxu0
      %2875 = vmatprep.mubr.bf16.mxu0 0
      %2876 = vmatmul.mubr.bf16.gmra.mxu0 %v2686
      %v2877 = vpop.f32.mrf.mxu0
      %v2878 = vadd.f32 0.0, %v2877
      %v2879 = vpop.f32.mrf.mxu0
      %v2880 = vpop.f32.mrf.mxu0
      %v2881 = vadd.f32 0.0, %v2880
      %v2882 = vpop.f32.mrf.mxu0
      %2883 = vmatprep.mubr.bf16.mxu0 0
      %2884 = vmatmul.mubr.bf16.gmra.mxu0 %v2687
      %v2885 = vpop.f32.mrf.mxu0
      %v2886 = vadd.f32 0.0, %v2885
      %v2887 = vpop.f32.mrf.mxu0
      %v2888 = vpop.f32.mrf.mxu0
      %v2889 = vadd.f32 0.0, %v2888
      %v2890 = vpop.f32.mrf.mxu0
      %2891 = vmatprep.mubr.bf16.mxu0 0
      %2892 = vmatmul.mubr.bf16.gmra.mxu0 %v2688
      %v2893 = vpop.f32.mrf.mxu0
      %v2894 = vadd.f32 0.0, %v2893
      %v2895 = vpop.f32.mrf.mxu0
      %v2896 = vpop.f32.mrf.mxu0
      %v2897 = vadd.f32 0.0, %v2896
      %v2898 = vpop.f32.mrf.mxu0
      %2899 = vmatprep.mubr.bf16.mxu0 0
      %2900 = vmatmul.mubr.bf16.gmra.mxu0 %v2689
      %v2901 = vpop.f32.mrf.mxu0
      %v2902 = vadd.f32 0.0, %v2901
      %v2903 = vpop.f32.mrf.mxu0
      %v2904 = vpop.f32.mrf.mxu0
      %v2905 = vadd.f32 0.0, %v2904
      %v2906 = vpop.f32.mrf.mxu0
      %2907 = vmatprep.mubr.bf16.mxu0 0
      %2908 = vmatmul.mubr.bf16.gmra.mxu0 %v2690
      %v2909 = vpop.f32.mrf.mxu0
      %v2910 = vadd.f32 0.0, %v2909
      %v2911 = vpop.f32.mrf.mxu0
      %v2912 = vpop.f32.mrf.mxu0
      %v2913 = vadd.f32 0.0, %v2912
      %v2914 = vpop.f32.mrf.mxu0
      %2915 = vdwg.mxu0
      %v2916 = vadd.f32 %v2510, %v2790
      %v2917 = vadd.f32 %v2511, %v2793
      %v2918 = vadd.f32 %v2512, %v2798
      %v2919 = vadd.f32 %v2513, %v2801
      %v2920 = vadd.f32 %v2514, %v2806
      %v2921 = vadd.f32 %v2515, %v2809
      %v2922 = vadd.f32 %v2516, %v2814
      %v2923 = vadd.f32 %v2517, %v2817
      %v2924 = vadd.f32 %v2518, %v2822
      %v2925 = vadd.f32 %v2519, %v2825
      %v2926 = vadd.f32 %v2520, %v2830
      %v2927 = vadd.f32 %v2521, %v2833
      %v2928 = vadd.f32 %v2522, %v2838
      %v2929 = vadd.f32 %v2523, %v2841
      %v2930 = vadd.f32 %v2524, %v2846
      %v2931 = vadd.f32 %v2525, %v2849
      %v2932 = vadd.f32 %v2526, %v2854
      %v2933 = vadd.f32 %v2527, %v2857
      %v2934 = vadd.f32 %v2528, %v2862
      %v2935 = vadd.f32 %v2529, %v2865
      %v2936 = vadd.f32 %v2530, %v2870
      %v2937 = vadd.f32 %v2531, %v2873
      %v2938 = vadd.f32 %v2532, %v2878
      %v2939 = vadd.f32 %v2533, %v2881
      %v2940 = vadd.f32 %v2534, %v2886
      %v2941 = vadd.f32 %v2535, %v2889
      %v2942 = vadd.f32 %v2536, %v2894
      %v2943 = vadd.f32 %v2537, %v2897
      %v2944 = vadd.f32 %v2538, %v2902
      %v2945 = vadd.f32 %v2539, %v2905
      %v2946 = vadd.f32 %v2540, %v2910
      %v2947 = vadd.f32 %v2541, %v2913
      %v2949 = vshrl.u32 %v2546, 16
      %v2951 = vrot.slane %v2949, 4
      %v2952 = vshll.u32 %v2546, 16
      %v2954 = vrot.slane %v2952, 5
      %v2955 = vor.u32 %v2951, %v2954
      %v2956 = vrot.slane %v2955, 4
      %v2958 = vshll.u32 %v2547, 16
      %v2960 = vrot.slane %v2958, 5
      %v2961 = vsel %vm1109, %v2956, %v2960
      %v2962 = vshrl.u32 %v2547, 16
      %v2964 = vrot.slane %v2962, 4
      %v2965 = vor.u32 %v2964, %v2960
      %v2966 = vrot.slane %v2965, 4
      %v2968 = vshll.u32 %v2548, 16
      %v2970 = vrot.slane %v2968, 5
      %v2971 = vsel %vm1109, %v2966, %v2970
      %v2973 = vshrl.u32 %v2549, 16
      %v2975 = vrot.slane %v2973, 4
      %v2976 = vshll.u32 %v2549, 16
      %v2978 = vrot.slane %v2976, 5
      %v2979 = vor.u32 %v2975, %v2978
      %v2980 = vrot.slane %v2979, 4
      %v2982 = vshll.u32 %v2550, 16
      %v2984 = vrot.slane %v2982, 5
      %v2985 = vsel %vm1109, %v2980, %v2984
      %v2986 = vshrl.u32 %v2550, 16
      %v2988 = vrot.slane %v2986, 4
      %v2989 = vor.u32 %v2988, %v2984
      %v2990 = vrot.slane %v2989, 4
      %v2992 = vshll.u32 %v2551, 16
      %v2994 = vrot.slane %v2992, 5
      %v2995 = vsel %vm1109, %v2990, %v2994
      %v2997 = vshrl.u32 %v2552, 16
      %v2999 = vrot.slane %v2997, 4
      %v3000 = vshll.u32 %v2552, 16
      %v3002 = vrot.slane %v3000, 5
      %v3003 = vor.u32 %v2999, %v3002
      %v3004 = vrot.slane %v3003, 4
      %v3006 = vshll.u32 %v2553, 16
      %v3008 = vrot.slane %v3006, 5
      %v3009 = vsel %vm1109, %v3004, %v3008
      %v3010 = vshrl.u32 %v2553, 16
      %v3012 = vrot.slane %v3010, 4
      %v3013 = vor.u32 %v3012, %v3008
      %v3014 = vrot.slane %v3013, 4
      %v3016 = vshll.u32 %v2554, 16
      %v3018 = vrot.slane %v3016, 5
      %v3019 = vsel %vm1109, %v3014, %v3018
      %v3021 = vshrl.u32 %v2555, 16
      %v3023 = vrot.slane %v3021, 4
      %v3024 = vshll.u32 %v2555, 16
      %v3026 = vrot.slane %v3024, 5
      %v3027 = vor.u32 %v3023, %v3026
      %v3028 = vrot.slane %v3027, 4
      %v3030 = vshll.u32 %v2556, 16
      %v3032 = vrot.slane %v3030, 5
      %v3033 = vsel %vm1109, %v3028, %v3032
      %v3034 = vshrl.u32 %v2556, 16
      %v3036 = vrot.slane %v3034, 4
      %v3037 = vor.u32 %v3036, %v3032
      %v3038 = vrot.slane %v3037, 4
      %v3040 = vshll.u32 %v2557, 16
      %v3042 = vrot.slane %v3040, 5
      %v3043 = vsel %vm1109, %v3038, %v3042
      %v3045 = vshrl.u32 %v2558, 16
      %v3047 = vrot.slane %v3045, 4
      %v3048 = vshll.u32 %v2558, 16
      %v3050 = vrot.slane %v3048, 5
      %v3051 = vor.u32 %v3047, %v3050
      %v3052 = vrot.slane %v3051, 4
      %v3054 = vshll.u32 %v2559, 16
      %v3056 = vrot.slane %v3054, 5
      %v3057 = vsel %vm1109, %v3052, %v3056
      %v3058 = vshrl.u32 %v2559, 16
      %v3060 = vrot.slane %v3058, 4
      %v3061 = vor.u32 %v3060, %v3056
      %v3062 = vrot.slane %v3061, 4
      %v3064 = vshll.u32 %v2560, 16
      %v3066 = vrot.slane %v3064, 5
      %v3067 = vsel %vm1109, %v3062, %v3066
      %v3069 = vshrl.u32 %v2561, 16
      %v3071 = vrot.slane %v3069, 4
      %v3072 = vshll.u32 %v2561, 16
      %v3074 = vrot.slane %v3072, 5
      %v3075 = vor.u32 %v3071, %v3074
      %v3076 = vrot.slane %v3075, 4
      %v3078 = vshll.u32 %v2562, 16
      %v3080 = vrot.slane %v3078, 5
      %v3081 = vsel %vm1109, %v3076, %v3080
      %v3082 = vshrl.u32 %v2562, 16
      %v3084 = vrot.slane %v3082, 4
      %v3085 = vor.u32 %v3084, %v3080
      %v3086 = vrot.slane %v3085, 4
      %v3088 = vshll.u32 %v2563, 16
      %v3090 = vrot.slane %v3088, 5
      %v3091 = vsel %vm1109, %v3086, %v3090
      %v3093 = vshrl.u32 %v2564, 16
      %v3095 = vrot.slane %v3093, 4
      %v3096 = vshll.u32 %v2564, 16
      %v3098 = vrot.slane %v3096, 5
      %v3099 = vor.u32 %v3095, %v3098
      %v3100 = vrot.slane %v3099, 4
      %v3102 = vshll.u32 %v2565, 16
      %v3104 = vrot.slane %v3102, 5
      %v3105 = vsel %vm1109, %v3100, %v3104
      %v3106 = vshrl.u32 %v2565, 16
      %v3108 = vrot.slane %v3106, 4
      %v3109 = vor.u32 %v3108, %v3104
      %v3110 = vrot.slane %v3109, 4
      %v3112 = vshll.u32 %v2566, 16
      %v3114 = vrot.slane %v3112, 5
      %v3115 = vsel %vm1109, %v3110, %v3114
      %v3117 = vshrl.u32 %v2567, 16
      %v3119 = vrot.slane %v3117, 4
      %v3120 = vshll.u32 %v2567, 16
      %v3122 = vrot.slane %v3120, 5
      %v3123 = vor.u32 %v3119, %v3122
      %v3124 = vrot.slane %v3123, 4
      %v3126 = vshll.u32 %v2568, 16
      %v3128 = vrot.slane %v3126, 5
      %v3129 = vsel %vm1109, %v3124, %v3128
      %v3130 = vshrl.u32 %v2568, 16
      %v3132 = vrot.slane %v3130, 4
      %v3133 = vor.u32 %v3132, %v3128
      %v3134 = vrot.slane %v3133, 4
      %v3136 = vshll.u32 %v2569, 16
      %v3138 = vrot.slane %v3136, 5
      %v3139 = vsel %vm1109, %v3134, %v3138
      %v3141 = vshrl.u32 %v2570, 16
      %v3143 = vrot.slane %v3141, 4
      %v3144 = vshll.u32 %v2570, 16
      %v3146 = vrot.slane %v3144, 5
      %v3147 = vor.u32 %v3143, %v3146
      %v3148 = vrot.slane %v3147, 4
      %v3150 = vshll.u32 %v2571, 16
      %v3152 = vrot.slane %v3150, 5
      %v3153 = vsel %vm1109, %v3148, %v3152
      %v3154 = vshrl.u32 %v2571, 16
      %v3156 = vrot.slane %v3154, 4
      %v3157 = vor.u32 %v3156, %v3152
      %v3158 = vrot.slane %v3157, 4
      %v3160 = vshll.u32 %v2572, 16
      %v3162 = vrot.slane %v3160, 5
      %v3163 = vsel %vm1109, %v3158, %v3162
      %v3165 = vshrl.u32 %v2573, 16
      %v3167 = vrot.slane %v3165, 4
      %v3168 = vshll.u32 %v2573, 16
      %v3170 = vrot.slane %v3168, 5
      %v3171 = vor.u32 %v3167, %v3170
      %v3172 = vrot.slane %v3171, 4
      %v3174 = vshll.u32 %v2574, 16
      %v3176 = vrot.slane %v3174, 5
      %v3177 = vsel %vm1109, %v3172, %v3176
      %v3178 = vshrl.u32 %v2574, 16
      %v3180 = vrot.slane %v3178, 4
      %v3181 = vor.u32 %v3180, %v3176
      %v3182 = vrot.slane %v3181, 4
      %v3184 = vshll.u32 %v2575, 16
      %v3186 = vrot.slane %v3184, 5
      %v3187 = vsel %vm1109, %v3182, %v3186
      %v3189 = vshrl.u32 %v2576, 16
      %v3191 = vrot.slane %v3189, 4
      %v3192 = vshll.u32 %v2576, 16
      %v3194 = vrot.slane %v3192, 5
      %v3195 = vor.u32 %v3191, %v3194
      %v3196 = vrot.slane %v3195, 4
      %v3198 = vshll.u32 %v2577, 16
      %v3200 = vrot.slane %v3198, 5
      %v3201 = vsel %vm1109, %v3196, %v3200
      %v3202 = vshrl.u32 %v2577, 16
      %v3204 = vrot.slane %v3202, 4
      %v3205 = vor.u32 %v3204, %v3200
      %v3206 = vrot.slane %v3205, 4
      %v3208 = vshll.u32 %v2578, 16
      %v3210 = vrot.slane %v3208, 5
      %v3211 = vsel %vm1109, %v3206, %v3210
      %v3213 = vshrl.u32 %v2579, 16
      %v3215 = vrot.slane %v3213, 4
      %v3216 = vshll.u32 %v2579, 16
      %v3218 = vrot.slane %v3216, 5
      %v3219 = vor.u32 %v3215, %v3218
      %v3220 = vrot.slane %v3219, 4
      %v3222 = vshll.u32 %v2580, 16
      %v3224 = vrot.slane %v3222, 5
      %v3225 = vsel %vm1109, %v3220, %v3224
      %v3226 = vshrl.u32 %v2580, 16
      %v3228 = vrot.slane %v3226, 4
      %v3229 = vor.u32 %v3228, %v3224
      %v3230 = vrot.slane %v3229, 4
      %v3232 = vshll.u32 %v2581, 16
      %v3234 = vrot.slane %v3232, 5
      %v3235 = vsel %vm1109, %v3230, %v3234
      %v3237 = vshrl.u32 %v2582, 16
      %v3239 = vrot.slane %v3237, 4
      %v3240 = vshll.u32 %v2582, 16
      %v3242 = vrot.slane %v3240, 5
      %v3243 = vor.u32 %v3239, %v3242
      %v3244 = vrot.slane %v3243, 4
      %v3246 = vshll.u32 %v2583, 16
      %v3248 = vrot.slane %v3246, 5
      %v3249 = vsel %vm1109, %v3244, %v3248
      %v3250 = vshrl.u32 %v2583, 16
      %v3252 = vrot.slane %v3250, 4
      %v3253 = vor.u32 %v3252, %v3248
      %v3254 = vrot.slane %v3253, 4
      %v3256 = vshll.u32 %v2584, 16
      %v3258 = vrot.slane %v3256, 5
      %v3259 = vsel %vm1109, %v3254, %v3258
      %v3261 = vshrl.u32 %v2585, 16
      %v3263 = vrot.slane %v3261, 4
      %v3264 = vshll.u32 %v2585, 16
      %v3266 = vrot.slane %v3264, 5
      %v3267 = vor.u32 %v3263, %v3266
      %v3268 = vrot.slane %v3267, 4
      %v3270 = vshll.u32 %v2586, 16
      %v3272 = vrot.slane %v3270, 5
      %v3273 = vsel %vm1109, %v3268, %v3272
      %v3274 = vshrl.u32 %v2586, 16
      %v3276 = vrot.slane %v3274, 4
      %v3277 = vor.u32 %v3276, %v3272
      %v3278 = vrot.slane %v3277, 4
      %v3280 = vshll.u32 %v2587, 16
      %v3282 = vrot.slane %v3280, 5
      %v3283 = vsel %vm1109, %v3278, %v3282
      %v3285 = vshrl.u32 %v2588, 16
      %v3287 = vrot.slane %v3285, 4
      %v3288 = vshll.u32 %v2588, 16
      %v3290 = vrot.slane %v3288, 5
      %v3291 = vor.u32 %v3287, %v3290
      %v3292 = vrot.slane %v3291, 4
      %v3294 = vshll.u32 %v2589, 16
      %v3296 = vrot.slane %v3294, 5
      %v3297 = vsel %vm1109, %v3292, %v3296
      %v3298 = vshrl.u32 %v2589, 16
      %v3300 = vrot.slane %v3298, 4
      %v3301 = vor.u32 %v3300, %v3296
      %v3302 = vrot.slane %v3301, 4
      %v3304 = vshll.u32 %v2590, 16
      %v3306 = vrot.slane %v3304, 5
      %v3307 = vsel %vm1109, %v3302, %v3306
      %v3309 = vshrl.u32 %v2591, 16
      %v3311 = vrot.slane %v3309, 4
      %v3312 = vshll.u32 %v2591, 16
      %v3314 = vrot.slane %v3312, 5
      %v3315 = vor.u32 %v3311, %v3314
      %v3316 = vrot.slane %v3315, 4
      %v3318 = vshll.u32 %v2592, 16
      %v3320 = vrot.slane %v3318, 5
      %v3321 = vsel %vm1109, %v3316, %v3320
      %v3322 = vshrl.u32 %v2592, 16
      %v3324 = vrot.slane %v3322, 4
      %v3325 = vor.u32 %v3324, %v3320
      %v3326 = vrot.slane %v3325, 4
      %v3328 = vshll.u32 %v2593, 16
      %v3330 = vrot.slane %v3328, 5
      %v3331 = vsel %vm1109, %v3326, %v3330
      %s3332 = scalar_lea.vmem %s1, 256
      %v3333 = vld [vmem:[%s3332] sm:$0xf]
      %v3334 = vld [vmem:[%s3332 + $0x4] sm:$0xf]
      %v3335 = vld [vmem:[%s3332 + $0x8] sm:$0xf]
      %v3336 = vld [vmem:[%s3332 + $0xc] sm:$0xf]
      %v3337 = vld [vmem:[%s3332 + $0x10] sm:$0xf]
      %v3338 = vld [vmem:[%s3332 + $0x14] sm:$0xf]
      %v3339 = vld [vmem:[%s3332 + $0x18] sm:$0xf]
      %v3340 = vld [vmem:[%s3332 + $0x1c] sm:$0xf]
      %v3341 = vld [vmem:[%s3332 + $0x20] sm:$0xf]
      %v3342 = vld [vmem:[%s3332 + $0x24] sm:$0xf]
      %v3343 = vld [vmem:[%s3332 + $0x28] sm:$0xf]
      %v3344 = vld [vmem:[%s3332 + $0x2c] sm:$0xf]
      %v3345 = vld [vmem:[%s3332 + $0x30] sm:$0xf]
      %v3346 = vld [vmem:[%s3332 + $0x34] sm:$0xf]
      %v3347 = vld [vmem:[%s3332 + $0x38] sm:$0xf]
      %v3348 = vld [vmem:[%s3332 + $0x3c] sm:$0xf]
      %v3349 = vunpack.c.l.b16 %v2961
      %v3350 = vunpack.c.l.b16 %v2971
      %v3351 = vunpack.c.l.b16 %v2985
      %v3352 = vunpack.c.l.b16 %v2995
      %v3353 = vunpack.c.l.b16 %v3009
      %v3354 = vunpack.c.l.b16 %v3019
      %v3355 = vunpack.c.l.b16 %v3033
      %v3356 = vunpack.c.l.b16 %v3043
      %v3357 = vunpack.c.l.b16 %v3057
      %v3358 = vunpack.c.l.b16 %v3067
      %v3359 = vunpack.c.l.b16 %v3081
      %v3360 = vunpack.c.l.b16 %v3091
      %v3361 = vunpack.c.l.b16 %v3105
      %v3362 = vunpack.c.l.b16 %v3115
      %v3363 = vunpack.c.l.b16 %v3129
      %v3364 = vunpack.c.l.b16 %v3139
      %v3365 = vunpack.c.l.b16 %v3153
      %v3366 = vunpack.c.l.b16 %v3163
      %v3367 = vunpack.c.l.b16 %v3177
      %v3368 = vunpack.c.l.b16 %v3187
      %v3369 = vunpack.c.l.b16 %v3201
      %v3370 = vunpack.c.l.b16 %v3211
      %v3371 = vunpack.c.l.b16 %v3225
      %v3372 = vunpack.c.l.b16 %v3235
      %v3373 = vunpack.c.l.b16 %v3249
      %v3374 = vunpack.c.l.b16 %v3259
      %v3375 = vunpack.c.l.b16 %v3273
      %v3376 = vunpack.c.l.b16 %v3283
      %v3377 = vunpack.c.l.b16 %v3297
      %v3378 = vunpack.c.l.b16 %v3307
      %v3379 = vunpack.c.l.b16 %v3321
      %v3380 = vunpack.c.l.b16 %v3331
      %v3381 = vpack.c.b16 %v3350, %v3349
      %v3382 = vpack.c.b16 %v3352, %v3351
      %v3383 = vpack.c.b16 %v3354, %v3353
      %v3384 = vpack.c.b16 %v3356, %v3355
      %v3385 = vpack.c.b16 %v3358, %v3357
      %v3386 = vpack.c.b16 %v3360, %v3359
      %v3387 = vpack.c.b16 %v3362, %v3361
      %v3388 = vpack.c.b16 %v3364, %v3363
      %v3389 = vpack.c.b16 %v3366, %v3365
      %v3390 = vpack.c.b16 %v3368, %v3367
      %v3391 = vpack.c.b16 %v3370, %v3369
      %v3392 = vpack.c.b16 %v3372, %v3371
      %v3393 = vpack.c.b16 %v3374, %v3373
      %v3394 = vpack.c.b16 %v3376, %v3375
      %v3395 = vpack.c.b16 %v3378, %v3377
      %v3396 = vpack.c.b16 %v3380, %v3379
      %v3429 = vunpack.c.l.b16 %v3333
      %v3430 = vunpack.c.l.b16 %v3334
      %v3431 = vunpack.c.l.b16 %v3335
      %v3432 = vunpack.c.l.b16 %v3336
      %v3433 = vunpack.c.l.b16 %v3337
      %v3434 = vunpack.c.l.b16 %v3338
      %v3435 = vunpack.c.l.b16 %v3339
      %v3436 = vunpack.c.l.b16 %v3340
      %v3437 = vunpack.c.l.b16 %v3341
      %v3438 = vunpack.c.l.b16 %v3342
      %v3439 = vunpack.c.l.b16 %v3343
      %v3440 = vunpack.c.l.b16 %v3344
      %v3441 = vunpack.c.l.b16 %v3345
      %v3442 = vunpack.c.l.b16 %v3346
      %v3443 = vunpack.c.l.b16 %v3347
      %v3444 = vunpack.c.l.b16 %v3348
      %v3445 = vpack.c.b16 %v3430, %v3429
      %v3446 = vpack.c.b16 %v3432, %v3431
      %v3447 = vpack.c.b16 %v3434, %v3433
      %v3448 = vpack.c.b16 %v3436, %v3435
      %v3449 = vpack.c.b16 %v3438, %v3437
      %v3450 = vpack.c.b16 %v3440, %v3439
      %v3451 = vpack.c.b16 %v3442, %v3441
      %v3452 = vpack.c.b16 %v3444, %v3443
      %3461 = vmatprep.subr.bf16.mxu0 0
      %3462 = vmatpush1.bf16.msra.mxu0 %v3452
      %3463 = vmatprep.subr.bf16.mxu0 0
      %3464 = vmatpush1.bf16.msra.mxu0 %v3451
      %3465 = vmatprep.subr.bf16.mxu0 0
      %3466 = vmatpush1.bf16.msra.mxu0 %v3450
      %3467 = vmatprep.subr.bf16.mxu0 0
      %3468 = vmatpush1.bf16.msra.mxu0 %v3449
      %3469 = vmatprep.subr.bf16.mxu0 0
      %3470 = vmatpush1.bf16.msra.mxu0 %v3448
      %3471 = vmatprep.subr.bf16.mxu0 0
      %3472 = vmatpush1.bf16.msra.mxu0 %v3447
      %3473 = vmatprep.subr.bf16.mxu0 0
      %3474 = vmatpush1.bf16.msra.mxu0 %v3446
      %3475 = vmatprep.subr.bf16.mxu0 0
      %3476 = vmatpush1.bf16.msra.mxu0 %v3445
      %3477 = vmatprep.subr.bf16.mxu0 0
      %3478 = vmatpush2.bf16.msra.mxu0 0
      %3479 = vmatprep.subr.bf16.mxu0 0
      %3480 = vmatpush2.bf16.msra.mxu0 0
      %3481 = vmatprep.subr.bf16.mxu0 0
      %3482 = vmatpush2.bf16.msra.mxu0 0
      %3483 = vmatprep.subr.bf16.mxu0 0
      %3484 = vmatpush2.bf16.msra.mxu0 0
      %3485 = vmatprep.subr.bf16.mxu0 0
      %3486 = vmatpush2.bf16.msra.mxu0 0
      %3487 = vmatprep.subr.bf16.mxu0 0
      %3488 = vmatpush2.bf16.msra.mxu0 0
      %3489 = vmatprep.subr.bf16.mxu0 0
      %3490 = vmatpush2.bf16.msra.mxu0 0
      %3491 = vmatprep.subr.bf16.mxu0 0
      %3492 = vmatpush2.bf16.msra.mxu0 0
      %3493 = vmatprep.mubr.bf16.mxu0 0
      %3494 = vmatmul.mubr.bf16.gmra.mxu0 %v3381
      %v3495 = vpop.f32.mrf.mxu0
      %v3496 = vadd.f32 0.0, %v3495
      %v3497 = vpop.f32.mrf.mxu0
      %v3498 = vpop.f32.mrf.mxu0
      %v3499 = vadd.f32 0.0, %v3498
      %v3500 = vpop.f32.mrf.mxu0
      %3501 = vmatprep.mubr.bf16.mxu0 0
      %3502 = vmatmul.mubr.bf16.gmra.mxu0 %v3382
      %v3503 = vpop.f32.mrf.mxu0
      %v3504 = vadd.f32 0.0, %v3503
      %v3505 = vpop.f32.mrf.mxu0
      %v3506 = vpop.f32.mrf.mxu0
      %v3507 = vadd.f32 0.0, %v3506
      %v3508 = vpop.f32.mrf.mxu0
      %3509 = vmatprep.mubr.bf16.mxu0 0
      %3510 = vmatmul.mubr.bf16.gmra.mxu0 %v3383
      %v3511 = vpop.f32.mrf.mxu0
      %v3512 = vadd.f32 0.0, %v3511
      %v3513 = vpop.f32.mrf.mxu0
      %v3514 = vpop.f32.mrf.mxu0
      %v3515 = vadd.f32 0.0, %v3514
      %v3516 = vpop.f32.mrf.mxu0
      %3517 = vmatprep.mubr.bf16.mxu0 0
      %3518 = vmatmul.mubr.bf16.gmra.mxu0 %v3384
      %v3519 = vpop.f32.mrf.mxu0
      %v3520 = vadd.f32 0.0, %v3519
      %v3521 = vpop.f32.mrf.mxu0
      %v3522 = vpop.f32.mrf.mxu0
      %v3523 = vadd.f32 0.0, %v3522
      %v3524 = vpop.f32.mrf.mxu0
      %3525 = vmatprep.mubr.bf16.mxu0 0
      %3526 = vmatmul.mubr.bf16.gmra.mxu0 %v3385
      %v3527 = vpop.f32.mrf.mxu0
      %v3528 = vadd.f32 0.0, %v3527
      %v3529 = vpop.f32.mrf.mxu0
      %v3530 = vpop.f32.mrf.mxu0
      %v3531 = vadd.f32 0.0, %v3530
      %v3532 = vpop.f32.mrf.mxu0
      %3533 = vmatprep.mubr.bf16.mxu0 0
      %3534 = vmatmul.mubr.bf16.gmra.mxu0 %v3386
      %v3535 = vpop.f32.mrf.mxu0
      %v3536 = vadd.f32 0.0, %v3535
      %v3537 = vpop.f32.mrf.mxu0
      %v3538 = vpop.f32.mrf.mxu0
      %v3539 = vadd.f32 0.0, %v3538
      %v3540 = vpop.f32.mrf.mxu0
      %3541 = vmatprep.mubr.bf16.mxu0 0
      %3542 = vmatmul.mubr.bf16.gmra.mxu0 %v3387
      %v3543 = vpop.f32.mrf.mxu0
      %v3544 = vadd.f32 0.0, %v3543
      %v3545 = vpop.f32.mrf.mxu0
      %v3546 = vpop.f32.mrf.mxu0
      %v3547 = vadd.f32 0.0, %v3546
      %v3548 = vpop.f32.mrf.mxu0
      %3549 = vmatprep.mubr.bf16.mxu0 0
      %3550 = vmatmul.mubr.bf16.gmra.mxu0 %v3388
      %v3551 = vpop.f32.mrf.mxu0
      %v3552 = vadd.f32 0.0, %v3551
      %v3553 = vpop.f32.mrf.mxu0
      %v3554 = vpop.f32.mrf.mxu0
      %v3555 = vadd.f32 0.0, %v3554
      %v3556 = vpop.f32.mrf.mxu0
      %3557 = vmatprep.mubr.bf16.mxu0 0
      %3558 = vmatmul.mubr.bf16.gmra.mxu0 %v3389
      %v3559 = vpop.f32.mrf.mxu0
      %v3560 = vadd.f32 0.0, %v3559
      %v3561 = vpop.f32.mrf.mxu0
      %v3562 = vpop.f32.mrf.mxu0
      %v3563 = vadd.f32 0.0, %v3562
      %v3564 = vpop.f32.mrf.mxu0
      %3565 = vmatprep.mubr.bf16.mxu0 0
      %3566 = vmatmul.mubr.bf16.gmra.mxu0 %v3390
      %v3567 = vpop.f32.mrf.mxu0
      %v3568 = vadd.f32 0.0, %v3567
      %v3569 = vpop.f32.mrf.mxu0
      %v3570 = vpop.f32.mrf.mxu0
      %v3571 = vadd.f32 0.0, %v3570
      %v3572 = vpop.f32.mrf.mxu0
      %3573 = vmatprep.mubr.bf16.mxu0 0
      %3574 = vmatmul.mubr.bf16.gmra.mxu0 %v3391
      %v3575 = vpop.f32.mrf.mxu0
      %v3576 = vadd.f32 0.0, %v3575
      %v3577 = vpop.f32.mrf.mxu0
      %v3578 = vpop.f32.mrf.mxu0
      %v3579 = vadd.f32 0.0, %v3578
      %v3580 = vpop.f32.mrf.mxu0
      %3581 = vmatprep.mubr.bf16.mxu0 0
      %3582 = vmatmul.mubr.bf16.gmra.mxu0 %v3392
      %v3583 = vpop.f32.mrf.mxu0
      %v3584 = vadd.f32 0.0, %v3583
      %v3585 = vpop.f32.mrf.mxu0
      %v3586 = vpop.f32.mrf.mxu0
      %v3587 = vadd.f32 0.0, %v3586
      %v3588 = vpop.f32.mrf.mxu0
      %3589 = vmatprep.mubr.bf16.mxu0 0
      %3590 = vmatmul.mubr.bf16.gmra.mxu0 %v3393
      %v3591 = vpop.f32.mrf.mxu0
      %v3592 = vadd.f32 0.0, %v3591
      %v3593 = vpop.f32.mrf.mxu0
      %v3594 = vpop.f32.mrf.mxu0
      %v3595 = vadd.f32 0.0, %v3594
      %v3596 = vpop.f32.mrf.mxu0
      %3597 = vmatprep.mubr.bf16.mxu0 0
      %3598 = vmatmul.mubr.bf16.gmra.mxu0 %v3394
      %v3599 = vpop.f32.mrf.mxu0
      %v3600 = vadd.f32 0.0, %v3599
      %v3601 = vpop.f32.mrf.mxu0
      %v3602 = vpop.f32.mrf.mxu0
      %v3603 = vadd.f32 0.0, %v3602
      %v3604 = vpop.f32.mrf.mxu0
      %3605 = vmatprep.mubr.bf16.mxu0 0
      %3606 = vmatmul.mubr.bf16.gmra.mxu0 %v3395
      %v3607 = vpop.f32.mrf.mxu0
      %v3608 = vadd.f32 0.0, %v3607
      %v3609 = vpop.f32.mrf.mxu0
      %v3610 = vpop.f32.mrf.mxu0
      %v3611 = vadd.f32 0.0, %v3610
      %v3612 = vpop.f32.mrf.mxu0
      %3613 = vmatprep.mubr.bf16.mxu0 0
      %3614 = vmatmul.mubr.bf16.gmra.mxu0 %v3396
      %v3615 = vpop.f32.mrf.mxu0
      %v3616 = vadd.f32 0.0, %v3615
      %v3617 = vpop.f32.mrf.mxu0
      %v3618 = vpop.f32.mrf.mxu0
      %v3619 = vadd.f32 0.0, %v3618
      %v3620 = vpop.f32.mrf.mxu0
      %3621 = vdwg.mxu0
      %v3622 = vadd.f32 %v2916, %v3496
      %v3623 = vadd.f32 %v2917, %v3499
      %v3624 = vadd.f32 %v2918, %v3504
      %v3625 = vadd.f32 %v2919, %v3507
      %v3626 = vadd.f32 %v2920, %v3512
      %v3627 = vadd.f32 %v2921, %v3515
      %v3628 = vadd.f32 %v2922, %v3520
      %v3629 = vadd.f32 %v2923, %v3523
      %v3630 = vadd.f32 %v2924, %v3528
      %v3631 = vadd.f32 %v2925, %v3531
      %v3632 = vadd.f32 %v2926, %v3536
      %v3633 = vadd.f32 %v2927, %v3539
      %v3634 = vadd.f32 %v2928, %v3544
      %v3635 = vadd.f32 %v2929, %v3547
      %v3636 = vadd.f32 %v2930, %v3552
      %v3637 = vadd.f32 %v2931, %v3555
      %v3638 = vadd.f32 %v2932, %v3560
      %v3639 = vadd.f32 %v2933, %v3563
      %v3640 = vadd.f32 %v2934, %v3568
      %v3641 = vadd.f32 %v2935, %v3571
      %v3642 = vadd.f32 %v2936, %v3576
      %v3643 = vadd.f32 %v2937, %v3579
      %v3644 = vadd.f32 %v2938, %v3584
      %v3645 = vadd.f32 %v2939, %v3587
      %v3646 = vadd.f32 %v2940, %v3592
      %v3647 = vadd.f32 %v2941, %v3595
      %v3648 = vadd.f32 %v2942, %v3600
      %v3649 = vadd.f32 %v2943, %v3603
      %v3650 = vadd.f32 %v2944, %v3608
      %v3651 = vadd.f32 %v2945, %v3611
      %v3652 = vadd.f32 %v2946, %v3616
      %v3653 = vadd.f32 %v2947, %v3619
      %v3670 = vrot.slane %v2546, 5
      %v3671 = vrot.slane %v3670, 4
      %v3672 = vrot.slane %v2547, 5
      %v3673 = vsel %vm2107, %v3671, %v3672
      %v3674 = vrot.slane %v3672, 4
      %v3675 = vrot.slane %v2548, 5
      %v3676 = vsel %vm2107, %v3674, %v3675
      %v3677 = vrot.slane %v2549, 5
      %v3678 = vrot.slane %v3677, 4
      %v3679 = vrot.slane %v2550, 5
      %v3680 = vsel %vm2107, %v3678, %v3679
      %v3681 = vrot.slane %v3679, 4
      %v3682 = vrot.slane %v2551, 5
      %v3683 = vsel %vm2107, %v3681, %v3682
      %v3684 = vrot.slane %v2552, 5
      %v3685 = vrot.slane %v3684, 4
      %v3686 = vrot.slane %v2553, 5
      %v3687 = vsel %vm2107, %v3685, %v3686
      %v3688 = vrot.slane %v3686, 4
      %v3689 = vrot.slane %v2554, 5
      %v3690 = vsel %vm2107, %v3688, %v3689
      %v3691 = vrot.slane %v2555, 5
      %v3692 = vrot.slane %v3691, 4
      %v3693 = vrot.slane %v2556, 5
      %v3694 = vsel %vm2107, %v3692, %v3693
      %v3695 = vrot.slane %v3693, 4
      %v3696 = vrot.slane %v2557, 5
      %v3697 = vsel %vm2107, %v3695, %v3696
      %v3698 = vrot.slane %v2558, 5
      %v3699 = vrot.slane %v3698, 4
      %v3700 = vrot.slane %v2559, 5
      %v3701 = vsel %vm2107, %v3699, %v3700
      %v3702 = vrot.slane %v3700, 4
      %v3703 = vrot.slane %v2560, 5
      %v3704 = vsel %vm2107, %v3702, %v3703
      %v3705 = vrot.slane %v2561, 5
      %v3706 = vrot.slane %v3705, 4
      %v3707 = vrot.slane %v2562, 5
      %v3708 = vsel %vm2107, %v3706, %v3707
      %v3709 = vrot.slane %v3707, 4
      %v3710 = vrot.slane %v2563, 5
      %v3711 = vsel %vm2107, %v3709, %v3710
      %v3712 = vrot.slane %v2564, 5
      %v3713 = vrot.slane %v3712, 4
      %v3714 = vrot.slane %v2565, 5
      %v3715 = vsel %vm2107, %v3713, %v3714
      %v3716 = vrot.slane %v3714, 4
      %v3717 = vrot.slane %v2566, 5
      %v3718 = vsel %vm2107, %v3716, %v3717
      %v3719 = vrot.slane %v2567, 5
      %v3720 = vrot.slane %v3719, 4
      %v3721 = vrot.slane %v2568, 5
      %v3722 = vsel %vm2107, %v3720, %v3721
      %v3723 = vrot.slane %v3721, 4
      %v3724 = vrot.slane %v2569, 5
      %v3725 = vsel %vm2107, %v3723, %v3724
      %v3726 = vrot.slane %v2570, 5
      %v3727 = vrot.slane %v3726, 4
      %v3728 = vrot.slane %v2571, 5
      %v3729 = vsel %vm2107, %v3727, %v3728
      %v3730 = vrot.slane %v3728, 4
      %v3731 = vrot.slane %v2572, 5
      %v3732 = vsel %vm2107, %v3730, %v3731
      %v3733 = vrot.slane %v2573, 5
      %v3734 = vrot.slane %v3733, 4
      %v3735 = vrot.slane %v2574, 5
      %v3736 = vsel %vm2107, %v3734, %v3735
      %v3737 = vrot.slane %v3735, 4
      %v3738 = vrot.slane %v2575, 5
      %v3739 = vsel %vm2107, %v3737, %v3738
      %v3740 = vrot.slane %v2576, 5
      %v3741 = vrot.slane %v3740, 4
      %v3742 = vrot.slane %v2577, 5
      %v3743 = vsel %vm2107, %v3741, %v3742
      %v3744 = vrot.slane %v3742, 4
      %v3745 = vrot.slane %v2578, 5
      %v3746 = vsel %vm2107, %v3744, %v3745
      %v3747 = vrot.slane %v2579, 5
      %v3748 = vrot.slane %v3747, 4
      %v3749 = vrot.slane %v2580, 5
      %v3750 = vsel %vm2107, %v3748, %v3749
      %v3751 = vrot.slane %v3749, 4
      %v3752 = vrot.slane %v2581, 5
      %v3753 = vsel %vm2107, %v3751, %v3752
      %v3754 = vrot.slane %v2582, 5
      %v3755 = vrot.slane %v3754, 4
      %v3756 = vrot.slane %v2583, 5
      %v3757 = vsel %vm2107, %v3755, %v3756
      %v3758 = vrot.slane %v3756, 4
      %v3759 = vrot.slane %v2584, 5
      %v3760 = vsel %vm2107, %v3758, %v3759
      %v3761 = vrot.slane %v2585, 5
      %v3762 = vrot.slane %v3761, 4
      %v3763 = vrot.slane %v2586, 5
      %v3764 = vsel %vm2107, %v3762, %v3763
      %v3765 = vrot.slane %v3763, 4
      %v3766 = vrot.slane %v2587, 5
      %v3767 = vsel %vm2107, %v3765, %v3766
      %v3768 = vrot.slane %v2588, 5
      %v3769 = vrot.slane %v3768, 4
      %v3770 = vrot.slane %v2589, 5
      %v3771 = vsel %vm2107, %v3769, %v3770
      %v3772 = vrot.slane %v3770, 4
      %v3773 = vrot.slane %v2590, 5
      %v3774 = vsel %vm2107, %v3772, %v3773
      %v3775 = vrot.slane %v2591, 5
      %v3776 = vrot.slane %v3775, 4
      %v3777 = vrot.slane %v2592, 5
      %v3778 = vsel %vm2107, %v3776, %v3777
      %v3779 = vrot.slane %v3777, 4
      %v3780 = vrot.slane %v2593, 5
      %v3781 = vsel %vm2107, %v3779, %v3780
      %s3782 = scalar_lea.vmem %s1, 320
      %v3783 = vld [vmem:[%s3782] sm:$0xf]
      %v3784 = vld [vmem:[%s3782 + $0x4] sm:$0xf]
      %v3785 = vld [vmem:[%s3782 + $0x8] sm:$0xf]
      %v3786 = vld [vmem:[%s3782 + $0xc] sm:$0xf]
      %v3787 = vld [vmem:[%s3782 + $0x10] sm:$0xf]
      %v3788 = vld [vmem:[%s3782 + $0x14] sm:$0xf]
      %v3789 = vld [vmem:[%s3782 + $0x18] sm:$0xf]
      %v3790 = vld [vmem:[%s3782 + $0x1c] sm:$0xf]
      %v3791 = vld [vmem:[%s3782 + $0x20] sm:$0xf]
      %v3792 = vld [vmem:[%s3782 + $0x24] sm:$0xf]
      %v3793 = vld [vmem:[%s3782 + $0x28] sm:$0xf]
      %v3794 = vld [vmem:[%s3782 + $0x2c] sm:$0xf]
      %v3795 = vld [vmem:[%s3782 + $0x30] sm:$0xf]
      %v3796 = vld [vmem:[%s3782 + $0x34] sm:$0xf]
      %v3797 = vld [vmem:[%s3782 + $0x38] sm:$0xf]
      %v3798 = vld [vmem:[%s3782 + $0x3c] sm:$0xf]
      %v3799 = vunpack.c.l.b16 %v3673
      %v3800 = vunpack.c.l.b16 %v3676
      %v3801 = vunpack.c.l.b16 %v3680
      %v3802 = vunpack.c.l.b16 %v3683
      %v3803 = vunpack.c.l.b16 %v3687
      %v3804 = vunpack.c.l.b16 %v3690
      %v3805 = vunpack.c.l.b16 %v3694
      %v3806 = vunpack.c.l.b16 %v3697
      %v3807 = vunpack.c.l.b16 %v3701
      %v3808 = vunpack.c.l.b16 %v3704
      %v3809 = vunpack.c.l.b16 %v3708
      %v3810 = vunpack.c.l.b16 %v3711
      %v3811 = vunpack.c.l.b16 %v3715
      %v3812 = vunpack.c.l.b16 %v3718
      %v3813 = vunpack.c.l.b16 %v3722
      %v3814 = vunpack.c.l.b16 %v3725
      %v3815 = vunpack.c.l.b16 %v3729
      %v3816 = vunpack.c.l.b16 %v3732
      %v3817 = vunpack.c.l.b16 %v3736
      %v3818 = vunpack.c.l.b16 %v3739
      %v3819 = vunpack.c.l.b16 %v3743
      %v3820 = vunpack.c.l.b16 %v3746
      %v3821 = vunpack.c.l.b16 %v3750
      %v3822 = vunpack.c.l.b16 %v3753
      %v3823 = vunpack.c.l.b16 %v3757
      %v3824 = vunpack.c.l.b16 %v3760
      %v3825 = vunpack.c.l.b16 %v3764
      %v3826 = vunpack.c.l.b16 %v3767
      %v3827 = vunpack.c.l.b16 %v3771
      %v3828 = vunpack.c.l.b16 %v3774
      %v3829 = vunpack.c.l.b16 %v3778
      %v3830 = vunpack.c.l.b16 %v3781
      %v3831 = vpack.c.b16 %v3800, %v3799
      %v3832 = vpack.c.b16 %v3802, %v3801
      %v3833 = vpack.c.b16 %v3804, %v3803
      %v3834 = vpack.c.b16 %v3806, %v3805
      %v3835 = vpack.c.b16 %v3808, %v3807
      %v3836 = vpack.c.b16 %v3810, %v3809
      %v3837 = vpack.c.b16 %v3812, %v3811
      %v3838 = vpack.c.b16 %v3814, %v3813
      %v3839 = vpack.c.b16 %v3816, %v3815
      %v3840 = vpack.c.b16 %v3818, %v3817
      %v3841 = vpack.c.b16 %v3820, %v3819
      %v3842 = vpack.c.b16 %v3822, %v3821
      %v3843 = vpack.c.b16 %v3824, %v3823
      %v3844 = vpack.c.b16 %v3826, %v3825
      %v3845 = vpack.c.b16 %v3828, %v3827
      %v3846 = vpack.c.b16 %v3830, %v3829
      %v3879 = vunpack.c.l.b16 %v3783
      %v3880 = vunpack.c.l.b16 %v3784
      %v3881 = vunpack.c.l.b16 %v3785
      %v3882 = vunpack.c.l.b16 %v3786
      %v3883 = vunpack.c.l.b16 %v3787
      %v3884 = vunpack.c.l.b16 %v3788
      %v3885 = vunpack.c.l.b16 %v3789
      %v3886 = vunpack.c.l.b16 %v3790
      %v3887 = vunpack.c.l.b16 %v3791
      %v3888 = vunpack.c.l.b16 %v3792
      %v3889 = vunpack.c.l.b16 %v3793
      %v3890 = vunpack.c.l.b16 %v3794
      %v3891 = vunpack.c.l.b16 %v3795
      %v3892 = vunpack.c.l.b16 %v3796
      %v3893 = vunpack.c.l.b16 %v3797
      %v3894 = vunpack.c.l.b16 %v3798
      %v3895 = vpack.c.b16 %v3880, %v3879
      %v3896 = vpack.c.b16 %v3882, %v3881
      %v3897 = vpack.c.b16 %v3884, %v3883
      %v3898 = vpack.c.b16 %v3886, %v3885
      %v3899 = vpack.c.b16 %v3888, %v3887
      %v3900 = vpack.c.b16 %v3890, %v3889
      %v3901 = vpack.c.b16 %v3892, %v3891
      %v3902 = vpack.c.b16 %v3894, %v3893
      %3911 = vmatprep.subr.bf16.mxu0 0
      %3912 = vmatpush1.bf16.msra.mxu0 %v3902
      %3913 = vmatprep.subr.bf16.mxu0 0
      %3914 = vmatpush1.bf16.msra.mxu0 %v3901
      %3915 = vmatprep.subr.bf16.mxu0 0
      %3916 = vmatpush1.bf16.msra.mxu0 %v3900
      %3917 = vmatprep.subr.bf16.mxu0 0
      %3918 = vmatpush1.bf16.msra.mxu0 %v3899
      %3919 = vmatprep.subr.bf16.mxu0 0
      %3920 = vmatpush1.bf16.msra.mxu0 %v3898
      %3921 = vmatprep.subr.bf16.mxu0 0
      %3922 = vmatpush1.bf16.msra.mxu0 %v3897
      %3923 = vmatprep.subr.bf16.mxu0 0
      %3924 = vmatpush1.bf16.msra.mxu0 %v3896
      %3925 = vmatprep.subr.bf16.mxu0 0
      %3926 = vmatpush1.bf16.msra.mxu0 %v3895
      %3927 = vmatprep.subr.bf16.mxu0 0
      %3928 = vmatpush2.bf16.msra.mxu0 0
      %3929 = vmatprep.subr.bf16.mxu0 0
      %3930 = vmatpush2.bf16.msra.mxu0 0
      %3931 = vmatprep.subr.bf16.mxu0 0
      %3932 = vmatpush2.bf16.msra.mxu0 0
      %3933 = vmatprep.subr.bf16.mxu0 0
      %3934 = vmatpush2.bf16.msra.mxu0 0
      %3935 = vmatprep.subr.bf16.mxu0 0
      %3936 = vmatpush2.bf16.msra.mxu0 0
      %3937 = vmatprep.subr.bf16.mxu0 0
      %3938 = vmatpush2.bf16.msra.mxu0 0
      %3939 = vmatprep.subr.bf16.mxu0 0
      %3940 = vmatpush2.bf16.msra.mxu0 0
      %3941 = vmatprep.subr.bf16.mxu0 0
      %3942 = vmatpush2.bf16.msra.mxu0 0
      %3943 = vmatprep.mubr.bf16.mxu0 0
      %3944 = vmatmul.mubr.bf16.gmra.mxu0 %v3831
      %v3945 = vpop.f32.mrf.mxu0
      %v3946 = vadd.f32 0.0, %v3945
      %v3947 = vpop.f32.mrf.mxu0
      %v3948 = vpop.f32.mrf.mxu0
      %v3949 = vadd.f32 0.0, %v3948
      %v3950 = vpop.f32.mrf.mxu0
      %3951 = vmatprep.mubr.bf16.mxu0 0
      %3952 = vmatmul.mubr.bf16.gmra.mxu0 %v3832
      %v3953 = vpop.f32.mrf.mxu0
      %v3954 = vadd.f32 0.0, %v3953
      %v3955 = vpop.f32.mrf.mxu0
      %v3956 = vpop.f32.mrf.mxu0
      %v3957 = vadd.f32 0.0, %v3956
      %v3958 = vpop.f32.mrf.mxu0
      %3959 = vmatprep.mubr.bf16.mxu0 0
      %3960 = vmatmul.mubr.bf16.gmra.mxu0 %v3833
      %v3961 = vpop.f32.mrf.mxu0
      %v3962 = vadd.f32 0.0, %v3961
      %v3963 = vpop.f32.mrf.mxu0
      %v3964 = vpop.f32.mrf.mxu0
      %v3965 = vadd.f32 0.0, %v3964
      %v3966 = vpop.f32.mrf.mxu0
      %3967 = vmatprep.mubr.bf16.mxu0 0
      %3968 = vmatmul.mubr.bf16.gmra.mxu0 %v3834
      %v3969 = vpop.f32.mrf.mxu0
      %v3970 = vadd.f32 0.0, %v3969
      %v3971 = vpop.f32.mrf.mxu0
      %v3972 = vpop.f32.mrf.mxu0
      %v3973 = vadd.f32 0.0, %v3972
      %v3974 = vpop.f32.mrf.mxu0
      %3975 = vmatprep.mubr.bf16.mxu0 0
      %3976 = vmatmul.mubr.bf16.gmra.mxu0 %v3835
      %v3977 = vpop.f32.mrf.mxu0
      %v3978 = vadd.f32 0.0, %v3977
      %v3979 = vpop.f32.mrf.mxu0
      %v3980 = vpop.f32.mrf.mxu0
      %v3981 = vadd.f32 0.0, %v3980
      %v3982 = vpop.f32.mrf.mxu0
      %3983 = vmatprep.mubr.bf16.mxu0 0
      %3984 = vmatmul.mubr.bf16.gmra.mxu0 %v3836
      %v3985 = vpop.f32.mrf.mxu0
      %v3986 = vadd.f32 0.0, %v3985
      %v3987 = vpop.f32.mrf.mxu0
      %v3988 = vpop.f32.mrf.mxu0
      %v3989 = vadd.f32 0.0, %v3988
      %v3990 = vpop.f32.mrf.mxu0
      %3991 = vmatprep.mubr.bf16.mxu0 0
      %3992 = vmatmul.mubr.bf16.gmra.mxu0 %v3837
      %v3993 = vpop.f32.mrf.mxu0
      %v3994 = vadd.f32 0.0, %v3993
      %v3995 = vpop.f32.mrf.mxu0
      %v3996 = vpop.f32.mrf.mxu0
      %v3997 = vadd.f32 0.0, %v3996
      %v3998 = vpop.f32.mrf.mxu0
      %3999 = vmatprep.mubr.bf16.mxu0 0
      %4000 = vmatmul.mubr.bf16.gmra.mxu0 %v3838
      %v4001 = vpop.f32.mrf.mxu0
      %v4002 = vadd.f32 0.0, %v4001
      %v4003 = vpop.f32.mrf.mxu0
      %v4004 = vpop.f32.mrf.mxu0
      %v4005 = vadd.f32 0.0, %v4004
      %v4006 = vpop.f32.mrf.mxu0
      %4007 = vmatprep.mubr.bf16.mxu0 0
      %4008 = vmatmul.mubr.bf16.gmra.mxu0 %v3839
      %v4009 = vpop.f32.mrf.mxu0
      %v4010 = vadd.f32 0.0, %v4009
      %v4011 = vpop.f32.mrf.mxu0
      %v4012 = vpop.f32.mrf.mxu0
      %v4013 = vadd.f32 0.0, %v4012
      %v4014 = vpop.f32.mrf.mxu0
      %4015 = vmatprep.mubr.bf16.mxu0 0
      %4016 = vmatmul.mubr.bf16.gmra.mxu0 %v3840
      %v4017 = vpop.f32.mrf.mxu0
      %v4018 = vadd.f32 0.0, %v4017
      %v4019 = vpop.f32.mrf.mxu0
      %v4020 = vpop.f32.mrf.mxu0
      %v4021 = vadd.f32 0.0, %v4020
      %v4022 = vpop.f32.mrf.mxu0
      %4023 = vmatprep.mubr.bf16.mxu0 0
      %4024 = vmatmul.mubr.bf16.gmra.mxu0 %v3841
      %v4025 = vpop.f32.mrf.mxu0
      %v4026 = vadd.f32 0.0, %v4025
      %v4027 = vpop.f32.mrf.mxu0
      %v4028 = vpop.f32.mrf.mxu0
      %v4029 = vadd.f32 0.0, %v4028
      %v4030 = vpop.f32.mrf.mxu0
      %4031 = vmatprep.mubr.bf16.mxu0 0
      %4032 = vmatmul.mubr.bf16.gmra.mxu0 %v3842
      %v4033 = vpop.f32.mrf.mxu0
      %v4034 = vadd.f32 0.0, %v4033
      %v4035 = vpop.f32.mrf.mxu0
      %v4036 = vpop.f32.mrf.mxu0
      %v4037 = vadd.f32 0.0, %v4036
      %v4038 = vpop.f32.mrf.mxu0
      %4039 = vmatprep.mubr.bf16.mxu0 0
      %4040 = vmatmul.mubr.bf16.gmra.mxu0 %v3843
      %v4041 = vpop.f32.mrf.mxu0
      %v4042 = vadd.f32 0.0, %v4041
      %v4043 = vpop.f32.mrf.mxu0
      %v4044 = vpop.f32.mrf.mxu0
      %v4045 = vadd.f32 0.0, %v4044
      %v4046 = vpop.f32.mrf.mxu0
      %4047 = vmatprep.mubr.bf16.mxu0 0
      %4048 = vmatmul.mubr.bf16.gmra.mxu0 %v3844
      %v4049 = vpop.f32.mrf.mxu0
      %v4050 = vadd.f32 0.0, %v4049
      %v4051 = vpop.f32.mrf.mxu0
      %v4052 = vpop.f32.mrf.mxu0
      %v4053 = vadd.f32 0.0, %v4052
      %v4054 = vpop.f32.mrf.mxu0
      %4055 = vmatprep.mubr.bf16.mxu0 0
      %4056 = vmatmul.mubr.bf16.gmra.mxu0 %v3845
      %v4057 = vpop.f32.mrf.mxu0
      %v4058 = vadd.f32 0.0, %v4057
      %v4059 = vpop.f32.mrf.mxu0
      %v4060 = vpop.f32.mrf.mxu0
      %v4061 = vadd.f32 0.0, %v4060
      %v4062 = vpop.f32.mrf.mxu0
      %4063 = vmatprep.mubr.bf16.mxu0 0
      %4064 = vmatmul.mubr.bf16.gmra.mxu0 %v3846
      %v4065 = vpop.f32.mrf.mxu0
      %v4066 = vadd.f32 0.0, %v4065
      %v4067 = vpop.f32.mrf.mxu0
      %v4068 = vpop.f32.mrf.mxu0
      %v4069 = vadd.f32 0.0, %v4068
      %v4070 = vpop.f32.mrf.mxu0
      %4071 = vdwg.mxu0
      %v4072 = vadd.f32 %v3622, %v3946
      %v4073 = vadd.f32 %v3623, %v3949
      %v4074 = vadd.f32 %v3624, %v3954
      %v4075 = vadd.f32 %v3625, %v3957
      %v4076 = vadd.f32 %v3626, %v3962
      %v4077 = vadd.f32 %v3627, %v3965
      %v4078 = vadd.f32 %v3628, %v3970
      %v4079 = vadd.f32 %v3629, %v3973
      %v4080 = vadd.f32 %v3630, %v3978
      %v4081 = vadd.f32 %v3631, %v3981
      %v4082 = vadd.f32 %v3632, %v3986
      %v4083 = vadd.f32 %v3633, %v3989
      %v4084 = vadd.f32 %v3634, %v3994
      %v4085 = vadd.f32 %v3635, %v3997
      %v4086 = vadd.f32 %v3636, %v4002
      %v4087 = vadd.f32 %v3637, %v4005
      %v4088 = vadd.f32 %v3638, %v4010
      %v4089 = vadd.f32 %v3639, %v4013
      %v4090 = vadd.f32 %v3640, %v4018
      %v4091 = vadd.f32 %v3641, %v4021
      %v4092 = vadd.f32 %v3642, %v4026
      %v4093 = vadd.f32 %v3643, %v4029
      %v4094 = vadd.f32 %v3644, %v4034
      %v4095 = vadd.f32 %v3645, %v4037
      %v4096 = vadd.f32 %v3646, %v4042
      %v4097 = vadd.f32 %v3647, %v4045
      %v4098 = vadd.f32 %v3648, %v4050
      %v4099 = vadd.f32 %v3649, %v4053
      %v4100 = vadd.f32 %v3650, %v4058
      %v4101 = vadd.f32 %v3651, %v4061
      %v4102 = vadd.f32 %v3652, %v4066
      %v4103 = vadd.f32 %v3653, %v4069
      %s4104 = sadd.s32 %s1039, 2
      %s4105 = smul.u32 %s4104, 3
      %s4106 = smul.addr %s4105, 4
      %s4107 = scalar_lea.vmem [#allocation2], %s4106
      %v4108 = vld [vmem:[%s4107] sm:$0xf]
      %v4109 = vld [vmem:[%s4107 + $0x4] sm:$0xf]
      %v4110 = vld [vmem:[%s4107 + $0x8] sm:$0x1]
      %v4111 = vld [vmem:[%s4107 + $0xc] sm:$0xf]
      %v4112 = vld [vmem:[%s4107 + $0x10] sm:$0xf]
      %v4113 = vld [vmem:[%s4107 + $0x14] sm:$0x1]
      %v4114 = vld [vmem:[%s4107 + $0x18] sm:$0xf]
      %v4115 = vld [vmem:[%s4107 + $0x1c] sm:$0xf]
      %v4116 = vld [vmem:[%s4107 + $0x20] sm:$0x1]
      %v4117 = vld [vmem:[%s4107 + $0x24] sm:$0xf]
      %v4118 = vld [vmem:[%s4107 + $0x28] sm:$0xf]
      %v4119 = vld [vmem:[%s4107 + $0x2c] sm:$0x1]
      %v4120 = vld [vmem:[%s4107 + $0x30] sm:$0xf]
      %v4121 = vld [vmem:[%s4107 + $0x34] sm:$0xf]
      %v4122 = vld [vmem:[%s4107 + $0x38] sm:$0x1]
      %v4123 = vld [vmem:[%s4107 + $0x3c] sm:$0xf]
      %v4124 = vld [vmem:[%s4107 + $0x40] sm:$0xf]
      %v4125 = vld [vmem:[%s4107 + $0x44] sm:$0x1]
      %v4126 = vld [vmem:[%s4107 + $0x48] sm:$0xf]
      %v4127 = vld [vmem:[%s4107 + $0x4c] sm:$0xf]
      %v4128 = vld [vmem:[%s4107 + $0x50] sm:$0x1]
      %v4129 = vld [vmem:[%s4107 + $0x54] sm:$0xf]
      %v4130 = vld [vmem:[%s4107 + $0x58] sm:$0xf]
      %v4131 = vld [vmem:[%s4107 + $0x5c] sm:$0x1]
      %v4132 = vld [vmem:[%s4107 + $0x60] sm:$0xf]
      %v4133 = vld [vmem:[%s4107 + $0x64] sm:$0xf]
      %v4134 = vld [vmem:[%s4107 + $0x68] sm:$0x1]
      %v4135 = vld [vmem:[%s4107 + $0x6c] sm:$0xf]
      %v4136 = vld [vmem:[%s4107 + $0x70] sm:$0xf]
      %v4137 = vld [vmem:[%s4107 + $0x74] sm:$0x1]
      %v4138 = vld [vmem:[%s4107 + $0x78] sm:$0xf]
      %v4139 = vld [vmem:[%s4107 + $0x7c] sm:$0xf]
      %v4140 = vld [vmem:[%s4107 + $0x80] sm:$0x1]
      %v4141 = vld [vmem:[%s4107 + $0x84] sm:$0xf]
      %v4142 = vld [vmem:[%s4107 + $0x88] sm:$0xf]
      %v4143 = vld [vmem:[%s4107 + $0x8c] sm:$0x1]
      %v4144 = vld [vmem:[%s4107 + $0x90] sm:$0xf]
      %v4145 = vld [vmem:[%s4107 + $0x94] sm:$0xf]
      %v4146 = vld [vmem:[%s4107 + $0x98] sm:$0x1]
      %v4147 = vld [vmem:[%s4107 + $0x9c] sm:$0xf]
      %v4148 = vld [vmem:[%s4107 + $0xa0] sm:$0xf]
      %v4149 = vld [vmem:[%s4107 + $0xa4] sm:$0x1]
      %v4150 = vld [vmem:[%s4107 + $0xa8] sm:$0xf]
      %v4151 = vld [vmem:[%s4107 + $0xac] sm:$0xf]
      %v4152 = vld [vmem:[%s4107 + $0xb0] sm:$0x1]
      %v4153 = vld [vmem:[%s4107 + $0xb4] sm:$0xf]
      %v4154 = vld [vmem:[%s4107 + $0xb8] sm:$0xf]
      %v4155 = vld [vmem:[%s4107 + $0xbc] sm:$0x1]
      %s4156 = scalar_lea.vmem %s1, 384
      %v4157 = vld [vmem:[%s4156] sm:$0xf]
      %v4158 = vld [vmem:[%s4156 + $0x4] sm:$0xf]
      %v4159 = vld [vmem:[%s4156 + $0x8] sm:$0xf]
      %v4160 = vld [vmem:[%s4156 + $0xc] sm:$0xf]
      %v4161 = vld [vmem:[%s4156 + $0x10] sm:$0xf]
      %v4162 = vld [vmem:[%s4156 + $0x14] sm:$0xf]
      %v4163 = vld [vmem:[%s4156 + $0x18] sm:$0xf]
      %v4164 = vld [vmem:[%s4156 + $0x1c] sm:$0xf]
      %v4165 = vld [vmem:[%s4156 + $0x20] sm:$0xf]
      %v4166 = vld [vmem:[%s4156 + $0x24] sm:$0xf]
      %v4167 = vld [vmem:[%s4156 + $0x28] sm:$0xf]
      %v4168 = vld [vmem:[%s4156 + $0x2c] sm:$0xf]
      %v4169 = vld [vmem:[%s4156 + $0x30] sm:$0xf]
      %v4170 = vld [vmem:[%s4156 + $0x34] sm:$0xf]
      %v4171 = vld [vmem:[%s4156 + $0x38] sm:$0xf]
      %v4172 = vld [vmem:[%s4156 + $0x3c] sm:$0xf]
      %v4205 = vunpack.c.l.b16 %v4108
      %v4206 = vunpack.c.l.b16 %v4109
      %v4207 = vunpack.c.l.b16 %v4111
      %v4208 = vunpack.c.l.b16 %v4112
      %v4209 = vunpack.c.l.b16 %v4114
      %v4210 = vunpack.c.l.b16 %v4115
      %v4211 = vunpack.c.l.b16 %v4117
      %v4212 = vunpack.c.l.b16 %v4118
      %v4213 = vunpack.c.l.b16 %v4120
      %v4214 = vunpack.c.l.b16 %v4121
      %v4215 = vunpack.c.l.b16 %v4123
      %v4216 = vunpack.c.l.b16 %v4124
      %v4217 = vunpack.c.l.b16 %v4126
      %v4218 = vunpack.c.l.b16 %v4127
      %v4219 = vunpack.c.l.b16 %v4129
      %v4220 = vunpack.c.l.b16 %v4130
      %v4221 = vunpack.c.l.b16 %v4132
      %v4222 = vunpack.c.l.b16 %v4133
      %v4223 = vunpack.c.l.b16 %v4135
      %v4224 = vunpack.c.l.b16 %v4136
      %v4225 = vunpack.c.l.b16 %v4138
      %v4226 = vunpack.c.l.b16 %v4139
      %v4227 = vunpack.c.l.b16 %v4141
      %v4228 = vunpack.c.l.b16 %v4142
      %v4229 = vunpack.c.l.b16 %v4144
      %v4230 = vunpack.c.l.b16 %v4145
      %v4231 = vunpack.c.l.b16 %v4147
      %v4232 = vunpack.c.l.b16 %v4148
      %v4233 = vunpack.c.l.b16 %v4150
      %v4234 = vunpack.c.l.b16 %v4151
      %v4235 = vunpack.c.l.b16 %v4153
      %v4236 = vunpack.c.l.b16 %v4154
      %v4237 = vpack.c.b16 %v4206, %v4205
      %v4238 = vpack.c.b16 %v4208, %v4207
      %v4239 = vpack.c.b16 %v4210, %v4209
      %v4240 = vpack.c.b16 %v4212, %v4211
      %v4241 = vpack.c.b16 %v4214, %v4213
      %v4242 = vpack.c.b16 %v4216, %v4215
      %v4243 = vpack.c.b16 %v4218, %v4217
      %v4244 = vpack.c.b16 %v4220, %v4219
      %v4245 = vpack.c.b16 %v4222, %v4221
      %v4246 = vpack.c.b16 %v4224, %v4223
      %v4247 = vpack.c.b16 %v4226, %v4225
      %v4248 = vpack.c.b16 %v4228, %v4227
      %v4249 = vpack.c.b16 %v4230, %v4229
      %v4250 = vpack.c.b16 %v4232, %v4231
      %v4251 = vpack.c.b16 %v4234, %v4233
      %v4252 = vpack.c.b16 %v4236, %v4235
      %v4285 = vunpack.c.l.b16 %v4157
      %v4286 = vunpack.c.l.b16 %v4158
      %v4287 = vunpack.c.l.b16 %v4159
      %v4288 = vunpack.c.l.b16 %v4160
      %v4289 = vunpack.c.l.b16 %v4161
      %v4290 = vunpack.c.l.b16 %v4162
      %v4291 = vunpack.c.l.b16 %v4163
      %v4292 = vunpack.c.l.b16 %v4164
      %v4293 = vunpack.c.l.b16 %v4165
      %v4294 = vunpack.c.l.b16 %v4166
      %v4295 = vunpack.c.l.b16 %v4167
      %v4296 = vunpack.c.l.b16 %v4168
      %v4297 = vunpack.c.l.b16 %v4169
      %v4298 = vunpack.c.l.b16 %v4170
      %v4299 = vunpack.c.l.b16 %v4171
      %v4300 = vunpack.c.l.b16 %v4172
      %v4301 = vpack.c.b16 %v4286, %v4285
      %v4302 = vpack.c.b16 %v4288, %v4287
      %v4303 = vpack.c.b16 %v4290, %v4289
      %v4304 = vpack.c.b16 %v4292, %v4291
      %v4305 = vpack.c.b16 %v4294, %v4293
      %v4306 = vpack.c.b16 %v4296, %v4295
      %v4307 = vpack.c.b16 %v4298, %v4297
      %v4308 = vpack.c.b16 %v4300, %v4299
      %4317 = vmatprep.subr.bf16.mxu0 0
      %4318 = vmatpush1.bf16.msra.mxu0 %v4308
      %4319 = vmatprep.subr.bf16.mxu0 0
      %4320 = vmatpush1.bf16.msra.mxu0 %v4307
      %4321 = vmatprep.subr.bf16.mxu0 0
      %4322 = vmatpush1.bf16.msra.mxu0 %v4306
      %4323 = vmatprep.subr.bf16.mxu0 0
      %4324 = vmatpush1.bf16.msra.mxu0 %v4305
      %4325 = vmatprep.subr.bf16.mxu0 0
      %4326 = vmatpush1.bf16.msra.mxu0 %v4304
      %4327 = vmatprep.subr.bf16.mxu0 0
      %4328 = vmatpush1.bf16.msra.mxu0 %v4303
      %4329 = vmatprep.subr.bf16.mxu0 0
      %4330 = vmatpush1.bf16.msra.mxu0 %v4302
      %4331 = vmatprep.subr.bf16.mxu0 0
      %4332 = vmatpush1.bf16.msra.mxu0 %v4301
      %4333 = vmatprep.subr.bf16.mxu0 0
      %4334 = vmatpush2.bf16.msra.mxu0 0
      %4335 = vmatprep.subr.bf16.mxu0 0
      %4336 = vmatpush2.bf16.msra.mxu0 0
      %4337 = vmatprep.subr.bf16.mxu0 0
      %4338 = vmatpush2.bf16.msra.mxu0 0
      %4339 = vmatprep.subr.bf16.mxu0 0
      %4340 = vmatpush2.bf16.msra.mxu0 0
      %4341 = vmatprep.subr.bf16.mxu0 0
      %4342 = vmatpush2.bf16.msra.mxu0 0
      %4343 = vmatprep.subr.bf16.mxu0 0
      %4344 = vmatpush2.bf16.msra.mxu0 0
      %4345 = vmatprep.subr.bf16.mxu0 0
      %4346 = vmatpush2.bf16.msra.mxu0 0
      %4347 = vmatprep.subr.bf16.mxu0 0
      %4348 = vmatpush2.bf16.msra.mxu0 0
      %4349 = vmatprep.mubr.bf16.mxu0 0
      %4350 = vmatmul.mubr.bf16.gmra.mxu0 %v4237
      %v4351 = vpop.f32.mrf.mxu0
      %v4352 = vadd.f32 0.0, %v4351
      %v4353 = vpop.f32.mrf.mxu0
      %v4354 = vpop.f32.mrf.mxu0
      %v4355 = vadd.f32 0.0, %v4354
      %v4356 = vpop.f32.mrf.mxu0
      %4357 = vmatprep.mubr.bf16.mxu0 0
      %4358 = vmatmul.mubr.bf16.gmra.mxu0 %v4238
      %v4359 = vpop.f32.mrf.mxu0
      %v4360 = vadd.f32 0.0, %v4359
      %v4361 = vpop.f32.mrf.mxu0
      %v4362 = vpop.f32.mrf.mxu0
      %v4363 = vadd.f32 0.0, %v4362
      %v4364 = vpop.f32.mrf.mxu0
      %4365 = vmatprep.mubr.bf16.mxu0 0
      %4366 = vmatmul.mubr.bf16.gmra.mxu0 %v4239
      %v4367 = vpop.f32.mrf.mxu0
      %v4368 = vadd.f32 0.0, %v4367
      %v4369 = vpop.f32.mrf.mxu0
      %v4370 = vpop.f32.mrf.mxu0
      %v4371 = vadd.f32 0.0, %v4370
      %v4372 = vpop.f32.mrf.mxu0
      %4373 = vmatprep.mubr.bf16.mxu0 0
      %4374 = vmatmul.mubr.bf16.gmra.mxu0 %v4240
      %v4375 = vpop.f32.mrf.mxu0
      %v4376 = vadd.f32 0.0, %v4375
      %v4377 = vpop.f32.mrf.mxu0
      %v4378 = vpop.f32.mrf.mxu0
      %v4379 = vadd.f32 0.0, %v4378
      %v4380 = vpop.f32.mrf.mxu0
      %4381 = vmatprep.mubr.bf16.mxu0 0
      %4382 = vmatmul.mubr.bf16.gmra.mxu0 %v4241
      %v4383 = vpop.f32.mrf.mxu0
      %v4384 = vadd.f32 0.0, %v4383
      %v4385 = vpop.f32.mrf.mxu0
      %v4386 = vpop.f32.mrf.mxu0
      %v4387 = vadd.f32 0.0, %v4386
      %v4388 = vpop.f32.mrf.mxu0
      %4389 = vmatprep.mubr.bf16.mxu0 0
      %4390 = vmatmul.mubr.bf16.gmra.mxu0 %v4242
      %v4391 = vpop.f32.mrf.mxu0
      %v4392 = vadd.f32 0.0, %v4391
      %v4393 = vpop.f32.mrf.mxu0
      %v4394 = vpop.f32.mrf.mxu0
      %v4395 = vadd.f32 0.0, %v4394
      %v4396 = vpop.f32.mrf.mxu0
      %4397 = vmatprep.mubr.bf16.mxu0 0
      %4398 = vmatmul.mubr.bf16.gmra.mxu0 %v4243
      %v4399 = vpop.f32.mrf.mxu0
      %v4400 = vadd.f32 0.0, %v4399
      %v4401 = vpop.f32.mrf.mxu0
      %v4402 = vpop.f32.mrf.mxu0
      %v4403 = vadd.f32 0.0, %v4402
      %v4404 = vpop.f32.mrf.mxu0
      %4405 = vmatprep.mubr.bf16.mxu0 0
      %4406 = vmatmul.mubr.bf16.gmra.mxu0 %v4244
      %v4407 = vpop.f32.mrf.mxu0
      %v4408 = vadd.f32 0.0, %v4407
      %v4409 = vpop.f32.mrf.mxu0
      %v4410 = vpop.f32.mrf.mxu0
      %v4411 = vadd.f32 0.0, %v4410
      %v4412 = vpop.f32.mrf.mxu0
      %4413 = vmatprep.mubr.bf16.mxu0 0
      %4414 = vmatmul.mubr.bf16.gmra.mxu0 %v4245
      %v4415 = vpop.f32.mrf.mxu0
      %v4416 = vadd.f32 0.0, %v4415
      %v4417 = vpop.f32.mrf.mxu0
      %v4418 = vpop.f32.mrf.mxu0
      %v4419 = vadd.f32 0.0, %v4418
      %v4420 = vpop.f32.mrf.mxu0
      %4421 = vmatprep.mubr.bf16.mxu0 0
      %4422 = vmatmul.mubr.bf16.gmra.mxu0 %v4246
      %v4423 = vpop.f32.mrf.mxu0
      %v4424 = vadd.f32 0.0, %v4423
      %v4425 = vpop.f32.mrf.mxu0
      %v4426 = vpop.f32.mrf.mxu0
      %v4427 = vadd.f32 0.0, %v4426
      %v4428 = vpop.f32.mrf.mxu0
      %4429 = vmatprep.mubr.bf16.mxu0 0
      %4430 = vmatmul.mubr.bf16.gmra.mxu0 %v4247
      %v4431 = vpop.f32.mrf.mxu0
      %v4432 = vadd.f32 0.0, %v4431
      %v4433 = vpop.f32.mrf.mxu0
      %v4434 = vpop.f32.mrf.mxu0
      %v4435 = vadd.f32 0.0, %v4434
      %v4436 = vpop.f32.mrf.mxu0
      %4437 = vmatprep.mubr.bf16.mxu0 0
      %4438 = vmatmul.mubr.bf16.gmra.mxu0 %v4248
      %v4439 = vpop.f32.mrf.mxu0
      %v4440 = vadd.f32 0.0, %v4439
      %v4441 = vpop.f32.mrf.mxu0
      %v4442 = vpop.f32.mrf.mxu0
      %v4443 = vadd.f32 0.0, %v4442
      %v4444 = vpop.f32.mrf.mxu0
      %4445 = vmatprep.mubr.bf16.mxu0 0
      %4446 = vmatmul.mubr.bf16.gmra.mxu0 %v4249
      %v4447 = vpop.f32.mrf.mxu0
      %v4448 = vadd.f32 0.0, %v4447
      %v4449 = vpop.f32.mrf.mxu0
      %v4450 = vpop.f32.mrf.mxu0
      %v4451 = vadd.f32 0.0, %v4450
      %v4452 = vpop.f32.mrf.mxu0
      %4453 = vmatprep.mubr.bf16.mxu0 0
      %4454 = vmatmul.mubr.bf16.gmra.mxu0 %v4250
      %v4455 = vpop.f32.mrf.mxu0
      %v4456 = vadd.f32 0.0, %v4455
      %v4457 = vpop.f32.mrf.mxu0
      %v4458 = vpop.f32.mrf.mxu0
      %v4459 = vadd.f32 0.0, %v4458
      %v4460 = vpop.f32.mrf.mxu0
      %4461 = vmatprep.mubr.bf16.mxu0 0
      %4462 = vmatmul.mubr.bf16.gmra.mxu0 %v4251
      %v4463 = vpop.f32.mrf.mxu0
      %v4464 = vadd.f32 0.0, %v4463
      %v4465 = vpop.f32.mrf.mxu0
      %v4466 = vpop.f32.mrf.mxu0
      %v4467 = vadd.f32 0.0, %v4466
      %v4468 = vpop.f32.mrf.mxu0
      %4469 = vmatprep.mubr.bf16.mxu0 0
      %4470 = vmatmul.mubr.bf16.gmra.mxu0 %v4252
      %v4471 = vpop.f32.mrf.mxu0
      %v4472 = vadd.f32 0.0, %v4471
      %v4473 = vpop.f32.mrf.mxu0
      %v4474 = vpop.f32.mrf.mxu0
      %v4475 = vadd.f32 0.0, %v4474
      %v4476 = vpop.f32.mrf.mxu0
      %4477 = vdwg.mxu0
      %v4478 = vadd.f32 %v4072, %v4352
      %v4479 = vadd.f32 %v4073, %v4355
      %v4480 = vadd.f32 %v4074, %v4360
      %v4481 = vadd.f32 %v4075, %v4363
      %v4482 = vadd.f32 %v4076, %v4368
      %v4483 = vadd.f32 %v4077, %v4371
      %v4484 = vadd.f32 %v4078, %v4376
      %v4485 = vadd.f32 %v4079, %v4379
      %v4486 = vadd.f32 %v4080, %v4384
      %v4487 = vadd.f32 %v4081, %v4387
      %v4488 = vadd.f32 %v4082, %v4392
      %v4489 = vadd.f32 %v4083, %v4395
      %v4490 = vadd.f32 %v4084, %v4400
      %v4491 = vadd.f32 %v4085, %v4403
      %v4492 = vadd.f32 %v4086, %v4408
      %v4493 = vadd.f32 %v4087, %v4411
      %v4494 = vadd.f32 %v4088, %v4416
      %v4495 = vadd.f32 %v4089, %v4419
      %v4496 = vadd.f32 %v4090, %v4424
      %v4497 = vadd.f32 %v4091, %v4427
      %v4498 = vadd.f32 %v4092, %v4432
      %v4499 = vadd.f32 %v4093, %v4435
      %v4500 = vadd.f32 %v4094, %v4440
      %v4501 = vadd.f32 %v4095, %v4443
      %v4502 = vadd.f32 %v4096, %v4448
      %v4503 = vadd.f32 %v4097, %v4451
      %v4504 = vadd.f32 %v4098, %v4456
      %v4505 = vadd.f32 %v4099, %v4459
      %v4506 = vadd.f32 %v4100, %v4464
      %v4507 = vadd.f32 %v4101, %v4467
      %v4508 = vadd.f32 %v4102, %v4472
      %v4509 = vadd.f32 %v4103, %v4475
      %v4511 = vshrl.u32 %v4108, 16
      %v4513 = vrot.slane %v4511, 4
      %v4514 = vshll.u32 %v4108, 16
      %v4516 = vrot.slane %v4514, 5
      %v4517 = vor.u32 %v4513, %v4516
      %v4518 = vrot.slane %v4517, 4
      %v4520 = vshll.u32 %v4109, 16
      %v4522 = vrot.slane %v4520, 5
      %v4523 = vsel %vm1109, %v4518, %v4522
      %v4524 = vshrl.u32 %v4109, 16
      %v4526 = vrot.slane %v4524, 4
      %v4527 = vor.u32 %v4526, %v4522
      %v4528 = vrot.slane %v4527, 4
      %v4530 = vshll.u32 %v4110, 16
      %v4532 = vrot.slane %v4530, 5
      %v4533 = vsel %vm1109, %v4528, %v4532
      %v4535 = vshrl.u32 %v4111, 16
      %v4537 = vrot.slane %v4535, 4
      %v4538 = vshll.u32 %v4111, 16
      %v4540 = vrot.slane %v4538, 5
      %v4541 = vor.u32 %v4537, %v4540
      %v4542 = vrot.slane %v4541, 4
      %v4544 = vshll.u32 %v4112, 16
      %v4546 = vrot.slane %v4544, 5
      %v4547 = vsel %vm1109, %v4542, %v4546
      %v4548 = vshrl.u32 %v4112, 16
      %v4550 = vrot.slane %v4548, 4
      %v4551 = vor.u32 %v4550, %v4546
      %v4552 = vrot.slane %v4551, 4
      %v4554 = vshll.u32 %v4113, 16
      %v4556 = vrot.slane %v4554, 5
      %v4557 = vsel %vm1109, %v4552, %v4556
      %v4559 = vshrl.u32 %v4114, 16
      %v4561 = vrot.slane %v4559, 4
      %v4562 = vshll.u32 %v4114, 16
      %v4564 = vrot.slane %v4562, 5
      %v4565 = vor.u32 %v4561, %v4564
      %v4566 = vrot.slane %v4565, 4
      %v4568 = vshll.u32 %v4115, 16
      %v4570 = vrot.slane %v4568, 5
      %v4571 = vsel %vm1109, %v4566, %v4570
      %v4572 = vshrl.u32 %v4115, 16
      %v4574 = vrot.slane %v4572, 4
      %v4575 = vor.u32 %v4574, %v4570
      %v4576 = vrot.slane %v4575, 4
      %v4578 = vshll.u32 %v4116, 16
      %v4580 = vrot.slane %v4578, 5
      %v4581 = vsel %vm1109, %v4576, %v4580
      %v4583 = vshrl.u32 %v4117, 16
      %v4585 = vrot.slane %v4583, 4
      %v4586 = vshll.u32 %v4117, 16
      %v4588 = vrot.slane %v4586, 5
      %v4589 = vor.u32 %v4585, %v4588
      %v4590 = vrot.slane %v4589, 4
      %v4592 = vshll.u32 %v4118, 16
      %v4594 = vrot.slane %v4592, 5
      %v4595 = vsel %vm1109, %v4590, %v4594
      %v4596 = vshrl.u32 %v4118, 16
      %v4598 = vrot.slane %v4596, 4
      %v4599 = vor.u32 %v4598, %v4594
      %v4600 = vrot.slane %v4599, 4
      %v4602 = vshll.u32 %v4119, 16
      %v4604 = vrot.slane %v4602, 5
      %v4605 = vsel %vm1109, %v4600, %v4604
      %v4607 = vshrl.u32 %v4120, 16
      %v4609 = vrot.slane %v4607, 4
      %v4610 = vshll.u32 %v4120, 16
      %v4612 = vrot.slane %v4610, 5
      %v4613 = vor.u32 %v4609, %v4612
      %v4614 = vrot.slane %v4613, 4
      %v4616 = vshll.u32 %v4121, 16
      %v4618 = vrot.slane %v4616, 5
      %v4619 = vsel %vm1109, %v4614, %v4618
      %v4620 = vshrl.u32 %v4121, 16
      %v4622 = vrot.slane %v4620, 4
      %v4623 = vor.u32 %v4622, %v4618
      %v4624 = vrot.slane %v4623, 4
      %v4626 = vshll.u32 %v4122, 16
      %v4628 = vrot.slane %v4626, 5
      %v4629 = vsel %vm1109, %v4624, %v4628
      %v4631 = vshrl.u32 %v4123, 16
      %v4633 = vrot.slane %v4631, 4
      %v4634 = vshll.u32 %v4123, 16
      %v4636 = vrot.slane %v4634, 5
      %v4637 = vor.u32 %v4633, %v4636
      %v4638 = vrot.slane %v4637, 4
      %v4640 = vshll.u32 %v4124, 16
      %v4642 = vrot.slane %v4640, 5
      %v4643 = vsel %vm1109, %v4638, %v4642
      %v4644 = vshrl.u32 %v4124, 16
      %v4646 = vrot.slane %v4644, 4
      %v4647 = vor.u32 %v4646, %v4642
      %v4648 = vrot.slane %v4647, 4
      %v4650 = vshll.u32 %v4125, 16
      %v4652 = vrot.slane %v4650, 5
      %v4653 = vsel %vm1109, %v4648, %v4652
      %v4655 = vshrl.u32 %v4126, 16
      %v4657 = vrot.slane %v4655, 4
      %v4658 = vshll.u32 %v4126, 16
      %v4660 = vrot.slane %v4658, 5
      %v4661 = vor.u32 %v4657, %v4660
      %v4662 = vrot.slane %v4661, 4
      %v4664 = vshll.u32 %v4127, 16
      %v4666 = vrot.slane %v4664, 5
      %v4667 = vsel %vm1109, %v4662, %v4666
      %v4668 = vshrl.u32 %v4127, 16
      %v4670 = vrot.slane %v4668, 4
      %v4671 = vor.u32 %v4670, %v4666
      %v4672 = vrot.slane %v4671, 4
      %v4674 = vshll.u32 %v4128, 16
      %v4676 = vrot.slane %v4674, 5
      %v4677 = vsel %vm1109, %v4672, %v4676
      %v4679 = vshrl.u32 %v4129, 16
      %v4681 = vrot.slane %v4679, 4
      %v4682 = vshll.u32 %v4129, 16
      %v4684 = vrot.slane %v4682, 5
      %v4685 = vor.u32 %v4681, %v4684
      %v4686 = vrot.slane %v4685, 4
      %v4688 = vshll.u32 %v4130, 16
      %v4690 = vrot.slane %v4688, 5
      %v4691 = vsel %vm1109, %v4686, %v4690
      %v4692 = vshrl.u32 %v4130, 16
      %v4694 = vrot.slane %v4692, 4
      %v4695 = vor.u32 %v4694, %v4690
      %v4696 = vrot.slane %v4695, 4
      %v4698 = vshll.u32 %v4131, 16
      %v4700 = vrot.slane %v4698, 5
      %v4701 = vsel %vm1109, %v4696, %v4700
      %v4703 = vshrl.u32 %v4132, 16
      %v4705 = vrot.slane %v4703, 4
      %v4706 = vshll.u32 %v4132, 16
      %v4708 = vrot.slane %v4706, 5
      %v4709 = vor.u32 %v4705, %v4708
      %v4710 = vrot.slane %v4709, 4
      %v4712 = vshll.u32 %v4133, 16
      %v4714 = vrot.slane %v4712, 5
      %v4715 = vsel %vm1109, %v4710, %v4714
      %v4716 = vshrl.u32 %v4133, 16
      %v4718 = vrot.slane %v4716, 4
      %v4719 = vor.u32 %v4718, %v4714
      %v4720 = vrot.slane %v4719, 4
      %v4722 = vshll.u32 %v4134, 16
      %v4724 = vrot.slane %v4722, 5
      %v4725 = vsel %vm1109, %v4720, %v4724
      %v4727 = vshrl.u32 %v4135, 16
      %v4729 = vrot.slane %v4727, 4
      %v4730 = vshll.u32 %v4135, 16
      %v4732 = vrot.slane %v4730, 5
      %v4733 = vor.u32 %v4729, %v4732
      %v4734 = vrot.slane %v4733, 4
      %v4736 = vshll.u32 %v4136, 16
      %v4738 = vrot.slane %v4736, 5
      %v4739 = vsel %vm1109, %v4734, %v4738
      %v4740 = vshrl.u32 %v4136, 16
      %v4742 = vrot.slane %v4740, 4
      %v4743 = vor.u32 %v4742, %v4738
      %v4744 = vrot.slane %v4743, 4
      %v4746 = vshll.u32 %v4137, 16
      %v4748 = vrot.slane %v4746, 5
      %v4749 = vsel %vm1109, %v4744, %v4748
      %v4751 = vshrl.u32 %v4138, 16
      %v4753 = vrot.slane %v4751, 4
      %v4754 = vshll.u32 %v4138, 16
      %v4756 = vrot.slane %v4754, 5
      %v4757 = vor.u32 %v4753, %v4756
      %v4758 = vrot.slane %v4757, 4
      %v4760 = vshll.u32 %v4139, 16
      %v4762 = vrot.slane %v4760, 5
      %v4763 = vsel %vm1109, %v4758, %v4762
      %v4764 = vshrl.u32 %v4139, 16
      %v4766 = vrot.slane %v4764, 4
      %v4767 = vor.u32 %v4766, %v4762
      %v4768 = vrot.slane %v4767, 4
      %v4770 = vshll.u32 %v4140, 16
      %v4772 = vrot.slane %v4770, 5
      %v4773 = vsel %vm1109, %v4768, %v4772
      %v4775 = vshrl.u32 %v4141, 16
      %v4777 = vrot.slane %v4775, 4
      %v4778 = vshll.u32 %v4141, 16
      %v4780 = vrot.slane %v4778, 5
      %v4781 = vor.u32 %v4777, %v4780
      %v4782 = vrot.slane %v4781, 4
      %v4784 = vshll.u32 %v4142, 16
      %v4786 = vrot.slane %v4784, 5
      %v4787 = vsel %vm1109, %v4782, %v4786
      %v4788 = vshrl.u32 %v4142, 16
      %v4790 = vrot.slane %v4788, 4
      %v4791 = vor.u32 %v4790, %v4786
      %v4792 = vrot.slane %v4791, 4
      %v4794 = vshll.u32 %v4143, 16
      %v4796 = vrot.slane %v4794, 5
      %v4797 = vsel %vm1109, %v4792, %v4796
      %v4799 = vshrl.u32 %v4144, 16
      %v4801 = vrot.slane %v4799, 4
      %v4802 = vshll.u32 %v4144, 16
      %v4804 = vrot.slane %v4802, 5
      %v4805 = vor.u32 %v4801, %v4804
      %v4806 = vrot.slane %v4805, 4
      %v4808 = vshll.u32 %v4145, 16
      %v4810 = vrot.slane %v4808, 5
      %v4811 = vsel %vm1109, %v4806, %v4810
      %v4812 = vshrl.u32 %v4145, 16
      %v4814 = vrot.slane %v4812, 4
      %v4815 = vor.u32 %v4814, %v4810
      %v4816 = vrot.slane %v4815, 4
      %v4818 = vshll.u32 %v4146, 16
      %v4820 = vrot.slane %v4818, 5
      %v4821 = vsel %vm1109, %v4816, %v4820
      %v4823 = vshrl.u32 %v4147, 16
      %v4825 = vrot.slane %v4823, 4
      %v4826 = vshll.u32 %v4147, 16
      %v4828 = vrot.slane %v4826, 5
      %v4829 = vor.u32 %v4825, %v4828
      %v4830 = vrot.slane %v4829, 4
      %v4832 = vshll.u32 %v4148, 16
      %v4834 = vrot.slane %v4832, 5
      %v4835 = vsel %vm1109, %v4830, %v4834
      %v4836 = vshrl.u32 %v4148, 16
      %v4838 = vrot.slane %v4836, 4
      %v4839 = vor.u32 %v4838, %v4834
      %v4840 = vrot.slane %v4839, 4
      %v4842 = vshll.u32 %v4149, 16
      %v4844 = vrot.slane %v4842, 5
      %v4845 = vsel %vm1109, %v4840, %v4844
      %v4847 = vshrl.u32 %v4150, 16
      %v4849 = vrot.slane %v4847, 4
      %v4850 = vshll.u32 %v4150, 16
      %v4852 = vrot.slane %v4850, 5
      %v4853 = vor.u32 %v4849, %v4852
      %v4854 = vrot.slane %v4853, 4
      %v4856 = vshll.u32 %v4151, 16
      %v4858 = vrot.slane %v4856, 5
      %v4859 = vsel %vm1109, %v4854, %v4858
      %v4860 = vshrl.u32 %v4151, 16
      %v4862 = vrot.slane %v4860, 4
      %v4863 = vor.u32 %v4862, %v4858
      %v4864 = vrot.slane %v4863, 4
      %v4866 = vshll.u32 %v4152, 16
      %v4868 = vrot.slane %v4866, 5
      %v4869 = vsel %vm1109, %v4864, %v4868
      %v4871 = vshrl.u32 %v4153, 16
      %v4873 = vrot.slane %v4871, 4
      %v4874 = vshll.u32 %v4153, 16
      %v4876 = vrot.slane %v4874, 5
      %v4877 = vor.u32 %v4873, %v4876
      %v4878 = vrot.slane %v4877, 4
      %v4880 = vshll.u32 %v4154, 16
      %v4882 = vrot.slane %v4880, 5
      %v4883 = vsel %vm1109, %v4878, %v4882
      %v4884 = vshrl.u32 %v4154, 16
      %v4886 = vrot.slane %v4884, 4
      %v4887 = vor.u32 %v4886, %v4882
      %v4888 = vrot.slane %v4887, 4
      %v4890 = vshll.u32 %v4155, 16
      %v4892 = vrot.slane %v4890, 5
      %v4893 = vsel %vm1109, %v4888, %v4892
      %s4894 = scalar_lea.vmem %s1, 448
      %v4895 = vld [vmem:[%s4894] sm:$0xf]
      %v4896 = vld [vmem:[%s4894 + $0x4] sm:$0xf]
      %v4897 = vld [vmem:[%s4894 + $0x8] sm:$0xf]
      %v4898 = vld [vmem:[%s4894 + $0xc] sm:$0xf]
      %v4899 = vld [vmem:[%s4894 + $0x10] sm:$0xf]
      %v4900 = vld [vmem:[%s4894 + $0x14] sm:$0xf]
      %v4901 = vld [vmem:[%s4894 + $0x18] sm:$0xf]
      %v4902 = vld [vmem:[%s4894 + $0x1c] sm:$0xf]
      %v4903 = vld [vmem:[%s4894 + $0x20] sm:$0xf]
      %v4904 = vld [vmem:[%s4894 + $0x24] sm:$0xf]
      %v4905 = vld [vmem:[%s4894 + $0x28] sm:$0xf]
      %v4906 = vld [vmem:[%s4894 + $0x2c] sm:$0xf]
      %v4907 = vld [vmem:[%s4894 + $0x30] sm:$0xf]
      %v4908 = vld [vmem:[%s4894 + $0x34] sm:$0xf]
      %v4909 = vld [vmem:[%s4894 + $0x38] sm:$0xf]
      %v4910 = vld [vmem:[%s4894 + $0x3c] sm:$0xf]
      %v4911 = vunpack.c.l.b16 %v4523
      %v4912 = vunpack.c.l.b16 %v4533
      %v4913 = vunpack.c.l.b16 %v4547
      %v4914 = vunpack.c.l.b16 %v4557
      %v4915 = vunpack.c.l.b16 %v4571
      %v4916 = vunpack.c.l.b16 %v4581
      %v4917 = vunpack.c.l.b16 %v4595
      %v4918 = vunpack.c.l.b16 %v4605
      %v4919 = vunpack.c.l.b16 %v4619
      %v4920 = vunpack.c.l.b16 %v4629
      %v4921 = vunpack.c.l.b16 %v4643
      %v4922 = vunpack.c.l.b16 %v4653
      %v4923 = vunpack.c.l.b16 %v4667
      %v4924 = vunpack.c.l.b16 %v4677
      %v4925 = vunpack.c.l.b16 %v4691
      %v4926 = vunpack.c.l.b16 %v4701
      %v4927 = vunpack.c.l.b16 %v4715
      %v4928 = vunpack.c.l.b16 %v4725
      %v4929 = vunpack.c.l.b16 %v4739
      %v4930 = vunpack.c.l.b16 %v4749
      %v4931 = vunpack.c.l.b16 %v4763
      %v4932 = vunpack.c.l.b16 %v4773
      %v4933 = vunpack.c.l.b16 %v4787
      %v4934 = vunpack.c.l.b16 %v4797
      %v4935 = vunpack.c.l.b16 %v4811
      %v4936 = vunpack.c.l.b16 %v4821
      %v4937 = vunpack.c.l.b16 %v4835
      %v4938 = vunpack.c.l.b16 %v4845
      %v4939 = vunpack.c.l.b16 %v4859
      %v4940 = vunpack.c.l.b16 %v4869
      %v4941 = vunpack.c.l.b16 %v4883
      %v4942 = vunpack.c.l.b16 %v4893
      %v4943 = vpack.c.b16 %v4912, %v4911
      %v4944 = vpack.c.b16 %v4914, %v4913
      %v4945 = vpack.c.b16 %v4916, %v4915
      %v4946 = vpack.c.b16 %v4918, %v4917
      %v4947 = vpack.c.b16 %v4920, %v4919
      %v4948 = vpack.c.b16 %v4922, %v4921
      %v4949 = vpack.c.b16 %v4924, %v4923
      %v4950 = vpack.c.b16 %v4926, %v4925
      %v4951 = vpack.c.b16 %v4928, %v4927
      %v4952 = vpack.c.b16 %v4930, %v4929
      %v4953 = vpack.c.b16 %v4932, %v4931
      %v4954 = vpack.c.b16 %v4934, %v4933
      %v4955 = vpack.c.b16 %v4936, %v4935
      %v4956 = vpack.c.b16 %v4938, %v4937
      %v4957 = vpack.c.b16 %v4940, %v4939
      %v4958 = vpack.c.b16 %v4942, %v4941
      %v4991 = vunpack.c.l.b16 %v4895
      %v4992 = vunpack.c.l.b16 %v4896
      %v4993 = vunpack.c.l.b16 %v4897
      %v4994 = vunpack.c.l.b16 %v4898
      %v4995 = vunpack.c.l.b16 %v4899
      %v4996 = vunpack.c.l.b16 %v4900
      %v4997 = vunpack.c.l.b16 %v4901
      %v4998 = vunpack.c.l.b16 %v4902
      %v4999 = vunpack.c.l.b16 %v4903
      %v5000 = vunpack.c.l.b16 %v4904
      %v5001 = vunpack.c.l.b16 %v4905
      %v5002 = vunpack.c.l.b16 %v4906
      %v5003 = vunpack.c.l.b16 %v4907
      %v5004 = vunpack.c.l.b16 %v4908
      %v5005 = vunpack.c.l.b16 %v4909
      %v5006 = vunpack.c.l.b16 %v4910
      %v5007 = vpack.c.b16 %v4992, %v4991
      %v5008 = vpack.c.b16 %v4994, %v4993
      %v5009 = vpack.c.b16 %v4996, %v4995
      %v5010 = vpack.c.b16 %v4998, %v4997
      %v5011 = vpack.c.b16 %v5000, %v4999
      %v5012 = vpack.c.b16 %v5002, %v5001
      %v5013 = vpack.c.b16 %v5004, %v5003
      %v5014 = vpack.c.b16 %v5006, %v5005
      %5023 = vmatprep.subr.bf16.mxu0 0
      %5024 = vmatpush1.bf16.msra.mxu0 %v5014
      %5025 = vmatprep.subr.bf16.mxu0 0
      %5026 = vmatpush1.bf16.msra.mxu0 %v5013
      %5027 = vmatprep.subr.bf16.mxu0 0
      %5028 = vmatpush1.bf16.msra.mxu0 %v5012
      %5029 = vmatprep.subr.bf16.mxu0 0
      %5030 = vmatpush1.bf16.msra.mxu0 %v5011
      %5031 = vmatprep.subr.bf16.mxu0 0
      %5032 = vmatpush1.bf16.msra.mxu0 %v5010
      %5033 = vmatprep.subr.bf16.mxu0 0
      %5034 = vmatpush1.bf16.msra.mxu0 %v5009
      %5035 = vmatprep.subr.bf16.mxu0 0
      %5036 = vmatpush1.bf16.msra.mxu0 %v5008
      %5037 = vmatprep.subr.bf16.mxu0 0
      %5038 = vmatpush1.bf16.msra.mxu0 %v5007
      %5039 = vmatprep.subr.bf16.mxu0 0
      %5040 = vmatpush2.bf16.msra.mxu0 0
      %5041 = vmatprep.subr.bf16.mxu0 0
      %5042 = vmatpush2.bf16.msra.mxu0 0
      %5043 = vmatprep.subr.bf16.mxu0 0
      %5044 = vmatpush2.bf16.msra.mxu0 0
      %5045 = vmatprep.subr.bf16.mxu0 0
      %5046 = vmatpush2.bf16.msra.mxu0 0
      %5047 = vmatprep.subr.bf16.mxu0 0
      %5048 = vmatpush2.bf16.msra.mxu0 0
      %5049 = vmatprep.subr.bf16.mxu0 0
      %5050 = vmatpush2.bf16.msra.mxu0 0
      %5051 = vmatprep.subr.bf16.mxu0 0
      %5052 = vmatpush2.bf16.msra.mxu0 0
      %5053 = vmatprep.subr.bf16.mxu0 0
      %5054 = vmatpush2.bf16.msra.mxu0 0
      %5055 = vmatprep.mubr.bf16.mxu0 0
      %5056 = vmatmul.mubr.bf16.gmra.mxu0 %v4943
      %v5057 = vpop.f32.mrf.mxu0
      %v5058 = vadd.f32 0.0, %v5057
      %v5059 = vpop.f32.mrf.mxu0
      %v5060 = vpop.f32.mrf.mxu0
      %v5061 = vadd.f32 0.0, %v5060
      %v5062 = vpop.f32.mrf.mxu0
      %5063 = vmatprep.mubr.bf16.mxu0 0
      %5064 = vmatmul.mubr.bf16.gmra.mxu0 %v4944
      %v5065 = vpop.f32.mrf.mxu0
      %v5066 = vadd.f32 0.0, %v5065
      %v5067 = vpop.f32.mrf.mxu0
      %v5068 = vpop.f32.mrf.mxu0
      %v5069 = vadd.f32 0.0, %v5068
      %v5070 = vpop.f32.mrf.mxu0
      %5071 = vmatprep.mubr.bf16.mxu0 0
      %5072 = vmatmul.mubr.bf16.gmra.mxu0 %v4945
      %v5073 = vpop.f32.mrf.mxu0
      %v5074 = vadd.f32 0.0, %v5073
      %v5075 = vpop.f32.mrf.mxu0
      %v5076 = vpop.f32.mrf.mxu0
      %v5077 = vadd.f32 0.0, %v5076
      %v5078 = vpop.f32.mrf.mxu0
      %5079 = vmatprep.mubr.bf16.mxu0 0
      %5080 = vmatmul.mubr.bf16.gmra.mxu0 %v4946
      %v5081 = vpop.f32.mrf.mxu0
      %v5082 = vadd.f32 0.0, %v5081
      %v5083 = vpop.f32.mrf.mxu0
      %v5084 = vpop.f32.mrf.mxu0
      %v5085 = vadd.f32 0.0, %v5084
      %v5086 = vpop.f32.mrf.mxu0
      %5087 = vmatprep.mubr.bf16.mxu0 0
      %5088 = vmatmul.mubr.bf16.gmra.mxu0 %v4947
      %v5089 = vpop.f32.mrf.mxu0
      %v5090 = vadd.f32 0.0, %v5089
      %v5091 = vpop.f32.mrf.mxu0
      %v5092 = vpop.f32.mrf.mxu0
      %v5093 = vadd.f32 0.0, %v5092
      %v5094 = vpop.f32.mrf.mxu0
      %5095 = vmatprep.mubr.bf16.mxu0 0
      %5096 = vmatmul.mubr.bf16.gmra.mxu0 %v4948
      %v5097 = vpop.f32.mrf.mxu0
      %v5098 = vadd.f32 0.0, %v5097
      %v5099 = vpop.f32.mrf.mxu0
      %v5100 = vpop.f32.mrf.mxu0
      %v5101 = vadd.f32 0.0, %v5100
      %v5102 = vpop.f32.mrf.mxu0
      %5103 = vmatprep.mubr.bf16.mxu0 0
      %5104 = vmatmul.mubr.bf16.gmra.mxu0 %v4949
      %v5105 = vpop.f32.mrf.mxu0
      %v5106 = vadd.f32 0.0, %v5105
      %v5107 = vpop.f32.mrf.mxu0
      %v5108 = vpop.f32.mrf.mxu0
      %v5109 = vadd.f32 0.0, %v5108
      %v5110 = vpop.f32.mrf.mxu0
      %5111 = vmatprep.mubr.bf16.mxu0 0
      %5112 = vmatmul.mubr.bf16.gmra.mxu0 %v4950
      %v5113 = vpop.f32.mrf.mxu0
      %v5114 = vadd.f32 0.0, %v5113
      %v5115 = vpop.f32.mrf.mxu0
      %v5116 = vpop.f32.mrf.mxu0
      %v5117 = vadd.f32 0.0, %v5116
      %v5118 = vpop.f32.mrf.mxu0
      %5119 = vmatprep.mubr.bf16.mxu0 0
      %5120 = vmatmul.mubr.bf16.gmra.mxu0 %v4951
      %v5121 = vpop.f32.mrf.mxu0
      %v5122 = vadd.f32 0.0, %v5121
      %v5123 = vpop.f32.mrf.mxu0
      %v5124 = vpop.f32.mrf.mxu0
      %v5125 = vadd.f32 0.0, %v5124
      %v5126 = vpop.f32.mrf.mxu0
      %5127 = vmatprep.mubr.bf16.mxu0 0
      %5128 = vmatmul.mubr.bf16.gmra.mxu0 %v4952
      %v5129 = vpop.f32.mrf.mxu0
      %v5130 = vadd.f32 0.0, %v5129
      %v5131 = vpop.f32.mrf.mxu0
      %v5132 = vpop.f32.mrf.mxu0
      %v5133 = vadd.f32 0.0, %v5132
      %v5134 = vpop.f32.mrf.mxu0
      %5135 = vmatprep.mubr.bf16.mxu0 0
      %5136 = vmatmul.mubr.bf16.gmra.mxu0 %v4953
      %v5137 = vpop.f32.mrf.mxu0
      %v5138 = vadd.f32 0.0, %v5137
      %v5139 = vpop.f32.mrf.mxu0
      %v5140 = vpop.f32.mrf.mxu0
      %v5141 = vadd.f32 0.0, %v5140
      %v5142 = vpop.f32.mrf.mxu0
      %5143 = vmatprep.mubr.bf16.mxu0 0
      %5144 = vmatmul.mubr.bf16.gmra.mxu0 %v4954
      %v5145 = vpop.f32.mrf.mxu0
      %v5146 = vadd.f32 0.0, %v5145
      %v5147 = vpop.f32.mrf.mxu0
      %v5148 = vpop.f32.mrf.mxu0
      %v5149 = vadd.f32 0.0, %v5148
      %v5150 = vpop.f32.mrf.mxu0
      %5151 = vmatprep.mubr.bf16.mxu0 0
      %5152 = vmatmul.mubr.bf16.gmra.mxu0 %v4955
      %v5153 = vpop.f32.mrf.mxu0
      %v5154 = vadd.f32 0.0, %v5153
      %v5155 = vpop.f32.mrf.mxu0
      %v5156 = vpop.f32.mrf.mxu0
      %v5157 = vadd.f32 0.0, %v5156
      %v5158 = vpop.f32.mrf.mxu0
      %5159 = vmatprep.mubr.bf16.mxu0 0
      %5160 = vmatmul.mubr.bf16.gmra.mxu0 %v4956
      %v5161 = vpop.f32.mrf.mxu0
      %v5162 = vadd.f32 0.0, %v5161
      %v5163 = vpop.f32.mrf.mxu0
      %v5164 = vpop.f32.mrf.mxu0
      %v5165 = vadd.f32 0.0, %v5164
      %v5166 = vpop.f32.mrf.mxu0
      %5167 = vmatprep.mubr.bf16.mxu0 0
      %5168 = vmatmul.mubr.bf16.gmra.mxu0 %v4957
      %v5169 = vpop.f32.mrf.mxu0
      %v5170 = vadd.f32 0.0, %v5169
      %v5171 = vpop.f32.mrf.mxu0
      %v5172 = vpop.f32.mrf.mxu0
      %v5173 = vadd.f32 0.0, %v5172
      %v5174 = vpop.f32.mrf.mxu0
      %5175 = vmatprep.mubr.bf16.mxu0 0
      %5176 = vmatmul.mubr.bf16.gmra.mxu0 %v4958
      %v5177 = vpop.f32.mrf.mxu0
      %v5178 = vadd.f32 0.0, %v5177
      %v5179 = vpop.f32.mrf.mxu0
      %v5180 = vpop.f32.mrf.mxu0
      %v5181 = vadd.f32 0.0, %v5180
      %v5182 = vpop.f32.mrf.mxu0
      %5183 = vdwg.mxu0
      %v5184 = vadd.f32 %v4478, %v5058
      %v5185 = vadd.f32 %v4479, %v5061
      %v5186 = vadd.f32 %v4480, %v5066
      %v5187 = vadd.f32 %v4481, %v5069
      %v5188 = vadd.f32 %v4482, %v5074
      %v5189 = vadd.f32 %v4483, %v5077
      %v5190 = vadd.f32 %v4484, %v5082
      %v5191 = vadd.f32 %v4485, %v5085
      %v5192 = vadd.f32 %v4486, %v5090
      %v5193 = vadd.f32 %v4487, %v5093
      %v5194 = vadd.f32 %v4488, %v5098
      %v5195 = vadd.f32 %v4489, %v5101
      %v5196 = vadd.f32 %v4490, %v5106
      %v5197 = vadd.f32 %v4491, %v5109
      %v5198 = vadd.f32 %v4492, %v5114
      %v5199 = vadd.f32 %v4493, %v5117
      %v5200 = vadd.f32 %v4494, %v5122
      %v5201 = vadd.f32 %v4495, %v5125
      %v5202 = vadd.f32 %v4496, %v5130
      %v5203 = vadd.f32 %v4497, %v5133
      %v5204 = vadd.f32 %v4498, %v5138
      %v5205 = vadd.f32 %v4499, %v5141
      %v5206 = vadd.f32 %v4500, %v5146
      %v5207 = vadd.f32 %v4501, %v5149
      %v5208 = vadd.f32 %v4502, %v5154
      %v5209 = vadd.f32 %v4503, %v5157
      %v5210 = vadd.f32 %v4504, %v5162
      %v5211 = vadd.f32 %v4505, %v5165
      %v5212 = vadd.f32 %v4506, %v5170
      %v5213 = vadd.f32 %v4507, %v5173
      %v5214 = vadd.f32 %v4508, %v5178
      %v5215 = vadd.f32 %v4509, %v5181
      %v5232 = vrot.slane %v4108, 5
      %v5233 = vrot.slane %v5232, 4
      %v5234 = vrot.slane %v4109, 5
      %v5235 = vsel %vm2107, %v5233, %v5234
      %v5236 = vrot.slane %v5234, 4
      %v5237 = vrot.slane %v4110, 5
      %v5238 = vsel %vm2107, %v5236, %v5237
      %v5239 = vrot.slane %v4111, 5
      %v5240 = vrot.slane %v5239, 4
      %v5241 = vrot.slane %v4112, 5
      %v5242 = vsel %vm2107, %v5240, %v5241
      %v5243 = vrot.slane %v5241, 4
      %v5244 = vrot.slane %v4113, 5
      %v5245 = vsel %vm2107, %v5243, %v5244
      %v5246 = vrot.slane %v4114, 5
      %v5247 = vrot.slane %v5246, 4
      %v5248 = vrot.slane %v4115, 5
      %v5249 = vsel %vm2107, %v5247, %v5248
      %v5250 = vrot.slane %v5248, 4
      %v5251 = vrot.slane %v4116, 5
      %v5252 = vsel %vm2107, %v5250, %v5251
      %v5253 = vrot.slane %v4117, 5
      %v5254 = vrot.slane %v5253, 4
      %v5255 = vrot.slane %v4118, 5
      %v5256 = vsel %vm2107, %v5254, %v5255
      %v5257 = vrot.slane %v5255, 4
      %v5258 = vrot.slane %v4119, 5
      %v5259 = vsel %vm2107, %v5257, %v5258
      %v5260 = vrot.slane %v4120, 5
      %v5261 = vrot.slane %v5260, 4
      %v5262 = vrot.slane %v4121, 5
      %v5263 = vsel %vm2107, %v5261, %v5262
      %v5264 = vrot.slane %v5262, 4
      %v5265 = vrot.slane %v4122, 5
      %v5266 = vsel %vm2107, %v5264, %v5265
      %v5267 = vrot.slane %v4123, 5
      %v5268 = vrot.slane %v5267, 4
      %v5269 = vrot.slane %v4124, 5
      %v5270 = vsel %vm2107, %v5268, %v5269
      %v5271 = vrot.slane %v5269, 4
      %v5272 = vrot.slane %v4125, 5
      %v5273 = vsel %vm2107, %v5271, %v5272
      %v5274 = vrot.slane %v4126, 5
      %v5275 = vrot.slane %v5274, 4
      %v5276 = vrot.slane %v4127, 5
      %v5277 = vsel %vm2107, %v5275, %v5276
      %v5278 = vrot.slane %v5276, 4
      %v5279 = vrot.slane %v4128, 5
      %v5280 = vsel %vm2107, %v5278, %v5279
      %v5281 = vrot.slane %v4129, 5
      %v5282 = vrot.slane %v5281, 4
      %v5283 = vrot.slane %v4130, 5
      %v5284 = vsel %vm2107, %v5282, %v5283
      %v5285 = vrot.slane %v5283, 4
      %v5286 = vrot.slane %v4131, 5
      %v5287 = vsel %vm2107, %v5285, %v5286
      %v5288 = vrot.slane %v4132, 5
      %v5289 = vrot.slane %v5288, 4
      %v5290 = vrot.slane %v4133, 5
      %v5291 = vsel %vm2107, %v5289, %v5290
      %v5292 = vrot.slane %v5290, 4
      %v5293 = vrot.slane %v4134, 5
      %v5294 = vsel %vm2107, %v5292, %v5293
      %v5295 = vrot.slane %v4135, 5
      %v5296 = vrot.slane %v5295, 4
      %v5297 = vrot.slane %v4136, 5
      %v5298 = vsel %vm2107, %v5296, %v5297
      %v5299 = vrot.slane %v5297, 4
      %v5300 = vrot.slane %v4137, 5
      %v5301 = vsel %vm2107, %v5299, %v5300
      %v5302 = vrot.slane %v4138, 5
      %v5303 = vrot.slane %v5302, 4
      %v5304 = vrot.slane %v4139, 5
      %v5305 = vsel %vm2107, %v5303, %v5304
      %v5306 = vrot.slane %v5304, 4
      %v5307 = vrot.slane %v4140, 5
      %v5308 = vsel %vm2107, %v5306, %v5307
      %v5309 = vrot.slane %v4141, 5
      %v5310 = vrot.slane %v5309, 4
      %v5311 = vrot.slane %v4142, 5
      %v5312 = vsel %vm2107, %v5310, %v5311
      %v5313 = vrot.slane %v5311, 4
      %v5314 = vrot.slane %v4143, 5
      %v5315 = vsel %vm2107, %v5313, %v5314
      %v5316 = vrot.slane %v4144, 5
      %v5317 = vrot.slane %v5316, 4
      %v5318 = vrot.slane %v4145, 5
      %v5319 = vsel %vm2107, %v5317, %v5318
      %v5320 = vrot.slane %v5318, 4
      %v5321 = vrot.slane %v4146, 5
      %v5322 = vsel %vm2107, %v5320, %v5321
      %v5323 = vrot.slane %v4147, 5
      %v5324 = vrot.slane %v5323, 4
      %v5325 = vrot.slane %v4148, 5
      %v5326 = vsel %vm2107, %v5324, %v5325
      %v5327 = vrot.slane %v5325, 4
      %v5328 = vrot.slane %v4149, 5
      %v5329 = vsel %vm2107, %v5327, %v5328
      %v5330 = vrot.slane %v4150, 5
      %v5331 = vrot.slane %v5330, 4
      %v5332 = vrot.slane %v4151, 5
      %v5333 = vsel %vm2107, %v5331, %v5332
      %v5334 = vrot.slane %v5332, 4
      %v5335 = vrot.slane %v4152, 5
      %v5336 = vsel %vm2107, %v5334, %v5335
      %v5337 = vrot.slane %v4153, 5
      %v5338 = vrot.slane %v5337, 4
      %v5339 = vrot.slane %v4154, 5
      %v5340 = vsel %vm2107, %v5338, %v5339
      %v5341 = vrot.slane %v5339, 4
      %v5342 = vrot.slane %v4155, 5
      %v5343 = vsel %vm2107, %v5341, %v5342
      %s5344 = scalar_lea.vmem %s1, 512
      %v5345 = vld [vmem:[%s5344] sm:$0xf]
      %v5346 = vld [vmem:[%s5344 + $0x4] sm:$0xf]
      %v5347 = vld [vmem:[%s5344 + $0x8] sm:$0xf]
      %v5348 = vld [vmem:[%s5344 + $0xc] sm:$0xf]
      %v5349 = vld [vmem:[%s5344 + $0x10] sm:$0xf]
      %v5350 = vld [vmem:[%s5344 + $0x14] sm:$0xf]
      %v5351 = vld [vmem:[%s5344 + $0x18] sm:$0xf]
      %v5352 = vld [vmem:[%s5344 + $0x1c] sm:$0xf]
      %v5353 = vld [vmem:[%s5344 + $0x20] sm:$0xf]
      %v5354 = vld [vmem:[%s5344 + $0x24] sm:$0xf]
      %v5355 = vld [vmem:[%s5344 + $0x28] sm:$0xf]
      %v5356 = vld [vmem:[%s5344 + $0x2c] sm:$0xf]
      %v5357 = vld [vmem:[%s5344 + $0x30] sm:$0xf]
      %v5358 = vld [vmem:[%s5344 + $0x34] sm:$0xf]
      %v5359 = vld [vmem:[%s5344 + $0x38] sm:$0xf]
      %v5360 = vld [vmem:[%s5344 + $0x3c] sm:$0xf]
      %v5361 = vunpack.c.l.b16 %v5235
      %v5362 = vunpack.c.l.b16 %v5238
      %v5363 = vunpack.c.l.b16 %v5242
      %v5364 = vunpack.c.l.b16 %v5245
      %v5365 = vunpack.c.l.b16 %v5249
      %v5366 = vunpack.c.l.b16 %v5252
      %v5367 = vunpack.c.l.b16 %v5256
      %v5368 = vunpack.c.l.b16 %v5259
      %v5369 = vunpack.c.l.b16 %v5263
      %v5370 = vunpack.c.l.b16 %v5266
      %v5371 = vunpack.c.l.b16 %v5270
      %v5372 = vunpack.c.l.b16 %v5273
      %v5373 = vunpack.c.l.b16 %v5277
      %v5374 = vunpack.c.l.b16 %v5280
      %v5375 = vunpack.c.l.b16 %v5284
      %v5376 = vunpack.c.l.b16 %v5287
      %v5377 = vunpack.c.l.b16 %v5291
      %v5378 = vunpack.c.l.b16 %v5294
      %v5379 = vunpack.c.l.b16 %v5298
      %v5380 = vunpack.c.l.b16 %v5301
      %v5381 = vunpack.c.l.b16 %v5305
      %v5382 = vunpack.c.l.b16 %v5308
      %v5383 = vunpack.c.l.b16 %v5312
      %v5384 = vunpack.c.l.b16 %v5315
      %v5385 = vunpack.c.l.b16 %v5319
      %v5386 = vunpack.c.l.b16 %v5322
      %v5387 = vunpack.c.l.b16 %v5326
      %v5388 = vunpack.c.l.b16 %v5329
      %v5389 = vunpack.c.l.b16 %v5333
      %v5390 = vunpack.c.l.b16 %v5336
      %v5391 = vunpack.c.l.b16 %v5340
      %v5392 = vunpack.c.l.b16 %v5343
      %v5393 = vpack.c.b16 %v5362, %v5361
      %v5394 = vpack.c.b16 %v5364, %v5363
      %v5395 = vpack.c.b16 %v5366, %v5365
      %v5396 = vpack.c.b16 %v5368, %v5367
      %v5397 = vpack.c.b16 %v5370, %v5369
      %v5398 = vpack.c.b16 %v5372, %v5371
      %v5399 = vpack.c.b16 %v5374, %v5373
      %v5400 = vpack.c.b16 %v5376, %v5375
      %v5401 = vpack.c.b16 %v5378, %v5377
      %v5402 = vpack.c.b16 %v5380, %v5379
      %v5403 = vpack.c.b16 %v5382, %v5381
      %v5404 = vpack.c.b16 %v5384, %v5383
      %v5405 = vpack.c.b16 %v5386, %v5385
      %v5406 = vpack.c.b16 %v5388, %v5387
      %v5407 = vpack.c.b16 %v5390, %v5389
      %v5408 = vpack.c.b16 %v5392, %v5391
      %v5441 = vunpack.c.l.b16 %v5345
      %v5442 = vunpack.c.l.b16 %v5346
      %v5443 = vunpack.c.l.b16 %v5347
      %v5444 = vunpack.c.l.b16 %v5348
      %v5445 = vunpack.c.l.b16 %v5349
      %v5446 = vunpack.c.l.b16 %v5350
      %v5447 = vunpack.c.l.b16 %v5351
      %v5448 = vunpack.c.l.b16 %v5352
      %v5449 = vunpack.c.l.b16 %v5353
      %v5450 = vunpack.c.l.b16 %v5354
      %v5451 = vunpack.c.l.b16 %v5355
      %v5452 = vunpack.c.l.b16 %v5356
      %v5453 = vunpack.c.l.b16 %v5357
      %v5454 = vunpack.c.l.b16 %v5358
      %v5455 = vunpack.c.l.b16 %v5359
      %v5456 = vunpack.c.l.b16 %v5360
      %v5457 = vpack.c.b16 %v5442, %v5441
      %v5458 = vpack.c.b16 %v5444, %v5443
      %v5459 = vpack.c.b16 %v5446, %v5445
      %v5460 = vpack.c.b16 %v5448, %v5447
      %v5461 = vpack.c.b16 %v5450, %v5449
      %v5462 = vpack.c.b16 %v5452, %v5451
      %v5463 = vpack.c.b16 %v5454, %v5453
      %v5464 = vpack.c.b16 %v5456, %v5455
      %5473 = vmatprep.subr.bf16.mxu0 0
      %5474 = vmatpush1.bf16.msra.mxu0 %v5464
      %5475 = vmatprep.subr.bf16.mxu0 0
      %5476 = vmatpush1.bf16.msra.mxu0 %v5463
      %5477 = vmatprep.subr.bf16.mxu0 0
      %5478 = vmatpush1.bf16.msra.mxu0 %v5462
      %5479 = vmatprep.subr.bf16.mxu0 0
      %5480 = vmatpush1.bf16.msra.mxu0 %v5461
      %5481 = vmatprep.subr.bf16.mxu0 0
      %5482 = vmatpush1.bf16.msra.mxu0 %v5460
      %5483 = vmatprep.subr.bf16.mxu0 0
      %5484 = vmatpush1.bf16.msra.mxu0 %v5459
      %5485 = vmatprep.subr.bf16.mxu0 0
      %5486 = vmatpush1.bf16.msra.mxu0 %v5458
      %5487 = vmatprep.subr.bf16.mxu0 0
      %5488 = vmatpush1.bf16.msra.mxu0 %v5457
      %5489 = vmatprep.subr.bf16.mxu0 0
      %5490 = vmatpush2.bf16.msra.mxu0 0
      %5491 = vmatprep.subr.bf16.mxu0 0
      %5492 = vmatpush2.bf16.msra.mxu0 0
      %5493 = vmatprep.subr.bf16.mxu0 0
      %5494 = vmatpush2.bf16.msra.mxu0 0
      %5495 = vmatprep.subr.bf16.mxu0 0
      %5496 = vmatpush2.bf16.msra.mxu0 0
      %5497 = vmatprep.subr.bf16.mxu0 0
      %5498 = vmatpush2.bf16.msra.mxu0 0
      %5499 = vmatprep.subr.bf16.mxu0 0
      %5500 = vmatpush2.bf16.msra.mxu0 0
      %5501 = vmatprep.subr.bf16.mxu0 0
      %5502 = vmatpush2.bf16.msra.mxu0 0
      %5503 = vmatprep.subr.bf16.mxu0 0
      %5504 = vmatpush2.bf16.msra.mxu0 0
      %5505 = vmatprep.mubr.bf16.mxu0 0
      %5506 = vmatmul.mubr.bf16.gmra.mxu0 %v5393
      %v5507 = vpop.f32.mrf.mxu0
      %v5508 = vadd.f32 0.0, %v5507
      %v5509 = vpop.f32.mrf.mxu0
      %v5510 = vpop.f32.mrf.mxu0
      %v5511 = vadd.f32 0.0, %v5510
      %v5512 = vpop.f32.mrf.mxu0
      %5513 = vmatprep.mubr.bf16.mxu0 0
      %5514 = vmatmul.mubr.bf16.gmra.mxu0 %v5394
      %v5515 = vpop.f32.mrf.mxu0
      %v5516 = vadd.f32 0.0, %v5515
      %v5517 = vpop.f32.mrf.mxu0
      %v5518 = vpop.f32.mrf.mxu0
      %v5519 = vadd.f32 0.0, %v5518
      %v5520 = vpop.f32.mrf.mxu0
      %5521 = vmatprep.mubr.bf16.mxu0 0
      %5522 = vmatmul.mubr.bf16.gmra.mxu0 %v5395
      %v5523 = vpop.f32.mrf.mxu0
      %v5524 = vadd.f32 0.0, %v5523
      %v5525 = vpop.f32.mrf.mxu0
      %v5526 = vpop.f32.mrf.mxu0
      %v5527 = vadd.f32 0.0, %v5526
      %v5528 = vpop.f32.mrf.mxu0
      %5529 = vmatprep.mubr.bf16.mxu0 0
      %5530 = vmatmul.mubr.bf16.gmra.mxu0 %v5396
      %v5531 = vpop.f32.mrf.mxu0
      %v5532 = vadd.f32 0.0, %v5531
      %v5533 = vpop.f32.mrf.mxu0
      %v5534 = vpop.f32.mrf.mxu0
      %v5535 = vadd.f32 0.0, %v5534
      %v5536 = vpop.f32.mrf.mxu0
      %5537 = vmatprep.mubr.bf16.mxu0 0
      %5538 = vmatmul.mubr.bf16.gmra.mxu0 %v5397
      %v5539 = vpop.f32.mrf.mxu0
      %v5540 = vadd.f32 0.0, %v5539
      %v5541 = vpop.f32.mrf.mxu0
      %v5542 = vpop.f32.mrf.mxu0
      %v5543 = vadd.f32 0.0, %v5542
      %v5544 = vpop.f32.mrf.mxu0
      %5545 = vmatprep.mubr.bf16.mxu0 0
      %5546 = vmatmul.mubr.bf16.gmra.mxu0 %v5398
      %v5547 = vpop.f32.mrf.mxu0
      %v5548 = vadd.f32 0.0, %v5547
      %v5549 = vpop.f32.mrf.mxu0
      %v5550 = vpop.f32.mrf.mxu0
      %v5551 = vadd.f32 0.0, %v5550
      %v5552 = vpop.f32.mrf.mxu0
      %5553 = vmatprep.mubr.bf16.mxu0 0
      %5554 = vmatmul.mubr.bf16.gmra.mxu0 %v5399
      %v5555 = vpop.f32.mrf.mxu0
      %v5556 = vadd.f32 0.0, %v5555
      %v5557 = vpop.f32.mrf.mxu0
      %v5558 = vpop.f32.mrf.mxu0
      %v5559 = vadd.f32 0.0, %v5558
      %v5560 = vpop.f32.mrf.mxu0
      %5561 = vmatprep.mubr.bf16.mxu0 0
      %5562 = vmatmul.mubr.bf16.gmra.mxu0 %v5400
      %v5563 = vpop.f32.mrf.mxu0
      %v5564 = vadd.f32 0.0, %v5563
      %v5565 = vpop.f32.mrf.mxu0
      %v5566 = vpop.f32.mrf.mxu0
      %v5567 = vadd.f32 0.0, %v5566
      %v5568 = vpop.f32.mrf.mxu0
      %5569 = vmatprep.mubr.bf16.mxu0 0
      %5570 = vmatmul.mubr.bf16.gmra.mxu0 %v5401
      %v5571 = vpop.f32.mrf.mxu0
      %v5572 = vadd.f32 0.0, %v5571
      %v5573 = vpop.f32.mrf.mxu0
      %v5574 = vpop.f32.mrf.mxu0
      %v5575 = vadd.f32 0.0, %v5574
      %v5576 = vpop.f32.mrf.mxu0
      %5577 = vmatprep.mubr.bf16.mxu0 0
      %5578 = vmatmul.mubr.bf16.gmra.mxu0 %v5402
      %v5579 = vpop.f32.mrf.mxu0
      %v5580 = vadd.f32 0.0, %v5579
      %v5581 = vpop.f32.mrf.mxu0
      %v5582 = vpop.f32.mrf.mxu0
      %v5583 = vadd.f32 0.0, %v5582
      %v5584 = vpop.f32.mrf.mxu0
      %5585 = vmatprep.mubr.bf16.mxu0 0
      %5586 = vmatmul.mubr.bf16.gmra.mxu0 %v5403
      %v5587 = vpop.f32.mrf.mxu0
      %v5588 = vadd.f32 0.0, %v5587
      %v5589 = vpop.f32.mrf.mxu0
      %v5590 = vpop.f32.mrf.mxu0
      %v5591 = vadd.f32 0.0, %v5590
      %v5592 = vpop.f32.mrf.mxu0
      %5593 = vmatprep.mubr.bf16.mxu0 0
      %5594 = vmatmul.mubr.bf16.gmra.mxu0 %v5404
      %v5595 = vpop.f32.mrf.mxu0
      %v5596 = vadd.f32 0.0, %v5595
      %v5597 = vpop.f32.mrf.mxu0
      %v5598 = vpop.f32.mrf.mxu0
      %v5599 = vadd.f32 0.0, %v5598
      %v5600 = vpop.f32.mrf.mxu0
      %5601 = vmatprep.mubr.bf16.mxu0 0
      %5602 = vmatmul.mubr.bf16.gmra.mxu0 %v5405
      %v5603 = vpop.f32.mrf.mxu0
      %v5604 = vadd.f32 0.0, %v5603
      %v5605 = vpop.f32.mrf.mxu0
      %v5606 = vpop.f32.mrf.mxu0
      %v5607 = vadd.f32 0.0, %v5606
      %v5608 = vpop.f32.mrf.mxu0
      %5609 = vmatprep.mubr.bf16.mxu0 0
      %5610 = vmatmul.mubr.bf16.gmra.mxu0 %v5406
      %v5611 = vpop.f32.mrf.mxu0
      %v5612 = vadd.f32 0.0, %v5611
      %v5613 = vpop.f32.mrf.mxu0
      %v5614 = vpop.f32.mrf.mxu0
      %v5615 = vadd.f32 0.0, %v5614
      %v5616 = vpop.f32.mrf.mxu0
      %5617 = vmatprep.mubr.bf16.mxu0 0
      %5618 = vmatmul.mubr.bf16.gmra.mxu0 %v5407
      %v5619 = vpop.f32.mrf.mxu0
      %v5620 = vadd.f32 0.0, %v5619
      %v5621 = vpop.f32.mrf.mxu0
      %v5622 = vpop.f32.mrf.mxu0
      %v5623 = vadd.f32 0.0, %v5622
      %v5624 = vpop.f32.mrf.mxu0
      %5625 = vmatprep.mubr.bf16.mxu0 0
      %5626 = vmatmul.mubr.bf16.gmra.mxu0 %v5408
      %v5627 = vpop.f32.mrf.mxu0
      %v5628 = vadd.f32 0.0, %v5627
      %v5629 = vpop.f32.mrf.mxu0
      %v5630 = vpop.f32.mrf.mxu0
      %v5631 = vadd.f32 0.0, %v5630
      %v5632 = vpop.f32.mrf.mxu0
      %5633 = vdwg.mxu0
      %v5634 = vadd.f32 %v5184, %v5508
      %v5635 = vadd.f32 %v5185, %v5511
      %v5636 = vadd.f32 %v5186, %v5516
      %v5637 = vadd.f32 %v5187, %v5519
      %v5638 = vadd.f32 %v5188, %v5524
      %v5639 = vadd.f32 %v5189, %v5527
      %v5640 = vadd.f32 %v5190, %v5532
      %v5641 = vadd.f32 %v5191, %v5535
      %v5642 = vadd.f32 %v5192, %v5540
      %v5643 = vadd.f32 %v5193, %v5543
      %v5644 = vadd.f32 %v5194, %v5548
      %v5645 = vadd.f32 %v5195, %v5551
      %v5646 = vadd.f32 %v5196, %v5556
      %v5647 = vadd.f32 %v5197, %v5559
      %v5648 = vadd.f32 %v5198, %v5564
      %v5649 = vadd.f32 %v5199, %v5567
      %v5650 = vadd.f32 %v5200, %v5572
      %v5651 = vadd.f32 %v5201, %v5575
      %v5652 = vadd.f32 %v5202, %v5580
      %v5653 = vadd.f32 %v5203, %v5583
      %v5654 = vadd.f32 %v5204, %v5588
      %v5655 = vadd.f32 %v5205, %v5591
      %v5656 = vadd.f32 %v5206, %v5596
      %v5657 = vadd.f32 %v5207, %v5599
      %v5658 = vadd.f32 %v5208, %v5604
      %v5659 = vadd.f32 %v5209, %v5607
      %v5660 = vadd.f32 %v5210, %v5612
      %v5661 = vadd.f32 %v5211, %v5615
      %v5662 = vadd.f32 %v5212, %v5620
      %v5663 = vadd.f32 %v5213, %v5623
      %v5664 = vadd.f32 %v5214, %v5628
      %v5665 = vadd.f32 %v5215, %v5631
      %v5666 = vpack.c.bf16 %v5635, %v5634
      %v5667 = vpack.c.bf16 %v5637, %v5636
      %v5668 = vpack.c.bf16 %v5639, %v5638
      %v5669 = vpack.c.bf16 %v5641, %v5640
      %v5670 = vpack.c.bf16 %v5643, %v5642
      %v5671 = vpack.c.bf16 %v5645, %v5644
      %v5672 = vpack.c.bf16 %v5647, %v5646
      %v5673 = vpack.c.bf16 %v5649, %v5648
      %v5674 = vpack.c.bf16 %v5651, %v5650
      %v5675 = vpack.c.bf16 %v5653, %v5652
      %v5676 = vpack.c.bf16 %v5655, %v5654
      %v5677 = vpack.c.bf16 %v5657, %v5656
      %v5678 = vpack.c.bf16 %v5659, %v5658
      %v5679 = vpack.c.bf16 %v5661, %v5660
      %v5680 = vpack.c.bf16 %v5663, %v5662
      %v5681 = vpack.c.bf16 %v5665, %v5664
      %v5698 = vunpack.c.l.b16 %v5666
      %v5699 = vunpack.c.h.b16 %v5666
      %v5700 = vunpack.c.l.b16 %v5667
      %v5701 = vunpack.c.h.b16 %v5667
      %v5702 = vunpack.c.l.b16 %v5668
      %v5703 = vunpack.c.h.b16 %v5668
      %v5704 = vunpack.c.l.b16 %v5669
      %v5705 = vunpack.c.h.b16 %v5669
      %v5706 = vunpack.c.l.b16 %v5670
      %v5707 = vunpack.c.h.b16 %v5670
      %v5708 = vunpack.c.l.b16 %v5671
      %v5709 = vunpack.c.h.b16 %v5671
      %v5710 = vunpack.c.l.b16 %v5672
      %v5711 = vunpack.c.h.b16 %v5672
      %v5712 = vunpack.c.l.b16 %v5673
      %v5713 = vunpack.c.h.b16 %v5673
      %v5714 = vunpack.c.l.b16 %v5674
      %v5715 = vunpack.c.h.b16 %v5674
      %v5716 = vunpack.c.l.b16 %v5675
      %v5717 = vunpack.c.h.b16 %v5675
      %v5718 = vunpack.c.l.b16 %v5676
      %v5719 = vunpack.c.h.b16 %v5676
      %v5720 = vunpack.c.l.b16 %v5677
      %v5721 = vunpack.c.h.b16 %v5677
      %v5722 = vunpack.c.l.b16 %v5678
      %v5723 = vunpack.c.h.b16 %v5678
      %v5724 = vunpack.c.l.b16 %v5679
      %v5725 = vunpack.c.h.b16 %v5679
      %v5726 = vunpack.c.l.b16 %v5680
      %v5727 = vunpack.c.h.b16 %v5680
      %v5728 = vunpack.c.l.b16 %v5681
      %v5729 = vunpack.c.h.b16 %v5681
      %v5730 = vpack.c.b16 %v5698, %v5698
      %v5731 = vpack.c.b16 %v5699, %v5699
      %v5732 = vpack.c.b16 %v5700, %v5700
      %v5733 = vpack.c.b16 %v5701, %v5701
      %v5734 = vpack.c.b16 %v5702, %v5702
      %v5735 = vpack.c.b16 %v5703, %v5703
      %v5736 = vpack.c.b16 %v5704, %v5704
      %v5737 = vpack.c.b16 %v5705, %v5705
      %v5738 = vpack.c.b16 %v5706, %v5706
      %v5739 = vpack.c.b16 %v5707, %v5707
      %v5740 = vpack.c.b16 %v5708, %v5708
      %v5741 = vpack.c.b16 %v5709, %v5709
      %v5742 = vpack.c.b16 %v5710, %v5710
      %v5743 = vpack.c.b16 %v5711, %v5711
      %v5744 = vpack.c.b16 %v5712, %v5712
      %v5745 = vpack.c.b16 %v5713, %v5713
      %v5746 = vpack.c.b16 %v5714, %v5714
      %v5747 = vpack.c.b16 %v5715, %v5715
      %v5748 = vpack.c.b16 %v5716, %v5716
      %v5749 = vpack.c.b16 %v5717, %v5717
      %v5750 = vpack.c.b16 %v5718, %v5718
      %v5751 = vpack.c.b16 %v5719, %v5719
      %v5752 = vpack.c.b16 %v5720, %v5720
      %v5753 = vpack.c.b16 %v5721, %v5721
      %v5754 = vpack.c.b16 %v5722, %v5722
      %v5755 = vpack.c.b16 %v5723, %v5723
      %v5756 = vpack.c.b16 %v5724, %v5724
      %v5757 = vpack.c.b16 %v5725, %v5725
      %v5758 = vpack.c.b16 %v5726, %v5726
      %v5759 = vpack.c.b16 %v5727, %v5727
      %v5760 = vpack.c.b16 %v5728, %v5728
      %v5761 = vpack.c.b16 %v5729, %v5729
      %5794 = vst [vmem:[%s260] sm:$0xf] %v5730
      %5795 = vst [vmem:[%s260 + $0x4] sm:$0xf] %v5731
      %5796 = vst [vmem:[%s260 + $0x8] sm:$0xf] %v5732
      %5797 = vst [vmem:[%s260 + $0xc] sm:$0xf] %v5733
      %5798 = vst [vmem:[%s260 + $0x10] sm:$0xf] %v5734
      %5799 = vst [vmem:[%s260 + $0x14] sm:$0xf] %v5735
      %5800 = vst [vmem:[%s260 + $0x18] sm:$0xf] %v5736
      %5801 = vst [vmem:[%s260 + $0x1c] sm:$0xf] %v5737
      %5802 = vst [vmem:[%s260 + $0x20] sm:$0xf] %v5738
      %5803 = vst [vmem:[%s260 + $0x24] sm:$0xf] %v5739
      %5804 = vst [vmem:[%s260 + $0x28] sm:$0xf] %v5740
      %5805 = vst [vmem:[%s260 + $0x2c] sm:$0xf] %v5741
      %5806 = vst [vmem:[%s260 + $0x30] sm:$0xf] %v5742
      %5807 = vst [vmem:[%s260 + $0x34] sm:$0xf] %v5743
      %5808 = vst [vmem:[%s260 + $0x38] sm:$0xf] %v5744
      %5809 = vst [vmem:[%s260 + $0x3c] sm:$0xf] %v5745
      %5810 = vst [vmem:[%s260 + $0x40] sm:$0xf] %v5746
      %5811 = vst [vmem:[%s260 + $0x44] sm:$0xf] %v5747
      %5812 = vst [vmem:[%s260 + $0x48] sm:$0xf] %v5748
      %5813 = vst [vmem:[%s260 + $0x4c] sm:$0xf] %v5749
      %5814 = vst [vmem:[%s260 + $0x50] sm:$0xf] %v5750
      %5815 = vst [vmem:[%s260 + $0x54] sm:$0xf] %v5751
      %5816 = vst [vmem:[%s260 + $0x58] sm:$0xf] %v5752
      %5817 = vst [vmem:[%s260 + $0x5c] sm:$0xf] %v5753
      %5818 = vst [vmem:[%s260 + $0x60] sm:$0xf] %v5754
      %5819 = vst [vmem:[%s260 + $0x64] sm:$0xf] %v5755
      %5820 = vst [vmem:[%s260 + $0x68] sm:$0xf] %v5756
      %5821 = vst [vmem:[%s260 + $0x6c] sm:$0xf] %v5757
      %5822 = vst [vmem:[%s260 + $0x70] sm:$0xf] %v5758
      %5823 = vst [vmem:[%s260 + $0x74] sm:$0xf] %v5759
      %5824 = vst [vmem:[%s260 + $0x78] sm:$0xf] %v5760
      %5825 = vst [vmem:[%s260 + $0x7c] sm:$0xf] %v5761
      %v5826 = vadd.f32 %v5634, %v5635
      %v5827 = vadd.f32 %v5826, %v5636
      %v5828 = vadd.f32 %v5827, %v5637
      %v5829 = vadd.f32 %v5828, %v5638
      %v5830 = vadd.f32 %v5829, %v5639
      %v5831 = vadd.f32 %v5830, %v5640
      %v5832 = vadd.f32 %v5831, %v5641
      %v5833 = vadd.f32 %v5832, %v5642
      %v5834 = vadd.f32 %v5833, %v5643
      %v5835 = vadd.f32 %v5834, %v5644
      %v5836 = vadd.f32 %v5835, %v5645
      %v5837 = vadd.f32 %v5836, %v5646
      %v5838 = vadd.f32 %v5837, %v5647
      %v5839 = vadd.f32 %v5838, %v5648
      %v5840 = vadd.f32 %v5839, %v5649
      %v5841 = vadd.f32 %v5840, %v5650
      %v5842 = vadd.f32 %v5841, %v5651
      %v5843 = vadd.f32 %v5842, %v5652
      %v5844 = vadd.f32 %v5843, %v5653
      %v5845 = vadd.f32 %v5844, %v5654
      %v5846 = vadd.f32 %v5845, %v5655
      %v5847 = vadd.f32 %v5846, %v5656
      %v5848 = vadd.f32 %v5847, %v5657
      %v5849 = vadd.f32 %v5848, %v5658
      %v5850 = vadd.f32 %v5849, %v5659
      %v5851 = vadd.f32 %v5850, %v5660
      %v5852 = vadd.f32 %v5851, %v5661
      %v5853 = vadd.f32 %v5852, %v5662
      %v5854 = vadd.f32 %v5853, %v5663
      %v5855 = vadd.f32 %v5854, %v5664
      %v5856 = vadd.f32 %v5855, %v5665
      %v5857 = vrot.slane %v5856, 4
      %v5858 = vadd.f32 %v5856, %v5857
      %v5859 = vrot.slane %v5858, 2
      %v5860 = vadd.f32 %v5858, %v5859
      %v5861 = vrot.slane %v5860, 1
      %v5862 = vadd.f32 %v5860, %v5861
      %v5863 = vrcp.pop 256.0
      %v5864 = vmul.f32 %v5862, %v5863
      %v5865 = vsub.f32 %v5634, %v5864
      %v5866 = vsub.f32 %v5635, %v5864
      %v5867 = vsub.f32 %v5636, %v5864
      %v5868 = vsub.f32 %v5637, %v5864
      %v5869 = vsub.f32 %v5638, %v5864
      %v5870 = vsub.f32 %v5639, %v5864
      %v5871 = vsub.f32 %v5640, %v5864
      %v5872 = vsub.f32 %v5641, %v5864
      %v5873 = vsub.f32 %v5642, %v5864
      %v5874 = vsub.f32 %v5643, %v5864
      %v5875 = vsub.f32 %v5644, %v5864
      %v5876 = vsub.f32 %v5645, %v5864
      %v5877 = vsub.f32 %v5646, %v5864
      %v5878 = vsub.f32 %v5647, %v5864
      %v5879 = vsub.f32 %v5648, %v5864
      %v5880 = vsub.f32 %v5649, %v5864
      %v5881 = vsub.f32 %v5650, %v5864
      %v5882 = vsub.f32 %v5651, %v5864
      %v5883 = vsub.f32 %v5652, %v5864
      %v5884 = vsub.f32 %v5653, %v5864
      %v5885 = vsub.f32 %v5654, %v5864
      %v5886 = vsub.f32 %v5655, %v5864
      %v5887 = vsub.f32 %v5656, %v5864
      %v5888 = vsub.f32 %v5657, %v5864
      %v5889 = vsub.f32 %v5658, %v5864
      %v5890 = vsub.f32 %v5659, %v5864
      %v5891 = vsub.f32 %v5660, %v5864
      %v5892 = vsub.f32 %v5661, %v5864
      %v5893 = vsub.f32 %v5662, %v5864
      %v5894 = vsub.f32 %v5663, %v5864
      %v5895 = vsub.f32 %v5664, %v5864
      %v5896 = vsub.f32 %v5665, %v5864
      %v5897 = vmul.f32 %v5865, %v5865
      %v5898 = vmul.f32 %v5866, %v5866
      %v5899 = vmul.f32 %v5867, %v5867
      %v5900 = vmul.f32 %v5868, %v5868
      %v5901 = vmul.f32 %v5869, %v5869
      %v5902 = vmul.f32 %v5870, %v5870
      %v5903 = vmul.f32 %v5871, %v5871
      %v5904 = vmul.f32 %v5872, %v5872
      %v5905 = vmul.f32 %v5873, %v5873
      %v5906 = vmul.f32 %v5874, %v5874
      %v5907 = vmul.f32 %v5875, %v5875
      %v5908 = vmul.f32 %v5876, %v5876
      %v5909 = vmul.f32 %v5877, %v5877
      %v5910 = vmul.f32 %v5878, %v5878
      %v5911 = vmul.f32 %v5879, %v5879
      %v5912 = vmul.f32 %v5880, %v5880
      %v5913 = vmul.f32 %v5881, %v5881
      %v5914 = vmul.f32 %v5882, %v5882
      %v5915 = vmul.f32 %v5883, %v5883
      %v5916 = vmul.f32 %v5884, %v5884
      %v5917 = vmul.f32 %v5885, %v5885
      %v5918 = vmul.f32 %v5886, %v5886
      %v5919 = vmul.f32 %v5887, %v5887
      %v5920 = vmul.f32 %v5888, %v5888
      %v5921 = vmul.f32 %v5889, %v5889
      %v5922 = vmul.f32 %v5890, %v5890
      %v5923 = vmul.f32 %v5891, %v5891
      %v5924 = vmul.f32 %v5892, %v5892
      %v5925 = vmul.f32 %v5893, %v5893
      %v5926 = vmul.f32 %v5894, %v5894
      %v5927 = vmul.f32 %v5895, %v5895
      %v5928 = vmul.f32 %v5896, %v5896
      %v5929 = vadd.f32 %v5897, %v5898
      %v5930 = vadd.f32 %v5929, %v5899
      %v5931 = vadd.f32 %v5930, %v5900
      %v5932 = vadd.f32 %v5931, %v5901
      %v5933 = vadd.f32 %v5932, %v5902
      %v5934 = vadd.f32 %v5933, %v5903
      %v5935 = vadd.f32 %v5934, %v5904
      %v5936 = vadd.f32 %v5935, %v5905
      %v5937 = vadd.f32 %v5936, %v5906
      %v5938 = vadd.f32 %v5937, %v5907
      %v5939 = vadd.f32 %v5938, %v5908
      %v5940 = vadd.f32 %v5939, %v5909
      %v5941 = vadd.f32 %v5940, %v5910
      %v5942 = vadd.f32 %v5941, %v5911
      %v5943 = vadd.f32 %v5942, %v5912
      %v5944 = vadd.f32 %v5943, %v5913
      %v5945 = vadd.f32 %v5944, %v5914
      %v5946 = vadd.f32 %v5945, %v5915
      %v5947 = vadd.f32 %v5946, %v5916
      %v5948 = vadd.f32 %v5947, %v5917
      %v5949 = vadd.f32 %v5948, %v5918
      %v5950 = vadd.f32 %v5949, %v5919
      %v5951 = vadd.f32 %v5950, %v5920
      %v5952 = vadd.f32 %v5951, %v5921
      %v5953 = vadd.f32 %v5952, %v5922
      %v5954 = vadd.f32 %v5953, %v5923
      %v5955 = vadd.f32 %v5954, %v5924
      %v5956 = vadd.f32 %v5955, %v5925
      %v5957 = vadd.f32 %v5956, %v5926
      %v5958 = vadd.f32 %v5957, %v5927
      %v5959 = vadd.f32 %v5958, %v5928
      %v5960 = vrot.slane %v5959, 4
      %v5961 = vadd.f32 %v5959, %v5960
      %v5962 = vrot.slane %v5961, 2
      %v5963 = vadd.f32 %v5961, %v5962
      %v5964 = vrot.slane %v5963, 1
      %v5965 = vadd.f32 %v5963, %v5964
      %5966 = vst [vmem:[%s268] sm:$0x1] %v5862
      %5967 = vst [vmem:[%s268 + $0x1] sm:$0x1] %v5965
      %s5968 = smul.u32 16, %s22
      %p5969 = scmp.lt.s32.totalorder %s21, 1
      %s5970 = scalar_select %p5969, %s21, 1
      %p5971 = scmp.lt.s32.totalorder %s5968, 15
      %s5972 = scalar_select %p5971, %s5968, 15
      %s5973 = smul.addr %s5972, 2
      %s5974 = smul.addr %s5970, 32
      %s5975 = sadd.s32 %s5973, %s5974
      %s5976 = smul.addr %s5975, 4
      %s5977 = scalar_lea.vmem %s4, %s5976
      %p5978 = scmp.lt.s32.totalorder %s21, 1
      %s5979 = scalar_select %p5978, %s21, 1
      %p5980 = scmp.lt.s32.totalorder %s22, 0
      %s5981 = scalar_select %p5980, %s22, 0
      %s5982 = sadd.s32 %s5981, %s5979
      %s5983 = smul.addr %s5982, 2
      %s5984 = scalar_lea.vmem %s5, %s5983
      // Predicated region
      $region41: #{double_conv_forward.4} parent=35 // pred_check
        %p5985 = pneg %p138
      $region42: #{double_conv_forward.4} parent=35 // pred_check_branch
        %5987 = sbr.rel (%p5985) target = $region44
      $region43: #{double_conv_forward.4} parent=35 // pred_region
        %s5988 = smul.u32 16, %s22
      $region44: #{double_conv_forward.4} parent=35 // pred_fallthru
        _
      // Predicated region
      $region45: #{double_conv_forward.4} parent=35 // pred_check
        %p5989 = pneg %p166
      $region46: #{double_conv_forward.4} parent=35 // pred_check_branch
        %5991 = sbr.rel (%p5989) target = $region48
      $region47: #{double_conv_forward.4} parent=35 // pred_region
        _
      $region48: #{double_conv_forward.4} parent=35 // pred_fallthru
        _
    $region36: #{double_conv_forward.4} parent=5 // pred_fallthru
      _
    %p5992 = scmp.le.s32.totalorder 2, %s12
    // Predicated region
    $region49: #{double_conv_forward.4} parent=5 // pred_check
      %p5993 = pneg %p5992
    $region50: #{double_conv_forward.4} parent=5 // pred_check_branch
      %5995 = sbr.rel (%p5993) target = $region52
    $region51: #{double_conv_forward.4} parent=5 // pred_region
      %s5996 = ssub.s32 %s12, 2
      // Predicated region
      $region53: #{double_conv_forward.4} parent=51 // pred_check
        %p5997 = pneg %p144
      $region54: #{double_conv_forward.4} parent=51 // pred_check_branch
        %5999 = sbr.rel (%p5997) target = $region56
      $region55: #{double_conv_forward.4} parent=51 // pred_region
        %s6000 = smul.u32 16, %s24
        %p6001 = scmp.lt.s32.totalorder %s23, 1
        %s6002 = scalar_select %p6001, %s23, 1
        %p6003 = scmp.lt.s32.totalorder %s6000, 15
        %s6004 = scalar_select %p6003, %s6000, 15
        %s6005 = smul.addr %s6004, 2
        %s6006 = smul.addr %s6002, 32
        %s6007 = sadd.s32 %s6005, %s6006
        %s6008 = smul.addr %s6007, 4
        %s6009 = scalar_lea.vmem %s4, %s6008
      $region56: #{double_conv_forward.4} parent=51 // pred_fallthru
        _
      // Predicated region
      $region57: #{double_conv_forward.4} parent=51 // pred_check
        %p6010 = pneg %p172
      $region58: #{double_conv_forward.4} parent=51 // pred_check_branch
        %6012 = sbr.rel (%p6010) target = $region60
      $region59: #{double_conv_forward.4} parent=51 // pred_region
        %p6013 = scmp.lt.s32.totalorder %s23, 1
        %s6014 = scalar_select %p6013, %s23, 1
        %p6015 = scmp.lt.s32.totalorder %s24, 0
        %s6016 = scalar_select %p6015, %s24, 0
        %s6017 = sadd.s32 %s6016, %s6014
        %s6018 = smul.addr %s6017, 2
        %s6019 = scalar_lea.vmem %s5, %s6018
      $region60: #{double_conv_forward.4} parent=51 // pred_fallthru
        _
    $region52: #{double_conv_forward.4} parent=5 // pred_fallthru
      _
  $region6: #{double_conv_forward.4} parent=0 // loop_footer
    %s16 = sadd.s32 1, %s12
  $region7: #{double_conv_forward.4} parent=0 // loop_footer_branch
    %11 = sbr.rel target = $region3
  $region8: #{double_conv_forward.4} parent=0 // loop_exit
    _

</llo_original>
